<compile_context>
chip_gen: v6e
topology: v6e:2x2x1
jax: 0.10.0
libtpu: 0.0.40
codegen_flags: <defaults>
</compile_context>

<pallas_src>
import functools
import math

import jax
import jax.numpy as jnp
from jax.experimental import pallas as pl
from jax.experimental.pallas import tpu as pltpu

_BN_EPS = 1e-5


# ----------------------------- shared math -----------------------------

def _bn_relu(y, gamma, beta):
    # train-mode BatchNorm1d over the (B*V) row axis (biased variance), then ReLU.
    m = jnp.mean(y, axis=0, keepdims=True)
    v = jnp.mean(jnp.square(y - m), axis=0, keepdims=True)
    return jnp.maximum((y - m) * jax.lax.rsqrt(v + _BN_EPS) * gamma + beta, 0.0)


# ----------------------------- fused decoder kernel -----------------------------

def _make_decoder_kernel(plan):
    """plan: tuple of 'res' / 'proj' / 'final' in forward order (unrolled at trace time)."""
    NP = {'res': 8, 'proj': 4, 'final': 2}

    def kernel(*refs):
        x0_ref, sm_ref, sp_ref = refs[0], refs[1], refs[2]
        out_ref = refs[-1]
        wrefs = refs[3:-1]

        # block-diagonal reflect-shift permutation matrices (B*V, B*V), loaded once.
        sm = sm_ref[...]
        sp = sp_ref[...]

        # NOTE(v6e/v7x): casting the jnp.dot inputs to bf16 (keeping
        # preferred_element_type=f32) would run the MXU at full rate; kept in f32 here to
        # preserve the PyTorch module's forward numerics.
        def conv1(x2, w_ref, b_ref):
            return jnp.dot(x2, w_ref[...], preferred_element_type=jnp.float32) + b_ref[...]

        def conv3(x2, w_ref, b_ref):
            # k=3 'same' conv with reflect padding: shifted rows obtained in-kernel via two
            # tiny permutation matmuls (pure MXU, per-batch reflect baked into sm/sp).
            xm = jnp.dot(sm, x2, preferred_element_type=jnp.float32)   # x[v-1] (reflect)
            xp = jnp.dot(sp, x2, preferred_element_type=jnp.float32)   # x[v+1] (reflect)
            return (jnp.dot(xm, w_ref[0], preferred_element_type=jnp.float32)
                    + jnp.dot(x2, w_ref[1], preferred_element_type=jnp.float32)
                    + jnp.dot(xp, w_ref[2], preferred_element_type=jnp.float32)
                    + b_ref[...])

        x = x0_ref[...]                    # (B*V, latent)  -- already z + pe
        i = 0
        for kind in plan:                  # unrolled at trace time
            lp = wrefs[i:i + NP[kind]]
            i += NP[kind]
            if kind == 'res':              # ResBlock1D
                w1, b1, g1, be1, w2, b2, g2, be2 = lp
                identity = x
                h = _bn_relu(conv3(x, w1, b1), g1[...], be1[...])
                h = _bn_relu(conv3(h, w2, b2), g2[...], be2[...])
                x = h + identity           # skip after the second BN+ReLU (matches reference)
            elif kind == 'proj':           # ProjBlock1D
                w, b, g, be = lp
                x = _bn_relu(conv1(x, w, b), g[...], be[...])
            else:                          # proj_final (no norm / activation)
                w, b = lp
                x = conv1(x, w, b)
        out_ref[...] = x                   # (B*V, S*Rc*F)

    return kernel


# ----------------------------- CP reconstruction kernel -----------------------------

def _cp_kernel(ax_ref, by_ref, cz_ref, o_ref, *, Rc):
    # einsum('brif, brjf, brkf -> bfijk') for one batch b, lane-dense over (k, f):
    #   ax, by: (Rc, V, K) with K = V*F, lanes = (k, f), value replicated over k
    #   cz:     (Rc, K)    lanes = (k, f)
    #   o:      (V, V, K)  o[i, j, k*F + f]
    cz = cz_ref[...]                                             # (Rc, K)
    bc = by_ref[0] * cz[0:1, :]                                  # (V, K)
    acc = ax_ref[0][:, None, :] * bc[None, :, :]                 # (V, V, K) full 128-lane FMAs
    for r in range(1, Rc):                                       # Rc small, unrolled
        bc = by_ref[r] * cz[r:r + 1, :]
        acc = acc + ax_ref[r][:, None, :] * bc[None, :, :]
    o_ref[...] = acc


# ----------------------------- wrappers (glue) -----------------------------

def _reflect_shift_matrices(B, V):
    # xm[v] = x[|v-1|]  (reflect at v=0),  xp[v] = x[min(v+1, V-2 mirrored)]
    src_m = jnp.abs(jnp.arange(V) - 1)
    src_p = jnp.where(jnp.arange(V) < V - 1, jnp.arange(V) + 1, V - 2)
    sm = jax.nn.one_hot(src_m, V, dtype=jnp.float32)
    sp = jax.nn.one_hot(src_p, V, dtype=jnp.float32)
    eye_b = jnp.eye(B, dtype=jnp.float32)
    return jnp.kron(eye_b, sm), jnp.kron(eye_b, sp)              # (B*V, B*V) each


def _flatten_params(params, cfg):
    nd, nu, nb = cfg['num_down_blocks'], cfg['num_up_blocks'], cfg['num_bottlenecks']
    plan, flat = [], []

    def push_res(p):
        for c in (p['conv1'], p['conv2']):
            flat.extend([c['w'], c['b'], c['gamma'], c['beta']])
        plan.append('res')

    def push_proj(p):
        flat.extend([p['w'], p['b'], p['gamma'], p['beta']])
        plan.append('proj')

    for i in range(nd):
        push_res(params[f'block{i}'])
        push_proj(params[f'proj{i}'])
    for i in range(nb):
        push_res(params[f'bottleneck{i}'])
    for i in range(nu):
        push_proj(params[f'proj{nd + i}'])
        push_res(params[f'block{nd + i}'])
    flat.extend([params['proj_final']['w'], params['proj_final']['b']])
    plan.append('final')
    return tuple(plan), flat


def slim_cc_auto_decoder_forward(z, params, cfg):
    nd, nu, nb = cfg['num_down_blocks'], cfg['num_up_blocks'], cfg['num_bottlenecks']
    V, S, Rc, F = cfg['vox_reso'], cfg['spatial_dim'], cfg['Rc'], cfg['feat_dim']
    assert S == 3, "forward uses exactly three spatial factors (fvx, fvy, fvz)"
    B, C0 = z.shape
    Cf = S * Rc * F
    K = V * F

    # ---- XLA glue (layout/constant prep only) ----
    # pe_mode='add', cond_mode=None: x0[(b,v), :] = z[b, :] + pe[v, :]
    x0 = (z[:, None, :] + params['pe'][None, :, :]).reshape(B * V, C0)
    sm, sp = _reflect_shift_matrices(B, V)
    plan, flat = _flatten_params(params, cfg)

    # ---- single fused decoder pallas_call (everything VMEM-resident) ----
    dec = pl.pallas_call(
        _make_decoder_kernel(plan),
        out_shape=jax.ShapeDtypeStruct((B * V, Cf), jnp.float32),
    )(x0, sm, sp, *flat)

    # ---- CP reconstruction: grid=(B,), lane-dense output (last dim = V*F = 128) ----
    fv = dec.reshape(B, V, S, Rc, F)
    # (B, Rc, V, F) factor layouts; replicate fvx/fvy over k so in-kernel ops are full-lane.
    ax = jnp.tile(jnp.transpose(fv[:, :, 0], (0, 2, 1, 3)), (1, 1, 1, V))   # (B, Rc, V, K)
    by = jnp.tile(jnp.transpose(fv[:, :, 1], (0, 2, 1, 3)), (1, 1, 1, V))   # (B, Rc, V, K)
    cz = jnp.transpose(fv[:, :, 2], (0, 2, 1, 3)).reshape(B, Rc, K)         # (B, Rc, K)

    out = pl.pallas_call(
        functools.partial(_cp_kernel, Rc=Rc),
        grid=(B,),
        in_specs=[
            pl.BlockSpec((None, Rc, V, K), lambda b: (b, 0, 0, 0)),
            pl.BlockSpec((None, Rc, V, K), lambda b: (b, 0, 0, 0)),
            pl.BlockSpec((None, Rc, K), lambda b: (b, 0, 0)),
        ],
        out_specs=pl.BlockSpec((None, V, V, K), lambda b: (b, 0, 0, 0)),
        out_shape=jax.ShapeDtypeStruct((B, V, V, K), jnp.float32),
        compiler_params=pltpu.CompilerParams(dimension_semantics=("parallel",)),
    )(ax, by, cz)

    # cheap final layout fix in XLA (256 KiB): (B, V, V, V*F) -> (B, F, V, V, V) 'bfijk'
    grid = jnp.transpose(out.reshape(B, V, V, V, F), (0, 4, 1, 2, 3))
    return {'grid': grid}


# ----------------------------- pure-JAX reference (for correctness) -----------------------------

def _ref_forward(z, params, cfg):
    nd, nu, nb = cfg['num_down_blocks'], cfg['num_up_blocks'], cfg['num_bottlenecks']
    V, S, Rc, F = cfg['vox_reso'], cfg['spatial_dim'], cfg['Rc'], cfg['feat_dim']
    B = z.shape[0]
    HI = jax.lax.Precision.HIGHEST

    def bn_relu(y, p):
        m = jnp.mean(y, axis=(0, 1), keepdims=True)
        v = jnp.mean(jnp.square(y - m), axis=(0, 1), keepdims=True)
        return jnp.maximum((y - m) * jax.lax.rsqrt(v + _BN_EPS) * p['gamma'][0] + p['beta'][0], 0.0)

    def conv1(x, p):
        return jnp.einsum('bvc,cd->bvd', x, p['w'], precision=HI) + p['b'][0]

    def conv3(x, p):
        xp = jnp.pad(x, ((0, 0), (1, 1), (0, 0)), mode='reflect')
        return (jnp.einsum('bvc,cd->bvd', xp[:, :-2], p['w'][0], precision=HI)
                + jnp.einsum('bvc,cd->bvd', xp[:, 1:-1], p['w'][1], precision=HI)
                + jnp.einsum('bvc,cd->bvd', xp[:, 2:], p['w'][2], precision=HI)
                + p['b'][0])

    def res(x, p):
        h = bn_relu(conv3(x, p['conv1']), p['conv1'])
        h = bn_relu(conv3(h, p['conv2']), p['conv2'])
        return h + x

    def proj(x, p):
        return bn_relu(conv1(x, p), p)

    x = z[:, None, :] + params['pe'][None, :, :]
    for i in range(nd):
        x = res(x, params[f'block{i}'])
        x = proj(x, params[f'proj{i}'])
    for i in range(nb):
        x = res(x, params[f'bottleneck{i}'])
    for i in range(nu):
        x = proj(x, params[f'proj{nd + i}'])
        x = res(x, params[f'block{nd + i}'])
    x = conv1(x, params['proj_final'])

    fv = x.reshape(B, V, S, Rc, F)
    fvx = jnp.transpose(fv[:, :, 0], (0, 2, 1, 3))
    fvy = jnp.transpose(fv[:, :, 1], (0, 2, 1, 3))
    fvz = jnp.transpose(fv[:, :, 2], (0, 2, 1, 3))
    return {'grid': jnp.einsum('brif,brjf,brkf->bfijk', fvx, fvy, fvz, precision=HI)}


# ----------------------------- parameter init -----------------------------

def _init_conv1(key, cin, cout, bn=True):
    ks = jax.random.split(key, 4)
    p = {'w': jax.random.normal(ks[0], (cin, cout), jnp.float32) / math.sqrt(cin),
         'b': 0.1 * jax.random.normal(ks[1], (1, cout), jnp.float32)}
    if bn:
        p['gamma'] = 1.0 + 0.1 * jax.random.normal(ks[2], (1, cout), jnp.float32)
        p['beta'] = 0.1 * jax.random.normal(ks[3], (1, cout), jnp.float32)
    return p


def _init_conv3(key, cin, cout):
    ks = jax.random.split(key, 4)
    return {'w': jax.random.normal(ks[0], (3, cin, cout), jnp.float32) / math.sqrt(3 * cin),
            'b': 0.1 * jax.random.normal(ks[1], (1, cout), jnp.float32),
            'gamma': 1.0 + 0.1 * jax.random.normal(ks[2], (1, cout), jnp.float32),
            'beta': 0.1 * jax.random.normal(ks[3], (1, cout), jnp.float32)}


def _init_res(key, dim):
    k1, k2 = jax.random.split(key)
    return {'conv1': _init_conv3(k1, dim, dim), 'conv2': _init_conv3(k2, dim, dim)}


def make_positional_encoding(max_len, d_model):
    pos = jnp.arange(max_len, dtype=jnp.float32)[:, None]
    div = jnp.exp(jnp.arange(0, d_model, 2, dtype=jnp.float32) * (-math.log(10000.0) / d_model))
    pe = jnp.zeros((max_len, d_model), jnp.float32)
    pe = pe.at[:, 0::2].set(jnp.sin(pos * div))
    pe = pe.at[:, 1::2].set(jnp.cos(pos * div))
    return pe                                              # (max_len, d_model); pe[v, f]


def init_params(key, cfg):
    latent = cfg['latent_dim']
    nd, nu, nb = cfg['num_down_blocks'], cfg['num_up_blocks'], cfg['num_bottlenecks']
    params = {'pe': make_positional_encoding(128, latent)[:cfg['vox_reso']]}
    keys = iter(jax.random.split(key, 64))
    in_dim = latent
    for i in range(nd):
        params[f'block{i}'] = _init_res(next(keys), in_dim)
        params[f'proj{i}'] = _init_conv1(next(keys), in_dim, in_dim // 2)
        in_dim //= 2
    for i in range(nb):
        params[f'bottleneck{i}'] = _init_res(next(keys), in_dim)
    for i in range(nu):
        params[f'proj{nd + i}'] = _init_conv1(next(keys), in_dim, in_dim * 2)
        in_dim *= 2
        params[f'block{nd + i}'] = _init_res(next(keys), in_dim)
    params['proj_final'] = _init_conv1(
        next(keys), in_dim, cfg['spatial_dim'] * cfg['Rc'] * cfg['feat_dim'], bn=False)
    return params


# ----------------------------- main -----------------------------

if __name__ == "__main__":
    cfg = dict(latent_dim=64, num_down_blocks=2, num_up_blocks=2, num_bottlenecks=1,
               spatial_dim=3, Rc=4, vox_reso=16, feat_dim=8)
    key = jax.random.PRNGKey(0)
    kp, kz = jax.random.split(key)
    params = init_params(kp, cfg)
    z = jax.random.normal(kz, (2, cfg['latent_dim']), jnp.float32)

    fwd = jax.jit(functools.partial(slim_cc_auto_decoder_forward, cfg=cfg))
    out = fwd(z, params)
    grid = jax.block_until_ready(out['grid'])

    assert grid.shape == (2, cfg['feat_dim'], cfg['vox_reso'], cfg['vox_reso'], cfg['vox_reso'])
    assert bool(jnp.all(jnp.isfinite(grid)))

    ref = _ref_forward(z, params, cfg)['grid']
    err = float(jnp.max(jnp.abs(grid - ref)))
    assert bool(jnp.allclose(grid, ref, atol=1e-2, rtol=1e-2)), f"max abs err {err}"

    print("KERNEL_OK")
</pallas_src>

<mosaic_0001>
module attributes {stable_mosaic.version = 11 : i64} {
  func.func @_cp_kernel(%arg0: i32, %arg1: memref<1x4x16x128xf32, #tpu.memory_space<vmem>>, %arg2: memref<1x4x16x128xf32, #tpu.memory_space<vmem>>, %arg3: memref<1x4x128xf32, #tpu.memory_space<vmem>>, %arg4: memref<1x16x16x128xf32, #tpu.memory_space<vmem>>) attributes {dimension_semantics = [#tpu.dimension_semantics<parallel>], iteration_bounds = array<i64: 2>, scalar_prefetch = 0 : i64, scratch_operands = 0 : i64, tpu.core_type = #tpu.core_type<tc>, window_params = [{transform_indices = @transform_0, window_bounds = array<i64: 1, 4, 16, 128>}, {transform_indices = @transform_1, window_bounds = array<i64: 1, 4, 16, 128>}, {transform_indices = @transform_2, window_bounds = array<i64: 1, 4, 128>}, {transform_indices = @transform_3, window_bounds = array<i64: 1, 16, 16, 128>}]} {
    %c0 = arith.constant 0 : index
    %c0_0 = arith.constant 0 : index
    %c0_1 = arith.constant 0 : index
    %0 = vector.load %arg3[%c0, %c0_0, %c0_1] : memref<1x4x128xf32, #tpu.memory_space<vmem>>, vector<1x4x128xf32>
    %1 = vector.shape_cast %0 : vector<1x4x128xf32> to vector<4x128xf32>
    %c0_2 = arith.constant 0 : index
    %c0_3 = arith.constant 0 : index
    %c0_4 = arith.constant 0 : index
    %c0_5 = arith.constant 0 : index
    %2 = vector.load %arg2[%c0_2, %c0_3, %c0_4, %c0_5] : memref<1x4x16x128xf32, #tpu.memory_space<vmem>>, vector<1x1x16x128xf32>
    %3 = vector.shape_cast %2 : vector<1x1x16x128xf32> to vector<16x128xf32>
    %4 = vector.extract_strided_slice %1 {offsets = [0, 0], sizes = [1, 128], strides = [1, 1]} : vector<4x128xf32> to vector<1x128xf32>
    %5 = vector.broadcast %4 : vector<1x128xf32> to vector<16x128xf32>
    %6 = arith.mulf %3, %5 : vector<16x128xf32>
    %c0_6 = arith.constant 0 : index
    %c0_7 = arith.constant 0 : index
    %c0_8 = arith.constant 0 : index
    %c0_9 = arith.constant 0 : index
    %7 = vector.load %arg1[%c0_6, %c0_7, %c0_8, %c0_9] : memref<1x4x16x128xf32, #tpu.memory_space<vmem>>, vector<1x1x16x128xf32>
    %8 = vector.shape_cast %7 : vector<1x1x16x128xf32> to vector<16x128xf32>
    %9 = vector.shape_cast %8 : vector<16x128xf32> to vector<16x1x128xf32>
    %10 = vector.shape_cast %6 : vector<16x128xf32> to vector<1x16x128xf32>
    %11 = vector.broadcast %9 : vector<16x1x128xf32> to vector<16x16x128xf32>
    %12 = vector.broadcast %10 : vector<1x16x128xf32> to vector<16x16x128xf32>
    %13 = arith.mulf %11, %12 : vector<16x16x128xf32>
    %c0_10 = arith.constant 0 : index
    %c1 = arith.constant 1 : index
    %c0_11 = arith.constant 0 : index
    %c0_12 = arith.constant 0 : index
    %14 = vector.load %arg2[%c0_10, %c1, %c0_11, %c0_12] : memref<1x4x16x128xf32, #tpu.memory_space<vmem>>, vector<1x1x16x128xf32>
    %15 = vector.shape_cast %14 : vector<1x1x16x128xf32> to vector<16x128xf32>
    %16 = vector.extract_strided_slice %1 {offsets = [1, 0], sizes = [1, 128], strides = [1, 1]} : vector<4x128xf32> to vector<1x128xf32>
    %17 = vector.broadcast %16 : vector<1x128xf32> to vector<16x128xf32>
    %18 = arith.mulf %15, %17 : vector<16x128xf32>
    %c0_13 = arith.constant 0 : index
    %c1_14 = arith.constant 1 : index
    %c0_15 = arith.constant 0 : index
    %c0_16 = arith.constant 0 : index
    %19 = vector.load %arg1[%c0_13, %c1_14, %c0_15, %c0_16] : memref<1x4x16x128xf32, #tpu.memory_space<vmem>>, vector<1x1x16x128xf32>
    %20 = vector.shape_cast %19 : vector<1x1x16x128xf32> to vector<16x128xf32>
    %21 = vector.shape_cast %20 : vector<16x128xf32> to vector<16x1x128xf32>
    %22 = vector.shape_cast %18 : vector<16x128xf32> to vector<1x16x128xf32>
    %23 = vector.broadcast %21 : vector<16x1x128xf32> to vector<16x16x128xf32>
    %24 = vector.broadcast %22 : vector<1x16x128xf32> to vector<16x16x128xf32>
    %25 = arith.mulf %23, %24 : vector<16x16x128xf32>
    %26 = arith.addf %13, %25 : vector<16x16x128xf32>
    %c0_17 = arith.constant 0 : index
    %c2 = arith.constant 2 : index
    %c0_18 = arith.constant 0 : index
    %c0_19 = arith.constant 0 : index
    %27 = vector.load %arg2[%c0_17, %c2, %c0_18, %c0_19] : memref<1x4x16x128xf32, #tpu.memory_space<vmem>>, vector<1x1x16x128xf32>
    %28 = vector.shape_cast %27 : vector<1x1x16x128xf32> to vector<16x128xf32>
    %29 = vector.extract_strided_slice %1 {offsets = [2, 0], sizes = [1, 128], strides = [1, 1]} : vector<4x128xf32> to vector<1x128xf32>
    %30 = vector.broadcast %29 : vector<1x128xf32> to vector<16x128xf32>
    %31 = arith.mulf %28, %30 : vector<16x128xf32>
    %c0_20 = arith.constant 0 : index
    %c2_21 = arith.constant 2 : index
    %c0_22 = arith.constant 0 : index
    %c0_23 = arith.constant 0 : index
    %32 = vector.load %arg1[%c0_20, %c2_21, %c0_22, %c0_23] : memref<1x4x16x128xf32, #tpu.memory_space<vmem>>, vector<1x1x16x128xf32>
    %33 = vector.shape_cast %32 : vector<1x1x16x128xf32> to vector<16x128xf32>
    %34 = vector.shape_cast %33 : vector<16x128xf32> to vector<16x1x128xf32>
    %35 = vector.shape_cast %31 : vector<16x128xf32> to vector<1x16x128xf32>
    %36 = vector.broadcast %34 : vector<16x1x128xf32> to vector<16x16x128xf32>
    %37 = vector.broadcast %35 : vector<1x16x128xf32> to vector<16x16x128xf32>
    %38 = arith.mulf %36, %37 : vector<16x16x128xf32>
    %39 = arith.addf %26, %38 : vector<16x16x128xf32>
    %c0_24 = arith.constant 0 : index
    %c3 = arith.constant 3 : index
    %c0_25 = arith.constant 0 : index
    %c0_26 = arith.constant 0 : index
    %40 = vector.load %arg2[%c0_24, %c3, %c0_25, %c0_26] : memref<1x4x16x128xf32, #tpu.memory_space<vmem>>, vector<1x1x16x128xf32>
    %41 = vector.shape_cast %40 : vector<1x1x16x128xf32> to vector<16x128xf32>
    %42 = vector.extract_strided_slice %1 {offsets = [3, 0], sizes = [1, 128], strides = [1, 1]} : vector<4x128xf32> to vector<1x128xf32>
    %43 = vector.broadcast %42 : vector<1x128xf32> to vector<16x128xf32>
    %44 = arith.mulf %41, %43 : vector<16x128xf32>
    %c0_27 = arith.constant 0 : index
    %c3_28 = arith.constant 3 : index
    %c0_29 = arith.constant 0 : index
    %c0_30 = arith.constant 0 : index
    %45 = vector.load %arg1[%c0_27, %c3_28, %c0_29, %c0_30] : memref<1x4x16x128xf32, #tpu.memory_space<vmem>>, vector<1x1x16x128xf32>
    %46 = vector.shape_cast %45 : vector<1x1x16x128xf32> to vector<16x128xf32>
    %47 = vector.shape_cast %46 : vector<16x128xf32> to vector<16x1x128xf32>
    %48 = vector.shape_cast %44 : vector<16x128xf32> to vector<1x16x128xf32>
    %49 = vector.broadcast %47 : vector<16x1x128xf32> to vector<16x16x128xf32>
    %50 = vector.broadcast %48 : vector<1x16x128xf32> to vector<16x16x128xf32>
    %51 = arith.mulf %49, %50 : vector<16x16x128xf32>
    %52 = arith.addf %39, %51 : vector<16x16x128xf32>
    %c0_31 = arith.constant 0 : index
    %c0_32 = arith.constant 0 : index
    %c0_33 = arith.constant 0 : index
    %c0_34 = arith.constant 0 : index
    %53 = vector.load %arg4[%c0_31, %c0_32, %c0_33, %c0_34] : memref<1x16x16x128xf32, #tpu.memory_space<vmem>>, vector<1x16x16x128xf32>
    %54 = vector.shape_cast %53 : vector<1x16x16x128xf32> to vector<16x16x128xf32>
    %55 = vector.shape_cast %52 : vector<16x16x128xf32> to vector<1x16x16x128xf32>
    tpu.vector_store %arg4[%c0_31, %c0_32, %c0_33, %c0_34], %55 {strides = array<i32>} : memref<1x16x16x128xf32, #tpu.memory_space<vmem>>, vector<1x16x16x128xf32>,
    return
  }
  func.func @transform_0(%arg0: i32) -> (i32, i32, i32, i32) {
    %c0_i32 = arith.constant 0 : i32
    %c0_i32_0 = arith.constant 0 : i32
    %c0_i32_1 = arith.constant 0 : i32
    %c0_i32_2 = arith.constant 0 : i32
    return %arg0, %c0_i32, %c0_i32_0, %c0_i32_1 : i32, i32, i32, i32
  }
  func.func @transform_1(%arg0: i32) -> (i32, i32, i32, i32) {
    %c0_i32 = arith.constant 0 : i32
    %c0_i32_0 = arith.constant 0 : i32
    %c0_i32_1 = arith.constant 0 : i32
    %c0_i32_2 = arith.constant 0 : i32
    return %arg0, %c0_i32, %c0_i32_0, %c0_i32_1 : i32, i32, i32, i32
  }
  func.func @transform_2(%arg0: i32) -> (i32, i32, i32) {
    %c0_i32 = arith.constant 0 : i32
    %c0_i32_0 = arith.constant 0 : i32
    %c0_i32_1 = arith.constant 0 : i32
    return %arg0, %c0_i32, %c0_i32_0 : i32, i32, i32
  }
  func.func @transform_3(%arg0: i32) -> (i32, i32, i32, i32) {
    %c0_i32 = arith.constant 0 : i32
    %c0_i32_0 = arith.constant 0 : i32
    %c0_i32_1 = arith.constant 0 : i32
    %c0_i32_2 = arith.constant 0 : i32
    return %arg0, %c0_i32, %c0_i32_0, %c0_i32_1 : i32, i32, i32, i32
  }
}

module attributes {stable_mosaic.version = 11 : i64} {
  func.func @kernel(%arg0: memref<32x64xf32, #tpu.memory_space<vmem>>, %arg1: memref<32x32xf32, #tpu.memory_space<vmem>>, %arg2: memref<32x32xf32, #tpu.memory_space<vmem>>, %arg3: memref<3x64x64xf32, #tpu.memory_space<vmem>>, %arg4: memref<1x64xf32, #tpu.memory_space<vmem>>, %arg5: memref<1x64xf32, #tpu.memory_space<vmem>>, %arg6: memref<1x64xf32, #tpu.memory_space<vmem>>, %arg7: memref<3x64x64xf32, #tpu.memory_space<vmem>>, %arg8: memref<1x64xf32, #tpu.memory_space<vmem>>, %arg9: memref<1x64xf32, #tpu.memory_space<vmem>>, %arg10: memref<1x64xf32, #tpu.memory_space<vmem>>, %arg11: memref<64x32xf32, #tpu.memory_space<vmem>>, %arg12: memref<1x32xf32, #tpu.memory_space<vmem>>, %arg13: memref<1x32xf32, #tpu.memory_space<vmem>>, %arg14: memref<1x32xf32, #tpu.memory_space<vmem>>, %arg15: memref<3x32x32xf32, #tpu.memory_space<vmem>>, %arg16: memref<1x32xf32, #tpu.memory_space<vmem>>, %arg17: memref<1x32xf32, #tpu.memory_space<vmem>>, %arg18: memref<1x32xf32, #tpu.memory_space<vmem>>, %arg19: memref<3x32x32xf32, #tpu.memory_space<vmem>>, %arg20: memref<1x32xf32, #tpu.memory_space<vmem>>, %arg21: memref<1x32xf32, #tpu.memory_space<vmem>>, %arg22: memref<1x32xf32, #tpu.memory_space<vmem>>, %arg23: memref<32x16xf32, #tpu.memory_space<vmem>>, %arg24: memref<1x16xf32, #tpu.memory_space<vmem>>, %arg25: memref<1x16xf32, #tpu.memory_space<vmem>>, %arg26: memref<1x16xf32, #tpu.memory_space<vmem>>, %arg27: memref<3x16x16xf32, #tpu.memory_space<vmem>>, %arg28: memref<1x16xf32, #tpu.memory_space<vmem>>, %arg29: memref<1x16xf32, #tpu.memory_space<vmem>>, %arg30: memref<1x16xf32, #tpu.memory_space<vmem>>, %arg31: memref<3x16x16xf32, #tpu.memory_space<vmem>>, %arg32: memref<1x16xf32, #tpu.memory_space<vmem>>, %arg33: memref<1x16xf32, #tpu.memory_space<vmem>>, %arg34: memref<1x16xf32, #tpu.memory_space<vmem>>, %arg35: memref<16x32xf32, #tpu.memory_space<vmem>>, %arg36: memref<1x32xf32, #tpu.memory_space<vmem>>, %arg37: memref<1x32xf32, #tpu.memory_space<vmem>>, %arg38: memref<1x32xf32, #tpu.memory_space<vmem>>, %arg39: memref<3x32x32xf32, #tpu.memory_space<vmem>>, %arg40: memref<1x32xf32, #tpu.memory_space<vmem>>, %arg41: memref<1x32xf32, #tpu.memory_space<vmem>>, %arg42: memref<1x32xf32, #tpu.memory_space<vmem>>, %arg43: memref<3x32x32xf32, #tpu.memory_space<vmem>>, %arg44: memref<1x32xf32, #tpu.memory_space<vmem>>, %arg45: memref<1x32xf32, #tpu.memory_space<vmem>>, %arg46: memref<1x32xf32, #tpu.memory_space<vmem>>, %arg47: memref<32x64xf32, #tpu.memory_space<vmem>>, %arg48: memref<1x64xf32, #tpu.memory_space<vmem>>, %arg49: memref<1x64xf32, #tpu.memory_space<vmem>>, %arg50: memref<1x64xf32, #tpu.memory_space<vmem>>, %arg51: memref<3x64x64xf32, #tpu.memory_space<vmem>>, %arg52: memref<1x64xf32, #tpu.memory_space<vmem>>, %arg53: memref<1x64xf32, #tpu.memory_space<vmem>>, %arg54: memref<1x64xf32, #tpu.memory_space<vmem>>, %arg55: memref<3x64x64xf32, #tpu.memory_space<vmem>>, %arg56: memref<1x64xf32, #tpu.memory_space<vmem>>, %arg57: memref<1x64xf32, #tpu.memory_space<vmem>>, %arg58: memref<1x64xf32, #tpu.memory_space<vmem>>, %arg59: memref<64x96xf32, #tpu.memory_space<vmem>>, %arg60: memref<1x96xf32, #tpu.memory_space<vmem>>, %arg61: memref<32x96xf32, #tpu.memory_space<vmem>>) attributes {dimension_semantics = [], scalar_prefetch = 0 : i64, scratch_operands = 0 : i64, tpu.core_type = #tpu.core_type<tc>} {
    %c0 = arith.constant 0 : index
    %c0_0 = arith.constant 0 : index
    %0 = vector.load %arg1[%c0, %c0_0] : memref<32x32xf32, #tpu.memory_space<vmem>>, vector<32x32xf32>
    %c0_1 = arith.constant 0 : index
    %c0_2 = arith.constant 0 : index
    %1 = vector.load %arg2[%c0_1, %c0_2] : memref<32x32xf32, #tpu.memory_space<vmem>>, vector<32x32xf32>
    %c0_3 = arith.constant 0 : index
    %c0_4 = arith.constant 0 : index
    %2 = vector.load %arg0[%c0_3, %c0_4] : memref<32x64xf32, #tpu.memory_space<vmem>>, vector<32x64xf32>
    %cst = arith.constant dense<0.000000e+00> : vector<32x64xf32>
    %3 = tpu.matmul %0, %2, %cst {dimension_numbers = #tpu.dot_dimension_numbers<[1], [0], [0], [1], [0, 0, 1, 1], [], []>} : vector<32x32xf32>, vector<32x64xf32>, vector<32x64xf32> -> vector<32x64xf32>
    %cst_5 = arith.constant dense<0.000000e+00> : vector<32x64xf32>
    %4 = tpu.matmul %1, %2, %cst_5 {dimension_numbers = #tpu.dot_dimension_numbers<[1], [0], [0], [1], [0, 0, 1, 1], [], []>} : vector<32x32xf32>, vector<32x64xf32>, vector<32x64xf32> -> vector<32x64xf32>
    %c0_6 = arith.constant 0 : index
    %c0_7 = arith.constant 0 : index
    %c0_8 = arith.constant 0 : index
    %5 = vector.load %arg3[%c0_6, %c0_7, %c0_8] : memref<3x64x64xf32, #tpu.memory_space<vmem>>, vector<1x64x64xf32>
    %6 = vector.shape_cast %5 : vector<1x64x64xf32> to vector<64x64xf32>
    %cst_9 = arith.constant dense<0.000000e+00> : vector<32x64xf32>
    %7 = tpu.matmul %3, %6, %cst_9 {dimension_numbers = #tpu.dot_dimension_numbers<[1], [0], [0], [1], [0, 0, 1, 1], [], []>} : vector<32x64xf32>, vector<64x64xf32>, vector<32x64xf32> -> vector<32x64xf32>
    %c1 = arith.constant 1 : index
    %c0_10 = arith.constant 0 : index
    %c0_11 = arith.constant 0 : index
    %8 = vector.load %arg3[%c1, %c0_10, %c0_11] : memref<3x64x64xf32, #tpu.memory_space<vmem>>, vector<1x64x64xf32>
    %9 = vector.shape_cast %8 : vector<1x64x64xf32> to vector<64x64xf32>
    %cst_12 = arith.constant dense<0.000000e+00> : vector<32x64xf32>
    %10 = tpu.matmul %2, %9, %cst_12 {dimension_numbers = #tpu.dot_dimension_numbers<[1], [0], [0], [1], [0, 0, 1, 1], [], []>} : vector<32x64xf32>, vector<64x64xf32>, vector<32x64xf32> -> vector<32x64xf32>
    %11 = arith.addf %7, %10 : vector<32x64xf32>
    %c2 = arith.constant 2 : index
    %c0_13 = arith.constant 0 : index
    %c0_14 = arith.constant 0 : index
    %12 = vector.load %arg3[%c2, %c0_13, %c0_14] : memref<3x64x64xf32, #tpu.memory_space<vmem>>, vector<1x64x64xf32>
    %13 = vector.shape_cast %12 : vector<1x64x64xf32> to vector<64x64xf32>
    %cst_15 = arith.constant dense<0.000000e+00> : vector<32x64xf32>
    %14 = tpu.matmul %4, %13, %cst_15 {dimension_numbers = #tpu.dot_dimension_numbers<[1], [0], [0], [1], [0, 0, 1, 1], [], []>} : vector<32x64xf32>, vector<64x64xf32>, vector<32x64xf32> -> vector<32x64xf32>
    %15 = arith.addf %11, %14 : vector<32x64xf32>
    %c0_16 = arith.constant 0 : index
    %c0_17 = arith.constant 0 : index
    %16 = vector.load %arg4[%c0_16, %c0_17] : memref<1x64xf32, #tpu.memory_space<vmem>>, vector<1x64xf32>
    %17 = vector.broadcast %16 : vector<1x64xf32> to vector<32x64xf32>
    %18 = arith.addf %15, %17 : vector<32x64xf32>
    %c0_18 = arith.constant 0 : index
    %c0_19 = arith.constant 0 : index
    %19 = vector.load %arg5[%c0_18, %c0_19] : memref<1x64xf32, #tpu.memory_space<vmem>>, vector<1x64xf32>
    %c0_20 = arith.constant 0 : index
    %c0_21 = arith.constant 0 : index
    %20 = vector.load %arg6[%c0_20, %c0_21] : memref<1x64xf32, #tpu.memory_space<vmem>>, vector<1x64xf32>
    %cst_22 = arith.constant dense<0.000000e+00> : vector<64xf32>
    %21 = vector.multi_reduction <add>, %18, %cst_22 [0] : vector<32x64xf32> to vector<64xf32>
    %22 = vector.shape_cast %21 : vector<64xf32> to vector<1x64xf32>
    %cst_23 = arith.constant 3.200000e+01 : f32
    %23 = vector.broadcast %cst_23 : f32 to vector<1x64xf32>
    %24 = arith.divf %22, %23 : vector<1x64xf32>
    %25 = vector.broadcast %24 : vector<1x64xf32> to vector<32x64xf32>
    %26 = arith.subf %18, %25 : vector<32x64xf32>
    %27 = arith.mulf %26, %26 : vector<32x64xf32>
    %cst_24 = arith.constant dense<0.000000e+00> : vector<64xf32>
    %28 = vector.multi_reduction <add>, %27, %cst_24 [0] : vector<32x64xf32> to vector<64xf32>
    %29 = vector.shape_cast %28 : vector<64xf32> to vector<1x64xf32>
    %cst_25 = arith.constant 3.200000e+01 : f32
    %30 = vector.broadcast %cst_25 : f32 to vector<1x64xf32>
    %31 = arith.divf %29, %30 : vector<1x64xf32>
    %32 = vector.broadcast %24 : vector<1x64xf32> to vector<32x64xf32>
    %33 = arith.subf %18, %32 : vector<32x64xf32>
    %cst_26 = arith.constant 9.99999974E-6 : f32
    %34 = vector.broadcast %cst_26 : f32 to vector<1x64xf32>
    %35 = arith.addf %31, %34 : vector<1x64xf32>
    %36 = math.rsqrt %35 : vector<1x64xf32>
    %37 = vector.broadcast %36 : vector<1x64xf32> to vector<32x64xf32>
    %38 = arith.mulf %33, %37 : vector<32x64xf32>
    %39 = vector.broadcast %19 : vector<1x64xf32> to vector<32x64xf32>
    %40 = arith.mulf %38, %39 : vector<32x64xf32>
    %41 = vector.broadcast %20 : vector<1x64xf32> to vector<32x64xf32>
    %42 = arith.addf %40, %41 : vector<32x64xf32>
    %cst_27 = arith.constant 0.000000e+00 : f32
    %43 = vector.broadcast %cst_27 : f32 to vector<32x64xf32>
    %44 = arith.maximumf %42, %43 : vector<32x64xf32>
    %cst_28 = arith.constant dense<0.000000e+00> : vector<32x64xf32>
    %45 = tpu.matmul %0, %44, %cst_28 {dimension_numbers = #tpu.dot_dimension_numbers<[1], [0], [0], [1], [0, 0, 1, 1], [], []>} : vector<32x32xf32>, vector<32x64xf32>, vector<32x64xf32> -> vector<32x64xf32>
    %cst_29 = arith.constant dense<0.000000e+00> : vector<32x64xf32>
    %46 = tpu.matmul %1, %44, %cst_29 {dimension_numbers = #tpu.dot_dimension_numbers<[1], [0], [0], [1], [0, 0, 1, 1], [], []>} : vector<32x32xf32>, vector<32x64xf32>, vector<32x64xf32> -> vector<32x64xf32>
    %c0_30 = arith.constant 0 : index
    %c0_31 = arith.constant 0 : index
    %c0_32 = arith.constant 0 : index
    %47 = vector.load %arg7[%c0_30, %c0_31, %c0_32] : memref<3x64x64xf32, #tpu.memory_space<vmem>>, vector<1x64x64xf32>
    %48 = vector.shape_cast %47 : vector<1x64x64xf32> to vector<64x64xf32>
    %cst_33 = arith.constant dense<0.000000e+00> : vector<32x64xf32>
    %49 = tpu.matmul %45, %48, %cst_33 {dimension_numbers = #tpu.dot_dimension_numbers<[1], [0], [0], [1], [0, 0, 1, 1], [], []>} : vector<32x64xf32>, vector<64x64xf32>, vector<32x64xf32> -> vector<32x64xf32>
    %c1_34 = arith.constant 1 : index
    %c0_35 = arith.constant 0 : index
    %c0_36 = arith.constant 0 : index
    %50 = vector.load %arg7[%c1_34, %c0_35, %c0_36] : memref<3x64x64xf32, #tpu.memory_space<vmem>>, vector<1x64x64xf32>
    %51 = vector.shape_cast %50 : vector<1x64x64xf32> to vector<64x64xf32>
    %cst_37 = arith.constant dense<0.000000e+00> : vector<32x64xf32>
    %52 = tpu.matmul %44, %51, %cst_37 {dimension_numbers = #tpu.dot_dimension_numbers<[1], [0], [0], [1], [0, 0, 1, 1], [], []>} : vector<32x64xf32>, vector<64x64xf32>, vector<32x64xf32> -> vector<32x64xf32>
    %53 = arith.addf %49, %52 : vector<32x64xf32>
    %c2_38 = arith.constant 2 : index
    %c0_39 = arith.constant 0 : index
    %c0_40 = arith.constant 0 : index
    %54 = vector.load %arg7[%c2_38, %c0_39, %c0_40] : memref<3x64x64xf32, #tpu.memory_space<vmem>>, vector<1x64x64xf32>
    %55 = vector.shape_cast %54 : vector<1x64x64xf32> to vector<64x64xf32>
    %cst_41 = arith.constant dense<0.000000e+00> : vector<32x64xf32>
    %56 = tpu.matmul %46, %55, %cst_41 {dimension_numbers = #tpu.dot_dimension_numbers<[1], [0], [0], [1], [0, 0, 1, 1], [], []>} : vector<32x64xf32>, vector<64x64xf32>, vector<32x64xf32> -> vector<32x64xf32>
    %57 = arith.addf %53, %56 : vector<32x64xf32>
    %c0_42 = arith.constant 0 : index
    %c0_43 = arith.constant 0 : index
    %58 = vector.load %arg8[%c0_42, %c0_43] : memref<1x64xf32, #tpu.memory_space<vmem>>, vector<1x64xf32>
    %59 = vector.broadcast %58 : vector<1x64xf32> to vector<32x64xf32>
    %60 = arith.addf %57, %59 : vector<32x64xf32>
    %c0_44 = arith.constant 0 : index
    %c0_45 = arith.constant 0 : index
    %61 = vector.load %arg9[%c0_44, %c0_45] : memref<1x64xf32, #tpu.memory_space<vmem>>, vector<1x64xf32>
    %c0_46 = arith.constant 0 : index
    %c0_47 = arith.constant 0 : index
    %62 = vector.load %arg10[%c0_46, %c0_47] : memref<1x64xf32, #tpu.memory_space<vmem>>, vector<1x64xf32>
    %cst_48 = arith.constant dense<0.000000e+00> : vector<64xf32>
    %63 = vector.multi_reduction <add>, %60, %cst_48 [0] : vector<32x64xf32> to vector<64xf32>
    %64 = vector.shape_cast %63 : vector<64xf32> to vector<1x64xf32>
    %cst_49 = arith.constant 3.200000e+01 : f32
    %65 = vector.broadcast %cst_49 : f32 to vector<1x64xf32>
    %66 = arith.divf %64, %65 : vector<1x64xf32>
    %67 = vector.broadcast %66 : vector<1x64xf32> to vector<32x64xf32>
    %68 = arith.subf %60, %67 : vector<32x64xf32>
    %69 = arith.mulf %68, %68 : vector<32x64xf32>
    %cst_50 = arith.constant dense<0.000000e+00> : vector<64xf32>
    %70 = vector.multi_reduction <add>, %69, %cst_50 [0] : vector<32x64xf32> to vector<64xf32>
    %71 = vector.shape_cast %70 : vector<64xf32> to vector<1x64xf32>
    %cst_51 = arith.constant 3.200000e+01 : f32
    %72 = vector.broadcast %cst_51 : f32 to vector<1x64xf32>
    %73 = arith.divf %71, %72 : vector<1x64xf32>
    %74 = vector.broadcast %66 : vector<1x64xf32> to vector<32x64xf32>
    %75 = arith.subf %60, %74 : vector<32x64xf32>
    %cst_52 = arith.constant 9.99999974E-6 : f32
    %76 = vector.broadcast %cst_52 : f32 to vector<1x64xf32>
    %77 = arith.addf %73, %76 : vector<1x64xf32>
    %78 = math.rsqrt %77 : vector<1x64xf32>
    %79 = vector.broadcast %78 : vector<1x64xf32> to vector<32x64xf32>
    %80 = arith.mulf %75, %79 : vector<32x64xf32>
    %81 = vector.broadcast %61 : vector<1x64xf32> to vector<32x64xf32>
    %82 = arith.mulf %80, %81 : vector<32x64xf32>
    %83 = vector.broadcast %62 : vector<1x64xf32> to vector<32x64xf32>
    %84 = arith.addf %82, %83 : vector<32x64xf32>
    %cst_53 = arith.constant 0.000000e+00 : f32
    %85 = vector.broadcast %cst_53 : f32 to vector<32x64xf32>
    %86 = arith.maximumf %84, %85 : vector<32x64xf32>
    %87 = arith.addf %86, %2 : vector<32x64xf32>
    %c0_54 = arith.constant 0 : index
    %c0_55 = arith.constant 0 : index
    %88 = vector.load %arg11[%c0_54, %c0_55] : memref<64x32xf32, #tpu.memory_space<vmem>>, vector<64x32xf32>
    %cst_56 = arith.constant dense<0.000000e+00> : vector<32x32xf32>
    %89 = tpu.matmul %87, %88, %cst_56 {dimension_numbers = #tpu.dot_dimension_numbers<[1], [0], [0], [1], [0, 0, 1, 1], [], []>} : vector<32x64xf32>, vector<64x32xf32>, vector<32x32xf32> -> vector<32x32xf32>
    %c0_57 = arith.constant 0 : index
    %c0_58 = arith.constant 0 : index
    %90 = vector.load %arg12[%c0_57, %c0_58] : memref<1x32xf32, #tpu.memory_space<vmem>>, vector<1x32xf32>
    %91 = vector.broadcast %90 : vector<1x32xf32> to vector<32x32xf32>
    %92 = arith.addf %89, %91 : vector<32x32xf32>
    %c0_59 = arith.constant 0 : index
    %c0_60 = arith.constant 0 : index
    %93 = vector.load %arg13[%c0_59, %c0_60] : memref<1x32xf32, #tpu.memory_space<vmem>>, vector<1x32xf32>
    %c0_61 = arith.constant 0 : index
    %c0_62 = arith.constant 0 : index
    %94 = vector.load %arg14[%c0_61, %c0_62] : memref<1x32xf32, #tpu.memory_space<vmem>>, vector<1x32xf32>
    %cst_63 = arith.constant dense<0.000000e+00> : vector<32xf32>
    %95 = vector.multi_reduction <add>, %92, %cst_63 [0] : vector<32x32xf32> to vector<32xf32>
    %96 = vector.shape_cast %95 : vector<32xf32> to vector<1x32xf32>
    %cst_64 = arith.constant 3.200000e+01 : f32
    %97 = vector.broadcast %cst_64 : f32 to vector<1x32xf32>
    %98 = arith.divf %96, %97 : vector<1x32xf32>
    %99 = vector.broadcast %98 : vector<1x32xf32> to vector<32x32xf32>
    %100 = arith.subf %92, %99 : vector<32x32xf32>
    %101 = arith.mulf %100, %100 : vector<32x32xf32>
    %cst_65 = arith.constant dense<0.000000e+00> : vector<32xf32>
    %102 = vector.multi_reduction <add>, %101, %cst_65 [0] : vector<32x32xf32> to vector<32xf32>
    %103 = vector.shape_cast %102 : vector<32xf32> to vector<1x32xf32>
    %cst_66 = arith.constant 3.200000e+01 : f32
    %104 = vector.broadcast %cst_66 : f32 to vector<1x32xf32>
    %105 = arith.divf %103, %104 : vector<1x32xf32>
    %106 = vector.broadcast %98 : vector<1x32xf32> to vector<32x32xf32>
    %107 = arith.subf %92, %106 : vector<32x32xf32>
    %cst_67 = arith.constant 9.99999974E-6 : f32
    %108 = vector.broadcast %cst_67 : f32 to vector<1x32xf32>
    %109 = arith.addf %105, %108 : vector<1x32xf32>
    %110 = math.rsqrt %109 : vector<1x32xf32>
    %111 = vector.broadcast %110 : vector<1x32xf32> to vector<32x32xf32>
    %112 = arith.mulf %107, %111 : vector<32x32xf32>
    %113 = vector.broadcast %93 : vector<1x32xf32> to vector<32x32xf32>
    %114 = arith.mulf %112, %113 : vector<32x32xf32>
    %115 = vector.broadcast %94 : vector<1x32xf32> to vector<32x32xf32>
    %116 = arith.addf %114, %115 : vector<32x32xf32>
    %cst_68 = arith.constant 0.000000e+00 : f32
    %117 = vector.broadcast %cst_68 : f32 to vector<32x32xf32>
    %118 = arith.maximumf %116, %117 : vector<32x32xf32>
    %cst_69 = arith.constant dense<0.000000e+00> : vector<32x32xf32>
    %119 = tpu.matmul %0, %118, %cst_69 {dimension_numbers = #tpu.dot_dimension_numbers<[1], [0], [0], [1], [0, 0, 1, 1], [], []>} : vector<32x32xf32>, vector<32x32xf32>, vector<32x32xf32> -> vector<32x32xf32>
    %cst_70 = arith.constant dense<0.000000e+00> : vector<32x32xf32>
    %120 = tpu.matmul %1, %118, %cst_70 {dimension_numbers = #tpu.dot_dimension_numbers<[1], [0], [0], [1], [0, 0, 1, 1], [], []>} : vector<32x32xf32>, vector<32x32xf32>, vector<32x32xf32> -> vector<32x32xf32>
    %c0_71 = arith.constant 0 : index
    %c0_72 = arith.constant 0 : index
    %c0_73 = arith.constant 0 : index
    %121 = vector.load %arg15[%c0_71, %c0_72, %c0_73] : memref<3x32x32xf32, #tpu.memory_space<vmem>>, vector<1x32x32xf32>
    %122 = vector.shape_cast %121 : vector<1x32x32xf32> to vector<32x32xf32>
    %cst_74 = arith.constant dense<0.000000e+00> : vector<32x32xf32>
    %123 = tpu.matmul %119, %122, %cst_74 {dimension_numbers = #tpu.dot_dimension_numbers<[1], [0], [0], [1], [0, 0, 1, 1], [], []>} : vector<32x32xf32>, vector<32x32xf32>, vector<32x32xf32> -> vector<32x32xf32>
    %c1_75 = arith.constant 1 : index
    %c0_76 = arith.constant 0 : index
    %c0_77 = arith.constant 0 : index
    %124 = vector.load %arg15[%c1_75, %c0_76, %c0_77] : memref<3x32x32xf32, #tpu.memory_space<vmem>>, vector<1x32x32xf32>
    %125 = vector.shape_cast %124 : vector<1x32x32xf32> to vector<32x32xf32>
    %cst_78 = arith.constant dense<0.000000e+00> : vector<32x32xf32>
    %126 = tpu.matmul %118, %125, %cst_78 {dimension_numbers = #tpu.dot_dimension_numbers<[1], [0], [0], [1], [0, 0, 1, 1], [], []>} : vector<32x32xf32>, vector<32x32xf32>, vector<32x32xf32> -> vector<32x32xf32>
    %127 = arith.addf %123, %126 : vector<32x32xf32>
    %c2_79 = arith.constant 2 : index
    %c0_80 = arith.constant 0 : index
    %c0_81 = arith.constant 0 : index
    %128 = vector.load %arg15[%c2_79, %c0_80, %c0_81] : memref<3x32x32xf32, #tpu.memory_space<vmem>>, vector<1x32x32xf32>
    %129 = vector.shape_cast %128 : vector<1x32x32xf32> to vector<32x32xf32>
    %cst_82 = arith.constant dense<0.000000e+00> : vector<32x32xf32>
    %130 = tpu.matmul %120, %129, %cst_82 {dimension_numbers = #tpu.dot_dimension_numbers<[1], [0], [0], [1], [0, 0, 1, 1], [], []>} : vector<32x32xf32>, vector<32x32xf32>, vector<32x32xf32> -> vector<32x32xf32>
    %131 = arith.addf %127, %130 : vector<32x32xf32>
    %c0_83 = arith.constant 0 : index
    %c0_84 = arith.constant 0 : index
    %132 = vector.load %arg16[%c0_83, %c0_84] : memref<1x32xf32, #tpu.memory_space<vmem>>, vector<1x32xf32>
    %133 = vector.broadcast %132 : vector<1x32xf32> to vector<32x32xf32>
    %134 = arith.addf %131, %133 : vector<32x32xf32>
    %c0_85 = arith.constant 0 : index
    %c0_86 = arith.constant 0 : index
    %135 = vector.load %arg17[%c0_85, %c0_86] : memref<1x32xf32, #tpu.memory_space<vmem>>, vector<1x32xf32>
    %c0_87 = arith.constant 0 : index
    %c0_88 = arith.constant 0 : index
    %136 = vector.load %arg18[%c0_87, %c0_88] : memref<1x32xf32, #tpu.memory_space<vmem>>, vector<1x32xf32>
    %cst_89 = arith.constant dense<0.000000e+00> : vector<32xf32>
    %137 = vector.multi_reduction <add>, %134, %cst_89 [0] : vector<32x32xf32> to vector<32xf32>
    %138 = vector.shape_cast %137 : vector<32xf32> to vector<1x32xf32>
    %cst_90 = arith.constant 3.200000e+01 : f32
    %139 = vector.broadcast %cst_90 : f32 to vector<1x32xf32>
    %140 = arith.divf %138, %139 : vector<1x32xf32>
    %141 = vector.broadcast %140 : vector<1x32xf32> to vector<32x32xf32>
    %142 = arith.subf %134, %141 : vector<32x32xf32>
    %143 = arith.mulf %142, %142 : vector<32x32xf32>
    %cst_91 = arith.constant dense<0.000000e+00> : vector<32xf32>
    %144 = vector.multi_reduction <add>, %143, %cst_91 [0] : vector<32x32xf32> to vector<32xf32>
    %145 = vector.shape_cast %144 : vector<32xf32> to vector<1x32xf32>
    %cst_92 = arith.constant 3.200000e+01 : f32
    %146 = vector.broadcast %cst_92 : f32 to vector<1x32xf32>
    %147 = arith.divf %145, %146 : vector<1x32xf32>
    %148 = vector.broadcast %140 : vector<1x32xf32> to vector<32x32xf32>
    %149 = arith.subf %134, %148 : vector<32x32xf32>
    %cst_93 = arith.constant 9.99999974E-6 : f32
    %150 = vector.broadcast %cst_93 : f32 to vector<1x32xf32>
    %151 = arith.addf %147, %150 : vector<1x32xf32>
    %152 = math.rsqrt %151 : vector<1x32xf32>
    %153 = vector.broadcast %152 : vector<1x32xf32> to vector<32x32xf32>
    %154 = arith.mulf %149, %153 : vector<32x32xf32>
    %155 = vector.broadcast %135 : vector<1x32xf32> to vector<32x32xf32>
    %156 = arith.mulf %154, %155 : vector<32x32xf32>
    %157 = vector.broadcast %136 : vector<1x32xf32> to vector<32x32xf32>
    %158 = arith.addf %156, %157 : vector<32x32xf32>
    %cst_94 = arith.constant 0.000000e+00 : f32
    %159 = vector.broadcast %cst_94 : f32 to vector<32x32xf32>
    %160 = arith.maximumf %158, %159 : vector<32x32xf32>
    %cst_95 = arith.constant dense<0.000000e+00> : vector<32x32xf32>
    %161 = tpu.matmul %0, %160, %cst_95 {dimension_numbers = #tpu.dot_dimension_numbers<[1], [0], [0], [1], [0, 0, 1, 1], [], []>} : vector<32x32xf32>, vector<32x32xf32>, vector<32x32xf32> -> vector<32x32xf32>
    %cst_96 = arith.constant dense<0.000000e+00> : vector<32x32xf32>
    %162 = tpu.matmul %1, %160, %cst_96 {dimension_numbers = #tpu.dot_dimension_numbers<[1], [0], [0], [1], [0, 0, 1, 1], [], []>} : vector<32x32xf32>, vector<32x32xf32>, vector<32x32xf32> -> vector<32x32xf32>
    %c0_97 = arith.constant 0 : index
    %c0_98 = arith.constant 0 : index
    %c0_99 = arith.constant 0 : index
    %163 = vector.load %arg19[%c0_97, %c0_98, %c0_99] : memref<3x32x32xf32, #tpu.memory_space<vmem>>, vector<1x32x32xf32>
    %164 = vector.shape_cast %163 : vector<1x32x32xf32> to vector<32x32xf32>
    %cst_100 = arith.constant dense<0.000000e+00> : vector<32x32xf32>
    %165 = tpu.matmul %161, %164, %cst_100 {dimension_numbers = #tpu.dot_dimension_numbers<[1], [0], [0], [1], [0, 0, 1, 1], [], []>} : vector<32x32xf32>, vector<32x32xf32>, vector<32x32xf32> -> vector<32x32xf32>
    %c1_101 = arith.constant 1 : index
    %c0_102 = arith.constant 0 : index
    %c0_103 = arith.constant 0 : index
    %166 = vector.load %arg19[%c1_101, %c0_102, %c0_103] : memref<3x32x32xf32, #tpu.memory_space<vmem>>, vector<1x32x32xf32>
    %167 = vector.shape_cast %166 : vector<1x32x32xf32> to vector<32x32xf32>
    %cst_104 = arith.constant dense<0.000000e+00> : vector<32x32xf32>
    %168 = tpu.matmul %160, %167, %cst_104 {dimension_numbers = #tpu.dot_dimension_numbers<[1], [0], [0], [1], [0, 0, 1, 1], [], []>} : vector<32x32xf32>, vector<32x32xf32>, vector<32x32xf32> -> vector<32x32xf32>
    %169 = arith.addf %165, %168 : vector<32x32xf32>
    %c2_105 = arith.constant 2 : index
    %c0_106 = arith.constant 0 : index
    %c0_107 = arith.constant 0 : index
    %170 = vector.load %arg19[%c2_105, %c0_106, %c0_107] : memref<3x32x32xf32, #tpu.memory_space<vmem>>, vector<1x32x32xf32>
    %171 = vector.shape_cast %170 : vector<1x32x32xf32> to vector<32x32xf32>
    %cst_108 = arith.constant dense<0.000000e+00> : vector<32x32xf32>
    %172 = tpu.matmul %162, %171, %cst_108 {dimension_numbers = #tpu.dot_dimension_numbers<[1], [0], [0], [1], [0, 0, 1, 1], [], []>} : vector<32x32xf32>, vector<32x32xf32>, vector<32x32xf32> -> vector<32x32xf32>
    %173 = arith.addf %169, %172 : vector<32x32xf32>
    %c0_109 = arith.constant 0 : index
    %c0_110 = arith.constant 0 : index
    %174 = vector.load %arg20[%c0_109, %c0_110] : memref<1x32xf32, #tpu.memory_space<vmem>>, vector<1x32xf32>
    %175 = vector.broadcast %174 : vector<1x32xf32> to vector<32x32xf32>
    %176 = arith.addf %173, %175 : vector<32x32xf32>
    %c0_111 = arith.constant 0 : index
    %c0_112 = arith.constant 0 : index
    %177 = vector.load %arg21[%c0_111, %c0_112] : memref<1x32xf32, #tpu.memory_space<vmem>>, vector<1x32xf32>
    %c0_113 = arith.constant 0 : index
    %c0_114 = arith.constant 0 : index
    %178 = vector.load %arg22[%c0_113, %c0_114] : memref<1x32xf32, #tpu.memory_space<vmem>>, vector<1x32xf32>
    %cst_115 = arith.constant dense<0.000000e+00> : vector<32xf32>
    %179 = vector.multi_reduction <add>, %176, %cst_115 [0] : vector<32x32xf32> to vector<32xf32>
    %180 = vector.shape_cast %179 : vector<32xf32> to vector<1x32xf32>
    %cst_116 = arith.constant 3.200000e+01 : f32
    %181 = vector.broadcast %cst_116 : f32 to vector<1x32xf32>
    %182 = arith.divf %180, %181 : vector<1x32xf32>
    %183 = vector.broadcast %182 : vector<1x32xf32> to vector<32x32xf32>
    %184 = arith.subf %176, %183 : vector<32x32xf32>
    %185 = arith.mulf %184, %184 : vector<32x32xf32>
    %cst_117 = arith.constant dense<0.000000e+00> : vector<32xf32>
    %186 = vector.multi_reduction <add>, %185, %cst_117 [0] : vector<32x32xf32> to vector<32xf32>
    %187 = vector.shape_cast %186 : vector<32xf32> to vector<1x32xf32>
    %cst_118 = arith.constant 3.200000e+01 : f32
    %188 = vector.broadcast %cst_118 : f32 to vector<1x32xf32>
    %189 = arith.divf %187, %188 : vector<1x32xf32>
    %190 = vector.broadcast %182 : vector<1x32xf32> to vector<32x32xf32>
    %191 = arith.subf %176, %190 : vector<32x32xf32>
    %cst_119 = arith.constant 9.99999974E-6 : f32
    %192 = vector.broadcast %cst_119 : f32 to vector<1x32xf32>
    %193 = arith.addf %189, %192 : vector<1x32xf32>
    %194 = math.rsqrt %193 : vector<1x32xf32>
    %195 = vector.broadcast %194 : vector<1x32xf32> to vector<32x32xf32>
    %196 = arith.mulf %191, %195 : vector<32x32xf32>
    %197 = vector.broadcast %177 : vector<1x32xf32> to vector<32x32xf32>
    %198 = arith.mulf %196, %197 : vector<32x32xf32>
    %199 = vector.broadcast %178 : vector<1x32xf32> to vector<32x32xf32>
    %200 = arith.addf %198, %199 : vector<32x32xf32>
    %cst_120 = arith.constant 0.000000e+00 : f32
    %201 = vector.broadcast %cst_120 : f32 to vector<32x32xf32>
    %202 = arith.maximumf %200, %201 : vector<32x32xf32>
    %203 = arith.addf %202, %118 : vector<32x32xf32>
    %c0_121 = arith.constant 0 : index
    %c0_122 = arith.constant 0 : index
    %204 = vector.load %arg23[%c0_121, %c0_122] : memref<32x16xf32, #tpu.memory_space<vmem>>, vector<32x16xf32>
    %cst_123 = arith.constant dense<0.000000e+00> : vector<32x16xf32>
    %205 = tpu.matmul %203, %204, %cst_123 {dimension_numbers = #tpu.dot_dimension_numbers<[1], [0], [0], [1], [0, 0, 1, 1], [], []>} : vector<32x32xf32>, vector<32x16xf32>, vector<32x16xf32> -> vector<32x16xf32>
    %c0_124 = arith.constant 0 : index
    %c0_125 = arith.constant 0 : index
    %206 = vector.load %arg24[%c0_124, %c0_125] : memref<1x16xf32, #tpu.memory_space<vmem>>, vector<1x16xf32>
    %207 = vector.broadcast %206 : vector<1x16xf32> to vector<32x16xf32>
    %208 = arith.addf %205, %207 : vector<32x16xf32>
    %c0_126 = arith.constant 0 : index
    %c0_127 = arith.constant 0 : index
    %209 = vector.load %arg25[%c0_126, %c0_127] : memref<1x16xf32, #tpu.memory_space<vmem>>, vector<1x16xf32>
    %c0_128 = arith.constant 0 : index
    %c0_129 = arith.constant 0 : index
    %210 = vector.load %arg26[%c0_128, %c0_129] : memref<1x16xf32, #tpu.memory_space<vmem>>, vector<1x16xf32>
    %cst_130 = arith.constant dense<0.000000e+00> : vector<16xf32>
    %211 = vector.multi_reduction <add>, %208, %cst_130 [0] : vector<32x16xf32> to vector<16xf32>
    %212 = vector.shape_cast %211 : vector<16xf32> to vector<1x16xf32>
    %cst_131 = arith.constant 3.200000e+01 : f32
    %213 = vector.broadcast %cst_131 : f32 to vector<1x16xf32>
    %214 = arith.divf %212, %213 : vector<1x16xf32>
    %215 = vector.broadcast %214 : vector<1x16xf32> to vector<32x16xf32>
    %216 = arith.subf %208, %215 : vector<32x16xf32>
    %217 = arith.mulf %216, %216 : vector<32x16xf32>
    %cst_132 = arith.constant dense<0.000000e+00> : vector<16xf32>
    %218 = vector.multi_reduction <add>, %217, %cst_132 [0] : vector<32x16xf32> to vector<16xf32>
    %219 = vector.shape_cast %218 : vector<16xf32> to vector<1x16xf32>
    %cst_133 = arith.constant 3.200000e+01 : f32
    %220 = vector.broadcast %cst_133 : f32 to vector<1x16xf32>
    %221 = arith.divf %219, %220 : vector<1x16xf32>
    %222 = vector.broadcast %214 : vector<1x16xf32> to vector<32x16xf32>
    %223 = arith.subf %208, %222 : vector<32x16xf32>
    %cst_134 = arith.constant 9.99999974E-6 : f32
    %224 = vector.broadcast %cst_134 : f32 to vector<1x16xf32>
    %225 = arith.addf %221, %224 : vector<1x16xf32>
    %226 = math.rsqrt %225 : vector<1x16xf32>
    %227 = vector.broadcast %226 : vector<1x16xf32> to vector<32x16xf32>
    %228 = arith.mulf %223, %227 : vector<32x16xf32>
    %229 = vector.broadcast %209 : vector<1x16xf32> to vector<32x16xf32>
    %230 = arith.mulf %228, %229 : vector<32x16xf32>
    %231 = vector.broadcast %210 : vector<1x16xf32> to vector<32x16xf32>
    %232 = arith.addf %230, %231 : vector<32x16xf32>
    %cst_135 = arith.constant 0.000000e+00 : f32
    %233 = vector.broadcast %cst_135 : f32 to vector<32x16xf32>
    %234 = arith.maximumf %232, %233 : vector<32x16xf32>
    %cst_136 = arith.constant dense<0.000000e+00> : vector<32x16xf32>
    %235 = tpu.matmul %0, %234, %cst_136 {dimension_numbers = #tpu.dot_dimension_numbers<[1], [0], [0], [1], [0, 0, 1, 1], [], []>} : vector<32x32xf32>, vector<32x16xf32>, vector<32x16xf32> -> vector<32x16xf32>
    %cst_137 = arith.constant dense<0.000000e+00> : vector<32x16xf32>
    %236 = tpu.matmul %1, %234, %cst_137 {dimension_numbers = #tpu.dot_dimension_numbers<[1], [0], [0], [1], [0, 0, 1, 1], [], []>} : vector<32x32xf32>, vector<32x16xf32>, vector<32x16xf32> -> vector<32x16xf32>
    %c0_138 = arith.constant 0 : index
    %c0_139 = arith.constant 0 : index
    %c0_140 = arith.constant 0 : index
    %237 = vector.load %arg27[%c0_138, %c0_139, %c0_140] : memref<3x16x16xf32, #tpu.memory_space<vmem>>, vector<1x16x16xf32>
    %238 = vector.shape_cast %237 : vector<1x16x16xf32> to vector<16x16xf32>
    %cst_141 = arith.constant dense<0.000000e+00> : vector<32x16xf32>
    %239 = tpu.matmul %235, %238, %cst_141 {dimension_numbers = #tpu.dot_dimension_numbers<[1], [0], [0], [1], [0, 0, 1, 1], [], []>} : vector<32x16xf32>, vector<16x16xf32>, vector<32x16xf32> -> vector<32x16xf32>
    %c1_142 = arith.constant 1 : index
    %c0_143 = arith.constant 0 : index
    %c0_144 = arith.constant 0 : index
    %240 = vector.load %arg27[%c1_142, %c0_143, %c0_144] : memref<3x16x16xf32, #tpu.memory_space<vmem>>, vector<1x16x16xf32>
    %241 = vector.shape_cast %240 : vector<1x16x16xf32> to vector<16x16xf32>
    %cst_145 = arith.constant dense<0.000000e+00> : vector<32x16xf32>
    %242 = tpu.matmul %234, %241, %cst_145 {dimension_numbers = #tpu.dot_dimension_numbers<[1], [0], [0], [1], [0, 0, 1, 1], [], []>} : vector<32x16xf32>, vector<16x16xf32>, vector<32x16xf32> -> vector<32x16xf32>
    %243 = arith.addf %239, %242 : vector<32x16xf32>
    %c2_146 = arith.constant 2 : index
    %c0_147 = arith.constant 0 : index
    %c0_148 = arith.constant 0 : index
    %244 = vector.load %arg27[%c2_146, %c0_147, %c0_148] : memref<3x16x16xf32, #tpu.memory_space<vmem>>, vector<1x16x16xf32>
    %245 = vector.shape_cast %244 : vector<1x16x16xf32> to vector<16x16xf32>
    %cst_149 = arith.constant dense<0.000000e+00> : vector<32x16xf32>
    %246 = tpu.matmul %236, %245, %cst_149 {dimension_numbers = #tpu.dot_dimension_numbers<[1], [0], [0], [1], [0, 0, 1, 1], [], []>} : vector<32x16xf32>, vector<16x16xf32>, vector<32x16xf32> -> vector<32x16xf32>
    %247 = arith.addf %243, %246 : vector<32x16xf32>
    %c0_150 = arith.constant 0 : index
    %c0_151 = arith.constant 0 : index
    %248 = vector.load %arg28[%c0_150, %c0_151] : memref<1x16xf32, #tpu.memory_space<vmem>>, vector<1x16xf32>
    %249 = vector.broadcast %248 : vector<1x16xf32> to vector<32x16xf32>
    %250 = arith.addf %247, %249 : vector<32x16xf32>
    %c0_152 = arith.constant 0 : index
    %c0_153 = arith.constant 0 : index
    %251 = vector.load %arg29[%c0_152, %c0_153] : memref<1x16xf32, #tpu.memory_space<vmem>>, vector<1x16xf32>
    %c0_154 = arith.constant 0 : index
    %c0_155 = arith.constant 0 : index
    %252 = vector.load %arg30[%c0_154, %c0_155] : memref<1x16xf32, #tpu.memory_space<vmem>>, vector<1x16xf32>
    %cst_156 = arith.constant dense<0.000000e+00> : vector<16xf32>
    %253 = vector.multi_reduction <add>, %250, %cst_156 [0] : vector<32x16xf32> to vector<16xf32>
    %254 = vector.shape_cast %253 : vector<16xf32> to vector<1x16xf32>
    %cst_157 = arith.constant 3.200000e+01 : f32
    %255 = vector.broadcast %cst_157 : f32 to vector<1x16xf32>
    %256 = arith.divf %254, %255 : vector<1x16xf32>
    %257 = vector.broadcast %256 : vector<1x16xf32> to vector<32x16xf32>
    %258 = arith.subf %250, %257 : vector<32x16xf32>
    %259 = arith.mulf %258, %258 : vector<32x16xf32>
    %cst_158 = arith.constant dense<0.000000e+00> : vector<16xf32>
    %260 = vector.multi_reduction <add>, %259, %cst_158 [0] : vector<32x16xf32> to vector<16xf32>
    %261 = vector.shape_cast %260 : vector<16xf32> to vector<1x16xf32>
    %cst_159 = arith.constant 3.200000e+01 : f32
    %262 = vector.broadcast %cst_159 : f32 to vector<1x16xf32>
    %263 = arith.divf %261, %262 : vector<1x16xf32>
    %264 = vector.broadcast %256 : vector<1x16xf32> to vector<32x16xf32>
    %265 = arith.subf %250, %264 : vector<32x16xf32>
    %cst_160 = arith.constant 9.99999974E-6 : f32
    %266 = vector.broadcast %cst_160 : f32 to vector<1x16xf32>
    %267 = arith.addf %263, %266 : vector<1x16xf32>
    %268 = math.rsqrt %267 : vector<1x16xf32>
    %269 = vector.broadcast %268 : vector<1x16xf32> to vector<32x16xf32>
    %270 = arith.mulf %265, %269 : vector<32x16xf32>
    %271 = vector.broadcast %251 : vector<1x16xf32> to vector<32x16xf32>
    %272 = arith.mulf %270, %271 : vector<32x16xf32>
    %273 = vector.broadcast %252 : vector<1x16xf32> to vector<32x16xf32>
    %274 = arith.addf %272, %273 : vector<32x16xf32>
    %cst_161 = arith.constant 0.000000e+00 : f32
    %275 = vector.broadcast %cst_161 : f32 to vector<32x16xf32>
    %276 = arith.maximumf %274, %275 : vector<32x16xf32>
    %cst_162 = arith.constant dense<0.000000e+00> : vector<32x16xf32>
    %277 = tpu.matmul %0, %276, %cst_162 {dimension_numbers = #tpu.dot_dimension_numbers<[1], [0], [0], [1], [0, 0, 1, 1], [], []>} : vector<32x32xf32>, vector<32x16xf32>, vector<32x16xf32> -> vector<32x16xf32>
    %cst_163 = arith.constant dense<0.000000e+00> : vector<32x16xf32>
    %278 = tpu.matmul %1, %276, %cst_163 {dimension_numbers = #tpu.dot_dimension_numbers<[1], [0], [0], [1], [0, 0, 1, 1], [], []>} : vector<32x32xf32>, vector<32x16xf32>, vector<32x16xf32> -> vector<32x16xf32>
    %c0_164 = arith.constant 0 : index
    %c0_165 = arith.constant 0 : index
    %c0_166 = arith.constant 0 : index
    %279 = vector.load %arg31[%c0_164, %c0_165, %c0_166] : memref<3x16x16xf32, #tpu.memory_space<vmem>>, vector<1x16x16xf32>
    %280 = vector.shape_cast %279 : vector<1x16x16xf32> to vector<16x16xf32>
    %cst_167 = arith.constant dense<0.000000e+00> : vector<32x16xf32>
    %281 = tpu.matmul %277, %280, %cst_167 {dimension_numbers = #tpu.dot_dimension_numbers<[1], [0], [0], [1], [0, 0, 1, 1], [], []>} : vector<32x16xf32>, vector<16x16xf32>, vector<32x16xf32> -> vector<32x16xf32>
    %c1_168 = arith.constant 1 : index
    %c0_169 = arith.constant 0 : index
    %c0_170 = arith.constant 0 : index
    %282 = vector.load %arg31[%c1_168, %c0_169, %c0_170] : memref<3x16x16xf32, #tpu.memory_space<vmem>>, vector<1x16x16xf32>
    %283 = vector.shape_cast %282 : vector<1x16x16xf32> to vector<16x16xf32>
    %cst_171 = arith.constant dense<0.000000e+00> : vector<32x16xf32>
    %284 = tpu.matmul %276, %283, %cst_171 {dimension_numbers = #tpu.dot_dimension_numbers<[1], [0], [0], [1], [0, 0, 1, 1], [], []>} : vector<32x16xf32>, vector<16x16xf32>, vector<32x16xf32> -> vector<32x16xf32>
    %285 = arith.addf %281, %284 : vector<32x16xf32>
    %c2_172 = arith.constant 2 : index
    %c0_173 = arith.constant 0 : index
    %c0_174 = arith.constant 0 : index
    %286 = vector.load %arg31[%c2_172, %c0_173, %c0_174] : memref<3x16x16xf32, #tpu.memory_space<vmem>>, vector<1x16x16xf32>
    %287 = vector.shape_cast %286 : vector<1x16x16xf32> to vector<16x16xf32>
    %cst_175 = arith.constant dense<0.000000e+00> : vector<32x16xf32>
    %288 = tpu.matmul %278, %287, %cst_175 {dimension_numbers = #tpu.dot_dimension_numbers<[1], [0], [0], [1], [0, 0, 1, 1], [], []>} : vector<32x16xf32>, vector<16x16xf32>, vector<32x16xf32> -> vector<32x16xf32>
    %289 = arith.addf %285, %288 : vector<32x16xf32>
    %c0_176 = arith.constant 0 : index
    %c0_177 = arith.constant 0 : index
    %290 = vector.load %arg32[%c0_176, %c0_177] : memref<1x16xf32, #tpu.memory_space<vmem>>, vector<1x16xf32>
    %291 = vector.broadcast %290 : vector<1x16xf32> to vector<32x16xf32>
    %292 = arith.addf %289, %291 : vector<32x16xf32>
    %c0_178 = arith.constant 0 : index
    %c0_179 = arith.constant 0 : index
    %293 = vector.load %arg33[%c0_178, %c0_179] : memref<1x16xf32, #tpu.memory_space<vmem>>, vector<1x16xf32>
    %c0_180 = arith.constant 0 : index
    %c0_181 = arith.constant 0 : index
    %294 = vector.load %arg34[%c0_180, %c0_181] : memref<1x16xf32, #tpu.memory_space<vmem>>, vector<1x16xf32>
    %cst_182 = arith.constant dense<0.000000e+00> : vector<16xf32>
    %295 = vector.multi_reduction <add>, %292, %cst_182 [0] : vector<32x16xf32> to vector<16xf32>
    %296 = vector.shape_cast %295 : vector<16xf32> to vector<1x16xf32>
    %cst_183 = arith.constant 3.200000e+01 : f32
    %297 = vector.broadcast %cst_183 : f32 to vector<1x16xf32>
    %298 = arith.divf %296, %297 : vector<1x16xf32>
    %299 = vector.broadcast %298 : vector<1x16xf32> to vector<32x16xf32>
    %300 = arith.subf %292, %299 : vector<32x16xf32>
    %301 = arith.mulf %300, %300 : vector<32x16xf32>
    %cst_184 = arith.constant dense<0.000000e+00> : vector<16xf32>
    %302 = vector.multi_reduction <add>, %301, %cst_184 [0] : vector<32x16xf32> to vector<16xf32>
    %303 = vector.shape_cast %302 : vector<16xf32> to vector<1x16xf32>
    %cst_185 = arith.constant 3.200000e+01 : f32
    %304 = vector.broadcast %cst_185 : f32 to vector<1x16xf32>
    %305 = arith.divf %303, %304 : vector<1x16xf32>
    %306 = vector.broadcast %298 : vector<1x16xf32> to vector<32x16xf32>
    %307 = arith.subf %292, %306 : vector<32x16xf32>
    %cst_186 = arith.constant 9.99999974E-6 : f32
    %308 = vector.broadcast %cst_186 : f32 to vector<1x16xf32>
    %309 = arith.addf %305, %308 : vector<1x16xf32>
    %310 = math.rsqrt %309 : vector<1x16xf32>
    %311 = vector.broadcast %310 : vector<1x16xf32> to vector<32x16xf32>
    %312 = arith.mulf %307, %311 : vector<32x16xf32>
    %313 = vector.broadcast %293 : vector<1x16xf32> to vector<32x16xf32>
    %314 = arith.mulf %312, %313 : vector<32x16xf32>
    %315 = vector.broadcast %294 : vector<1x16xf32> to vector<32x16xf32>
    %316 = arith.addf %314, %315 : vector<32x16xf32>
    %cst_187 = arith.constant 0.000000e+00 : f32
    %317 = vector.broadcast %cst_187 : f32 to vector<32x16xf32>
    %318 = arith.maximumf %316, %317 : vector<32x16xf32>
    %319 = arith.addf %318, %234 : vector<32x16xf32>
    %c0_188 = arith.constant 0 : index
    %c0_189 = arith.constant 0 : index
    %320 = vector.load %arg35[%c0_188, %c0_189] : memref<16x32xf32, #tpu.memory_space<vmem>>, vector<16x32xf32>
    %cst_190 = arith.constant dense<0.000000e+00> : vector<32x32xf32>
    %321 = tpu.matmul %319, %320, %cst_190 {dimension_numbers = #tpu.dot_dimension_numbers<[1], [0], [0], [1], [0, 0, 1, 1], [], []>} : vector<32x16xf32>, vector<16x32xf32>, vector<32x32xf32> -> vector<32x32xf32>
    %c0_191 = arith.constant 0 : index
    %c0_192 = arith.constant 0 : index
    %322 = vector.load %arg36[%c0_191, %c0_192] : memref<1x32xf32, #tpu.memory_space<vmem>>, vector<1x32xf32>
    %323 = vector.broadcast %322 : vector<1x32xf32> to vector<32x32xf32>
    %324 = arith.addf %321, %323 : vector<32x32xf32>
    %c0_193 = arith.constant 0 : index
    %c0_194 = arith.constant 0 : index
    %325 = vector.load %arg37[%c0_193, %c0_194] : memref<1x32xf32, #tpu.memory_space<vmem>>, vector<1x32xf32>
    %c0_195 = arith.constant 0 : index
    %c0_196 = arith.constant 0 : index
    %326 = vector.load %arg38[%c0_195, %c0_196] : memref<1x32xf32, #tpu.memory_space<vmem>>, vector<1x32xf32>
    %cst_197 = arith.constant dense<0.000000e+00> : vector<32xf32>
    %327 = vector.multi_reduction <add>, %324, %cst_197 [0] : vector<32x32xf32> to vector<32xf32>
    %328 = vector.shape_cast %327 : vector<32xf32> to vector<1x32xf32>
    %cst_198 = arith.constant 3.200000e+01 : f32
    %329 = vector.broadcast %cst_198 : f32 to vector<1x32xf32>
    %330 = arith.divf %328, %329 : vector<1x32xf32>
    %331 = vector.broadcast %330 : vector<1x32xf32> to vector<32x32xf32>
    %332 = arith.subf %324, %331 : vector<32x32xf32>
    %333 = arith.mulf %332, %332 : vector<32x32xf32>
    %cst_199 = arith.constant dense<0.000000e+00> : vector<32xf32>
    %334 = vector.multi_reduction <add>, %333, %cst_199 [0] : vector<32x32xf32> to vector<32xf32>
    %335 = vector.shape_cast %334 : vector<32xf32> to vector<1x32xf32>
    %cst_200 = arith.constant 3.200000e+01 : f32
    %336 = vector.broadcast %cst_200 : f32 to vector<1x32xf32>
    %337 = arith.divf %335, %336 : vector<1x32xf32>
    %338 = vector.broadcast %330 : vector<1x32xf32> to vector<32x32xf32>
    %339 = arith.subf %324, %338 : vector<32x32xf32>
    %cst_201 = arith.constant 9.99999974E-6 : f32
    %340 = vector.broadcast %cst_201 : f32 to vector<1x32xf32>
    %341 = arith.addf %337, %340 : vector<1x32xf32>
    %342 = math.rsqrt %341 : vector<1x32xf32>
    %343 = vector.broadcast %342 : vector<1x32xf32> to vector<32x32xf32>
    %344 = arith.mulf %339, %343 : vector<32x32xf32>
    %345 = vector.broadcast %325 : vector<1x32xf32> to vector<32x32xf32>
    %346 = arith.mulf %344, %345 : vector<32x32xf32>
    %347 = vector.broadcast %326 : vector<1x32xf32> to vector<32x32xf32>
    %348 = arith.addf %346, %347 : vector<32x32xf32>
    %cst_202 = arith.constant 0.000000e+00 : f32
    %349 = vector.broadcast %cst_202 : f32 to vector<32x32xf32>
    %350 = arith.maximumf %348, %349 : vector<32x32xf32>
    %cst_203 = arith.constant dense<0.000000e+00> : vector<32x32xf32>
    %351 = tpu.matmul %0, %350, %cst_203 {dimension_numbers = #tpu.dot_dimension_numbers<[1], [0], [0], [1], [0, 0, 1, 1], [], []>} : vector<32x32xf32>, vector<32x32xf32>, vector<32x32xf32> -> vector<32x32xf32>
    %cst_204 = arith.constant dense<0.000000e+00> : vector<32x32xf32>
    %352 = tpu.matmul %1, %350, %cst_204 {dimension_numbers = #tpu.dot_dimension_numbers<[1], [0], [0], [1], [0, 0, 1, 1], [], []>} : vector<32x32xf32>, vector<32x32xf32>, vector<32x32xf32> -> vector<32x32xf32>
    %c0_205 = arith.constant 0 : index
    %c0_206 = arith.constant 0 : index
    %c0_207 = arith.constant 0 : index
    %353 = vector.load %arg39[%c0_205, %c0_206, %c0_207] : memref<3x32x32xf32, #tpu.memory_space<vmem>>, vector<1x32x32xf32>
    %354 = vector.shape_cast %353 : vector<1x32x32xf32> to vector<32x32xf32>
    %cst_208 = arith.constant dense<0.000000e+00> : vector<32x32xf32>
    %355 = tpu.matmul %351, %354, %cst_208 {dimension_numbers = #tpu.dot_dimension_numbers<[1], [0], [0], [1], [0, 0, 1, 1], [], []>} : vector<32x32xf32>, vector<32x32xf32>, vector<32x32xf32> -> vector<32x32xf32>
    %c1_209 = arith.constant 1 : index
    %c0_210 = arith.constant 0 : index
    %c0_211 = arith.constant 0 : index
    %356 = vector.load %arg39[%c1_209, %c0_210, %c0_211] : memref<3x32x32xf32, #tpu.memory_space<vmem>>, vector<1x32x32xf32>
    %357 = vector.shape_cast %356 : vector<1x32x32xf32> to vector<32x32xf32>
    %cst_212 = arith.constant dense<0.000000e+00> : vector<32x32xf32>
    %358 = tpu.matmul %350, %357, %cst_212 {dimension_numbers = #tpu.dot_dimension_numbers<[1], [0], [0], [1], [0, 0, 1, 1], [], []>} : vector<32x32xf32>, vector<32x32xf32>, vector<32x32xf32> -> vector<32x32xf32>
    %359 = arith.addf %355, %358 : vector<32x32xf32>
    %c2_213 = arith.constant 2 : index
    %c0_214 = arith.constant 0 : index
    %c0_215 = arith.constant 0 : index
    %360 = vector.load %arg39[%c2_213, %c0_214, %c0_215] : memref<3x32x32xf32, #tpu.memory_space<vmem>>, vector<1x32x32xf32>
    %361 = vector.shape_cast %360 : vector<1x32x32xf32> to vector<32x32xf32>
    %cst_216 = arith.constant dense<0.000000e+00> : vector<32x32xf32>
    %362 = tpu.matmul %352, %361, %cst_216 {dimension_numbers = #tpu.dot_dimension_numbers<[1], [0], [0], [1], [0, 0, 1, 1], [], []>} : vector<32x32xf32>, vector<32x32xf32>, vector<32x32xf32> -> vector<32x32xf32>
    %363 = arith.addf %359, %362 : vector<32x32xf32>
    %c0_217 = arith.constant 0 : index
    %c0_218 = arith.constant 0 : index
    %364 = vector.load %arg40[%c0_217, %c0_218] : memref<1x32xf32, #tpu.memory_space<vmem>>, vector<1x32xf32>
    %365 = vector.broadcast %364 : vector<1x32xf32> to vector<32x32xf32>
    %366 = arith.addf %363, %365 : vector<32x32xf32>
    %c0_219 = arith.constant 0 : index
    %c0_220 = arith.constant 0 : index
    %367 = vector.load %arg41[%c0_219, %c0_220] : memref<1x32xf32, #tpu.memory_space<vmem>>, vector<1x32xf32>
    %c0_221 = arith.constant 0 : index
    %c0_222 = arith.constant 0 : index
    %368 = vector.load %arg42[%c0_221, %c0_222] : memref<1x32xf32, #tpu.memory_space<vmem>>, vector<1x32xf32>
    %cst_223 = arith.constant dense<0.000000e+00> : vector<32xf32>
    %369 = vector.multi_reduction <add>, %366, %cst_223 [0] : vector<32x32xf32> to vector<32xf32>
    %370 = vector.shape_cast %369 : vector<32xf32> to vector<1x32xf32>
    %cst_224 = arith.constant 3.200000e+01 : f32
    %371 = vector.broadcast %cst_224 : f32 to vector<1x32xf32>
    %372 = arith.divf %370, %371 : vector<1x32xf32>
    %373 = vector.broadcast %372 : vector<1x32xf32> to vector<32x32xf32>
    %374 = arith.subf %366, %373 : vector<32x32xf32>
    %375 = arith.mulf %374, %374 : vector<32x32xf32>
    %cst_225 = arith.constant dense<0.000000e+00> : vector<32xf32>
    %376 = vector.multi_reduction <add>, %375, %cst_225 [0] : vector<32x32xf32> to vector<32xf32>
    %377 = vector.shape_cast %376 : vector<32xf32> to vector<1x32xf32>
    %cst_226 = arith.constant 3.200000e+01 : f32
    %378 = vector.broadcast %cst_226 : f32 to vector<1x32xf32>
    %379 = arith.divf %377, %378 : vector<1x32xf32>
    %380 = vector.broadcast %372 : vector<1x32xf32> to vector<32x32xf32>
    %381 = arith.subf %366, %380 : vector<32x32xf32>
    %cst_227 = arith.constant 9.99999974E-6 : f32
    %382 = vector.broadcast %cst_227 : f32 to vector<1x32xf32>
    %383 = arith.addf %379, %382 : vector<1x32xf32>
    %384 = math.rsqrt %383 : vector<1x32xf32>
    %385 = vector.broadcast %384 : vector<1x32xf32> to vector<32x32xf32>
    %386 = arith.mulf %381, %385 : vector<32x32xf32>
    %387 = vector.broadcast %367 : vector<1x32xf32> to vector<32x32xf32>
    %388 = arith.mulf %386, %387 : vector<32x32xf32>
    %389 = vector.broadcast %368 : vector<1x32xf32> to vector<32x32xf32>
    %390 = arith.addf %388, %389 : vector<32x32xf32>
    %cst_228 = arith.constant 0.000000e+00 : f32
    %391 = vector.broadcast %cst_228 : f32 to vector<32x32xf32>
    %392 = arith.maximumf %390, %391 : vector<32x32xf32>
    %cst_229 = arith.constant dense<0.000000e+00> : vector<32x32xf32>
    %393 = tpu.matmul %0, %392, %cst_229 {dimension_numbers = #tpu.dot_dimension_numbers<[1], [0], [0], [1], [0, 0, 1, 1], [], []>} : vector<32x32xf32>, vector<32x32xf32>, vector<32x32xf32> -> vector<32x32xf32>
    %cst_230 = arith.constant dense<0.000000e+00> : vector<32x32xf32>
    %394 = tpu.matmul %1, %392, %cst_230 {dimension_numbers = #tpu.dot_dimension_numbers<[1], [0], [0], [1], [0, 0, 1, 1], [], []>} : vector<32x32xf32>, vector<32x32xf32>, vector<32x32xf32> -> vector<32x32xf32>
    %c0_231 = arith.constant 0 : index
    %c0_232 = arith.constant 0 : index
    %c0_233 = arith.constant 0 : index
    %395 = vector.load %arg43[%c0_231, %c0_232, %c0_233] : memref<3x32x32xf32, #tpu.memory_space<vmem>>, vector<1x32x32xf32>
    %396 = vector.shape_cast %395 : vector<1x32x32xf32> to vector<32x32xf32>
    %cst_234 = arith.constant dense<0.000000e+00> : vector<32x32xf32>
    %397 = tpu.matmul %393, %396, %cst_234 {dimension_numbers = #tpu.dot_dimension_numbers<[1], [0], [0], [1], [0, 0, 1, 1], [], []>} : vector<32x32xf32>, vector<32x32xf32>, vector<32x32xf32> -> vector<32x32xf32>
    %c1_235 = arith.constant 1 : index
    %c0_236 = arith.constant 0 : index
    %c0_237 = arith.constant 0 : index
    %398 = vector.load %arg43[%c1_235, %c0_236, %c0_237] : memref<3x32x32xf32, #tpu.memory_space<vmem>>, vector<1x32x32xf32>
    %399 = vector.shape_cast %398 : vector<1x32x32xf32> to vector<32x32xf32>
    %cst_238 = arith.constant dense<0.000000e+00> : vector<32x32xf32>
    %400 = tpu.matmul %392, %399, %cst_238 {dimension_numbers = #tpu.dot_dimension_numbers<[1], [0], [0], [1], [0, 0, 1, 1], [], []>} : vector<32x32xf32>, vector<32x32xf32>, vector<32x32xf32> -> vector<32x32xf32>
    %401 = arith.addf %397, %400 : vector<32x32xf32>
    %c2_239 = arith.constant 2 : index
    %c0_240 = arith.constant 0 : index
    %c0_241 = arith.constant 0 : index
    %402 = vector.load %arg43[%c2_239, %c0_240, %c0_241] : memref<3x32x32xf32, #tpu.memory_space<vmem>>, vector<1x32x32xf32>
    %403 = vector.shape_cast %402 : vector<1x32x32xf32> to vector<32x32xf32>
    %cst_242 = arith.constant dense<0.000000e+00> : vector<32x32xf32>
    %404 = tpu.matmul %394, %403, %cst_242 {dimension_numbers = #tpu.dot_dimension_numbers<[1], [0], [0], [1], [0, 0, 1, 1], [], []>} : vector<32x32xf32>, vector<32x32xf32>, vector<32x32xf32> -> vector<32x32xf32>
    %405 = arith.addf %401, %404 : vector<32x32xf32>
    %c0_243 = arith.constant 0 : index
    %c0_244 = arith.constant 0 : index
    %406 = vector.load %arg44[%c0_243, %c0_244] : memref<1x32xf32, #tpu.memory_space<vmem>>, vector<1x32xf32>
    %407 = vector.broadcast %406 : vector<1x32xf32> to vector<32x32xf32>
    %408 = arith.addf %405, %407 : vector<32x32xf32>
    %c0_245 = arith.constant 0 : index
    %c0_246 = arith.constant 0 : index
    %409 = vector.load %arg45[%c0_245, %c0_246] : memref<1x32xf32, #tpu.memory_space<vmem>>, vector<1x32xf32>
    %c0_247 = arith.constant 0 : index
    %c0_248 = arith.constant 0 : index
    %410 = vector.load %arg46[%c0_247, %c0_248] : memref<1x32xf32, #tpu.memory_space<vmem>>, vector<1x32xf32>
    %cst_249 = arith.constant dense<0.000000e+00> : vector<32xf32>
    %411 = vector.multi_reduction <add>, %408, %cst_249 [0] : vector<32x32xf32> to vector<32xf32>
    %412 = vector.shape_cast %411 : vector<32xf32> to vector<1x32xf32>
    %cst_250 = arith.constant 3.200000e+01 : f32
    %413 = vector.broadcast %cst_250 : f32 to vector<1x32xf32>
    %414 = arith.divf %412, %413 : vector<1x32xf32>
    %415 = vector.broadcast %414 : vector<1x32xf32> to vector<32x32xf32>
    %416 = arith.subf %408, %415 : vector<32x32xf32>
    %417 = arith.mulf %416, %416 : vector<32x32xf32>
    %cst_251 = arith.constant dense<0.000000e+00> : vector<32xf32>
    %418 = vector.multi_reduction <add>, %417, %cst_251 [0] : vector<32x32xf32> to vector<32xf32>
    %419 = vector.shape_cast %418 : vector<32xf32> to vector<1x32xf32>
    %cst_252 = arith.constant 3.200000e+01 : f32
    %420 = vector.broadcast %cst_252 : f32 to vector<1x32xf32>
    %421 = arith.divf %419, %420 : vector<1x32xf32>
    %422 = vector.broadcast %414 : vector<1x32xf32> to vector<32x32xf32>
    %423 = arith.subf %408, %422 : vector<32x32xf32>
    %cst_253 = arith.constant 9.99999974E-6 : f32
    %424 = vector.broadcast %cst_253 : f32 to vector<1x32xf32>
    %425 = arith.addf %421, %424 : vector<1x32xf32>
    %426 = math.rsqrt %425 : vector<1x32xf32>
    %427 = vector.broadcast %426 : vector<1x32xf32> to vector<32x32xf32>
    %428 = arith.mulf %423, %427 : vector<32x32xf32>
    %429 = vector.broadcast %409 : vector<1x32xf32> to vector<32x32xf32>
    %430 = arith.mulf %428, %429 : vector<32x32xf32>
    %431 = vector.broadcast %410 : vector<1x32xf32> to vector<32x32xf32>
    %432 = arith.addf %430, %431 : vector<32x32xf32>
    %cst_254 = arith.constant 0.000000e+00 : f32
    %433 = vector.broadcast %cst_254 : f32 to vector<32x32xf32>
    %434 = arith.maximumf %432, %433 : vector<32x32xf32>
    %435 = arith.addf %434, %350 : vector<32x32xf32>
    %c0_255 = arith.constant 0 : index
    %c0_256 = arith.constant 0 : index
    %436 = vector.load %arg47[%c0_255, %c0_256] : memref<32x64xf32, #tpu.memory_space<vmem>>, vector<32x64xf32>
    %cst_257 = arith.constant dense<0.000000e+00> : vector<32x64xf32>
    %437 = tpu.matmul %435, %436, %cst_257 {dimension_numbers = #tpu.dot_dimension_numbers<[1], [0], [0], [1], [0, 0, 1, 1], [], []>} : vector<32x32xf32>, vector<32x64xf32>, vector<32x64xf32> -> vector<32x64xf32>
    %c0_258 = arith.constant 0 : index
    %c0_259 = arith.constant 0 : index
    %438 = vector.load %arg48[%c0_258, %c0_259] : memref<1x64xf32, #tpu.memory_space<vmem>>, vector<1x64xf32>
    %439 = vector.broadcast %438 : vector<1x64xf32> to vector<32x64xf32>
    %440 = arith.addf %437, %439 : vector<32x64xf32>
    %c0_260 = arith.constant 0 : index
    %c0_261 = arith.constant 0 : index
    %441 = vector.load %arg49[%c0_260, %c0_261] : memref<1x64xf32, #tpu.memory_space<vmem>>, vector<1x64xf32>
    %c0_262 = arith.constant 0 : index
    %c0_263 = arith.constant 0 : index
    %442 = vector.load %arg50[%c0_262, %c0_263] : memref<1x64xf32, #tpu.memory_space<vmem>>, vector<1x64xf32>
    %cst_264 = arith.constant dense<0.000000e+00> : vector<64xf32>
    %443 = vector.multi_reduction <add>, %440, %cst_264 [0] : vector<32x64xf32> to vector<64xf32>
    %444 = vector.shape_cast %443 : vector<64xf32> to vector<1x64xf32>
    %cst_265 = arith.constant 3.200000e+01 : f32
    %445 = vector.broadcast %cst_265 : f32 to vector<1x64xf32>
    %446 = arith.divf %444, %445 : vector<1x64xf32>
    %447 = vector.broadcast %446 : vector<1x64xf32> to vector<32x64xf32>
    %448 = arith.subf %440, %447 : vector<32x64xf32>
    %449 = arith.mulf %448, %448 : vector<32x64xf32>
    %cst_266 = arith.constant dense<0.000000e+00> : vector<64xf32>
    %450 = vector.multi_reduction <add>, %449, %cst_266 [0] : vector<32x64xf32> to vector<64xf32>
    %451 = vector.shape_cast %450 : vector<64xf32> to vector<1x64xf32>
    %cst_267 = arith.constant 3.200000e+01 : f32
    %452 = vector.broadcast %cst_267 : f32 to vector<1x64xf32>
    %453 = arith.divf %451, %452 : vector<1x64xf32>
    %454 = vector.broadcast %446 : vector<1x64xf32> to vector<32x64xf32>
    %455 = arith.subf %440, %454 : vector<32x64xf32>
    %cst_268 = arith.constant 9.99999974E-6 : f32
    %456 = vector.broadcast %cst_268 : f32 to vector<1x64xf32>
    %457 = arith.addf %453, %456 : vector<1x64xf32>
    %458 = math.rsqrt %457 : vector<1x64xf32>
    %459 = vector.broadcast %458 : vector<1x64xf32> to vector<32x64xf32>
    %460 = arith.mulf %455, %459 : vector<32x64xf32>
    %461 = vector.broadcast %441 : vector<1x64xf32> to vector<32x64xf32>
    %462 = arith.mulf %460, %461 : vector<32x64xf32>
    %463 = vector.broadcast %442 : vector<1x64xf32> to vector<32x64xf32>
    %464 = arith.addf %462, %463 : vector<32x64xf32>
    %cst_269 = arith.constant 0.000000e+00 : f32
    %465 = vector.broadcast %cst_269 : f32 to vector<32x64xf32>
    %466 = arith.maximumf %464, %465 : vector<32x64xf32>
    %cst_270 = arith.constant dense<0.000000e+00> : vector<32x64xf32>
    %467 = tpu.matmul %0, %466, %cst_270 {dimension_numbers = #tpu.dot_dimension_numbers<[1], [0], [0], [1], [0, 0, 1, 1], [], []>} : vector<32x32xf32>, vector<32x64xf32>, vector<32x64xf32> -> vector<32x64xf32>
    %cst_271 = arith.constant dense<0.000000e+00> : vector<32x64xf32>
    %468 = tpu.matmul %1, %466, %cst_271 {dimension_numbers = #tpu.dot_dimension_numbers<[1], [0], [0], [1], [0, 0, 1, 1], [], []>} : vector<32x32xf32>, vector<32x64xf32>, vector<32x64xf32> -> vector<32x64xf32>
    %c0_272 = arith.constant 0 : index
    %c0_273 = arith.constant 0 : index
    %c0_274 = arith.constant 0 : index
    %469 = vector.load %arg51[%c0_272, %c0_273, %c0_274] : memref<3x64x64xf32, #tpu.memory_space<vmem>>, vector<1x64x64xf32>
    %470 = vector.shape_cast %469 : vector<1x64x64xf32> to vector<64x64xf32>
    %cst_275 = arith.constant dense<0.000000e+00> : vector<32x64xf32>
    %471 = tpu.matmul %467, %470, %cst_275 {dimension_numbers = #tpu.dot_dimension_numbers<[1], [0], [0], [1], [0, 0, 1, 1], [], []>} : vector<32x64xf32>, vector<64x64xf32>, vector<32x64xf32> -> vector<32x64xf32>
    %c1_276 = arith.constant 1 : index
    %c0_277 = arith.constant 0 : index
    %c0_278 = arith.constant 0 : index
    %472 = vector.load %arg51[%c1_276, %c0_277, %c0_278] : memref<3x64x64xf32, #tpu.memory_space<vmem>>, vector<1x64x64xf32>
    %473 = vector.shape_cast %472 : vector<1x64x64xf32> to vector<64x64xf32>
    %cst_279 = arith.constant dense<0.000000e+00> : vector<32x64xf32>
    %474 = tpu.matmul %466, %473, %cst_279 {dimension_numbers = #tpu.dot_dimension_numbers<[1], [0], [0], [1], [0, 0, 1, 1], [], []>} : vector<32x64xf32>, vector<64x64xf32>, vector<32x64xf32> -> vector<32x64xf32>
    %475 = arith.addf %471, %474 : vector<32x64xf32>
    %c2_280 = arith.constant 2 : index
    %c0_281 = arith.constant 0 : index
    %c0_282 = arith.constant 0 : index
    %476 = vector.load %arg51[%c2_280, %c0_281, %c0_282] : memref<3x64x64xf32, #tpu.memory_space<vmem>>, vector<1x64x64xf32>
    %477 = vector.shape_cast %476 : vector<1x64x64xf32> to vector<64x64xf32>
    %cst_283 = arith.constant dense<0.000000e+00> : vector<32x64xf32>
    %478 = tpu.matmul %468, %477, %cst_283 {dimension_numbers = #tpu.dot_dimension_numbers<[1], [0], [0], [1], [0, 0, 1, 1], [], []>} : vector<32x64xf32>, vector<64x64xf32>, vector<32x64xf32> -> vector<32x64xf32>
    %479 = arith.addf %475, %478 : vector<32x64xf32>
    %c0_284 = arith.constant 0 : index
    %c0_285 = arith.constant 0 : index
    %480 = vector.load %arg52[%c0_284, %c0_285] : memref<1x64xf32, #tpu.memory_space<vmem>>, vector<1x64xf32>
    %481 = vector.broadcast %480 : vector<1x64xf32> to vector<32x64xf32>
    %482 = arith.addf %479, %481 : vector<32x64xf32>
    %c0_286 = arith.constant 0 : index
    %c0_287 = arith.constant 0 : index
    %483 = vector.load %arg53[%c0_286, %c0_287] : memref<1x64xf32, #tpu.memory_space<vmem>>, vector<1x64xf32>
    %c0_288 = arith.constant 0 : index
    %c0_289 = arith.constant 0 : index
    %484 = vector.load %arg54[%c0_288, %c0_289] : memref<1x64xf32, #tpu.memory_space<vmem>>, vector<1x64xf32>
    %cst_290 = arith.constant dense<0.000000e+00> : vector<64xf32>
    %485 = vector.multi_reduction <add>, %482, %cst_290 [0] : vector<32x64xf32> to vector<64xf32>
    %486 = vector.shape_cast %485 : vector<64xf32> to vector<1x64xf32>
    %cst_291 = arith.constant 3.200000e+01 : f32
    %487 = vector.broadcast %cst_291 : f32 to vector<1x64xf32>
    %488 = arith.divf %486, %487 : vector<1x64xf32>
    %489 = vector.broadcast %488 : vector<1x64xf32> to vector<32x64xf32>
    %490 = arith.subf %482, %489 : vector<32x64xf32>
    %491 = arith.mulf %490, %490 : vector<32x64xf32>
    %cst_292 = arith.constant dense<0.000000e+00> : vector<64xf32>
    %492 = vector.multi_reduction <add>, %491, %cst_292 [0] : vector<32x64xf32> to vector<64xf32>
    %493 = vector.shape_cast %492 : vector<64xf32> to vector<1x64xf32>
    %cst_293 = arith.constant 3.200000e+01 : f32
    %494 = vector.broadcast %cst_293 : f32 to vector<1x64xf32>
    %495 = arith.divf %493, %494 : vector<1x64xf32>
    %496 = vector.broadcast %488 : vector<1x64xf32> to vector<32x64xf32>
    %497 = arith.subf %482, %496 : vector<32x64xf32>
    %cst_294 = arith.constant 9.99999974E-6 : f32
    %498 = vector.broadcast %cst_294 : f32 to vector<1x64xf32>
    %499 = arith.addf %495, %498 : vector<1x64xf32>
    %500 = math.rsqrt %499 : vector<1x64xf32>
    %501 = vector.broadcast %500 : vector<1x64xf32> to vector<32x64xf32>
    %502 = arith.mulf %497, %501 : vector<32x64xf32>
    %503 = vector.broadcast %483 : vector<1x64xf32> to vector<32x64xf32>
    %504 = arith.mulf %502, %503 : vector<32x64xf32>
    %505 = vector.broadcast %484 : vector<1x64xf32> to vector<32x64xf32>
    %506 = arith.addf %504, %505 : vector<32x64xf32>
    %cst_295 = arith.constant 0.000000e+00 : f32
    %507 = vector.broadcast %cst_295 : f32 to vector<32x64xf32>
    %508 = arith.maximumf %506, %507 : vector<32x64xf32>
    %cst_296 = arith.constant dense<0.000000e+00> : vector<32x64xf32>
    %509 = tpu.matmul %0, %508, %cst_296 {dimension_numbers = #tpu.dot_dimension_numbers<[1], [0], [0], [1], [0, 0, 1, 1], [], []>} : vector<32x32xf32>, vector<32x64xf32>, vector<32x64xf32> -> vector<32x64xf32>
    %cst_297 = arith.constant dense<0.000000e+00> : vector<32x64xf32>
    %510 = tpu.matmul %1, %508, %cst_297 {dimension_numbers = #tpu.dot_dimension_numbers<[1], [0], [0], [1], [0, 0, 1, 1], [], []>} : vector<32x32xf32>, vector<32x64xf32>, vector<32x64xf32> -> vector<32x64xf32>
    %c0_298 = arith.constant 0 : index
    %c0_299 = arith.constant 0 : index
    %c0_300 = arith.constant 0 : index
    %511 = vector.load %arg55[%c0_298, %c0_299, %c0_300] : memref<3x64x64xf32, #tpu.memory_space<vmem>>, vector<1x64x64xf32>
    %512 = vector.shape_cast %511 : vector<1x64x64xf32> to vector<64x64xf32>
    %cst_301 = arith.constant dense<0.000000e+00> : vector<32x64xf32>
    %513 = tpu.matmul %509, %512, %cst_301 {dimension_numbers = #tpu.dot_dimension_numbers<[1], [0], [0], [1], [0, 0, 1, 1], [], []>} : vector<32x64xf32>, vector<64x64xf32>, vector<32x64xf32> -> vector<32x64xf32>
    %c1_302 = arith.constant 1 : index
    %c0_303 = arith.constant 0 : index
    %c0_304 = arith.constant 0 : index
    %514 = vector.load %arg55[%c1_302, %c0_303, %c0_304] : memref<3x64x64xf32, #tpu.memory_space<vmem>>, vector<1x64x64xf32>
    %515 = vector.shape_cast %514 : vector<1x64x64xf32> to vector<64x64xf32>
    %cst_305 = arith.constant dense<0.000000e+00> : vector<32x64xf32>
    %516 = tpu.matmul %508, %515, %cst_305 {dimension_numbers = #tpu.dot_dimension_numbers<[1], [0], [0], [1], [0, 0, 1, 1], [], []>} : vector<32x64xf32>, vector<64x64xf32>, vector<32x64xf32> -> vector<32x64xf32>
    %517 = arith.addf %513, %516 : vector<32x64xf32>
    %c2_306 = arith.constant 2 : index
    %c0_307 = arith.constant 0 : index
    %c0_308 = arith.constant 0 : index
    %518 = vector.load %arg55[%c2_306, %c0_307, %c0_308] : memref<3x64x64xf32, #tpu.memory_space<vmem>>, vector<1x64x64xf32>
    %519 = vector.shape_cast %518 : vector<1x64x64xf32> to vector<64x64xf32>
    %cst_309 = arith.constant dense<0.000000e+00> : vector<32x64xf32>
    %520 = tpu.matmul %510, %519, %cst_309 {dimension_numbers = #tpu.dot_dimension_numbers<[1], [0], [0], [1], [0, 0, 1, 1], [], []>} : vector<32x64xf32>, vector<64x64xf32>, vector<32x64xf32> -> vector<32x64xf32>
    %521 = arith.addf %517, %520 : vector<32x64xf32>
    %c0_310 = arith.constant 0 : index
    %c0_311 = arith.constant 0 : index
    %522 = vector.load %arg56[%c0_310, %c0_311] : memref<1x64xf32, #tpu.memory_space<vmem>>, vector<1x64xf32>
    %523 = vector.broadcast %522 : vector<1x64xf32> to vector<32x64xf32>
    %524 = arith.addf %521, %523 : vector<32x64xf32>
    %c0_312 = arith.constant 0 : index
    %c0_313 = arith.constant 0 : index
    %525 = vector.load %arg57[%c0_312, %c0_313] : memref<1x64xf32, #tpu.memory_space<vmem>>, vector<1x64xf32>
    %c0_314 = arith.constant 0 : index
    %c0_315 = arith.constant 0 : index
    %526 = vector.load %arg58[%c0_314, %c0_315] : memref<1x64xf32, #tpu.memory_space<vmem>>, vector<1x64xf32>
    %cst_316 = arith.constant dense<0.000000e+00> : vector<64xf32>
    %527 = vector.multi_reduction <add>, %524, %cst_316 [0] : vector<32x64xf32> to vector<64xf32>
    %528 = vector.shape_cast %527 : vector<64xf32> to vector<1x64xf32>
    %cst_317 = arith.constant 3.200000e+01 : f32
    %529 = vector.broadcast %cst_317 : f32 to vector<1x64xf32>
    %530 = arith.divf %528, %529 : vector<1x64xf32>
    %531 = vector.broadcast %530 : vector<1x64xf32> to vector<32x64xf32>
    %532 = arith.subf %524, %531 : vector<32x64xf32>
    %533 = arith.mulf %532, %532 : vector<32x64xf32>
    %cst_318 = arith.constant dense<0.000000e+00> : vector<64xf32>
    %534 = vector.multi_reduction <add>, %533, %cst_318 [0] : vector<32x64xf32> to vector<64xf32>
    %535 = vector.shape_cast %534 : vector<64xf32> to vector<1x64xf32>
    %cst_319 = arith.constant 3.200000e+01 : f32
    %536 = vector.broadcast %cst_319 : f32 to vector<1x64xf32>
    %537 = arith.divf %535, %536 : vector<1x64xf32>
    %538 = vector.broadcast %530 : vector<1x64xf32> to vector<32x64xf32>
    %539 = arith.subf %524, %538 : vector<32x64xf32>
    %cst_320 = arith.constant 9.99999974E-6 : f32
    %540 = vector.broadcast %cst_320 : f32 to vector<1x64xf32>
    %541 = arith.addf %537, %540 : vector<1x64xf32>
    %542 = math.rsqrt %541 : vector<1x64xf32>
    %543 = vector.broadcast %542 : vector<1x64xf32> to vector<32x64xf32>
    %544 = arith.mulf %539, %543 : vector<32x64xf32>
    %545 = vector.broadcast %525 : vector<1x64xf32> to vector<32x64xf32>
    %546 = arith.mulf %544, %545 : vector<32x64xf32>
    %547 = vector.broadcast %526 : vector<1x64xf32> to vector<32x64xf32>
    %548 = arith.addf %546, %547 : vector<32x64xf32>
    %cst_321 = arith.constant 0.000000e+00 : f32
    %549 = vector.broadcast %cst_321 : f32 to vector<32x64xf32>
    %550 = arith.maximumf %548, %549 : vector<32x64xf32>
    %551 = arith.addf %550, %466 : vector<32x64xf32>
    %c0_322 = arith.constant 0 : index
    %c0_323 = arith.constant 0 : index
    %552 = vector.load %arg59[%c0_322, %c0_323] : memref<64x96xf32, #tpu.memory_space<vmem>>, vector<64x96xf32>
    %cst_324 = arith.constant dense<0.000000e+00> : vector<32x96xf32>
    %553 = tpu.matmul %551, %552, %cst_324 {dimension_numbers = #tpu.dot_dimension_numbers<[1], [0], [0], [1], [0, 0, 1, 1], [], []>} : vector<32x64xf32>, vector<64x96xf32>, vector<32x96xf32> -> vector<32x96xf32>
    %c0_325 = arith.constant 0 : index
    %c0_326 = arith.constant 0 : index
    %554 = vector.load %arg60[%c0_325, %c0_326] : memref<1x96xf32, #tpu.memory_space<vmem>>, vector<1x96xf32>
    %555 = vector.broadcast %554 : vector<1x96xf32> to vector<32x96xf32>
    %556 = arith.addf %553, %555 : vector<32x96xf32>
    %c0_327 = arith.constant 0 : index
    %c0_328 = arith.constant 0 : index
    %557 = vector.load %arg61[%c0_327, %c0_328] : memref<32x96xf32, #tpu.memory_space<vmem>>, vector<32x96xf32>
    tpu.vector_store %arg61[%c0_327, %c0_328], %556 {strides = array<i32>} : memref<32x96xf32, #tpu.memory_space<vmem>>, vector<32x96xf32>,
    return
  }
}

</mosaic_0001>

<llo_original>
// kernel: slim_cc_auto_decoder_forward.3
$region0: #{slim_cc_auto_decoder_forward.3}
  #allocation0 [shape = 'u32[]', space=smem, size = 0x4, offset = 0x4, fixed_abs, tag = 'smem constant byte address 0x4 - core index']
  #allocation1 [shape = 'u32[144,128]{1,0:T(1,128)}', space=vmem, size = 0x12000, scoped, tag = 'internal scratch']
  %s0 = inlined_call_operand.vmem [shape: f32[2,4,16,128], index: 0, kind: input, shape index: {}]
  %s1 = inlined_call_operand.vmem [shape: f32[2,4,16,128], index: 1, kind: input, shape index: {}]
  %s2 = inlined_call_operand.vmem [shape: f32[2,4,128], index: 2, kind: input, shape index: {}]
  %s3 = inlined_call_operand.vmem [shape: f32[2,16,16,128], index: 3, kind: output, shape index: {}]
  %s4 = sld [smem:[#allocation0]]
  $region45: #{slim_cc_auto_decoder_forward.3} parent=0
    _
  %s6 = ssub.s32 1, %s4
  %s7 = scalar_select 0, %s6, %s4
  loop: start=0, step=1, limit=4
  $region2: #{slim_cc_auto_decoder_forward.3} parent=0 // loop_pre_header
    _
  $region3: #{slim_cc_auto_decoder_forward.3} parent=0 // loop_header
    %s9 = sphi 0, %s13
    %p10 = scmp.ge.s32.totalorder %s9, 4
    %s19 = sphi 0, %s21
    %s22 = sphi 0, %s19
    %s23 = sphi 0, %s22
    %s39 = sphi 0, %s23
    %s45 = sphi 0, %s47
    %s48 = sphi 0, %s45
    %s49 = sphi 0, %s48
    %s65 = sphi 0, %s49
    %s71 = sphi 0, %s73
    %s74 = sphi 0, %s71
    %s75 = sphi 0, %s74
    %s91 = sphi 0, %s75
    %s97 = sphi 0, %s99
    %s100 = sphi 0, %s97
    %s101 = sphi 0, %s100
    %s117 = sphi 0, %s101
  $region4: #{slim_cc_auto_decoder_forward.3} parent=0 // loop_header_branch
    %12 = sbr.rel (%p10) target = $region8
  $region5: #{slim_cc_auto_decoder_forward.3} parent=0 // loop_body
    %s14 = ssub.s32 %s9, 1
    %s15 = ssub.s32 %s9, 2
    %s16 = sadd.s32 %s9, 1
    %s17 = ssub.s32 %s9, %s16
    %p18 = scmp.eq.s32.totalorder %s17, 0
    %s20 = sadd.s32 %s19, 1
    %s21 = scalar_select %p18, %s19, %s20
    %p24 = pneg %p18
    %p25 = scmp.eq.s32.totalorder %s9, 1
    %p26 = por %p24, %p25
    %p27 = scmp.ne.s32.totalorder %s19, %s22
    %p28 = scmp.eq.s32.totalorder %s9, 0
    %p29 = por %p27, %p28
    %p30 = scmp.ne.s32.totalorder %s19, %s22
    %p31 = scmp.eq.s32.totalorder %s14, 1
    %p32 = por %p30, %p31
    %p33 = scmp.ne.s32.totalorder %s22, %s23
    %p34 = scmp.eq.s32.totalorder %s14, 0
    %p35 = por %p33, %p34
    %p36 = scmp.ne.s32.totalorder %s22, %s23
    %p37 = scmp.eq.s32.totalorder %s15, 1
    %p38 = por %p36, %p37
    %p40 = scmp.ne.s32.totalorder %s23, %s39
    %p41 = scmp.eq.s32.totalorder %s15, 0
    %p42 = por %p40, %p41
    %s43 = ssub.s32 %s9, %s16
    %p44 = scmp.eq.s32.totalorder %s43, 0
    %s46 = sadd.s32 %s45, 1
    %s47 = scalar_select %p44, %s45, %s46
    %p50 = pneg %p44
    %p51 = scmp.eq.s32.totalorder %s9, 1
    %p52 = por %p50, %p51
    %p53 = scmp.ne.s32.totalorder %s45, %s48
    %p54 = scmp.eq.s32.totalorder %s9, 0
    %p55 = por %p53, %p54
    %p56 = scmp.ne.s32.totalorder %s45, %s48
    %p57 = scmp.eq.s32.totalorder %s14, 1
    %p58 = por %p56, %p57
    %p59 = scmp.ne.s32.totalorder %s48, %s49
    %p60 = scmp.eq.s32.totalorder %s14, 0
    %p61 = por %p59, %p60
    %p62 = scmp.ne.s32.totalorder %s48, %s49
    %p63 = scmp.eq.s32.totalorder %s15, 1
    %p64 = por %p62, %p63
    %p66 = scmp.ne.s32.totalorder %s49, %s65
    %p67 = scmp.eq.s32.totalorder %s15, 0
    %p68 = por %p66, %p67
    %s69 = ssub.s32 %s9, %s16
    %p70 = scmp.eq.s32.totalorder %s69, 0
    %s72 = sadd.s32 %s71, 1
    %s73 = scalar_select %p70, %s71, %s72
    %p76 = pneg %p70
    %p77 = scmp.eq.s32.totalorder %s9, 1
    %p78 = por %p76, %p77
    %p79 = scmp.ne.s32.totalorder %s71, %s74
    %p80 = scmp.eq.s32.totalorder %s9, 0
    %p81 = por %p79, %p80
    %p82 = scmp.ne.s32.totalorder %s71, %s74
    %p83 = scmp.eq.s32.totalorder %s14, 1
    %p84 = por %p82, %p83
    %p85 = scmp.ne.s32.totalorder %s74, %s75
    %p86 = scmp.eq.s32.totalorder %s14, 0
    %p87 = por %p85, %p86
    %p88 = scmp.ne.s32.totalorder %s74, %s75
    %p89 = scmp.eq.s32.totalorder %s15, 1
    %p90 = por %p88, %p89
    %p92 = scmp.ne.s32.totalorder %s75, %s91
    %p93 = scmp.eq.s32.totalorder %s15, 0
    %p94 = por %p92, %p93
    %s95 = ssub.s32 %s9, %s16
    %p96 = scmp.eq.s32.totalorder %s95, 0
    %s98 = sadd.s32 %s97, 1
    %s99 = scalar_select %p96, %s97, %s98
    %p102 = pneg %p96
    %p103 = scmp.eq.s32.totalorder %s9, 1
    %p104 = por %p102, %p103
    %p105 = scmp.ne.s32.totalorder %s97, %s100
    %p106 = scmp.eq.s32.totalorder %s9, 0
    %p107 = por %p105, %p106
    %p108 = scmp.ne.s32.totalorder %s97, %s100
    %p109 = scmp.eq.s32.totalorder %s14, 1
    %p110 = por %p108, %p109
    %p111 = scmp.ne.s32.totalorder %s100, %s101
    %p112 = scmp.eq.s32.totalorder %s14, 0
    %p113 = por %p111, %p112
    %p114 = scmp.ne.s32.totalorder %s100, %s101
    %p115 = scmp.eq.s32.totalorder %s15, 1
    %p116 = por %p114, %p115
    %p118 = scmp.ne.s32.totalorder %s101, %s117
    %p119 = scmp.eq.s32.totalorder %s15, 0
    %p120 = por %p118, %p119
    %p121 = scmp.le.s32.totalorder 1, %s9
    %p122 = scmp.lt.s32.totalorder %s9, 3
    %p123 = pnand %p121, %p122
    %p124 = pneg %p123
    // Predicated region
    $region9: #{slim_cc_auto_decoder_forward.3} parent=5 // pred_check
      _
    $region10: #{slim_cc_auto_decoder_forward.3} parent=5 // pred_check_branch
      %126 = sbr.rel (%p123) target = $region12
    $region11: #{slim_cc_auto_decoder_forward.3} parent=5 // pred_region
      %s127 = ssub.s32 %s9, 1
    $region12: #{slim_cc_auto_decoder_forward.3} parent=5 // pred_fallthru
      _
    %p128 = scmp.lt.s32.totalorder %s9, 2
    // Predicated region
    $region13: #{slim_cc_auto_decoder_forward.3} parent=5 // pred_check
      %p129 = pneg %p128
    $region14: #{slim_cc_auto_decoder_forward.3} parent=5 // pred_check_branch
      %131 = sbr.rel (%p129) target = $region16
    $region15: #{slim_cc_auto_decoder_forward.3} parent=5 // pred_region
      // Predicated region
      $region17: #{slim_cc_auto_decoder_forward.3} parent=15 // pred_check
        %p132 = pneg %p29
      $region18: #{slim_cc_auto_decoder_forward.3} parent=15 // pred_check_branch
        %134 = sbr.rel (%p132) target = $region20
      $region19: #{slim_cc_auto_decoder_forward.3} parent=15 // pred_region
        %p135 = scmp.lt.s32.totalorder %s9, 1
        %s136 = scalar_select %p135, %s9, 1
        %s137 = smul.addr %s136, 8
        %s138 = smul.addr %s137, 8
        %s139 = scalar_lea.vmem %s0, %s138
      $region20: #{slim_cc_auto_decoder_forward.3} parent=15 // pred_fallthru
        _
      // Predicated region
      $region21: #{slim_cc_auto_decoder_forward.3} parent=15 // pred_check
        %p140 = pneg %p55
      $region22: #{slim_cc_auto_decoder_forward.3} parent=15 // pred_check_branch
        %142 = sbr.rel (%p140) target = $region24
      $region23: #{slim_cc_auto_decoder_forward.3} parent=15 // pred_region
        %p143 = scmp.lt.s32.totalorder %s9, 1
        %s144 = scalar_select %p143, %s9, 1
        %s145 = smul.addr %s144, 8
        %s146 = smul.addr %s145, 8
        %s147 = scalar_lea.vmem %s1, %s146
      $region24: #{slim_cc_auto_decoder_forward.3} parent=15 // pred_fallthru
        _
      // Predicated region
      $region25: #{slim_cc_auto_decoder_forward.3} parent=15 // pred_check
        %p148 = pneg %p81
      $region26: #{slim_cc_auto_decoder_forward.3} parent=15 // pred_check_branch
        %150 = sbr.rel (%p148) target = $region28
      $region27: #{slim_cc_auto_decoder_forward.3} parent=15 // pred_region
        %p151 = scmp.lt.s32.totalorder %s9, 1
        %s152 = scalar_select %p151, %s9, 1
        %s153 = smul.addr %s152, 4
        %s154 = scalar_lea.vmem %s2, %s153
      $region28: #{slim_cc_auto_decoder_forward.3} parent=15 // pred_fallthru
        _
    $region16: #{slim_cc_auto_decoder_forward.3} parent=5 // pred_fallthru
      _
    %p155 = scmp.le.s32.totalorder 1, %s9
    %p156 = scmp.lt.s32.totalorder %s9, 3
    %p157 = pnand %p155, %p156
    %p158 = pneg %p157
    // Predicated region
    $region29: #{slim_cc_auto_decoder_forward.3} parent=5 // pred_check
      _
    $region30: #{slim_cc_auto_decoder_forward.3} parent=5 // pred_check_branch
      %160 = sbr.rel (%p157) target = $region32
    $region31: #{slim_cc_auto_decoder_forward.3} parent=5 // pred_region
      %s161 = ssub.s32 %s9, 1
      %p162 = scmp.lt.s32.totalorder %s14, 1
      %s163 = scalar_select %p162, %s14, 1
      %s164 = smul.addr %s163, 8
      %s165 = smul.addr %s164, 8
      %s166 = scalar_lea.vmem %s0, %s165
      %p167 = pneg %p35
      %p168 = pneg %p32
      %p169 = scmp.lt.s32.totalorder %s14, 1
      %s170 = scalar_select %p169, %s14, 1
      %s171 = smul.addr %s170, 8
      %s172 = smul.addr %s171, 8
      %s173 = scalar_lea.vmem %s1, %s172
      %p174 = pneg %p61
      %p175 = pneg %p58
      %p176 = scmp.lt.s32.totalorder %s14, 1
      %s177 = scalar_select %p176, %s14, 1
      %s178 = smul.addr %s177, 4
      %s179 = scalar_lea.vmem %s2, %s178
      %p180 = pneg %p87
      %p181 = pneg %p84
      %p182 = pneg %p113
      %p183 = pneg %p110
      %p184 = scmp.lt.s32.totalorder %s14, 1
      %s185 = scalar_select %p184, %s14, 1
      %s186 = smul.addr %s185, 32
      %s187 = smul.addr %s186, 8
      %s188 = scalar_lea.vmem %s3, %s187
      %p189 = scmp.lt.s32.totalorder %s14, 1
      %s190 = scalar_select %p189, %s14, 1
      %s191 = smul.addr %s190, 8
      %s192 = smul.addr %s191, 8
      %s193 = scalar_lea.vmem %s0, %s192
      %p194 = scmp.lt.s32.totalorder %s14, 1
      %s195 = scalar_select %p194, %s14, 1
      %s196 = smul.addr %s195, 8
      %s197 = smul.addr %s196, 8
      %s198 = scalar_lea.vmem %s1, %s197
      %p199 = scmp.lt.s32.totalorder %s14, 1
      %s200 = scalar_select %p199, %s14, 1
      %s201 = smul.addr %s200, 4
      %s202 = scalar_lea.vmem %s2, %s201
      %p203 = scmp.lt.s32.totalorder %s14, 1
      %s204 = scalar_select %p203, %s14, 1
      %s205 = smul.addr %s204, 32
      %s206 = smul.addr %s205, 8
      %s207 = scalar_lea.vmem %s3, %s206
      %v208 = vld [vmem:[%s202] sm:$0xf]
      %v209 = vld [vmem:[%s198] sm:$0xff]
      %v210 = vld [vmem:[%s198 + $0x8] sm:$0xff]
      %v211 = vlaneseq
      %v212 = vshrl.u32 %v211, 7
      %v213 = vsub.s32 0, %v212
      %v214 = vrot.slane %v208, %v213
      %v215 = vmul.f32 %v209, %v214
      %v216 = vmul.f32 %v210, %v214
      %v217 = vld [vmem:[%s193] sm:$0xff]
      %v218 = vld [vmem:[%s193 + $0x8] sm:$0xff]
      %v221 = vcombine.high %v217, %v217
      %v223 = vunpack.c.l.s4 1966171168
      %v224 = vunpack.c.0.s8 %v223
      %v225 = vlaneseq
      %v226 = vshrl.u32 %v225, 7
      %v227 = vsub.s32 %v224, %v226
      %v228 = vrot.slane %v217, %v227
      %v230 = vunpack.c.l.s4 1966171168
      %v231 = vunpack.c.0.s8 %v230
      %v232 = vlaneseq
      %v233 = vshrl.u32 %v232, 7
      %v234 = vsub.s32 %v231, %v233
      %v235 = vrot.slane %v221, %v234
      %v236 = vcombine.high %v228, %v228
      %v237 = vcombine.high %v235, %v235
      %v239 = vunpack.c.l.s4 1966171168
      %v240 = vunpack.c.0.s8 %v239
      %v241 = vlaneseq
      %v242 = vshrl.u32 %v241, 7
      %v243 = vsub.s32 %v240, %v242
      %v244 = vrot.slane %v228, %v243
      %v246 = vunpack.c.l.s4 1966171168
      %v247 = vunpack.c.0.s8 %v246
      %v248 = vlaneseq
      %v249 = vshrl.u32 %v248, 7
      %v250 = vsub.s32 %v247, %v249
      %v251 = vrot.slane %v235, %v250
      %v253 = vunpack.c.l.s4 1966171168
      %v254 = vunpack.c.0.s8 %v253
      %v255 = vlaneseq
      %v256 = vshrl.u32 %v255, 7
      %v257 = vsub.s32 %v254, %v256
      %v258 = vrot.slane %v236, %v257
      %v260 = vunpack.c.l.s4 1966171168
      %v261 = vunpack.c.0.s8 %v260
      %v262 = vlaneseq
      %v263 = vshrl.u32 %v262, 7
      %v264 = vsub.s32 %v261, %v263
      %v265 = vrot.slane %v237, %v264
      %v266 = vcombine.high %v244, %v244
      %v267 = vcombine.high %v251, %v251
      %v268 = vcombine.high %v258, %v258
      %v269 = vcombine.high %v265, %v265
      %v270 = vcombine.high %v218, %v218
      %v272 = vunpack.c.l.s4 1966171168
      %v273 = vunpack.c.0.s8 %v272
      %v274 = vlaneseq
      %v275 = vshrl.u32 %v274, 7
      %v276 = vsub.s32 %v273, %v275
      %v277 = vrot.slane %v218, %v276
      %v279 = vunpack.c.l.s4 1966171168
      %v280 = vunpack.c.0.s8 %v279
      %v281 = vlaneseq
      %v282 = vshrl.u32 %v281, 7
      %v283 = vsub.s32 %v280, %v282
      %v284 = vrot.slane %v270, %v283
      %v285 = vcombine.high %v277, %v277
      %v286 = vcombine.high %v284, %v284
      %v288 = vunpack.c.l.s4 1966171168
      %v289 = vunpack.c.0.s8 %v288
      %v290 = vlaneseq
      %v291 = vshrl.u32 %v290, 7
      %v292 = vsub.s32 %v289, %v291
      %v293 = vrot.slane %v277, %v292
      %v295 = vunpack.c.l.s4 1966171168
      %v296 = vunpack.c.0.s8 %v295
      %v297 = vlaneseq
      %v298 = vshrl.u32 %v297, 7
      %v299 = vsub.s32 %v296, %v298
      %v300 = vrot.slane %v284, %v299
      %v302 = vunpack.c.l.s4 1966171168
      %v303 = vunpack.c.0.s8 %v302
      %v304 = vlaneseq
      %v305 = vshrl.u32 %v304, 7
      %v306 = vsub.s32 %v303, %v305
      %v307 = vrot.slane %v285, %v306
      %v309 = vunpack.c.l.s4 1966171168
      %v310 = vunpack.c.0.s8 %v309
      %v311 = vlaneseq
      %v312 = vshrl.u32 %v311, 7
      %v313 = vsub.s32 %v310, %v312
      %v314 = vrot.slane %v286, %v313
      %v315 = vcombine.high %v293, %v293
      %v316 = vcombine.high %v300, %v300
      %v317 = vcombine.high %v307, %v307
      %v318 = vcombine.high %v314, %v314
      %v319 = vlaneseq
      %v320 = vshrl.u32 %v319, 7
      %v321 = vsub.s32 0, %v320
      %v322 = vrot.slane %v244, %v321
      %v323 = vlaneseq
      %v324 = vshrl.u32 %v323, 7
      %v325 = vsub.s32 0, %v324
      %v326 = vrot.slane %v258, %v325
      %v327 = vlaneseq
      %v328 = vshrl.u32 %v327, 7
      %v329 = vsub.s32 0, %v328
      %v330 = vrot.slane %v266, %v329
      %v331 = vlaneseq
      %v332 = vshrl.u32 %v331, 7
      %v333 = vsub.s32 0, %v332
      %v334 = vrot.slane %v268, %v333
      %v335 = vlaneseq
      %v336 = vshrl.u32 %v335, 7
      %v337 = vsub.s32 0, %v336
      %v338 = vrot.slane %v251, %v337
      %v339 = vlaneseq
      %v340 = vshrl.u32 %v339, 7
      %v341 = vsub.s32 0, %v340
      %v342 = vrot.slane %v265, %v341
      %v343 = vlaneseq
      %v344 = vshrl.u32 %v343, 7
      %v345 = vsub.s32 0, %v344
      %v346 = vrot.slane %v267, %v345
      %v347 = vlaneseq
      %v348 = vshrl.u32 %v347, 7
      %v349 = vsub.s32 0, %v348
      %v350 = vrot.slane %v269, %v349
      %v351 = vlaneseq
      %v352 = vshrl.u32 %v351, 7
      %v353 = vsub.s32 0, %v352
      %v354 = vrot.slane %v293, %v353
      %v355 = vlaneseq
      %v356 = vshrl.u32 %v355, 7
      %v357 = vsub.s32 0, %v356
      %v358 = vrot.slane %v307, %v357
      %v359 = vlaneseq
      %v360 = vshrl.u32 %v359, 7
      %v361 = vsub.s32 0, %v360
      %v362 = vrot.slane %v315, %v361
      %v363 = vlaneseq
      %v364 = vshrl.u32 %v363, 7
      %v365 = vsub.s32 0, %v364
      %v366 = vrot.slane %v317, %v365
      %v367 = vlaneseq
      %v368 = vshrl.u32 %v367, 7
      %v369 = vsub.s32 0, %v368
      %v370 = vrot.slane %v300, %v369
      %v371 = vlaneseq
      %v372 = vshrl.u32 %v371, 7
      %v373 = vsub.s32 0, %v372
      %v374 = vrot.slane %v314, %v373
      %v375 = vlaneseq
      %v376 = vshrl.u32 %v375, 7
      %v377 = vsub.s32 0, %v376
      %v378 = vrot.slane %v316, %v377
      %v379 = vlaneseq
      %v380 = vshrl.u32 %v379, 7
      %v381 = vsub.s32 0, %v380
      %v382 = vrot.slane %v318, %v381
      %v399 = vmul.f32 %v322, %v215
      %v400 = vmul.f32 %v322, %v216
      %v401 = vmul.f32 %v326, %v215
      %v402 = vmul.f32 %v326, %v216
      %v403 = vmul.f32 %v330, %v215
      %v404 = vmul.f32 %v330, %v216
      %v405 = vmul.f32 %v334, %v215
      %v406 = vmul.f32 %v334, %v216
      %v407 = vmul.f32 %v338, %v215
      %v408 = vmul.f32 %v338, %v216
      %v409 = vmul.f32 %v342, %v215
      %v410 = vmul.f32 %v342, %v216
      %v411 = vmul.f32 %v346, %v215
      %v412 = vmul.f32 %v346, %v216
      %v413 = vmul.f32 %v350, %v215
      %v414 = vmul.f32 %v350, %v216
      %v415 = vmul.f32 %v354, %v215
      %v416 = vmul.f32 %v354, %v216
      %v417 = vmul.f32 %v358, %v215
      %v418 = vmul.f32 %v358, %v216
      %v419 = vmul.f32 %v362, %v215
      %v420 = vmul.f32 %v362, %v216
      %v421 = vmul.f32 %v366, %v215
      %v422 = vmul.f32 %v366, %v216
      %v423 = vmul.f32 %v370, %v215
      %v424 = vmul.f32 %v370, %v216
      %v425 = vmul.f32 %v374, %v215
      %v426 = vmul.f32 %v374, %v216
      %v427 = vmul.f32 %v378, %v215
      %v428 = vmul.f32 %v378, %v216
      %v429 = vmul.f32 %v382, %v215
      %v430 = vmul.f32 %v382, %v216
      %s431 = scalar_lea.vmem %s198, 16
      %v432 = vld [vmem:[%s431] sm:$0xff]
      %v433 = vld [vmem:[%s431 + $0x8] sm:$0xff]
      %v434 = vlaneseq
      %v435 = vshrl.u32 %v434, 7
      %v436 = vsub.s32 1, %v435
      %v437 = vrot.slane %v208, %v436
      %v438 = vmul.f32 %v432, %v437
      %v439 = vmul.f32 %v433, %v437
      %s440 = scalar_lea.vmem %s193, 16
      %v441 = vld [vmem:[%s440] sm:$0xff]
      %v442 = vld [vmem:[%s440 + $0x8] sm:$0xff]
      %v445 = vcombine.high %v441, %v441
      %v447 = vunpack.c.l.s4 1966171168
      %v448 = vunpack.c.0.s8 %v447
      %v449 = vlaneseq
      %v450 = vshrl.u32 %v449, 7
      %v451 = vsub.s32 %v448, %v450
      %v452 = vrot.slane %v441, %v451
      %v454 = vunpack.c.l.s4 1966171168
      %v455 = vunpack.c.0.s8 %v454
      %v456 = vlaneseq
      %v457 = vshrl.u32 %v456, 7
      %v458 = vsub.s32 %v455, %v457
      %v459 = vrot.slane %v445, %v458
      %v460 = vcombine.high %v452, %v452
      %v461 = vcombine.high %v459, %v459
      %v463 = vunpack.c.l.s4 1966171168
      %v464 = vunpack.c.0.s8 %v463
      %v465 = vlaneseq
      %v466 = vshrl.u32 %v465, 7
      %v467 = vsub.s32 %v464, %v466
      %v468 = vrot.slane %v452, %v467
      %v470 = vunpack.c.l.s4 1966171168
      %v471 = vunpack.c.0.s8 %v470
      %v472 = vlaneseq
      %v473 = vshrl.u32 %v472, 7
      %v474 = vsub.s32 %v471, %v473
      %v475 = vrot.slane %v459, %v474
      %v477 = vunpack.c.l.s4 1966171168
      %v478 = vunpack.c.0.s8 %v477
      %v479 = vlaneseq
      %v480 = vshrl.u32 %v479, 7
      %v481 = vsub.s32 %v478, %v480
      %v482 = vrot.slane %v460, %v481
      %v484 = vunpack.c.l.s4 1966171168
      %v485 = vunpack.c.0.s8 %v484
      %v486 = vlaneseq
      %v487 = vshrl.u32 %v486, 7
      %v488 = vsub.s32 %v485, %v487
      %v489 = vrot.slane %v461, %v488
      %v490 = vcombine.high %v468, %v468
      %v491 = vcombine.high %v475, %v475
      %v492 = vcombine.high %v482, %v482
      %v493 = vcombine.high %v489, %v489
      %v494 = vcombine.high %v442, %v442
      %v496 = vunpack.c.l.s4 1966171168
      %v497 = vunpack.c.0.s8 %v496
      %v498 = vlaneseq
      %v499 = vshrl.u32 %v498, 7
      %v500 = vsub.s32 %v497, %v499
      %v501 = vrot.slane %v442, %v500
      %v503 = vunpack.c.l.s4 1966171168
      %v504 = vunpack.c.0.s8 %v503
      %v505 = vlaneseq
      %v506 = vshrl.u32 %v505, 7
      %v507 = vsub.s32 %v504, %v506
      %v508 = vrot.slane %v494, %v507
      %v509 = vcombine.high %v501, %v501
      %v510 = vcombine.high %v508, %v508
      %v512 = vunpack.c.l.s4 1966171168
      %v513 = vunpack.c.0.s8 %v512
      %v514 = vlaneseq
      %v515 = vshrl.u32 %v514, 7
      %v516 = vsub.s32 %v513, %v515
      %v517 = vrot.slane %v501, %v516
      %v519 = vunpack.c.l.s4 1966171168
      %v520 = vunpack.c.0.s8 %v519
      %v521 = vlaneseq
      %v522 = vshrl.u32 %v521, 7
      %v523 = vsub.s32 %v520, %v522
      %v524 = vrot.slane %v508, %v523
      %v526 = vunpack.c.l.s4 1966171168
      %v527 = vunpack.c.0.s8 %v526
      %v528 = vlaneseq
      %v529 = vshrl.u32 %v528, 7
      %v530 = vsub.s32 %v527, %v529
      %v531 = vrot.slane %v509, %v530
      %v533 = vunpack.c.l.s4 1966171168
      %v534 = vunpack.c.0.s8 %v533
      %v535 = vlaneseq
      %v536 = vshrl.u32 %v535, 7
      %v537 = vsub.s32 %v534, %v536
      %v538 = vrot.slane %v510, %v537
      %v539 = vcombine.high %v517, %v517
      %v540 = vcombine.high %v524, %v524
      %v541 = vcombine.high %v531, %v531
      %v542 = vcombine.high %v538, %v538
      %v543 = vlaneseq
      %v544 = vshrl.u32 %v543, 7
      %v545 = vsub.s32 0, %v544
      %v546 = vrot.slane %v468, %v545
      %v547 = vlaneseq
      %v548 = vshrl.u32 %v547, 7
      %v549 = vsub.s32 0, %v548
      %v550 = vrot.slane %v482, %v549
      %v551 = vlaneseq
      %v552 = vshrl.u32 %v551, 7
      %v553 = vsub.s32 0, %v552
      %v554 = vrot.slane %v490, %v553
      %v555 = vlaneseq
      %v556 = vshrl.u32 %v555, 7
      %v557 = vsub.s32 0, %v556
      %v558 = vrot.slane %v492, %v557
      %v559 = vlaneseq
      %v560 = vshrl.u32 %v559, 7
      %v561 = vsub.s32 0, %v560
      %v562 = vrot.slane %v475, %v561
      %v563 = vlaneseq
      %v564 = vshrl.u32 %v563, 7
      %v565 = vsub.s32 0, %v564
      %v566 = vrot.slane %v489, %v565
      %v567 = vlaneseq
      %v568 = vshrl.u32 %v567, 7
      %v569 = vsub.s32 0, %v568
      %v570 = vrot.slane %v491, %v569
      %v571 = vlaneseq
      %v572 = vshrl.u32 %v571, 7
      %v573 = vsub.s32 0, %v572
      %v574 = vrot.slane %v493, %v573
      %v575 = vlaneseq
      %v576 = vshrl.u32 %v575, 7
      %v577 = vsub.s32 0, %v576
      %v578 = vrot.slane %v517, %v577
      %v579 = vlaneseq
      %v580 = vshrl.u32 %v579, 7
      %v581 = vsub.s32 0, %v580
      %v582 = vrot.slane %v531, %v581
      %v583 = vlaneseq
      %v584 = vshrl.u32 %v583, 7
      %v585 = vsub.s32 0, %v584
      %v586 = vrot.slane %v539, %v585
      %v587 = vlaneseq
      %v588 = vshrl.u32 %v587, 7
      %v589 = vsub.s32 0, %v588
      %v590 = vrot.slane %v541, %v589
      %v591 = vlaneseq
      %v592 = vshrl.u32 %v591, 7
      %v593 = vsub.s32 0, %v592
      %v594 = vrot.slane %v524, %v593
      %v595 = vlaneseq
      %v596 = vshrl.u32 %v595, 7
      %v597 = vsub.s32 0, %v596
      %v598 = vrot.slane %v538, %v597
      %v599 = vlaneseq
      %v600 = vshrl.u32 %v599, 7
      %v601 = vsub.s32 0, %v600
      %v602 = vrot.slane %v540, %v601
      %v603 = vlaneseq
      %v604 = vshrl.u32 %v603, 7
      %v605 = vsub.s32 0, %v604
      %v606 = vrot.slane %v542, %v605
      %v623 = vmul.f32 %v546, %v438
      %v624 = vmul.f32 %v546, %v439
      %v625 = vmul.f32 %v550, %v438
      %v626 = vmul.f32 %v550, %v439
      %v627 = vmul.f32 %v554, %v438
      %v628 = vmul.f32 %v554, %v439
      %v629 = vmul.f32 %v558, %v438
      %v630 = vmul.f32 %v558, %v439
      %v631 = vmul.f32 %v562, %v438
      %v632 = vmul.f32 %v562, %v439
      %v633 = vmul.f32 %v566, %v438
      %v634 = vmul.f32 %v566, %v439
      %v635 = vmul.f32 %v570, %v438
      %v636 = vmul.f32 %v570, %v439
      %v637 = vmul.f32 %v574, %v438
      %v638 = vmul.f32 %v574, %v439
      %v639 = vmul.f32 %v578, %v438
      %v640 = vmul.f32 %v578, %v439
      %v641 = vmul.f32 %v582, %v438
      %v642 = vmul.f32 %v582, %v439
      %v643 = vmul.f32 %v586, %v438
      %v644 = vmul.f32 %v586, %v439
      %v645 = vmul.f32 %v590, %v438
      %v646 = vmul.f32 %v590, %v439
      %v647 = vmul.f32 %v594, %v438
      %v648 = vmul.f32 %v594, %v439
      %v649 = vmul.f32 %v598, %v438
      %v650 = vmul.f32 %v598, %v439
      %v651 = vmul.f32 %v602, %v438
      %v652 = vmul.f32 %v602, %v439
      %v653 = vmul.f32 %v606, %v438
      %v654 = vmul.f32 %v606, %v439
      %v655 = vadd.f32 %v399, %v623
      %v656 = vadd.f32 %v400, %v624
      %v657 = vadd.f32 %v401, %v625
      %v658 = vadd.f32 %v402, %v626
      %v659 = vadd.f32 %v403, %v627
      %v660 = vadd.f32 %v404, %v628
      %v661 = vadd.f32 %v405, %v629
      %v662 = vadd.f32 %v406, %v630
      %v663 = vadd.f32 %v407, %v631
      %v664 = vadd.f32 %v408, %v632
      %v665 = vadd.f32 %v409, %v633
      %v666 = vadd.f32 %v410, %v634
      %v667 = vadd.f32 %v411, %v635
      %v668 = vadd.f32 %v412, %v636
      %v669 = vadd.f32 %v413, %v637
      %v670 = vadd.f32 %v414, %v638
      %v671 = vadd.f32 %v415, %v639
      %v672 = vadd.f32 %v416, %v640
      %v673 = vadd.f32 %v417, %v641
      %v674 = vadd.f32 %v418, %v642
      %v675 = vadd.f32 %v419, %v643
      %v676 = vadd.f32 %v420, %v644
      %v677 = vadd.f32 %v421, %v645
      %v678 = vadd.f32 %v422, %v646
      %v679 = vadd.f32 %v423, %v647
      %v680 = vadd.f32 %v424, %v648
      %v681 = vadd.f32 %v425, %v649
      %v682 = vadd.f32 %v426, %v650
      %v683 = vadd.f32 %v427, %v651
      %v684 = vadd.f32 %v428, %v652
      %v685 = vadd.f32 %v429, %v653
      %v686 = vadd.f32 %v430, %v654
      %s687 = scalar_lea.vmem %s198, 32
      %v688 = vld [vmem:[%s687] sm:$0xff]
      %v689 = vld [vmem:[%s687 + $0x8] sm:$0xff]
      %v690 = vlaneseq
      %v691 = vshrl.u32 %v690, 7
      %v692 = vsub.s32 2, %v691
      %v693 = vrot.slane %v208, %v692
      %v694 = vmul.f32 %v688, %v693
      %v695 = vmul.f32 %v689, %v693
      %s696 = scalar_lea.vmem %s193, 32
      %v697 = vld [vmem:[%s696] sm:$0xff]
      %v698 = vld [vmem:[%s696 + $0x8] sm:$0xff]
      %v701 = vcombine.high %v697, %v697
      %v703 = vunpack.c.l.s4 1966171168
      %v704 = vunpack.c.0.s8 %v703
      %v705 = vlaneseq
      %v706 = vshrl.u32 %v705, 7
      %v707 = vsub.s32 %v704, %v706
      %v708 = vrot.slane %v697, %v707
      %v710 = vunpack.c.l.s4 1966171168
      %v711 = vunpack.c.0.s8 %v710
      %v712 = vlaneseq
      %v713 = vshrl.u32 %v712, 7
      %v714 = vsub.s32 %v711, %v713
      %v715 = vrot.slane %v701, %v714
      %v716 = vcombine.high %v708, %v708
      %v717 = vcombine.high %v715, %v715
      %v719 = vunpack.c.l.s4 1966171168
      %v720 = vunpack.c.0.s8 %v719
      %v721 = vlaneseq
      %v722 = vshrl.u32 %v721, 7
      %v723 = vsub.s32 %v720, %v722
      %v724 = vrot.slane %v708, %v723
      %v726 = vunpack.c.l.s4 1966171168
      %v727 = vunpack.c.0.s8 %v726
      %v728 = vlaneseq
      %v729 = vshrl.u32 %v728, 7
      %v730 = vsub.s32 %v727, %v729
      %v731 = vrot.slane %v715, %v730
      %v733 = vunpack.c.l.s4 1966171168
      %v734 = vunpack.c.0.s8 %v733
      %v735 = vlaneseq
      %v736 = vshrl.u32 %v735, 7
      %v737 = vsub.s32 %v734, %v736
      %v738 = vrot.slane %v716, %v737
      %v740 = vunpack.c.l.s4 1966171168
      %v741 = vunpack.c.0.s8 %v740
      %v742 = vlaneseq
      %v743 = vshrl.u32 %v742, 7
      %v744 = vsub.s32 %v741, %v743
      %v745 = vrot.slane %v717, %v744
      %v746 = vcombine.high %v724, %v724
      %v747 = vcombine.high %v731, %v731
      %v748 = vcombine.high %v738, %v738
      %v749 = vcombine.high %v745, %v745
      %v750 = vcombine.high %v698, %v698
      %v752 = vunpack.c.l.s4 1966171168
      %v753 = vunpack.c.0.s8 %v752
      %v754 = vlaneseq
      %v755 = vshrl.u32 %v754, 7
      %v756 = vsub.s32 %v753, %v755
      %v757 = vrot.slane %v698, %v756
      %v759 = vunpack.c.l.s4 1966171168
      %v760 = vunpack.c.0.s8 %v759
      %v761 = vlaneseq
      %v762 = vshrl.u32 %v761, 7
      %v763 = vsub.s32 %v760, %v762
      %v764 = vrot.slane %v750, %v763
      %v765 = vcombine.high %v757, %v757
      %v766 = vcombine.high %v764, %v764
      %v768 = vunpack.c.l.s4 1966171168
      %v769 = vunpack.c.0.s8 %v768
      %v770 = vlaneseq
      %v771 = vshrl.u32 %v770, 7
      %v772 = vsub.s32 %v769, %v771
      %v773 = vrot.slane %v757, %v772
      %v775 = vunpack.c.l.s4 1966171168
      %v776 = vunpack.c.0.s8 %v775
      %v777 = vlaneseq
      %v778 = vshrl.u32 %v777, 7
      %v779 = vsub.s32 %v776, %v778
      %v780 = vrot.slane %v764, %v779
      %v782 = vunpack.c.l.s4 1966171168
      %v783 = vunpack.c.0.s8 %v782
      %v784 = vlaneseq
      %v785 = vshrl.u32 %v784, 7
      %v786 = vsub.s32 %v783, %v785
      %v787 = vrot.slane %v765, %v786
      %v789 = vunpack.c.l.s4 1966171168
      %v790 = vunpack.c.0.s8 %v789
      %v791 = vlaneseq
      %v792 = vshrl.u32 %v791, 7
      %v793 = vsub.s32 %v790, %v792
      %v794 = vrot.slane %v766, %v793
      %v795 = vcombine.high %v773, %v773
      %v796 = vcombine.high %v780, %v780
      %v797 = vcombine.high %v787, %v787
      %v798 = vcombine.high %v794, %v794
      %v799 = vlaneseq
      %v800 = vshrl.u32 %v799, 7
      %v801 = vsub.s32 0, %v800
      %v802 = vrot.slane %v724, %v801
      %v803 = vlaneseq
      %v804 = vshrl.u32 %v803, 7
      %v805 = vsub.s32 0, %v804
      %v806 = vrot.slane %v738, %v805
      %v807 = vlaneseq
      %v808 = vshrl.u32 %v807, 7
      %v809 = vsub.s32 0, %v808
      %v810 = vrot.slane %v746, %v809
      %v811 = vlaneseq
      %v812 = vshrl.u32 %v811, 7
      %v813 = vsub.s32 0, %v812
      %v814 = vrot.slane %v748, %v813
      %v815 = vlaneseq
      %v816 = vshrl.u32 %v815, 7
      %v817 = vsub.s32 0, %v816
      %v818 = vrot.slane %v731, %v817
      %v819 = vlaneseq
      %v820 = vshrl.u32 %v819, 7
      %v821 = vsub.s32 0, %v820
      %v822 = vrot.slane %v745, %v821
      %v823 = vlaneseq
      %v824 = vshrl.u32 %v823, 7
      %v825 = vsub.s32 0, %v824
      %v826 = vrot.slane %v747, %v825
      %v827 = vlaneseq
      %v828 = vshrl.u32 %v827, 7
      %v829 = vsub.s32 0, %v828
      %v830 = vrot.slane %v749, %v829
      %v831 = vlaneseq
      %v832 = vshrl.u32 %v831, 7
      %v833 = vsub.s32 0, %v832
      %v834 = vrot.slane %v773, %v833
      %v835 = vlaneseq
      %v836 = vshrl.u32 %v835, 7
      %v837 = vsub.s32 0, %v836
      %v838 = vrot.slane %v787, %v837
      %v839 = vlaneseq
      %v840 = vshrl.u32 %v839, 7
      %v841 = vsub.s32 0, %v840
      %v842 = vrot.slane %v795, %v841
      %v843 = vlaneseq
      %v844 = vshrl.u32 %v843, 7
      %v845 = vsub.s32 0, %v844
      %v846 = vrot.slane %v797, %v845
      %v847 = vlaneseq
      %v848 = vshrl.u32 %v847, 7
      %v849 = vsub.s32 0, %v848
      %v850 = vrot.slane %v780, %v849
      %v851 = vlaneseq
      %v852 = vshrl.u32 %v851, 7
      %v853 = vsub.s32 0, %v852
      %v854 = vrot.slane %v794, %v853
      %v855 = vlaneseq
      %v856 = vshrl.u32 %v855, 7
      %v857 = vsub.s32 0, %v856
      %v858 = vrot.slane %v796, %v857
      %v859 = vlaneseq
      %v860 = vshrl.u32 %v859, 7
      %v861 = vsub.s32 0, %v860
      %v862 = vrot.slane %v798, %v861
      %v879 = vmul.f32 %v802, %v694
      %v880 = vmul.f32 %v802, %v695
      %v881 = vmul.f32 %v806, %v694
      %v882 = vmul.f32 %v806, %v695
      %v883 = vmul.f32 %v810, %v694
      %v884 = vmul.f32 %v810, %v695
      %v885 = vmul.f32 %v814, %v694
      %v886 = vmul.f32 %v814, %v695
      %v887 = vmul.f32 %v818, %v694
      %v888 = vmul.f32 %v818, %v695
      %v889 = vmul.f32 %v822, %v694
      %v890 = vmul.f32 %v822, %v695
      %v891 = vmul.f32 %v826, %v694
      %v892 = vmul.f32 %v826, %v695
      %v893 = vmul.f32 %v830, %v694
      %v894 = vmul.f32 %v830, %v695
      %v895 = vmul.f32 %v834, %v694
      %v896 = vmul.f32 %v834, %v695
      %v897 = vmul.f32 %v838, %v694
      %v898 = vmul.f32 %v838, %v695
      %v899 = vmul.f32 %v842, %v694
      %v900 = vmul.f32 %v842, %v695
      %v901 = vmul.f32 %v846, %v694
      %v902 = vmul.f32 %v846, %v695
      %v903 = vmul.f32 %v850, %v694
      %v904 = vmul.f32 %v850, %v695
      %v905 = vmul.f32 %v854, %v694
      %v906 = vmul.f32 %v854, %v695
      %v907 = vmul.f32 %v858, %v694
      %v908 = vmul.f32 %v858, %v695
      %v909 = vmul.f32 %v862, %v694
      %v910 = vmul.f32 %v862, %v695
      %v911 = vadd.f32 %v655, %v879
      %v912 = vadd.f32 %v656, %v880
      %v913 = vadd.f32 %v657, %v881
      %v914 = vadd.f32 %v658, %v882
      %v915 = vadd.f32 %v659, %v883
      %v916 = vadd.f32 %v660, %v884
      %v917 = vadd.f32 %v661, %v885
      %v918 = vadd.f32 %v662, %v886
      %v919 = vadd.f32 %v663, %v887
      %v920 = vadd.f32 %v664, %v888
      %v921 = vadd.f32 %v665, %v889
      %v922 = vadd.f32 %v666, %v890
      %v923 = vadd.f32 %v667, %v891
      %v924 = vadd.f32 %v668, %v892
      %v925 = vadd.f32 %v669, %v893
      %v926 = vadd.f32 %v670, %v894
      %v927 = vadd.f32 %v671, %v895
      %v928 = vadd.f32 %v672, %v896
      %v929 = vadd.f32 %v673, %v897
      %v930 = vadd.f32 %v674, %v898
      %v931 = vadd.f32 %v675, %v899
      %v932 = vadd.f32 %v676, %v900
      %v933 = vadd.f32 %v677, %v901
      %v934 = vadd.f32 %v678, %v902
      %v935 = vadd.f32 %v679, %v903
      %v936 = vadd.f32 %v680, %v904
      %v937 = vadd.f32 %v681, %v905
      %v938 = vadd.f32 %v682, %v906
      %v939 = vadd.f32 %v683, %v907
      %v940 = vadd.f32 %v684, %v908
      %v941 = vadd.f32 %v685, %v909
      %v942 = vadd.f32 %v686, %v910
      %s943 = scalar_lea.vmem %s198, 48
      %v944 = vld [vmem:[%s943] sm:$0xff]
      %v945 = vld [vmem:[%s943 + $0x8] sm:$0xff]
      %v946 = vlaneseq
      %v947 = vshrl.u32 %v946, 7
      %v948 = vsub.s32 3, %v947
      %v949 = vrot.slane %v208, %v948
      %v950 = vmul.f32 %v944, %v949
      %v951 = vmul.f32 %v945, %v949
      %s952 = scalar_lea.vmem %s193, 48
      %v953 = vld [vmem:[%s952] sm:$0xff]
      %v954 = vld [vmem:[%s952 + $0x8] sm:$0xff]
      %v957 = vcombine.high %v953, %v953
      %v959 = vunpack.c.l.s4 1966171168
      %v960 = vunpack.c.0.s8 %v959
      %v961 = vlaneseq
      %v962 = vshrl.u32 %v961, 7
      %v963 = vsub.s32 %v960, %v962
      %v964 = vrot.slane %v953, %v963
      %v966 = vunpack.c.l.s4 1966171168
      %v967 = vunpack.c.0.s8 %v966
      %v968 = vlaneseq
      %v969 = vshrl.u32 %v968, 7
      %v970 = vsub.s32 %v967, %v969
      %v971 = vrot.slane %v957, %v970
      %v972 = vcombine.high %v964, %v964
      %v973 = vcombine.high %v971, %v971
      %v975 = vunpack.c.l.s4 1966171168
      %v976 = vunpack.c.0.s8 %v975
      %v977 = vlaneseq
      %v978 = vshrl.u32 %v977, 7
      %v979 = vsub.s32 %v976, %v978
      %v980 = vrot.slane %v964, %v979
      %v982 = vunpack.c.l.s4 1966171168
      %v983 = vunpack.c.0.s8 %v982
      %v984 = vlaneseq
      %v985 = vshrl.u32 %v984, 7
      %v986 = vsub.s32 %v983, %v985
      %v987 = vrot.slane %v971, %v986
      %v989 = vunpack.c.l.s4 1966171168
      %v990 = vunpack.c.0.s8 %v989
      %v991 = vlaneseq
      %v992 = vshrl.u32 %v991, 7
      %v993 = vsub.s32 %v990, %v992
      %v994 = vrot.slane %v972, %v993
      %v996 = vunpack.c.l.s4 1966171168
      %v997 = vunpack.c.0.s8 %v996
      %v998 = vlaneseq
      %v999 = vshrl.u32 %v998, 7
      %v1000 = vsub.s32 %v997, %v999
      %v1001 = vrot.slane %v973, %v1000
      %v1002 = vcombine.high %v980, %v980
      %v1003 = vcombine.high %v987, %v987
      %v1004 = vcombine.high %v994, %v994
      %v1005 = vcombine.high %v1001, %v1001
      %v1006 = vcombine.high %v954, %v954
      %v1008 = vunpack.c.l.s4 1966171168
      %v1009 = vunpack.c.0.s8 %v1008
      %v1010 = vlaneseq
      %v1011 = vshrl.u32 %v1010, 7
      %v1012 = vsub.s32 %v1009, %v1011
      %v1013 = vrot.slane %v954, %v1012
      %v1015 = vunpack.c.l.s4 1966171168
      %v1016 = vunpack.c.0.s8 %v1015
      %v1017 = vlaneseq
      %v1018 = vshrl.u32 %v1017, 7
      %v1019 = vsub.s32 %v1016, %v1018
      %v1020 = vrot.slane %v1006, %v1019
      %v1021 = vcombine.high %v1013, %v1013
      %v1022 = vcombine.high %v1020, %v1020
      %v1024 = vunpack.c.l.s4 1966171168
      %v1025 = vunpack.c.0.s8 %v1024
      %v1026 = vlaneseq
      %v1027 = vshrl.u32 %v1026, 7
      %v1028 = vsub.s32 %v1025, %v1027
      %v1029 = vrot.slane %v1013, %v1028
      %v1031 = vunpack.c.l.s4 1966171168
      %v1032 = vunpack.c.0.s8 %v1031
      %v1033 = vlaneseq
      %v1034 = vshrl.u32 %v1033, 7
      %v1035 = vsub.s32 %v1032, %v1034
      %v1036 = vrot.slane %v1020, %v1035
      %v1038 = vunpack.c.l.s4 1966171168
      %v1039 = vunpack.c.0.s8 %v1038
      %v1040 = vlaneseq
      %v1041 = vshrl.u32 %v1040, 7
      %v1042 = vsub.s32 %v1039, %v1041
      %v1043 = vrot.slane %v1021, %v1042
      %v1045 = vunpack.c.l.s4 1966171168
      %v1046 = vunpack.c.0.s8 %v1045
      %v1047 = vlaneseq
      %v1048 = vshrl.u32 %v1047, 7
      %v1049 = vsub.s32 %v1046, %v1048
      %v1050 = vrot.slane %v1022, %v1049
      %v1051 = vcombine.high %v1029, %v1029
      %v1052 = vcombine.high %v1036, %v1036
      %v1053 = vcombine.high %v1043, %v1043
      %v1054 = vcombine.high %v1050, %v1050
      %v1055 = vlaneseq
      %v1056 = vshrl.u32 %v1055, 7
      %v1057 = vsub.s32 0, %v1056
      %v1058 = vrot.slane %v980, %v1057
      %v1059 = vlaneseq
      %v1060 = vshrl.u32 %v1059, 7
      %v1061 = vsub.s32 0, %v1060
      %v1062 = vrot.slane %v994, %v1061
      %v1063 = vlaneseq
      %v1064 = vshrl.u32 %v1063, 7
      %v1065 = vsub.s32 0, %v1064
      %v1066 = vrot.slane %v1002, %v1065
      %v1067 = vlaneseq
      %v1068 = vshrl.u32 %v1067, 7
      %v1069 = vsub.s32 0, %v1068
      %v1070 = vrot.slane %v1004, %v1069
      %v1071 = vlaneseq
      %v1072 = vshrl.u32 %v1071, 7
      %v1073 = vsub.s32 0, %v1072
      %v1074 = vrot.slane %v987, %v1073
      %v1075 = vlaneseq
      %v1076 = vshrl.u32 %v1075, 7
      %v1077 = vsub.s32 0, %v1076
      %v1078 = vrot.slane %v1001, %v1077
      %v1079 = vlaneseq
      %v1080 = vshrl.u32 %v1079, 7
      %v1081 = vsub.s32 0, %v1080
      %v1082 = vrot.slane %v1003, %v1081
      %v1083 = vlaneseq
      %v1084 = vshrl.u32 %v1083, 7
      %v1085 = vsub.s32 0, %v1084
      %v1086 = vrot.slane %v1005, %v1085
      %v1087 = vlaneseq
      %v1088 = vshrl.u32 %v1087, 7
      %v1089 = vsub.s32 0, %v1088
      %v1090 = vrot.slane %v1029, %v1089
      %v1091 = vlaneseq
      %v1092 = vshrl.u32 %v1091, 7
      %v1093 = vsub.s32 0, %v1092
      %v1094 = vrot.slane %v1043, %v1093
      %v1095 = vlaneseq
      %v1096 = vshrl.u32 %v1095, 7
      %v1097 = vsub.s32 0, %v1096
      %v1098 = vrot.slane %v1051, %v1097
      %v1099 = vlaneseq
      %v1100 = vshrl.u32 %v1099, 7
      %v1101 = vsub.s32 0, %v1100
      %v1102 = vrot.slane %v1053, %v1101
      %v1103 = vlaneseq
      %v1104 = vshrl.u32 %v1103, 7
      %v1105 = vsub.s32 0, %v1104
      %v1106 = vrot.slane %v1036, %v1105
      %v1107 = vlaneseq
      %v1108 = vshrl.u32 %v1107, 7
      %v1109 = vsub.s32 0, %v1108
      %v1110 = vrot.slane %v1050, %v1109
      %v1111 = vlaneseq
      %v1112 = vshrl.u32 %v1111, 7
      %v1113 = vsub.s32 0, %v1112
      %v1114 = vrot.slane %v1052, %v1113
      %v1115 = vlaneseq
      %v1116 = vshrl.u32 %v1115, 7
      %v1117 = vsub.s32 0, %v1116
      %v1118 = vrot.slane %v1054, %v1117
      %v1135 = vmul.f32 %v1058, %v950
      %v1136 = vmul.f32 %v1058, %v951
      %v1137 = vmul.f32 %v1062, %v950
      %v1138 = vmul.f32 %v1062, %v951
      %v1139 = vmul.f32 %v1066, %v950
      %v1140 = vmul.f32 %v1066, %v951
      %v1141 = vmul.f32 %v1070, %v950
      %v1142 = vmul.f32 %v1070, %v951
      %v1143 = vmul.f32 %v1074, %v950
      %v1144 = vmul.f32 %v1074, %v951
      %v1145 = vmul.f32 %v1078, %v950
      %v1146 = vmul.f32 %v1078, %v951
      %v1147 = vmul.f32 %v1082, %v950
      %v1148 = vmul.f32 %v1082, %v951
      %v1149 = vmul.f32 %v1086, %v950
      %v1150 = vmul.f32 %v1086, %v951
      %v1151 = vmul.f32 %v1090, %v950
      %v1152 = vmul.f32 %v1090, %v951
      %v1153 = vmul.f32 %v1094, %v950
      %v1154 = vmul.f32 %v1094, %v951
      %v1155 = vmul.f32 %v1098, %v950
      %v1156 = vmul.f32 %v1098, %v951
      %v1157 = vmul.f32 %v1102, %v950
      %v1158 = vmul.f32 %v1102, %v951
      %v1159 = vmul.f32 %v1106, %v950
      %v1160 = vmul.f32 %v1106, %v951
      %v1161 = vmul.f32 %v1110, %v950
      %v1162 = vmul.f32 %v1110, %v951
      %v1163 = vmul.f32 %v1114, %v950
      %v1164 = vmul.f32 %v1114, %v951
      %v1165 = vmul.f32 %v1118, %v950
      %v1166 = vmul.f32 %v1118, %v951
      %v1167 = vadd.f32 %v911, %v1135
      %v1168 = vadd.f32 %v912, %v1136
      %v1169 = vadd.f32 %v913, %v1137
      %v1170 = vadd.f32 %v914, %v1138
      %v1171 = vadd.f32 %v915, %v1139
      %v1172 = vadd.f32 %v916, %v1140
      %v1173 = vadd.f32 %v917, %v1141
      %v1174 = vadd.f32 %v918, %v1142
      %v1175 = vadd.f32 %v919, %v1143
      %v1176 = vadd.f32 %v920, %v1144
      %v1177 = vadd.f32 %v921, %v1145
      %v1178 = vadd.f32 %v922, %v1146
      %v1179 = vadd.f32 %v923, %v1147
      %v1180 = vadd.f32 %v924, %v1148
      %v1181 = vadd.f32 %v925, %v1149
      %v1182 = vadd.f32 %v926, %v1150
      %v1183 = vadd.f32 %v927, %v1151
      %v1184 = vadd.f32 %v928, %v1152
      %v1185 = vadd.f32 %v929, %v1153
      %v1186 = vadd.f32 %v930, %v1154
      %v1187 = vadd.f32 %v931, %v1155
      %v1188 = vadd.f32 %v932, %v1156
      %v1189 = vadd.f32 %v933, %v1157
      %v1190 = vadd.f32 %v934, %v1158
      %v1191 = vadd.f32 %v935, %v1159
      %v1192 = vadd.f32 %v936, %v1160
      %v1193 = vadd.f32 %v937, %v1161
      %v1194 = vadd.f32 %v938, %v1162
      %v1195 = vadd.f32 %v939, %v1163
      %v1196 = vadd.f32 %v940, %v1164
      %v1197 = vadd.f32 %v941, %v1165
      %v1198 = vadd.f32 %v942, %v1166
      %1199 = vst [vmem:[%s207] sm:$0xff] %v1167
      %1200 = vst [vmem:[%s207 + $0x8] sm:$0xff] %v1168
      %1201 = vst [vmem:[%s207 + $0x10] sm:$0xff] %v1169
      %1202 = vst [vmem:[%s207 + $0x18] sm:$0xff] %v1170
      %1203 = vst [vmem:[%s207 + $0x20] sm:$0xff] %v1171
      %1204 = vst [vmem:[%s207 + $0x28] sm:$0xff] %v1172
      %1205 = vst [vmem:[%s207 + $0x30] sm:$0xff] %v1173
      %1206 = vst [vmem:[%s207 + $0x38] sm:$0xff] %v1174
      %1207 = vst [vmem:[%s207 + $0x40] sm:$0xff] %v1175
      %1208 = vst [vmem:[%s207 + $0x48] sm:$0xff] %v1176
      %1209 = vst [vmem:[%s207 + $0x50] sm:$0xff] %v1177
      %1210 = vst [vmem:[%s207 + $0x58] sm:$0xff] %v1178
      %1211 = vst [vmem:[%s207 + $0x60] sm:$0xff] %v1179
      %1212 = vst [vmem:[%s207 + $0x68] sm:$0xff] %v1180
      %1213 = vst [vmem:[%s207 + $0x70] sm:$0xff] %v1181
      %1214 = vst [vmem:[%s207 + $0x78] sm:$0xff] %v1182
      %1215 = vst [vmem:[%s207 + $0x80] sm:$0xff] %v1183
      %1216 = vst [vmem:[%s207 + $0x88] sm:$0xff] %v1184
      %1217 = vst [vmem:[%s207 + $0x90] sm:$0xff] %v1185
      %1218 = vst [vmem:[%s207 + $0x98] sm:$0xff] %v1186
      %1219 = vst [vmem:[%s207 + $0xa0] sm:$0xff] %v1187
      %1220 = vst [vmem:[%s207 + $0xa8] sm:$0xff] %v1188
      %1221 = vst [vmem:[%s207 + $0xb0] sm:$0xff] %v1189
      %1222 = vst [vmem:[%s207 + $0xb8] sm:$0xff] %v1190
      %1223 = vst [vmem:[%s207 + $0xc0] sm:$0xff] %v1191
      %1224 = vst [vmem:[%s207 + $0xc8] sm:$0xff] %v1192
      %1225 = vst [vmem:[%s207 + $0xd0] sm:$0xff] %v1193
      %1226 = vst [vmem:[%s207 + $0xd8] sm:$0xff] %v1194
      %1227 = vst [vmem:[%s207 + $0xe0] sm:$0xff] %v1195
      %1228 = vst [vmem:[%s207 + $0xe8] sm:$0xff] %v1196
      %1229 = vst [vmem:[%s207 + $0xf0] sm:$0xff] %v1197
      %1230 = vst [vmem:[%s207 + $0xf8] sm:$0xff] %v1198
      %p1231 = scmp.lt.s32.totalorder %s14, 1
      %s1232 = scalar_select %p1231, %s14, 1
      %s1233 = smul.addr %s1232, 32
      %s1234 = smul.addr %s1233, 8
      %s1235 = scalar_lea.vmem %s3, %s1234
      // Predicated region
      $region33: #{slim_cc_auto_decoder_forward.3} parent=31 // pred_check
        %p1236 = pneg %p110
      $region34: #{slim_cc_auto_decoder_forward.3} parent=31 // pred_check_branch
        %1238 = sbr.rel (%p1236) target = $region36
      $region35: #{slim_cc_auto_decoder_forward.3} parent=31 // pred_region
        _
      $region36: #{slim_cc_auto_decoder_forward.3} parent=31 // pred_fallthru
        _
    $region32: #{slim_cc_auto_decoder_forward.3} parent=5 // pred_fallthru
      _
    %p1239 = scmp.le.s32.totalorder 2, %s9
    // Predicated region
    $region37: #{slim_cc_auto_decoder_forward.3} parent=5 // pred_check
      %p1240 = pneg %p1239
    $region38: #{slim_cc_auto_decoder_forward.3} parent=5 // pred_check_branch
      %1242 = sbr.rel (%p1240) target = $region40
    $region39: #{slim_cc_auto_decoder_forward.3} parent=5 // pred_region
      %s1243 = ssub.s32 %s9, 2
      // Predicated region
      $region41: #{slim_cc_auto_decoder_forward.3} parent=39 // pred_check
        %p1244 = pneg %p116
      $region42: #{slim_cc_auto_decoder_forward.3} parent=39 // pred_check_branch
        %1246 = sbr.rel (%p1244) target = $region44
      $region43: #{slim_cc_auto_decoder_forward.3} parent=39 // pred_region
        %p1247 = scmp.lt.s32.totalorder %s15, 1
        %s1248 = scalar_select %p1247, %s15, 1
        %s1249 = smul.addr %s1248, 32
        %s1250 = smul.addr %s1249, 8
        %s1251 = scalar_lea.vmem %s3, %s1250
      $region44: #{slim_cc_auto_decoder_forward.3} parent=39 // pred_fallthru
        _
    $region40: #{slim_cc_auto_decoder_forward.3} parent=5 // pred_fallthru
      _
  $region6: #{slim_cc_auto_decoder_forward.3} parent=0 // loop_footer
    %s13 = sadd.s32 1, %s9
  $region7: #{slim_cc_auto_decoder_forward.3} parent=0 // loop_footer_branch
    %8 = sbr.rel target = $region3
  $region8: #{slim_cc_auto_decoder_forward.3} parent=0 // loop_exit
    _

// kernel: slim_cc_auto_decoder_forward.2
$region0: #{slim_cc_auto_decoder_forward.2}
  #allocation0 [shape = 'u32[]', space=smem, size = 0x4, offset = 0x4, fixed_abs, tag = 'smem constant byte address 0x4 - core index']
  #allocation1 [shape = 'u32[144,128]{1,0:T(1,128)}', space=vmem, size = 0x12000, scoped, tag = 'internal scratch']
  %s0 = inlined_call_operand.smem [shape: u32[62], index: -1, kind: input, shape index: {}]
  %s1 = sld [smem:[%s0]]
  %s2 = scalar_lea.smem %s0, 1
  %s3 = sld [smem:[%s2]]
  %s4 = scalar_lea.smem %s0, 2
  %s5 = sld [smem:[%s4]]
  %s6 = scalar_lea.smem %s0, 3
  %s7 = sld [smem:[%s6]]
  %s8 = scalar_lea.smem %s0, 4
  %s9 = sld [smem:[%s8]]
  %s10 = scalar_lea.smem %s0, 5
  %s11 = sld [smem:[%s10]]
  %s12 = scalar_lea.smem %s0, 6
  %s13 = sld [smem:[%s12]]
  %s14 = scalar_lea.smem %s0, 7
  %s15 = sld [smem:[%s14]]
  %s16 = scalar_lea.smem %s0, 8
  %s17 = sld [smem:[%s16]]
  %s18 = scalar_lea.smem %s0, 9
  %s19 = sld [smem:[%s18]]
  %s20 = scalar_lea.smem %s0, 10
  %s21 = sld [smem:[%s20]]
  %s22 = scalar_lea.smem %s0, 11
  %s23 = sld [smem:[%s22]]
  %s24 = scalar_lea.smem %s0, 12
  %s25 = sld [smem:[%s24]]
  %s26 = scalar_lea.smem %s0, 13
  %s27 = sld [smem:[%s26]]
  %s28 = scalar_lea.smem %s0, 14
  %s29 = sld [smem:[%s28]]
  %s30 = scalar_lea.smem %s0, 15
  %s31 = sld [smem:[%s30]]
  %s32 = scalar_lea.smem %s0, 16
  %s33 = sld [smem:[%s32]]
  %s34 = scalar_lea.smem %s0, 17
  %s35 = sld [smem:[%s34]]
  %s36 = scalar_lea.smem %s0, 18
  %s37 = sld [smem:[%s36]]
  %s38 = scalar_lea.smem %s0, 19
  %s39 = sld [smem:[%s38]]
  %s40 = scalar_lea.smem %s0, 20
  %s41 = sld [smem:[%s40]]
  %s42 = scalar_lea.smem %s0, 21
  %s43 = sld [smem:[%s42]]
  %s44 = scalar_lea.smem %s0, 22
  %s45 = sld [smem:[%s44]]
  %s46 = scalar_lea.smem %s0, 23
  %s47 = sld [smem:[%s46]]
  %s48 = scalar_lea.smem %s0, 24
  %s49 = sld [smem:[%s48]]
  %s50 = scalar_lea.smem %s0, 25
  %s51 = sld [smem:[%s50]]
  %s52 = scalar_lea.smem %s0, 26
  %s53 = sld [smem:[%s52]]
  %s54 = scalar_lea.smem %s0, 27
  %s55 = sld [smem:[%s54]]
  %s56 = scalar_lea.smem %s0, 28
  %s57 = sld [smem:[%s56]]
  %s58 = scalar_lea.smem %s0, 29
  %s59 = sld [smem:[%s58]]
  %s60 = scalar_lea.smem %s0, 30
  %s61 = sld [smem:[%s60]]
  %s62 = scalar_lea.smem %s0, 31
  %s63 = sld [smem:[%s62]]
  %s64 = scalar_lea.smem %s0, 32
  %s65 = sld [smem:[%s64]]
  %s66 = scalar_lea.smem %s0, 33
  %s67 = sld [smem:[%s66]]
  %s68 = scalar_lea.smem %s0, 34
  %s69 = sld [smem:[%s68]]
  %s70 = scalar_lea.smem %s0, 35
  %s71 = sld [smem:[%s70]]
  %s72 = scalar_lea.smem %s0, 36
  %s73 = sld [smem:[%s72]]
  %s74 = scalar_lea.smem %s0, 37
  %s75 = sld [smem:[%s74]]
  %s76 = scalar_lea.smem %s0, 38
  %s77 = sld [smem:[%s76]]
  %s78 = scalar_lea.smem %s0, 39
  %s79 = sld [smem:[%s78]]
  %s80 = scalar_lea.smem %s0, 40
  %s81 = sld [smem:[%s80]]
  %s82 = scalar_lea.smem %s0, 41
  %s83 = sld [smem:[%s82]]
  %s84 = scalar_lea.smem %s0, 42
  %s85 = sld [smem:[%s84]]
  %s86 = scalar_lea.smem %s0, 43
  %s87 = sld [smem:[%s86]]
  %s88 = scalar_lea.smem %s0, 44
  %s89 = sld [smem:[%s88]]
  %s90 = scalar_lea.smem %s0, 45
  %s91 = sld [smem:[%s90]]
  %s92 = scalar_lea.smem %s0, 46
  %s93 = sld [smem:[%s92]]
  %s94 = scalar_lea.smem %s0, 47
  %s95 = sld [smem:[%s94]]
  %s96 = scalar_lea.smem %s0, 48
  %s97 = sld [smem:[%s96]]
  %s98 = scalar_lea.smem %s0, 49
  %s99 = sld [smem:[%s98]]
  %s100 = scalar_lea.smem %s0, 50
  %s101 = sld [smem:[%s100]]
  %s102 = scalar_lea.smem %s0, 51
  %s103 = sld [smem:[%s102]]
  %s104 = scalar_lea.smem %s0, 52
  %s105 = sld [smem:[%s104]]
  %s106 = scalar_lea.smem %s0, 53
  %s107 = sld [smem:[%s106]]
  %s108 = scalar_lea.smem %s0, 54
  %s109 = sld [smem:[%s108]]
  %s110 = scalar_lea.smem %s0, 55
  %s111 = sld [smem:[%s110]]
  %s112 = scalar_lea.smem %s0, 56
  %s113 = sld [smem:[%s112]]
  %s114 = scalar_lea.smem %s0, 57
  %s115 = sld [smem:[%s114]]
  %s116 = scalar_lea.smem %s0, 58
  %s117 = sld [smem:[%s116]]
  %s118 = scalar_lea.smem %s0, 59
  %s119 = sld [smem:[%s118]]
  %s120 = scalar_lea.smem %s0, 60
  %s121 = sld [smem:[%s120]]
  %s122 = scalar_lea.smem %s0, 61
  %s123 = sld [smem:[%s122]]
  %s124 = sld [smem:[#allocation0]]
  $region478: #{slim_cc_auto_decoder_forward.2} parent=0
    _
  %s126 = ssub.s32 1, %s124
  %s127 = scalar_select 0, %s126, %s124
  $region1: #{slim_cc_auto_decoder_forward.2} parent=0
    #allocation2 [shape = 'u8[98304]{0}', space=vmem, size = 0x18000, scoped, tag = 'input window, operand 3, single buffered']
    #allocation3 [shape = 's32[1]{0}', space=sflag, size = 0x4, scoped, tag = 'scoped memory for slim_cc_auto_decoder_forward.2']
    #allocation4 [shape = 'u8[512]{0}', space=vmem, size = 0x400, scoped, tag = 'input window, operand 4, single buffered']
    #allocation5 [shape = 's32[1]{0}', space=sflag, size = 0x4, scoped, tag = 'scoped memory for slim_cc_auto_decoder_forward.2']
    #allocation6 [shape = 'u8[512]{0}', space=vmem, size = 0x400, scoped, tag = 'input window, operand 5, single buffered']
    #allocation7 [shape = 'u8[512]{0}', space=vmem, size = 0x400, scoped, tag = 'input window, operand 6, single buffered']
    #allocation8 [shape = 's32[1]{0}', space=sflag, size = 0x4, scoped, tag = 'scoped memory for slim_cc_auto_decoder_forward.2']
    #allocation9 [shape = 'u8[98304]{0}', space=vmem, size = 0x18000, scoped, tag = 'input window, operand 7, single buffered']
    #allocation10 [shape = 'u8[512]{0}', space=vmem, size = 0x400, scoped, tag = 'input window, operand 8, single buffered']
    #allocation11 [shape = 's32[1]{0}', space=sflag, size = 0x4, scoped, tag = 'scoped memory for slim_cc_auto_decoder_forward.2']
    #allocation12 [shape = 'u8[512]{0}', space=vmem, size = 0x400, scoped, tag = 'input window, operand 9, single buffered']
    #allocation13 [shape = 'u8[512]{0}', space=vmem, size = 0x400, scoped, tag = 'input window, operand 10, single buffered']
    #allocation14 [shape = 's32[1]{0}', space=sflag, size = 0x4, scoped, tag = 'scoped memory for slim_cc_auto_decoder_forward.2']
    #allocation15 [shape = 'u8[512]{0}', space=vmem, size = 0x400, scoped, tag = 'input window, operand 12, single buffered']
    #allocation16 [shape = 'u8[512]{0}', space=vmem, size = 0x400, scoped, tag = 'input window, operand 13, single buffered']
    #allocation17 [shape = 's32[1]{0}', space=sflag, size = 0x4, scoped, tag = 'scoped memory for slim_cc_auto_decoder_forward.2']
    #allocation18 [shape = 'u8[512]{0}', space=vmem, size = 0x400, scoped, tag = 'input window, operand 14, single buffered']
    #allocation19 [shape = 'u8[49152]{0}', space=vmem, size = 0xc000, scoped, tag = 'input window, operand 15, single buffered']
    #allocation20 [shape = 's32[1]{0}', space=sflag, size = 0x4, scoped, tag = 'scoped memory for slim_cc_auto_decoder_forward.2']
    #allocation21 [shape = 'u8[512]{0}', space=vmem, size = 0x400, scoped, tag = 'input window, operand 16, single buffered']
    #allocation22 [shape = 'u8[512]{0}', space=vmem, size = 0x400, scoped, tag = 'input window, operand 17, single buffered']
    #allocation23 [shape = 's32[1]{0}', space=sflag, size = 0x4, scoped, tag = 'scoped memory for slim_cc_auto_decoder_forward.2']
    #allocation24 [shape = 'u8[512]{0}', space=vmem, size = 0x400, scoped, tag = 'input window, operand 18, single buffered']
    #allocation25 [shape = 'u8[49152]{0}', space=vmem, size = 0xc000, scoped, tag = 'input window, operand 19, single buffered']
    #allocation26 [shape = 's32[1]{0}', space=sflag, size = 0x4, scoped, tag = 'scoped memory for slim_cc_auto_decoder_forward.2']
    #allocation27 [shape = 'u8[512]{0}', space=vmem, size = 0x400, scoped, tag = 'input window, operand 20, single buffered']
    #allocation28 [shape = 'u8[512]{0}', space=vmem, size = 0x400, scoped, tag = 'input window, operand 21, single buffered']
    #allocation29 [shape = 's32[1]{0}', space=sflag, size = 0x4, scoped, tag = 'scoped memory for slim_cc_auto_decoder_forward.2']
    #allocation30 [shape = 'u8[512]{0}', space=vmem, size = 0x400, scoped, tag = 'input window, operand 22, single buffered']
    #allocation31 [shape = 'u8[512]{0}', space=vmem, size = 0x400, scoped, tag = 'input window, operand 24, single buffered']
    #allocation32 [shape = 's32[1]{0}', space=sflag, size = 0x4, scoped, tag = 'scoped memory for slim_cc_auto_decoder_forward.2']
    #allocation33 [shape = 'u8[512]{0}', space=vmem, size = 0x400, scoped, tag = 'input window, operand 25, single buffered']
    #allocation34 [shape = 'u8[512]{0}', space=vmem, size = 0x400, scoped, tag = 'input window, operand 26, single buffered']
    #allocation35 [shape = 's32[1]{0}', space=sflag, size = 0x4, scoped, tag = 'scoped memory for slim_cc_auto_decoder_forward.2']
    #allocation36 [shape = 'u8[24576]{0}', space=vmem, size = 0x6000, scoped, tag = 'input window, operand 27, single buffered']
    #allocation37 [shape = 'u8[512]{0}', space=vmem, size = 0x400, scoped, tag = 'input window, operand 28, single buffered']
    #allocation38 [shape = 's32[1]{0}', space=sflag, size = 0x4, scoped, tag = 'scoped memory for slim_cc_auto_decoder_forward.2']
    #allocation39 [shape = 'u8[512]{0}', space=vmem, size = 0x400, scoped, tag = 'input window, operand 29, single buffered']
    #allocation40 [shape = 'u8[512]{0}', space=vmem, size = 0x400, scoped, tag = 'input window, operand 30, single buffered']
    #allocation41 [shape = 's32[1]{0}', space=sflag, size = 0x4, scoped, tag = 'scoped memory for slim_cc_auto_decoder_forward.2']
    #allocation42 [shape = 'u8[24576]{0}', space=vmem, size = 0x6000, scoped, tag = 'input window, operand 31, single buffered']
    #allocation43 [shape = 'u8[512]{0}', space=vmem, size = 0x400, scoped, tag = 'input window, operand 32, single buffered']
    #allocation44 [shape = 's32[1]{0}', space=sflag, size = 0x4, scoped, tag = 'scoped memory for slim_cc_auto_decoder_forward.2']
    #allocation45 [shape = 'u8[512]{0}', space=vmem, size = 0x400, scoped, tag = 'input window, operand 33, single buffered']
    #allocation46 [shape = 'u8[512]{0}', space=vmem, size = 0x400, scoped, tag = 'input window, operand 34, single buffered']
    #allocation47 [shape = 's32[1]{0}', space=sflag, size = 0x4, scoped, tag = 'scoped memory for slim_cc_auto_decoder_forward.2']
    #allocation48 [shape = 'u8[8192]{0}', space=vmem, size = 0x2000, scoped, tag = 'input window, operand 35, single buffered']
    #allocation49 [shape = 'u8[512]{0}', space=vmem, size = 0x400, scoped, tag = 'input window, operand 36, single buffered']
    #allocation50 [shape = 's32[1]{0}', space=sflag, size = 0x4, scoped, tag = 'scoped memory for slim_cc_auto_decoder_forward.2']
    #allocation51 [shape = 'u8[512]{0}', space=vmem, size = 0x400, scoped, tag = 'input window, operand 37, single buffered']
    #allocation52 [shape = 'u8[512]{0}', space=vmem, size = 0x400, scoped, tag = 'input window, operand 38, single buffered']
    #allocation53 [shape = 's32[1]{0}', space=sflag, size = 0x4, scoped, tag = 'scoped memory for slim_cc_auto_decoder_forward.2']
    #allocation54 [shape = 'u8[49152]{0}', space=vmem, size = 0xc000, scoped, tag = 'input window, operand 39, single buffered']
    #allocation55 [shape = 'u8[512]{0}', space=vmem, size = 0x400, scoped, tag = 'input window, operand 40, single buffered']
    #allocation56 [shape = 's32[1]{0}', space=sflag, size = 0x4, scoped, tag = 'scoped memory for slim_cc_auto_decoder_forward.2']
    #allocation57 [shape = 'u8[512]{0}', space=vmem, size = 0x400, scoped, tag = 'input window, operand 41, single buffered']
    #allocation58 [shape = 'u8[512]{0}', space=vmem, size = 0x400, scoped, tag = 'input window, operand 42, single buffered']
    #allocation59 [shape = 's32[1]{0}', space=sflag, size = 0x4, scoped, tag = 'scoped memory for slim_cc_auto_decoder_forward.2']
    #allocation60 [shape = 'u8[49152]{0}', space=vmem, size = 0xc000, scoped, tag = 'input window, operand 43, single buffered']
    #allocation61 [shape = 'u8[512]{0}', space=vmem, size = 0x400, scoped, tag = 'input window, operand 44, single buffered']
    #allocation62 [shape = 's32[1]{0}', space=sflag, size = 0x4, scoped, tag = 'scoped memory for slim_cc_auto_decoder_forward.2']
    #allocation63 [shape = 'u8[512]{0}', space=vmem, size = 0x400, scoped, tag = 'input window, operand 45, single buffered']
    #allocation64 [shape = 'u8[512]{0}', space=vmem, size = 0x400, scoped, tag = 'input window, operand 46, single buffered']
    #allocation65 [shape = 's32[1]{0}', space=sflag, size = 0x4, scoped, tag = 'scoped memory for slim_cc_auto_decoder_forward.2']
    #allocation66 [shape = 'u8[16384]{0}', space=vmem, size = 0x4000, scoped, tag = 'input window, operand 47, single buffered']
    #allocation67 [shape = 'u8[512]{0}', space=vmem, size = 0x400, scoped, tag = 'input window, operand 48, single buffered']
    #allocation68 [shape = 's32[1]{0}', space=sflag, size = 0x4, scoped, tag = 'scoped memory for slim_cc_auto_decoder_forward.2']
    #allocation69 [shape = 'u8[512]{0}', space=vmem, size = 0x400, scoped, tag = 'input window, operand 49, single buffered']
    #allocation70 [shape = 'u8[512]{0}', space=vmem, size = 0x400, scoped, tag = 'input window, operand 50, single buffered']
    #allocation71 [shape = 's32[1]{0}', space=sflag, size = 0x4, scoped, tag = 'scoped memory for slim_cc_auto_decoder_forward.2']
    #allocation72 [shape = 'u8[98304]{0}', space=vmem, size = 0x18000, scoped, tag = 'input window, operand 51, single buffered']
    #allocation73 [shape = 'u8[512]{0}', space=vmem, size = 0x400, scoped, tag = 'input window, operand 52, single buffered']
    #allocation74 [shape = 's32[1]{0}', space=sflag, size = 0x4, scoped, tag = 'scoped memory for slim_cc_auto_decoder_forward.2']
    #allocation75 [shape = 'u8[512]{0}', space=vmem, size = 0x400, scoped, tag = 'input window, operand 53, single buffered']
    #allocation76 [shape = 'u8[512]{0}', space=vmem, size = 0x400, scoped, tag = 'input window, operand 54, single buffered']
    #allocation77 [shape = 's32[1]{0}', space=sflag, size = 0x4, scoped, tag = 'scoped memory for slim_cc_auto_decoder_forward.2']
    #allocation78 [shape = 'u8[98304]{0}', space=vmem, size = 0x18000, scoped, tag = 'input window, operand 55, single buffered']
    #allocation79 [shape = 'u8[512]{0}', space=vmem, size = 0x400, scoped, tag = 'input window, operand 56, single buffered']
    #allocation80 [shape = 's32[1]{0}', space=sflag, size = 0x4, scoped, tag = 'scoped memory for slim_cc_auto_decoder_forward.2']
    #allocation81 [shape = 'u8[512]{0}', space=vmem, size = 0x400, scoped, tag = 'input window, operand 57, single buffered']
    #allocation82 [shape = 'u8[512]{0}', space=vmem, size = 0x400, scoped, tag = 'input window, operand 58, single buffered']
    #allocation83 [shape = 's32[1]{0}', space=sflag, size = 0x4, scoped, tag = 'scoped memory for slim_cc_auto_decoder_forward.2']
    #allocation84 [shape = 'u8[32768]{0}', space=vmem, size = 0x8000, scoped, tag = 'input window, operand 59, single buffered']
    #allocation85 [shape = 'u8[512]{0}', space=vmem, size = 0x400, scoped, tag = 'input window, operand 60, single buffered']
    #allocation86 [shape = 's32[1]{0}', space=sflag, size = 0x4, scoped, tag = 'scoped memory for slim_cc_auto_decoder_forward.2']
    %128 = vsyncpa [#allocation3], 0
    %129 = vsyncpa [#allocation5], 0
    %130 = vsyncpa [#allocation8], 0
    %131 = vsyncpa [#allocation11], 0
    %132 = vsyncpa [#allocation14], 0
    %133 = vsyncpa [#allocation17], 0
    %134 = vsyncpa [#allocation20], 0
    %135 = vsyncpa [#allocation23], 0
    %136 = vsyncpa [#allocation26], 0
    %137 = vsyncpa [#allocation29], 0
    %138 = vsyncpa [#allocation32], 0
    %139 = vsyncpa [#allocation35], 0
    %140 = vsyncpa [#allocation38], 0
    %141 = vsyncpa [#allocation41], 0
    %142 = vsyncpa [#allocation44], 0
    %143 = vsyncpa [#allocation47], 0
    %144 = vsyncpa [#allocation50], 0
    %145 = vsyncpa [#allocation53], 0
    %146 = vsyncpa [#allocation56], 0
    %147 = vsyncpa [#allocation59], 0
    %148 = vsyncpa [#allocation62], 0
    %149 = vsyncpa [#allocation65], 0
    %150 = vsyncpa [#allocation68], 0
    %151 = vsyncpa [#allocation71], 0
    %152 = vsyncpa [#allocation74], 0
    %153 = vsyncpa [#allocation77], 0
    %154 = vsyncpa [#allocation80], 0
    %155 = vsyncpa [#allocation83], 0
    %156 = vsyncpa [#allocation86], 0
    // Predicated region
    $region2: #{slim_cc_auto_decoder_forward.2} parent=1 // pred_check
      _
    $region3: #{slim_cc_auto_decoder_forward.2} parent=1 // pred_check_branch
      %158 = sbr.rel (0) target = $region5
    $region4: #{slim_cc_auto_decoder_forward.2} parent=1 // pred_region
      _
    $region5: #{slim_cc_auto_decoder_forward.2} parent=1 // pred_fallthru
      _
    // Predicated region
    $region6: #{slim_cc_auto_decoder_forward.2} parent=1 // pred_check
      _
    $region7: #{slim_cc_auto_decoder_forward.2} parent=1 // pred_check_branch
      %160 = sbr.rel (0) target = $region9
    $region8: #{slim_cc_auto_decoder_forward.2} parent=1 // pred_region
      _
    $region9: #{slim_cc_auto_decoder_forward.2} parent=1 // pred_fallthru
      _
    // Predicated region
    $region10: #{slim_cc_auto_decoder_forward.2} parent=1 // pred_check
      _
    $region11: #{slim_cc_auto_decoder_forward.2} parent=1 // pred_check_branch
      %162 = sbr.rel (0) target = $region13
    $region12: #{slim_cc_auto_decoder_forward.2} parent=1 // pred_region
      _
    $region13: #{slim_cc_auto_decoder_forward.2} parent=1 // pred_fallthru
      _
    // Predicated region
    $region14: #{slim_cc_auto_decoder_forward.2} parent=1 // pred_check
      _
    $region15: #{slim_cc_auto_decoder_forward.2} parent=1 // pred_check_branch
      %164 = sbr.rel (0) target = $region17
    $region16: #{slim_cc_auto_decoder_forward.2} parent=1 // pred_region
      %s166 = ssub.s32 3072, 3072
      %167 = vsyncadd [#allocation3], %s166
      %s168 = sshll.u32 [#allocation2], 4
      %s169 = int_to_ptr.vmem [resolvable:$true] %s168
      %174 = dma.hbm_to_vmem [thread:$0]  %s7, 3072, %s169, [#allocation3], 128, 128, 8
    $region17: #{slim_cc_auto_decoder_forward.2} parent=1 // pred_fallthru
      _
    // Predicated region
    $region18: #{slim_cc_auto_decoder_forward.2} parent=1 // pred_check
      _
    $region19: #{slim_cc_auto_decoder_forward.2} parent=1 // pred_check_branch
      %176 = sbr.rel (0) target = $region21
    $region20: #{slim_cc_auto_decoder_forward.2} parent=1 // pred_region
      %s178 = ssub.s32 16, 16
      %179 = vsyncadd [#allocation5], %s178
      %s181 = sshll.u32 [#allocation4], 4
      %s182 = int_to_ptr.vmem [resolvable:$true] %s181
      %184 = dma.hbm_to_vmem [thread:$0]  %s9, 16, %s182, [#allocation5]
    $region21: #{slim_cc_auto_decoder_forward.2} parent=1 // pred_fallthru
      _
    // Predicated region
    $region22: #{slim_cc_auto_decoder_forward.2} parent=1 // pred_check
      _
    $region23: #{slim_cc_auto_decoder_forward.2} parent=1 // pred_check_branch
      %186 = sbr.rel (0) target = $region25
    $region24: #{slim_cc_auto_decoder_forward.2} parent=1 // pred_region
      %s188 = ssub.s32 16, 16
      %189 = vsyncadd [#allocation5], %s188
      %s191 = sshll.u32 [#allocation6], 4
      %s192 = int_to_ptr.vmem [resolvable:$true] %s191
      %194 = dma.hbm_to_vmem [thread:$0]  %s11, 16, %s192, [#allocation5]
    $region25: #{slim_cc_auto_decoder_forward.2} parent=1 // pred_fallthru
      _
    // Predicated region
    $region26: #{slim_cc_auto_decoder_forward.2} parent=1 // pred_check
      _
    $region27: #{slim_cc_auto_decoder_forward.2} parent=1 // pred_check_branch
      %196 = sbr.rel (0) target = $region29
    $region28: #{slim_cc_auto_decoder_forward.2} parent=1 // pred_region
      %s198 = ssub.s32 16, 16
      %199 = vsyncadd [#allocation8], %s198
      %s201 = sshll.u32 [#allocation7], 4
      %s202 = int_to_ptr.vmem [resolvable:$true] %s201
      %204 = dma.hbm_to_vmem [thread:$0]  %s13, 16, %s202, [#allocation8]
    $region29: #{slim_cc_auto_decoder_forward.2} parent=1 // pred_fallthru
      _
    // Predicated region
    $region30: #{slim_cc_auto_decoder_forward.2} parent=1 // pred_check
      _
    $region31: #{slim_cc_auto_decoder_forward.2} parent=1 // pred_check_branch
      %206 = sbr.rel (0) target = $region33
    $region32: #{slim_cc_auto_decoder_forward.2} parent=1 // pred_region
      %s208 = ssub.s32 3072, 3072
      %209 = vsyncadd [#allocation8], %s208
      %s210 = sshll.u32 [#allocation9], 4
      %s211 = int_to_ptr.vmem [resolvable:$true] %s210
      %216 = dma.hbm_to_vmem [thread:$0]  %s15, 3072, %s211, [#allocation8], 128, 128, 8
    $region33: #{slim_cc_auto_decoder_forward.2} parent=1 // pred_fallthru
      _
    // Predicated region
    $region34: #{slim_cc_auto_decoder_forward.2} parent=1 // pred_check
      _
    $region35: #{slim_cc_auto_decoder_forward.2} parent=1 // pred_check_branch
      %218 = sbr.rel (0) target = $region37
    $region36: #{slim_cc_auto_decoder_forward.2} parent=1 // pred_region
      %s220 = ssub.s32 16, 16
      %221 = vsyncadd [#allocation11], %s220
      %s223 = sshll.u32 [#allocation10], 4
      %s224 = int_to_ptr.vmem [resolvable:$true] %s223
      %226 = dma.hbm_to_vmem [thread:$0]  %s17, 16, %s224, [#allocation11]
    $region37: #{slim_cc_auto_decoder_forward.2} parent=1 // pred_fallthru
      _
    // Predicated region
    $region38: #{slim_cc_auto_decoder_forward.2} parent=1 // pred_check
      _
    $region39: #{slim_cc_auto_decoder_forward.2} parent=1 // pred_check_branch
      %228 = sbr.rel (0) target = $region41
    $region40: #{slim_cc_auto_decoder_forward.2} parent=1 // pred_region
      %s230 = ssub.s32 16, 16
      %231 = vsyncadd [#allocation11], %s230
      %s233 = sshll.u32 [#allocation12], 4
      %s234 = int_to_ptr.vmem [resolvable:$true] %s233
      %236 = dma.hbm_to_vmem [thread:$0]  %s19, 16, %s234, [#allocation11]
    $region41: #{slim_cc_auto_decoder_forward.2} parent=1 // pred_fallthru
      _
    // Predicated region
    $region42: #{slim_cc_auto_decoder_forward.2} parent=1 // pred_check
      _
    $region43: #{slim_cc_auto_decoder_forward.2} parent=1 // pred_check_branch
      %238 = sbr.rel (0) target = $region45
    $region44: #{slim_cc_auto_decoder_forward.2} parent=1 // pred_region
      %s240 = ssub.s32 16, 16
      %241 = vsyncadd [#allocation14], %s240
      %s243 = sshll.u32 [#allocation13], 4
      %s244 = int_to_ptr.vmem [resolvable:$true] %s243
      %246 = dma.hbm_to_vmem [thread:$0]  %s21, 16, %s244, [#allocation14]
    $region45: #{slim_cc_auto_decoder_forward.2} parent=1 // pred_fallthru
      _
    // Predicated region
    $region46: #{slim_cc_auto_decoder_forward.2} parent=1 // pred_check
      _
    $region47: #{slim_cc_auto_decoder_forward.2} parent=1 // pred_check_branch
      %248 = sbr.rel (0) target = $region49
    $region48: #{slim_cc_auto_decoder_forward.2} parent=1 // pred_region
      _
    $region49: #{slim_cc_auto_decoder_forward.2} parent=1 // pred_fallthru
      _
    // Predicated region
    $region50: #{slim_cc_auto_decoder_forward.2} parent=1 // pred_check
      _
    $region51: #{slim_cc_auto_decoder_forward.2} parent=1 // pred_check_branch
      %250 = sbr.rel (0) target = $region53
    $region52: #{slim_cc_auto_decoder_forward.2} parent=1 // pred_region
      %s252 = ssub.s32 16, 16
      %253 = vsyncadd [#allocation14], %s252
      %s255 = sshll.u32 [#allocation15], 4
      %s256 = int_to_ptr.vmem [resolvable:$true] %s255
      %258 = dma.hbm_to_vmem [thread:$0]  %s25, 16, %s256, [#allocation14]
    $region53: #{slim_cc_auto_decoder_forward.2} parent=1 // pred_fallthru
      _
    // Predicated region
    $region54: #{slim_cc_auto_decoder_forward.2} parent=1 // pred_check
      _
    $region55: #{slim_cc_auto_decoder_forward.2} parent=1 // pred_check_branch
      %260 = sbr.rel (0) target = $region57
    $region56: #{slim_cc_auto_decoder_forward.2} parent=1 // pred_region
      %s262 = ssub.s32 16, 16
      %263 = vsyncadd [#allocation17], %s262
      %s265 = sshll.u32 [#allocation16], 4
      %s266 = int_to_ptr.vmem [resolvable:$true] %s265
      %268 = dma.hbm_to_vmem [thread:$0]  %s27, 16, %s266, [#allocation17]
    $region57: #{slim_cc_auto_decoder_forward.2} parent=1 // pred_fallthru
      _
    // Predicated region
    $region58: #{slim_cc_auto_decoder_forward.2} parent=1 // pred_check
      _
    $region59: #{slim_cc_auto_decoder_forward.2} parent=1 // pred_check_branch
      %270 = sbr.rel (0) target = $region61
    $region60: #{slim_cc_auto_decoder_forward.2} parent=1 // pred_region
      %s272 = ssub.s32 16, 16
      %273 = vsyncadd [#allocation17], %s272
      %s275 = sshll.u32 [#allocation18], 4
      %s276 = int_to_ptr.vmem [resolvable:$true] %s275
      %278 = dma.hbm_to_vmem [thread:$0]  %s29, 16, %s276, [#allocation17]
    $region61: #{slim_cc_auto_decoder_forward.2} parent=1 // pred_fallthru
      _
    // Predicated region
    $region62: #{slim_cc_auto_decoder_forward.2} parent=1 // pred_check
      _
    $region63: #{slim_cc_auto_decoder_forward.2} parent=1 // pred_check_branch
      %280 = sbr.rel (0) target = $region65
    $region64: #{slim_cc_auto_decoder_forward.2} parent=1 // pred_region
      %s282 = ssub.s32 1536, 1536
      %283 = vsyncadd [#allocation20], %s282
      %s284 = sshll.u32 [#allocation19], 4
      %s285 = int_to_ptr.vmem [resolvable:$true] %s284
      %290 = dma.hbm_to_vmem [thread:$0]  %s31, 1536, %s285, [#allocation20], 128, 128, 8
    $region65: #{slim_cc_auto_decoder_forward.2} parent=1 // pred_fallthru
      _
    // Predicated region
    $region66: #{slim_cc_auto_decoder_forward.2} parent=1 // pred_check
      _
    $region67: #{slim_cc_auto_decoder_forward.2} parent=1 // pred_check_branch
      %292 = sbr.rel (0) target = $region69
    $region68: #{slim_cc_auto_decoder_forward.2} parent=1 // pred_region
      %s294 = ssub.s32 16, 16
      %295 = vsyncadd [#allocation20], %s294
      %s297 = sshll.u32 [#allocation21], 4
      %s298 = int_to_ptr.vmem [resolvable:$true] %s297
      %300 = dma.hbm_to_vmem [thread:$0]  %s33, 16, %s298, [#allocation20]
    $region69: #{slim_cc_auto_decoder_forward.2} parent=1 // pred_fallthru
      _
    // Predicated region
    $region70: #{slim_cc_auto_decoder_forward.2} parent=1 // pred_check
      _
    $region71: #{slim_cc_auto_decoder_forward.2} parent=1 // pred_check_branch
      %302 = sbr.rel (0) target = $region73
    $region72: #{slim_cc_auto_decoder_forward.2} parent=1 // pred_region
      %s304 = ssub.s32 16, 16
      %305 = vsyncadd [#allocation23], %s304
      %s307 = sshll.u32 [#allocation22], 4
      %s308 = int_to_ptr.vmem [resolvable:$true] %s307
      %310 = dma.hbm_to_vmem [thread:$0]  %s35, 16, %s308, [#allocation23]
    $region73: #{slim_cc_auto_decoder_forward.2} parent=1 // pred_fallthru
      _
    // Predicated region
    $region74: #{slim_cc_auto_decoder_forward.2} parent=1 // pred_check
      _
    $region75: #{slim_cc_auto_decoder_forward.2} parent=1 // pred_check_branch
      %312 = sbr.rel (0) target = $region77
    $region76: #{slim_cc_auto_decoder_forward.2} parent=1 // pred_region
      %s314 = ssub.s32 16, 16
      %315 = vsyncadd [#allocation23], %s314
      %s317 = sshll.u32 [#allocation24], 4
      %s318 = int_to_ptr.vmem [resolvable:$true] %s317
      %320 = dma.hbm_to_vmem [thread:$0]  %s37, 16, %s318, [#allocation23]
    $region77: #{slim_cc_auto_decoder_forward.2} parent=1 // pred_fallthru
      _
    // Predicated region
    $region78: #{slim_cc_auto_decoder_forward.2} parent=1 // pred_check
      _
    $region79: #{slim_cc_auto_decoder_forward.2} parent=1 // pred_check_branch
      %322 = sbr.rel (0) target = $region81
    $region80: #{slim_cc_auto_decoder_forward.2} parent=1 // pred_region
      %s324 = ssub.s32 1536, 1536
      %325 = vsyncadd [#allocation26], %s324
      %s326 = sshll.u32 [#allocation25], 4
      %s327 = int_to_ptr.vmem [resolvable:$true] %s326
      %332 = dma.hbm_to_vmem [thread:$0]  %s39, 1536, %s327, [#allocation26], 128, 128, 8
    $region81: #{slim_cc_auto_decoder_forward.2} parent=1 // pred_fallthru
      _
    // Predicated region
    $region82: #{slim_cc_auto_decoder_forward.2} parent=1 // pred_check
      _
    $region83: #{slim_cc_auto_decoder_forward.2} parent=1 // pred_check_branch
      %334 = sbr.rel (0) target = $region85
    $region84: #{slim_cc_auto_decoder_forward.2} parent=1 // pred_region
      %s336 = ssub.s32 16, 16
      %337 = vsyncadd [#allocation26], %s336
      %s339 = sshll.u32 [#allocation27], 4
      %s340 = int_to_ptr.vmem [resolvable:$true] %s339
      %342 = dma.hbm_to_vmem [thread:$0]  %s41, 16, %s340, [#allocation26]
    $region85: #{slim_cc_auto_decoder_forward.2} parent=1 // pred_fallthru
      _
    // Predicated region
    $region86: #{slim_cc_auto_decoder_forward.2} parent=1 // pred_check
      _
    $region87: #{slim_cc_auto_decoder_forward.2} parent=1 // pred_check_branch
      %344 = sbr.rel (0) target = $region89
    $region88: #{slim_cc_auto_decoder_forward.2} parent=1 // pred_region
      %s346 = ssub.s32 16, 16
      %347 = vsyncadd [#allocation29], %s346
      %s349 = sshll.u32 [#allocation28], 4
      %s350 = int_to_ptr.vmem [resolvable:$true] %s349
      %352 = dma.hbm_to_vmem [thread:$0]  %s43, 16, %s350, [#allocation29]
    $region89: #{slim_cc_auto_decoder_forward.2} parent=1 // pred_fallthru
      _
    // Predicated region
    $region90: #{slim_cc_auto_decoder_forward.2} parent=1 // pred_check
      _
    $region91: #{slim_cc_auto_decoder_forward.2} parent=1 // pred_check_branch
      %354 = sbr.rel (0) target = $region93
    $region92: #{slim_cc_auto_decoder_forward.2} parent=1 // pred_region
      %s356 = ssub.s32 16, 16
      %357 = vsyncadd [#allocation29], %s356
      %s359 = sshll.u32 [#allocation30], 4
      %s360 = int_to_ptr.vmem [resolvable:$true] %s359
      %362 = dma.hbm_to_vmem [thread:$0]  %s45, 16, %s360, [#allocation29]
    $region93: #{slim_cc_auto_decoder_forward.2} parent=1 // pred_fallthru
      _
    // Predicated region
    $region94: #{slim_cc_auto_decoder_forward.2} parent=1 // pred_check
      _
    $region95: #{slim_cc_auto_decoder_forward.2} parent=1 // pred_check_branch
      %364 = sbr.rel (0) target = $region97
    $region96: #{slim_cc_auto_decoder_forward.2} parent=1 // pred_region
      _
    $region97: #{slim_cc_auto_decoder_forward.2} parent=1 // pred_fallthru
      _
    // Predicated region
    $region98: #{slim_cc_auto_decoder_forward.2} parent=1 // pred_check
      _
    $region99: #{slim_cc_auto_decoder_forward.2} parent=1 // pred_check_branch
      %366 = sbr.rel (0) target = $region101
    $region100: #{slim_cc_auto_decoder_forward.2} parent=1 // pred_region
      %s368 = ssub.s32 16, 16
      %369 = vsyncadd [#allocation32], %s368
      %s371 = sshll.u32 [#allocation31], 4
      %s372 = int_to_ptr.vmem [resolvable:$true] %s371
      %374 = dma.hbm_to_vmem [thread:$0]  %s49, 16, %s372, [#allocation32]
    $region101: #{slim_cc_auto_decoder_forward.2} parent=1 // pred_fallthru
      _
    // Predicated region
    $region102: #{slim_cc_auto_decoder_forward.2} parent=1 // pred_check
      _
    $region103: #{slim_cc_auto_decoder_forward.2} parent=1 // pred_check_branch
      %376 = sbr.rel (0) target = $region105
    $region104: #{slim_cc_auto_decoder_forward.2} parent=1 // pred_region
      %s378 = ssub.s32 16, 16
      %379 = vsyncadd [#allocation32], %s378
      %s381 = sshll.u32 [#allocation33], 4
      %s382 = int_to_ptr.vmem [resolvable:$true] %s381
      %384 = dma.hbm_to_vmem [thread:$0]  %s51, 16, %s382, [#allocation32]
    $region105: #{slim_cc_auto_decoder_forward.2} parent=1 // pred_fallthru
      _
    // Predicated region
    $region106: #{slim_cc_auto_decoder_forward.2} parent=1 // pred_check
      _
    $region107: #{slim_cc_auto_decoder_forward.2} parent=1 // pred_check_branch
      %386 = sbr.rel (0) target = $region109
    $region108: #{slim_cc_auto_decoder_forward.2} parent=1 // pred_region
      %s388 = ssub.s32 16, 16
      %389 = vsyncadd [#allocation35], %s388
      %s391 = sshll.u32 [#allocation34], 4
      %s392 = int_to_ptr.vmem [resolvable:$true] %s391
      %394 = dma.hbm_to_vmem [thread:$0]  %s53, 16, %s392, [#allocation35]
    $region109: #{slim_cc_auto_decoder_forward.2} parent=1 // pred_fallthru
      _
    // Predicated region
    $region110: #{slim_cc_auto_decoder_forward.2} parent=1 // pred_check
      _
    $region111: #{slim_cc_auto_decoder_forward.2} parent=1 // pred_check_branch
      %396 = sbr.rel (0) target = $region113
    $region112: #{slim_cc_auto_decoder_forward.2} parent=1 // pred_region
      %s398 = ssub.s32 768, 768
      %399 = vsyncadd [#allocation35], %s398
      %s400 = sshll.u32 [#allocation36], 4
      %s401 = int_to_ptr.vmem [resolvable:$true] %s400
      %406 = dma.hbm_to_vmem [thread:$0]  %s55, 768, %s401, [#allocation35], 128, 128, 8
    $region113: #{slim_cc_auto_decoder_forward.2} parent=1 // pred_fallthru
      _
    // Predicated region
    $region114: #{slim_cc_auto_decoder_forward.2} parent=1 // pred_check
      _
    $region115: #{slim_cc_auto_decoder_forward.2} parent=1 // pred_check_branch
      %408 = sbr.rel (0) target = $region117
    $region116: #{slim_cc_auto_decoder_forward.2} parent=1 // pred_region
      %s410 = ssub.s32 16, 16
      %411 = vsyncadd [#allocation38], %s410
      %s413 = sshll.u32 [#allocation37], 4
      %s414 = int_to_ptr.vmem [resolvable:$true] %s413
      %416 = dma.hbm_to_vmem [thread:$0]  %s57, 16, %s414, [#allocation38]
    $region117: #{slim_cc_auto_decoder_forward.2} parent=1 // pred_fallthru
      _
    // Predicated region
    $region118: #{slim_cc_auto_decoder_forward.2} parent=1 // pred_check
      _
    $region119: #{slim_cc_auto_decoder_forward.2} parent=1 // pred_check_branch
      %418 = sbr.rel (0) target = $region121
    $region120: #{slim_cc_auto_decoder_forward.2} parent=1 // pred_region
      %s420 = ssub.s32 16, 16
      %421 = vsyncadd [#allocation38], %s420
      %s423 = sshll.u32 [#allocation39], 4
      %s424 = int_to_ptr.vmem [resolvable:$true] %s423
      %426 = dma.hbm_to_vmem [thread:$0]  %s59, 16, %s424, [#allocation38]
    $region121: #{slim_cc_auto_decoder_forward.2} parent=1 // pred_fallthru
      _
    // Predicated region
    $region122: #{slim_cc_auto_decoder_forward.2} parent=1 // pred_check
      _
    $region123: #{slim_cc_auto_decoder_forward.2} parent=1 // pred_check_branch
      %428 = sbr.rel (0) target = $region125
    $region124: #{slim_cc_auto_decoder_forward.2} parent=1 // pred_region
      %s430 = ssub.s32 16, 16
      %431 = vsyncadd [#allocation41], %s430
      %s433 = sshll.u32 [#allocation40], 4
      %s434 = int_to_ptr.vmem [resolvable:$true] %s433
      %436 = dma.hbm_to_vmem [thread:$0]  %s61, 16, %s434, [#allocation41]
    $region125: #{slim_cc_auto_decoder_forward.2} parent=1 // pred_fallthru
      _
    // Predicated region
    $region126: #{slim_cc_auto_decoder_forward.2} parent=1 // pred_check
      _
    $region127: #{slim_cc_auto_decoder_forward.2} parent=1 // pred_check_branch
      %438 = sbr.rel (0) target = $region129
    $region128: #{slim_cc_auto_decoder_forward.2} parent=1 // pred_region
      %s440 = ssub.s32 768, 768
      %441 = vsyncadd [#allocation41], %s440
      %s442 = sshll.u32 [#allocation42], 4
      %s443 = int_to_ptr.vmem [resolvable:$true] %s442
      %448 = dma.hbm_to_vmem [thread:$0]  %s63, 768, %s443, [#allocation41], 128, 128, 8
    $region129: #{slim_cc_auto_decoder_forward.2} parent=1 // pred_fallthru
      _
    // Predicated region
    $region130: #{slim_cc_auto_decoder_forward.2} parent=1 // pred_check
      _
    $region131: #{slim_cc_auto_decoder_forward.2} parent=1 // pred_check_branch
      %450 = sbr.rel (0) target = $region133
    $region132: #{slim_cc_auto_decoder_forward.2} parent=1 // pred_region
      %s452 = ssub.s32 16, 16
      %453 = vsyncadd [#allocation44], %s452
      %s455 = sshll.u32 [#allocation43], 4
      %s456 = int_to_ptr.vmem [resolvable:$true] %s455
      %458 = dma.hbm_to_vmem [thread:$0]  %s65, 16, %s456, [#allocation44]
    $region133: #{slim_cc_auto_decoder_forward.2} parent=1 // pred_fallthru
      _
    // Predicated region
    $region134: #{slim_cc_auto_decoder_forward.2} parent=1 // pred_check
      _
    $region135: #{slim_cc_auto_decoder_forward.2} parent=1 // pred_check_branch
      %460 = sbr.rel (0) target = $region137
    $region136: #{slim_cc_auto_decoder_forward.2} parent=1 // pred_region
      %s462 = ssub.s32 16, 16
      %463 = vsyncadd [#allocation44], %s462
      %s465 = sshll.u32 [#allocation45], 4
      %s466 = int_to_ptr.vmem [resolvable:$true] %s465
      %468 = dma.hbm_to_vmem [thread:$0]  %s67, 16, %s466, [#allocation44]
    $region137: #{slim_cc_auto_decoder_forward.2} parent=1 // pred_fallthru
      _
    // Predicated region
    $region138: #{slim_cc_auto_decoder_forward.2} parent=1 // pred_check
      _
    $region139: #{slim_cc_auto_decoder_forward.2} parent=1 // pred_check_branch
      %470 = sbr.rel (0) target = $region141
    $region140: #{slim_cc_auto_decoder_forward.2} parent=1 // pred_region
      %s472 = ssub.s32 16, 16
      %473 = vsyncadd [#allocation47], %s472
      %s475 = sshll.u32 [#allocation46], 4
      %s476 = int_to_ptr.vmem [resolvable:$true] %s475
      %478 = dma.hbm_to_vmem [thread:$0]  %s69, 16, %s476, [#allocation47]
    $region141: #{slim_cc_auto_decoder_forward.2} parent=1 // pred_fallthru
      _
    // Predicated region
    $region142: #{slim_cc_auto_decoder_forward.2} parent=1 // pred_check
      _
    $region143: #{slim_cc_auto_decoder_forward.2} parent=1 // pred_check_branch
      %480 = sbr.rel (0) target = $region145
    $region144: #{slim_cc_auto_decoder_forward.2} parent=1 // pred_region
      %s482 = ssub.s32 256, 256
      %483 = vsyncadd [#allocation47], %s482
      %s484 = sshll.u32 [#allocation48], 4
      %s485 = int_to_ptr.vmem [resolvable:$true] %s484
      %490 = dma.hbm_to_vmem [thread:$0]  %s71, 256, %s485, [#allocation47], 128, 128, 8
    $region145: #{slim_cc_auto_decoder_forward.2} parent=1 // pred_fallthru
      _
    // Predicated region
    $region146: #{slim_cc_auto_decoder_forward.2} parent=1 // pred_check
      _
    $region147: #{slim_cc_auto_decoder_forward.2} parent=1 // pred_check_branch
      %492 = sbr.rel (0) target = $region149
    $region148: #{slim_cc_auto_decoder_forward.2} parent=1 // pred_region
      %s494 = ssub.s32 16, 16
      %495 = vsyncadd [#allocation50], %s494
      %s497 = sshll.u32 [#allocation49], 4
      %s498 = int_to_ptr.vmem [resolvable:$true] %s497
      %500 = dma.hbm_to_vmem [thread:$0]  %s73, 16, %s498, [#allocation50]
    $region149: #{slim_cc_auto_decoder_forward.2} parent=1 // pred_fallthru
      _
    // Predicated region
    $region150: #{slim_cc_auto_decoder_forward.2} parent=1 // pred_check
      _
    $region151: #{slim_cc_auto_decoder_forward.2} parent=1 // pred_check_branch
      %502 = sbr.rel (0) target = $region153
    $region152: #{slim_cc_auto_decoder_forward.2} parent=1 // pred_region
      %s504 = ssub.s32 16, 16
      %505 = vsyncadd [#allocation50], %s504
      %s507 = sshll.u32 [#allocation51], 4
      %s508 = int_to_ptr.vmem [resolvable:$true] %s507
      %510 = dma.hbm_to_vmem [thread:$0]  %s75, 16, %s508, [#allocation50]
    $region153: #{slim_cc_auto_decoder_forward.2} parent=1 // pred_fallthru
      _
    // Predicated region
    $region154: #{slim_cc_auto_decoder_forward.2} parent=1 // pred_check
      _
    $region155: #{slim_cc_auto_decoder_forward.2} parent=1 // pred_check_branch
      %512 = sbr.rel (0) target = $region157
    $region156: #{slim_cc_auto_decoder_forward.2} parent=1 // pred_region
      %s514 = ssub.s32 16, 16
      %515 = vsyncadd [#allocation53], %s514
      %s517 = sshll.u32 [#allocation52], 4
      %s518 = int_to_ptr.vmem [resolvable:$true] %s517
      %520 = dma.hbm_to_vmem [thread:$0]  %s77, 16, %s518, [#allocation53]
    $region157: #{slim_cc_auto_decoder_forward.2} parent=1 // pred_fallthru
      _
    // Predicated region
    $region158: #{slim_cc_auto_decoder_forward.2} parent=1 // pred_check
      _
    $region159: #{slim_cc_auto_decoder_forward.2} parent=1 // pred_check_branch
      %522 = sbr.rel (0) target = $region161
    $region160: #{slim_cc_auto_decoder_forward.2} parent=1 // pred_region
      %s524 = ssub.s32 1536, 1536
      %525 = vsyncadd [#allocation53], %s524
      %s526 = sshll.u32 [#allocation54], 4
      %s527 = int_to_ptr.vmem [resolvable:$true] %s526
      %532 = dma.hbm_to_vmem [thread:$0]  %s79, 1536, %s527, [#allocation53], 128, 128, 8
    $region161: #{slim_cc_auto_decoder_forward.2} parent=1 // pred_fallthru
      _
    // Predicated region
    $region162: #{slim_cc_auto_decoder_forward.2} parent=1 // pred_check
      _
    $region163: #{slim_cc_auto_decoder_forward.2} parent=1 // pred_check_branch
      %534 = sbr.rel (0) target = $region165
    $region164: #{slim_cc_auto_decoder_forward.2} parent=1 // pred_region
      %s536 = ssub.s32 16, 16
      %537 = vsyncadd [#allocation56], %s536
      %s539 = sshll.u32 [#allocation55], 4
      %s540 = int_to_ptr.vmem [resolvable:$true] %s539
      %542 = dma.hbm_to_vmem [thread:$0]  %s81, 16, %s540, [#allocation56]
    $region165: #{slim_cc_auto_decoder_forward.2} parent=1 // pred_fallthru
      _
    // Predicated region
    $region166: #{slim_cc_auto_decoder_forward.2} parent=1 // pred_check
      _
    $region167: #{slim_cc_auto_decoder_forward.2} parent=1 // pred_check_branch
      %544 = sbr.rel (0) target = $region169
    $region168: #{slim_cc_auto_decoder_forward.2} parent=1 // pred_region
      %s546 = ssub.s32 16, 16
      %547 = vsyncadd [#allocation56], %s546
      %s549 = sshll.u32 [#allocation57], 4
      %s550 = int_to_ptr.vmem [resolvable:$true] %s549
      %552 = dma.hbm_to_vmem [thread:$0]  %s83, 16, %s550, [#allocation56]
    $region169: #{slim_cc_auto_decoder_forward.2} parent=1 // pred_fallthru
      _
    // Predicated region
    $region170: #{slim_cc_auto_decoder_forward.2} parent=1 // pred_check
      _
    $region171: #{slim_cc_auto_decoder_forward.2} parent=1 // pred_check_branch
      %554 = sbr.rel (0) target = $region173
    $region172: #{slim_cc_auto_decoder_forward.2} parent=1 // pred_region
      %s556 = ssub.s32 16, 16
      %557 = vsyncadd [#allocation59], %s556
      %s559 = sshll.u32 [#allocation58], 4
      %s560 = int_to_ptr.vmem [resolvable:$true] %s559
      %562 = dma.hbm_to_vmem [thread:$0]  %s85, 16, %s560, [#allocation59]
    $region173: #{slim_cc_auto_decoder_forward.2} parent=1 // pred_fallthru
      _
    // Predicated region
    $region174: #{slim_cc_auto_decoder_forward.2} parent=1 // pred_check
      _
    $region175: #{slim_cc_auto_decoder_forward.2} parent=1 // pred_check_branch
      %564 = sbr.rel (0) target = $region177
    $region176: #{slim_cc_auto_decoder_forward.2} parent=1 // pred_region
      %s566 = ssub.s32 1536, 1536
      %567 = vsyncadd [#allocation59], %s566
      %s568 = sshll.u32 [#allocation60], 4
      %s569 = int_to_ptr.vmem [resolvable:$true] %s568
      %574 = dma.hbm_to_vmem [thread:$0]  %s87, 1536, %s569, [#allocation59], 128, 128, 8
    $region177: #{slim_cc_auto_decoder_forward.2} parent=1 // pred_fallthru
      _
    // Predicated region
    $region178: #{slim_cc_auto_decoder_forward.2} parent=1 // pred_check
      _
    $region179: #{slim_cc_auto_decoder_forward.2} parent=1 // pred_check_branch
      %576 = sbr.rel (0) target = $region181
    $region180: #{slim_cc_auto_decoder_forward.2} parent=1 // pred_region
      %s578 = ssub.s32 16, 16
      %579 = vsyncadd [#allocation62], %s578
      %s581 = sshll.u32 [#allocation61], 4
      %s582 = int_to_ptr.vmem [resolvable:$true] %s581
      %584 = dma.hbm_to_vmem [thread:$0]  %s89, 16, %s582, [#allocation62]
    $region181: #{slim_cc_auto_decoder_forward.2} parent=1 // pred_fallthru
      _
    // Predicated region
    $region182: #{slim_cc_auto_decoder_forward.2} parent=1 // pred_check
      _
    $region183: #{slim_cc_auto_decoder_forward.2} parent=1 // pred_check_branch
      %586 = sbr.rel (0) target = $region185
    $region184: #{slim_cc_auto_decoder_forward.2} parent=1 // pred_region
      %s588 = ssub.s32 16, 16
      %589 = vsyncadd [#allocation62], %s588
      %s591 = sshll.u32 [#allocation63], 4
      %s592 = int_to_ptr.vmem [resolvable:$true] %s591
      %594 = dma.hbm_to_vmem [thread:$0]  %s91, 16, %s592, [#allocation62]
    $region185: #{slim_cc_auto_decoder_forward.2} parent=1 // pred_fallthru
      _
    // Predicated region
    $region186: #{slim_cc_auto_decoder_forward.2} parent=1 // pred_check
      _
    $region187: #{slim_cc_auto_decoder_forward.2} parent=1 // pred_check_branch
      %596 = sbr.rel (0) target = $region189
    $region188: #{slim_cc_auto_decoder_forward.2} parent=1 // pred_region
      %s598 = ssub.s32 16, 16
      %599 = vsyncadd [#allocation65], %s598
      %s601 = sshll.u32 [#allocation64], 4
      %s602 = int_to_ptr.vmem [resolvable:$true] %s601
      %604 = dma.hbm_to_vmem [thread:$0]  %s93, 16, %s602, [#allocation65]
    $region189: #{slim_cc_auto_decoder_forward.2} parent=1 // pred_fallthru
      _
    // Predicated region
    $region190: #{slim_cc_auto_decoder_forward.2} parent=1 // pred_check
      _
    $region191: #{slim_cc_auto_decoder_forward.2} parent=1 // pred_check_branch
      %606 = sbr.rel (0) target = $region193
    $region192: #{slim_cc_auto_decoder_forward.2} parent=1 // pred_region
      %s608 = ssub.s32 512, 512
      %609 = vsyncadd [#allocation65], %s608
      %s610 = sshll.u32 [#allocation66], 4
      %s611 = int_to_ptr.vmem [resolvable:$true] %s610
      %616 = dma.hbm_to_vmem [thread:$0]  %s95, 512, %s611, [#allocation65], 128, 128, 8
    $region193: #{slim_cc_auto_decoder_forward.2} parent=1 // pred_fallthru
      _
    // Predicated region
    $region194: #{slim_cc_auto_decoder_forward.2} parent=1 // pred_check
      _
    $region195: #{slim_cc_auto_decoder_forward.2} parent=1 // pred_check_branch
      %618 = sbr.rel (0) target = $region197
    $region196: #{slim_cc_auto_decoder_forward.2} parent=1 // pred_region
      %s620 = ssub.s32 16, 16
      %621 = vsyncadd [#allocation68], %s620
      %s623 = sshll.u32 [#allocation67], 4
      %s624 = int_to_ptr.vmem [resolvable:$true] %s623
      %626 = dma.hbm_to_vmem [thread:$0]  %s97, 16, %s624, [#allocation68]
    $region197: #{slim_cc_auto_decoder_forward.2} parent=1 // pred_fallthru
      _
    // Predicated region
    $region198: #{slim_cc_auto_decoder_forward.2} parent=1 // pred_check
      _
    $region199: #{slim_cc_auto_decoder_forward.2} parent=1 // pred_check_branch
      %628 = sbr.rel (0) target = $region201
    $region200: #{slim_cc_auto_decoder_forward.2} parent=1 // pred_region
      %s630 = ssub.s32 16, 16
      %631 = vsyncadd [#allocation68], %s630
      %s633 = sshll.u32 [#allocation69], 4
      %s634 = int_to_ptr.vmem [resolvable:$true] %s633
      %636 = dma.hbm_to_vmem [thread:$0]  %s99, 16, %s634, [#allocation68]
    $region201: #{slim_cc_auto_decoder_forward.2} parent=1 // pred_fallthru
      _
    // Predicated region
    $region202: #{slim_cc_auto_decoder_forward.2} parent=1 // pred_check
      _
    $region203: #{slim_cc_auto_decoder_forward.2} parent=1 // pred_check_branch
      %638 = sbr.rel (0) target = $region205
    $region204: #{slim_cc_auto_decoder_forward.2} parent=1 // pred_region
      %s640 = ssub.s32 16, 16
      %641 = vsyncadd [#allocation71], %s640
      %s643 = sshll.u32 [#allocation70], 4
      %s644 = int_to_ptr.vmem [resolvable:$true] %s643
      %646 = dma.hbm_to_vmem [thread:$0]  %s101, 16, %s644, [#allocation71]
    $region205: #{slim_cc_auto_decoder_forward.2} parent=1 // pred_fallthru
      _
    // Predicated region
    $region206: #{slim_cc_auto_decoder_forward.2} parent=1 // pred_check
      _
    $region207: #{slim_cc_auto_decoder_forward.2} parent=1 // pred_check_branch
      %648 = sbr.rel (0) target = $region209
    $region208: #{slim_cc_auto_decoder_forward.2} parent=1 // pred_region
      %s650 = ssub.s32 3072, 3072
      %651 = vsyncadd [#allocation71], %s650
      %s652 = sshll.u32 [#allocation72], 4
      %s653 = int_to_ptr.vmem [resolvable:$true] %s652
      %658 = dma.hbm_to_vmem [thread:$0]  %s103, 3072, %s653, [#allocation71], 128, 128, 8
    $region209: #{slim_cc_auto_decoder_forward.2} parent=1 // pred_fallthru
      _
    // Predicated region
    $region210: #{slim_cc_auto_decoder_forward.2} parent=1 // pred_check
      _
    $region211: #{slim_cc_auto_decoder_forward.2} parent=1 // pred_check_branch
      %660 = sbr.rel (0) target = $region213
    $region212: #{slim_cc_auto_decoder_forward.2} parent=1 // pred_region
      %s662 = ssub.s32 16, 16
      %663 = vsyncadd [#allocation74], %s662
      %s665 = sshll.u32 [#allocation73], 4
      %s666 = int_to_ptr.vmem [resolvable:$true] %s665
      %668 = dma.hbm_to_vmem [thread:$0]  %s105, 16, %s666, [#allocation74]
    $region213: #{slim_cc_auto_decoder_forward.2} parent=1 // pred_fallthru
      _
    // Predicated region
    $region214: #{slim_cc_auto_decoder_forward.2} parent=1 // pred_check
      _
    $region215: #{slim_cc_auto_decoder_forward.2} parent=1 // pred_check_branch
      %670 = sbr.rel (0) target = $region217
    $region216: #{slim_cc_auto_decoder_forward.2} parent=1 // pred_region
      %s672 = ssub.s32 16, 16
      %673 = vsyncadd [#allocation74], %s672
      %s675 = sshll.u32 [#allocation75], 4
      %s676 = int_to_ptr.vmem [resolvable:$true] %s675
      %678 = dma.hbm_to_vmem [thread:$0]  %s107, 16, %s676, [#allocation74]
    $region217: #{slim_cc_auto_decoder_forward.2} parent=1 // pred_fallthru
      _
    // Predicated region
    $region218: #{slim_cc_auto_decoder_forward.2} parent=1 // pred_check
      _
    $region219: #{slim_cc_auto_decoder_forward.2} parent=1 // pred_check_branch
      %680 = sbr.rel (0) target = $region221
    $region220: #{slim_cc_auto_decoder_forward.2} parent=1 // pred_region
      %s682 = ssub.s32 16, 16
      %683 = vsyncadd [#allocation77], %s682
      %s685 = sshll.u32 [#allocation76], 4
      %s686 = int_to_ptr.vmem [resolvable:$true] %s685
      %688 = dma.hbm_to_vmem [thread:$0]  %s109, 16, %s686, [#allocation77]
    $region221: #{slim_cc_auto_decoder_forward.2} parent=1 // pred_fallthru
      _
    // Predicated region
    $region222: #{slim_cc_auto_decoder_forward.2} parent=1 // pred_check
      _
    $region223: #{slim_cc_auto_decoder_forward.2} parent=1 // pred_check_branch
      %690 = sbr.rel (0) target = $region225
    $region224: #{slim_cc_auto_decoder_forward.2} parent=1 // pred_region
      %s692 = ssub.s32 3072, 3072
      %693 = vsyncadd [#allocation77], %s692
      %s694 = sshll.u32 [#allocation78], 4
      %s695 = int_to_ptr.vmem [resolvable:$true] %s694
      %700 = dma.hbm_to_vmem [thread:$0]  %s111, 3072, %s695, [#allocation77], 128, 128, 8
    $region225: #{slim_cc_auto_decoder_forward.2} parent=1 // pred_fallthru
      _
    // Predicated region
    $region226: #{slim_cc_auto_decoder_forward.2} parent=1 // pred_check
      _
    $region227: #{slim_cc_auto_decoder_forward.2} parent=1 // pred_check_branch
      %702 = sbr.rel (0) target = $region229
    $region228: #{slim_cc_auto_decoder_forward.2} parent=1 // pred_region
      %s704 = ssub.s32 16, 16
      %705 = vsyncadd [#allocation80], %s704
      %s707 = sshll.u32 [#allocation79], 4
      %s708 = int_to_ptr.vmem [resolvable:$true] %s707
      %710 = dma.hbm_to_vmem [thread:$0]  %s113, 16, %s708, [#allocation80]
    $region229: #{slim_cc_auto_decoder_forward.2} parent=1 // pred_fallthru
      _
    // Predicated region
    $region230: #{slim_cc_auto_decoder_forward.2} parent=1 // pred_check
      _
    $region231: #{slim_cc_auto_decoder_forward.2} parent=1 // pred_check_branch
      %712 = sbr.rel (0) target = $region233
    $region232: #{slim_cc_auto_decoder_forward.2} parent=1 // pred_region
      %s714 = ssub.s32 16, 16
      %715 = vsyncadd [#allocation80], %s714
      %s717 = sshll.u32 [#allocation81], 4
      %s718 = int_to_ptr.vmem [resolvable:$true] %s717
      %720 = dma.hbm_to_vmem [thread:$0]  %s115, 16, %s718, [#allocation80]
    $region233: #{slim_cc_auto_decoder_forward.2} parent=1 // pred_fallthru
      _
    // Predicated region
    $region234: #{slim_cc_auto_decoder_forward.2} parent=1 // pred_check
      _
    $region235: #{slim_cc_auto_decoder_forward.2} parent=1 // pred_check_branch
      %722 = sbr.rel (0) target = $region237
    $region236: #{slim_cc_auto_decoder_forward.2} parent=1 // pred_region
      %s724 = ssub.s32 16, 16
      %725 = vsyncadd [#allocation83], %s724
      %s727 = sshll.u32 [#allocation82], 4
      %s728 = int_to_ptr.vmem [resolvable:$true] %s727
      %730 = dma.hbm_to_vmem [thread:$0]  %s117, 16, %s728, [#allocation83]
    $region237: #{slim_cc_auto_decoder_forward.2} parent=1 // pred_fallthru
      _
    // Predicated region
    $region238: #{slim_cc_auto_decoder_forward.2} parent=1 // pred_check
      _
    $region239: #{slim_cc_auto_decoder_forward.2} parent=1 // pred_check_branch
      %732 = sbr.rel (0) target = $region241
    $region240: #{slim_cc_auto_decoder_forward.2} parent=1 // pred_region
      %s734 = ssub.s32 1024, 1024
      %735 = vsyncadd [#allocation83], %s734
      %s736 = sshll.u32 [#allocation84], 4
      %s737 = int_to_ptr.vmem [resolvable:$true] %s736
      %742 = dma.hbm_to_vmem [thread:$0]  %s119, 1024, %s737, [#allocation83], 128, 128, 8
    $region241: #{slim_cc_auto_decoder_forward.2} parent=1 // pred_fallthru
      _
    // Predicated region
    $region242: #{slim_cc_auto_decoder_forward.2} parent=1 // pred_check
      _
    $region243: #{slim_cc_auto_decoder_forward.2} parent=1 // pred_check_branch
      %744 = sbr.rel (0) target = $region245
    $region244: #{slim_cc_auto_decoder_forward.2} parent=1 // pred_region
      %s746 = ssub.s32 16, 16
      %747 = vsyncadd [#allocation86], %s746
      %s749 = sshll.u32 [#allocation85], 4
      %s750 = int_to_ptr.vmem [resolvable:$true] %s749
      %752 = dma.hbm_to_vmem [thread:$0]  %s121, 16, %s750, [#allocation86]
    $region245: #{slim_cc_auto_decoder_forward.2} parent=1 // pred_fallthru
      _
    // Predicated region
    $region246: #{slim_cc_auto_decoder_forward.2} parent=1 // pred_check
      _
    $region247: #{slim_cc_auto_decoder_forward.2} parent=1 // pred_check_branch
      %754 = sbr.rel (0) target = $region249
    $region248: #{slim_cc_auto_decoder_forward.2} parent=1 // pred_region
      %755 = dma.done [#allocation3], 3072
    $region249: #{slim_cc_auto_decoder_forward.2} parent=1 // pred_fallthru
      _
    // Predicated region
    $region250: #{slim_cc_auto_decoder_forward.2} parent=1 // pred_check
      _
    $region251: #{slim_cc_auto_decoder_forward.2} parent=1 // pred_check_branch
      %757 = sbr.rel (0) target = $region253
    $region252: #{slim_cc_auto_decoder_forward.2} parent=1 // pred_region
      %758 = dma.done [#allocation5], 16
    $region253: #{slim_cc_auto_decoder_forward.2} parent=1 // pred_fallthru
      _
    // Predicated region
    $region254: #{slim_cc_auto_decoder_forward.2} parent=1 // pred_check
      _
    $region255: #{slim_cc_auto_decoder_forward.2} parent=1 // pred_check_branch
      %760 = sbr.rel (0) target = $region257
    $region256: #{slim_cc_auto_decoder_forward.2} parent=1 // pred_region
      %761 = dma.done [#allocation5], 16
    $region257: #{slim_cc_auto_decoder_forward.2} parent=1 // pred_fallthru
      _
    // Predicated region
    $region258: #{slim_cc_auto_decoder_forward.2} parent=1 // pred_check
      _
    $region259: #{slim_cc_auto_decoder_forward.2} parent=1 // pred_check_branch
      %763 = sbr.rel (0) target = $region261
    $region260: #{slim_cc_auto_decoder_forward.2} parent=1 // pred_region
      %764 = dma.done [#allocation8], 16
    $region261: #{slim_cc_auto_decoder_forward.2} parent=1 // pred_fallthru
      _
    // Predicated region
    $region262: #{slim_cc_auto_decoder_forward.2} parent=1 // pred_check
      _
    $region263: #{slim_cc_auto_decoder_forward.2} parent=1 // pred_check_branch
      %766 = sbr.rel (0) target = $region265
    $region264: #{slim_cc_auto_decoder_forward.2} parent=1 // pred_region
      %767 = dma.done [#allocation8], 3072
    $region265: #{slim_cc_auto_decoder_forward.2} parent=1 // pred_fallthru
      _
    // Predicated region
    $region266: #{slim_cc_auto_decoder_forward.2} parent=1 // pred_check
      _
    $region267: #{slim_cc_auto_decoder_forward.2} parent=1 // pred_check_branch
      %769 = sbr.rel (0) target = $region269
    $region268: #{slim_cc_auto_decoder_forward.2} parent=1 // pred_region
      %770 = dma.done [#allocation11], 16
    $region269: #{slim_cc_auto_decoder_forward.2} parent=1 // pred_fallthru
      _
    // Predicated region
    $region270: #{slim_cc_auto_decoder_forward.2} parent=1 // pred_check
      _
    $region271: #{slim_cc_auto_decoder_forward.2} parent=1 // pred_check_branch
      %772 = sbr.rel (0) target = $region273
    $region272: #{slim_cc_auto_decoder_forward.2} parent=1 // pred_region
      %773 = dma.done [#allocation11], 16
    $region273: #{slim_cc_auto_decoder_forward.2} parent=1 // pred_fallthru
      _
    // Predicated region
    $region274: #{slim_cc_auto_decoder_forward.2} parent=1 // pred_check
      _
    $region275: #{slim_cc_auto_decoder_forward.2} parent=1 // pred_check_branch
      %775 = sbr.rel (0) target = $region277
    $region276: #{slim_cc_auto_decoder_forward.2} parent=1 // pred_region
      %776 = dma.done [#allocation14], 16
    $region277: #{slim_cc_auto_decoder_forward.2} parent=1 // pred_fallthru
      _
    // Predicated region
    $region278: #{slim_cc_auto_decoder_forward.2} parent=1 // pred_check
      _
    $region279: #{slim_cc_auto_decoder_forward.2} parent=1 // pred_check_branch
      %778 = sbr.rel (0) target = $region281
    $region280: #{slim_cc_auto_decoder_forward.2} parent=1 // pred_region
      %779 = dma.done [#allocation14], 16
    $region281: #{slim_cc_auto_decoder_forward.2} parent=1 // pred_fallthru
      _
    // Predicated region
    $region282: #{slim_cc_auto_decoder_forward.2} parent=1 // pred_check
      _
    $region283: #{slim_cc_auto_decoder_forward.2} parent=1 // pred_check_branch
      %781 = sbr.rel (0) target = $region285
    $region284: #{slim_cc_auto_decoder_forward.2} parent=1 // pred_region
      %782 = dma.done [#allocation17], 16
    $region285: #{slim_cc_auto_decoder_forward.2} parent=1 // pred_fallthru
      _
    // Predicated region
    $region286: #{slim_cc_auto_decoder_forward.2} parent=1 // pred_check
      _
    $region287: #{slim_cc_auto_decoder_forward.2} parent=1 // pred_check_branch
      %784 = sbr.rel (0) target = $region289
    $region288: #{slim_cc_auto_decoder_forward.2} parent=1 // pred_region
      %785 = dma.done [#allocation17], 16
    $region289: #{slim_cc_auto_decoder_forward.2} parent=1 // pred_fallthru
      _
    // Predicated region
    $region290: #{slim_cc_auto_decoder_forward.2} parent=1 // pred_check
      _
    $region291: #{slim_cc_auto_decoder_forward.2} parent=1 // pred_check_branch
      %787 = sbr.rel (0) target = $region293
    $region292: #{slim_cc_auto_decoder_forward.2} parent=1 // pred_region
      %788 = dma.done [#allocation20], 1536
    $region293: #{slim_cc_auto_decoder_forward.2} parent=1 // pred_fallthru
      _
    // Predicated region
    $region294: #{slim_cc_auto_decoder_forward.2} parent=1 // pred_check
      _
    $region295: #{slim_cc_auto_decoder_forward.2} parent=1 // pred_check_branch
      %790 = sbr.rel (0) target = $region297
    $region296: #{slim_cc_auto_decoder_forward.2} parent=1 // pred_region
      %791 = dma.done [#allocation20], 16
    $region297: #{slim_cc_auto_decoder_forward.2} parent=1 // pred_fallthru
      _
    // Predicated region
    $region298: #{slim_cc_auto_decoder_forward.2} parent=1 // pred_check
      _
    $region299: #{slim_cc_auto_decoder_forward.2} parent=1 // pred_check_branch
      %793 = sbr.rel (0) target = $region301
    $region300: #{slim_cc_auto_decoder_forward.2} parent=1 // pred_region
      %794 = dma.done [#allocation23], 16
    $region301: #{slim_cc_auto_decoder_forward.2} parent=1 // pred_fallthru
      _
    // Predicated region
    $region302: #{slim_cc_auto_decoder_forward.2} parent=1 // pred_check
      _
    $region303: #{slim_cc_auto_decoder_forward.2} parent=1 // pred_check_branch
      %796 = sbr.rel (0) target = $region305
    $region304: #{slim_cc_auto_decoder_forward.2} parent=1 // pred_region
      %797 = dma.done [#allocation23], 16
    $region305: #{slim_cc_auto_decoder_forward.2} parent=1 // pred_fallthru
      _
    // Predicated region
    $region306: #{slim_cc_auto_decoder_forward.2} parent=1 // pred_check
      _
    $region307: #{slim_cc_auto_decoder_forward.2} parent=1 // pred_check_branch
      %799 = sbr.rel (0) target = $region309
    $region308: #{slim_cc_auto_decoder_forward.2} parent=1 // pred_region
      %800 = dma.done [#allocation26], 1536
    $region309: #{slim_cc_auto_decoder_forward.2} parent=1 // pred_fallthru
      _
    // Predicated region
    $region310: #{slim_cc_auto_decoder_forward.2} parent=1 // pred_check
      _
    $region311: #{slim_cc_auto_decoder_forward.2} parent=1 // pred_check_branch
      %802 = sbr.rel (0) target = $region313
    $region312: #{slim_cc_auto_decoder_forward.2} parent=1 // pred_region
      %803 = dma.done [#allocation26], 16
    $region313: #{slim_cc_auto_decoder_forward.2} parent=1 // pred_fallthru
      _
    // Predicated region
    $region314: #{slim_cc_auto_decoder_forward.2} parent=1 // pred_check
      _
    $region315: #{slim_cc_auto_decoder_forward.2} parent=1 // pred_check_branch
      %805 = sbr.rel (0) target = $region317
    $region316: #{slim_cc_auto_decoder_forward.2} parent=1 // pred_region
      %806 = dma.done [#allocation29], 16
    $region317: #{slim_cc_auto_decoder_forward.2} parent=1 // pred_fallthru
      _
    // Predicated region
    $region318: #{slim_cc_auto_decoder_forward.2} parent=1 // pred_check
      _
    $region319: #{slim_cc_auto_decoder_forward.2} parent=1 // pred_check_branch
      %808 = sbr.rel (0) target = $region321
    $region320: #{slim_cc_auto_decoder_forward.2} parent=1 // pred_region
      %809 = dma.done [#allocation29], 16
    $region321: #{slim_cc_auto_decoder_forward.2} parent=1 // pred_fallthru
      _
    // Predicated region
    $region322: #{slim_cc_auto_decoder_forward.2} parent=1 // pred_check
      _
    $region323: #{slim_cc_auto_decoder_forward.2} parent=1 // pred_check_branch
      %811 = sbr.rel (0) target = $region325
    $region324: #{slim_cc_auto_decoder_forward.2} parent=1 // pred_region
      %812 = dma.done [#allocation32], 16
    $region325: #{slim_cc_auto_decoder_forward.2} parent=1 // pred_fallthru
      _
    // Predicated region
    $region326: #{slim_cc_auto_decoder_forward.2} parent=1 // pred_check
      _
    $region327: #{slim_cc_auto_decoder_forward.2} parent=1 // pred_check_branch
      %814 = sbr.rel (0) target = $region329
    $region328: #{slim_cc_auto_decoder_forward.2} parent=1 // pred_region
      %815 = dma.done [#allocation32], 16
    $region329: #{slim_cc_auto_decoder_forward.2} parent=1 // pred_fallthru
      _
    // Predicated region
    $region330: #{slim_cc_auto_decoder_forward.2} parent=1 // pred_check
      _
    $region331: #{slim_cc_auto_decoder_forward.2} parent=1 // pred_check_branch
      %817 = sbr.rel (0) target = $region333
    $region332: #{slim_cc_auto_decoder_forward.2} parent=1 // pred_region
      %818 = dma.done [#allocation35], 16
    $region333: #{slim_cc_auto_decoder_forward.2} parent=1 // pred_fallthru
      _
    // Predicated region
    $region334: #{slim_cc_auto_decoder_forward.2} parent=1 // pred_check
      _
    $region335: #{slim_cc_auto_decoder_forward.2} parent=1 // pred_check_branch
      %820 = sbr.rel (0) target = $region337
    $region336: #{slim_cc_auto_decoder_forward.2} parent=1 // pred_region
      %821 = dma.done [#allocation35], 768
    $region337: #{slim_cc_auto_decoder_forward.2} parent=1 // pred_fallthru
      _
    // Predicated region
    $region338: #{slim_cc_auto_decoder_forward.2} parent=1 // pred_check
      _
    $region339: #{slim_cc_auto_decoder_forward.2} parent=1 // pred_check_branch
      %823 = sbr.rel (0) target = $region341
    $region340: #{slim_cc_auto_decoder_forward.2} parent=1 // pred_region
      %824 = dma.done [#allocation38], 16
    $region341: #{slim_cc_auto_decoder_forward.2} parent=1 // pred_fallthru
      _
    // Predicated region
    $region342: #{slim_cc_auto_decoder_forward.2} parent=1 // pred_check
      _
    $region343: #{slim_cc_auto_decoder_forward.2} parent=1 // pred_check_branch
      %826 = sbr.rel (0) target = $region345
    $region344: #{slim_cc_auto_decoder_forward.2} parent=1 // pred_region
      %827 = dma.done [#allocation38], 16
    $region345: #{slim_cc_auto_decoder_forward.2} parent=1 // pred_fallthru
      _
    // Predicated region
    $region346: #{slim_cc_auto_decoder_forward.2} parent=1 // pred_check
      _
    $region347: #{slim_cc_auto_decoder_forward.2} parent=1 // pred_check_branch
      %829 = sbr.rel (0) target = $region349
    $region348: #{slim_cc_auto_decoder_forward.2} parent=1 // pred_region
      %830 = dma.done [#allocation41], 16
    $region349: #{slim_cc_auto_decoder_forward.2} parent=1 // pred_fallthru
      _
    // Predicated region
    $region350: #{slim_cc_auto_decoder_forward.2} parent=1 // pred_check
      _
    $region351: #{slim_cc_auto_decoder_forward.2} parent=1 // pred_check_branch
      %832 = sbr.rel (0) target = $region353
    $region352: #{slim_cc_auto_decoder_forward.2} parent=1 // pred_region
      %833 = dma.done [#allocation41], 768
    $region353: #{slim_cc_auto_decoder_forward.2} parent=1 // pred_fallthru
      _
    // Predicated region
    $region354: #{slim_cc_auto_decoder_forward.2} parent=1 // pred_check
      _
    $region355: #{slim_cc_auto_decoder_forward.2} parent=1 // pred_check_branch
      %835 = sbr.rel (0) target = $region357
    $region356: #{slim_cc_auto_decoder_forward.2} parent=1 // pred_region
      %836 = dma.done [#allocation44], 16
    $region357: #{slim_cc_auto_decoder_forward.2} parent=1 // pred_fallthru
      _
    // Predicated region
    $region358: #{slim_cc_auto_decoder_forward.2} parent=1 // pred_check
      _
    $region359: #{slim_cc_auto_decoder_forward.2} parent=1 // pred_check_branch
      %838 = sbr.rel (0) target = $region361
    $region360: #{slim_cc_auto_decoder_forward.2} parent=1 // pred_region
      %839 = dma.done [#allocation44], 16
    $region361: #{slim_cc_auto_decoder_forward.2} parent=1 // pred_fallthru
      _
    // Predicated region
    $region362: #{slim_cc_auto_decoder_forward.2} parent=1 // pred_check
      _
    $region363: #{slim_cc_auto_decoder_forward.2} parent=1 // pred_check_branch
      %841 = sbr.rel (0) target = $region365
    $region364: #{slim_cc_auto_decoder_forward.2} parent=1 // pred_region
      %842 = dma.done [#allocation47], 16
    $region365: #{slim_cc_auto_decoder_forward.2} parent=1 // pred_fallthru
      _
    // Predicated region
    $region366: #{slim_cc_auto_decoder_forward.2} parent=1 // pred_check
      _
    $region367: #{slim_cc_auto_decoder_forward.2} parent=1 // pred_check_branch
      %844 = sbr.rel (0) target = $region369
    $region368: #{slim_cc_auto_decoder_forward.2} parent=1 // pred_region
      %845 = dma.done [#allocation47], 256
    $region369: #{slim_cc_auto_decoder_forward.2} parent=1 // pred_fallthru
      _
    // Predicated region
    $region370: #{slim_cc_auto_decoder_forward.2} parent=1 // pred_check
      _
    $region371: #{slim_cc_auto_decoder_forward.2} parent=1 // pred_check_branch
      %847 = sbr.rel (0) target = $region373
    $region372: #{slim_cc_auto_decoder_forward.2} parent=1 // pred_region
      %848 = dma.done [#allocation50], 16
    $region373: #{slim_cc_auto_decoder_forward.2} parent=1 // pred_fallthru
      _
    // Predicated region
    $region374: #{slim_cc_auto_decoder_forward.2} parent=1 // pred_check
      _
    $region375: #{slim_cc_auto_decoder_forward.2} parent=1 // pred_check_branch
      %850 = sbr.rel (0) target = $region377
    $region376: #{slim_cc_auto_decoder_forward.2} parent=1 // pred_region
      %851 = dma.done [#allocation50], 16
    $region377: #{slim_cc_auto_decoder_forward.2} parent=1 // pred_fallthru
      _
    // Predicated region
    $region378: #{slim_cc_auto_decoder_forward.2} parent=1 // pred_check
      _
    $region379: #{slim_cc_auto_decoder_forward.2} parent=1 // pred_check_branch
      %853 = sbr.rel (0) target = $region381
    $region380: #{slim_cc_auto_decoder_forward.2} parent=1 // pred_region
      %854 = dma.done [#allocation53], 16
    $region381: #{slim_cc_auto_decoder_forward.2} parent=1 // pred_fallthru
      _
    // Predicated region
    $region382: #{slim_cc_auto_decoder_forward.2} parent=1 // pred_check
      _
    $region383: #{slim_cc_auto_decoder_forward.2} parent=1 // pred_check_branch
      %856 = sbr.rel (0) target = $region385
    $region384: #{slim_cc_auto_decoder_forward.2} parent=1 // pred_region
      %857 = dma.done [#allocation53], 1536
    $region385: #{slim_cc_auto_decoder_forward.2} parent=1 // pred_fallthru
      _
    // Predicated region
    $region386: #{slim_cc_auto_decoder_forward.2} parent=1 // pred_check
      _
    $region387: #{slim_cc_auto_decoder_forward.2} parent=1 // pred_check_branch
      %859 = sbr.rel (0) target = $region389
    $region388: #{slim_cc_auto_decoder_forward.2} parent=1 // pred_region
      %860 = dma.done [#allocation56], 16
    $region389: #{slim_cc_auto_decoder_forward.2} parent=1 // pred_fallthru
      _
    // Predicated region
    $region390: #{slim_cc_auto_decoder_forward.2} parent=1 // pred_check
      _
    $region391: #{slim_cc_auto_decoder_forward.2} parent=1 // pred_check_branch
      %862 = sbr.rel (0) target = $region393
    $region392: #{slim_cc_auto_decoder_forward.2} parent=1 // pred_region
      %863 = dma.done [#allocation56], 16
    $region393: #{slim_cc_auto_decoder_forward.2} parent=1 // pred_fallthru
      _
    // Predicated region
    $region394: #{slim_cc_auto_decoder_forward.2} parent=1 // pred_check
      _
    $region395: #{slim_cc_auto_decoder_forward.2} parent=1 // pred_check_branch
      %865 = sbr.rel (0) target = $region397
    $region396: #{slim_cc_auto_decoder_forward.2} parent=1 // pred_region
      %866 = dma.done [#allocation59], 16
    $region397: #{slim_cc_auto_decoder_forward.2} parent=1 // pred_fallthru
      _
    // Predicated region
    $region398: #{slim_cc_auto_decoder_forward.2} parent=1 // pred_check
      _
    $region399: #{slim_cc_auto_decoder_forward.2} parent=1 // pred_check_branch
      %868 = sbr.rel (0) target = $region401
    $region400: #{slim_cc_auto_decoder_forward.2} parent=1 // pred_region
      %869 = dma.done [#allocation59], 1536
    $region401: #{slim_cc_auto_decoder_forward.2} parent=1 // pred_fallthru
      _
    // Predicated region
    $region402: #{slim_cc_auto_decoder_forward.2} parent=1 // pred_check
      _
    $region403: #{slim_cc_auto_decoder_forward.2} parent=1 // pred_check_branch
      %871 = sbr.rel (0) target = $region405
    $region404: #{slim_cc_auto_decoder_forward.2} parent=1 // pred_region
      %872 = dma.done [#allocation62], 16
    $region405: #{slim_cc_auto_decoder_forward.2} parent=1 // pred_fallthru
      _
    // Predicated region
    $region406: #{slim_cc_auto_decoder_forward.2} parent=1 // pred_check
      _
    $region407: #{slim_cc_auto_decoder_forward.2} parent=1 // pred_check_branch
      %874 = sbr.rel (0) target = $region409
    $region408: #{slim_cc_auto_decoder_forward.2} parent=1 // pred_region
      %875 = dma.done [#allocation62], 16
    $region409: #{slim_cc_auto_decoder_forward.2} parent=1 // pred_fallthru
      _
    // Predicated region
    $region410: #{slim_cc_auto_decoder_forward.2} parent=1 // pred_check
      _
    $region411: #{slim_cc_auto_decoder_forward.2} parent=1 // pred_check_branch
      %877 = sbr.rel (0) target = $region413
    $region412: #{slim_cc_auto_decoder_forward.2} parent=1 // pred_region
      %878 = dma.done [#allocation65], 16
    $region413: #{slim_cc_auto_decoder_forward.2} parent=1 // pred_fallthru
      _
    // Predicated region
    $region414: #{slim_cc_auto_decoder_forward.2} parent=1 // pred_check
      _
    $region415: #{slim_cc_auto_decoder_forward.2} parent=1 // pred_check_branch
      %880 = sbr.rel (0) target = $region417
    $region416: #{slim_cc_auto_decoder_forward.2} parent=1 // pred_region
      %881 = dma.done [#allocation65], 512
    $region417: #{slim_cc_auto_decoder_forward.2} parent=1 // pred_fallthru
      _
    // Predicated region
    $region418: #{slim_cc_auto_decoder_forward.2} parent=1 // pred_check
      _
    $region419: #{slim_cc_auto_decoder_forward.2} parent=1 // pred_check_branch
      %883 = sbr.rel (0) target = $region421
    $region420: #{slim_cc_auto_decoder_forward.2} parent=1 // pred_region
      %884 = dma.done [#allocation68], 16
    $region421: #{slim_cc_auto_decoder_forward.2} parent=1 // pred_fallthru
      _
    // Predicated region
    $region422: #{slim_cc_auto_decoder_forward.2} parent=1 // pred_check
      _
    $region423: #{slim_cc_auto_decoder_forward.2} parent=1 // pred_check_branch
      %886 = sbr.rel (0) target = $region425
    $region424: #{slim_cc_auto_decoder_forward.2} parent=1 // pred_region
      %887 = dma.done [#allocation68], 16
    $region425: #{slim_cc_auto_decoder_forward.2} parent=1 // pred_fallthru
      _
    // Predicated region
    $region426: #{slim_cc_auto_decoder_forward.2} parent=1 // pred_check
      _
    $region427: #{slim_cc_auto_decoder_forward.2} parent=1 // pred_check_branch
      %889 = sbr.rel (0) target = $region429
    $region428: #{slim_cc_auto_decoder_forward.2} parent=1 // pred_region
      %890 = dma.done [#allocation71], 16
    $region429: #{slim_cc_auto_decoder_forward.2} parent=1 // pred_fallthru
      _
    // Predicated region
    $region430: #{slim_cc_auto_decoder_forward.2} parent=1 // pred_check
      _
    $region431: #{slim_cc_auto_decoder_forward.2} parent=1 // pred_check_branch
      %892 = sbr.rel (0) target = $region433
    $region432: #{slim_cc_auto_decoder_forward.2} parent=1 // pred_region
      %893 = dma.done [#allocation71], 3072
    $region433: #{slim_cc_auto_decoder_forward.2} parent=1 // pred_fallthru
      _
    // Predicated region
    $region434: #{slim_cc_auto_decoder_forward.2} parent=1 // pred_check
      _
    $region435: #{slim_cc_auto_decoder_forward.2} parent=1 // pred_check_branch
      %895 = sbr.rel (0) target = $region437
    $region436: #{slim_cc_auto_decoder_forward.2} parent=1 // pred_region
      %896 = dma.done [#allocation74], 16
    $region437: #{slim_cc_auto_decoder_forward.2} parent=1 // pred_fallthru
      _
    // Predicated region
    $region438: #{slim_cc_auto_decoder_forward.2} parent=1 // pred_check
      _
    $region439: #{slim_cc_auto_decoder_forward.2} parent=1 // pred_check_branch
      %898 = sbr.rel (0) target = $region441
    $region440: #{slim_cc_auto_decoder_forward.2} parent=1 // pred_region
      %899 = dma.done [#allocation74], 16
    $region441: #{slim_cc_auto_decoder_forward.2} parent=1 // pred_fallthru
      _
    // Predicated region
    $region442: #{slim_cc_auto_decoder_forward.2} parent=1 // pred_check
      _
    $region443: #{slim_cc_auto_decoder_forward.2} parent=1 // pred_check_branch
      %901 = sbr.rel (0) target = $region445
    $region444: #{slim_cc_auto_decoder_forward.2} parent=1 // pred_region
      %902 = dma.done [#allocation77], 16
    $region445: #{slim_cc_auto_decoder_forward.2} parent=1 // pred_fallthru
      _
    // Predicated region
    $region446: #{slim_cc_auto_decoder_forward.2} parent=1 // pred_check
      _
    $region447: #{slim_cc_auto_decoder_forward.2} parent=1 // pred_check_branch
      %904 = sbr.rel (0) target = $region449
    $region448: #{slim_cc_auto_decoder_forward.2} parent=1 // pred_region
      %905 = dma.done [#allocation77], 3072
    $region449: #{slim_cc_auto_decoder_forward.2} parent=1 // pred_fallthru
      _
    // Predicated region
    $region450: #{slim_cc_auto_decoder_forward.2} parent=1 // pred_check
      _
    $region451: #{slim_cc_auto_decoder_forward.2} parent=1 // pred_check_branch
      %907 = sbr.rel (0) target = $region453
    $region452: #{slim_cc_auto_decoder_forward.2} parent=1 // pred_region
      %908 = dma.done [#allocation80], 16
    $region453: #{slim_cc_auto_decoder_forward.2} parent=1 // pred_fallthru
      _
    // Predicated region
    $region454: #{slim_cc_auto_decoder_forward.2} parent=1 // pred_check
      _
    $region455: #{slim_cc_auto_decoder_forward.2} parent=1 // pred_check_branch
      %910 = sbr.rel (0) target = $region457
    $region456: #{slim_cc_auto_decoder_forward.2} parent=1 // pred_region
      %911 = dma.done [#allocation80], 16
    $region457: #{slim_cc_auto_decoder_forward.2} parent=1 // pred_fallthru
      _
    // Predicated region
    $region458: #{slim_cc_auto_decoder_forward.2} parent=1 // pred_check
      _
    $region459: #{slim_cc_auto_decoder_forward.2} parent=1 // pred_check_branch
      %913 = sbr.rel (0) target = $region461
    $region460: #{slim_cc_auto_decoder_forward.2} parent=1 // pred_region
      %914 = dma.done [#allocation83], 16
    $region461: #{slim_cc_auto_decoder_forward.2} parent=1 // pred_fallthru
      _
    // Predicated region
    $region462: #{slim_cc_auto_decoder_forward.2} parent=1 // pred_check
      _
    $region463: #{slim_cc_auto_decoder_forward.2} parent=1 // pred_check_branch
      %916 = sbr.rel (0) target = $region465
    $region464: #{slim_cc_auto_decoder_forward.2} parent=1 // pred_region
      %917 = dma.done [#allocation83], 1024
    $region465: #{slim_cc_auto_decoder_forward.2} parent=1 // pred_fallthru
      _
    // Predicated region
    $region466: #{slim_cc_auto_decoder_forward.2} parent=1 // pred_check
      _
    $region467: #{slim_cc_auto_decoder_forward.2} parent=1 // pred_check_branch
      %919 = sbr.rel (0) target = $region469
    $region468: #{slim_cc_auto_decoder_forward.2} parent=1 // pred_region
      %920 = dma.done [#allocation86], 16
    $region469: #{slim_cc_auto_decoder_forward.2} parent=1 // pred_fallthru
      _
    %v921 = vld [vmem:[%s3] sm:$0xff]
    %v922 = vld [vmem:[%s3 + $0x8] sm:$0xff]
    %v923 = vld [vmem:[%s3 + $0x10] sm:$0xff]
    %v924 = vld [vmem:[%s3 + $0x18] sm:$0xff]
    %v925 = vld [vmem:[%s5] sm:$0xff]
    %v926 = vld [vmem:[%s5 + $0x8] sm:$0xff]
    %v927 = vld [vmem:[%s5 + $0x10] sm:$0xff]
    %v928 = vld [vmem:[%s5 + $0x18] sm:$0xff]
    %v929 = vld [vmem:[%s1] sm:$0xff]
    %v930 = vld [vmem:[%s1 + $0x8] sm:$0xff]
    %v931 = vld [vmem:[%s1 + $0x10] sm:$0xff]
    %v932 = vld [vmem:[%s1 + $0x18] sm:$0xff]
    %vm933 = vcmask 261120
    %v935 = vsel %vm933, %v921, 0
    %v938 = vsel %vm933, %v922, 0
    %v941 = vsel %vm933, %v923, 0
    %v944 = vsel %vm933, %v924, 0
    %946 = vmatprep.subr.mxu0 0.0
    %947 = vmatpush1.msra.mxu0 0.0
    %948 = vmatprep.subr.mxu0 0.0
    %949 = vmatpush1.msra.mxu0 0.0
    %950 = vmatprep.subr.mxu0 0.0
    %951 = vmatpush1.msra.mxu0 0.0
    %952 = vmatprep.subr.mxu0 0.0
    %953 = vmatpush1.msra.mxu0 0.0
    %954 = vmatprep.subr.mxu0 0.0
    %955 = vmatpush1.msra.mxu0 0.0
    %956 = vmatprep.subr.mxu0 0.0
    %957 = vmatpush1.msra.mxu0 0.0
    %958 = vmatprep.subr.mxu0 0.0
    %959 = vmatpush1.msra.mxu0 0.0
    %960 = vmatprep.subr.mxu0 0.0
    %961 = vmatpush1.msra.mxu0 0.0
    %962 = vmatprep.subr.mxu0 0.0
    %963 = vmatpush1.msra.mxu0 0.0
    %964 = vmatprep.subr.mxu0 0.0
    %965 = vmatpush1.msra.mxu0 0.0
    %966 = vmatprep.subr.mxu0 0.0
    %967 = vmatpush1.msra.mxu0 0.0
    %968 = vmatprep.subr.mxu0 0.0
    %969 = vmatpush1.msra.mxu0 0.0
    %970 = vmatprep.subr.mxu0 0.0
    %971 = vmatpush1.msra.mxu0 %v932
    %972 = vmatprep.subr.mxu0 0.0
    %973 = vmatpush1.msra.mxu0 %v931
    %974 = vmatprep.subr.mxu0 0.0
    %975 = vmatpush1.msra.mxu0 %v930
    %976 = vmatprep.subr.mxu0 0.0
    %977 = vmatpush1.msra.mxu0 %v929
    %978 = vmatprep.subr.mxu0 0.0
    %979 = vmatpush2.msra.mxu0 0.0
    %980 = vmatprep.subr.mxu0 0.0
    %981 = vmatpush2.msra.mxu0 0.0
    %982 = vmatprep.subr.mxu0 0.0
    %983 = vmatpush2.msra.mxu0 0.0
    %984 = vmatprep.subr.mxu0 0.0
    %985 = vmatpush2.msra.mxu0 0.0
    %986 = vmatprep.subr.mxu0 0.0
    %987 = vmatpush2.msra.mxu0 0.0
    %988 = vmatprep.subr.mxu0 0.0
    %989 = vmatpush2.msra.mxu0 0.0
    %990 = vmatprep.subr.mxu0 0.0
    %991 = vmatpush2.msra.mxu0 0.0
    %992 = vmatprep.subr.mxu0 0.0
    %993 = vmatpush2.msra.mxu0 0.0
    %994 = vmatprep.subr.mxu0 0.0
    %995 = vmatpush2.msra.mxu0 0.0
    %996 = vmatprep.subr.mxu0 0.0
    %997 = vmatpush2.msra.mxu0 0.0
    %998 = vmatprep.subr.mxu0 0.0
    %999 = vmatpush2.msra.mxu0 0.0
    %1000 = vmatprep.subr.mxu0 0.0
    %1001 = vmatpush2.msra.mxu0 0.0
    %1002 = vmatprep.subr.mxu0 0.0
    %1003 = vmatpush2.msra.mxu0 0.0
    %1004 = vmatprep.subr.mxu0 0.0
    %1005 = vmatpush2.msra.mxu0 0.0
    %1006 = vmatprep.subr.mxu0 0.0
    %1007 = vmatpush2.msra.mxu0 0.0
    %1008 = vmatprep.subr.mxu0 0.0
    %1009 = vmatpush2.msra.mxu0 0.0
    %1010 = vmatprep.mubr.f32.mxu0 0.0
    %1011 = vmatmul.mubr.f32.gmra.mxu0 %v935
    %v1012 = vpop.f32.mrf.mxu0
    %v1013 = vadd.f32 0.0, %v1012
    %v1014 = vpop.f32.mrf.mxu0
    %1015 = vmatprep.mubr.f32.mxu0 0.0
    %1016 = vmatmul.mubr.f32.gmra.mxu0 %v938
    %v1017 = vpop.f32.mrf.mxu0
    %v1018 = vadd.f32 0.0, %v1017
    %v1019 = vpop.f32.mrf.mxu0
    %1020 = vmatprep.mubr.f32.mxu0 0.0
    %1021 = vmatmul.mubr.f32.gmra.mxu0 %v941
    %v1022 = vpop.f32.mrf.mxu0
    %v1023 = vadd.f32 0.0, %v1022
    %v1024 = vpop.f32.mrf.mxu0
    %1025 = vmatprep.mubr.f32.mxu0 0.0
    %1026 = vmatmul.mubr.f32.gmra.mxu0 %v944
    %v1027 = vpop.f32.mrf.mxu0
    %v1028 = vadd.f32 0.0, %v1027
    %v1029 = vpop.f32.mrf.mxu0
    %1030 = vdwg.mxu0
    %v1032 = vsel %vm933, %v925, 0
    %v1035 = vsel %vm933, %v926, 0
    %v1038 = vsel %vm933, %v927, 0
    %v1041 = vsel %vm933, %v928, 0
    %1043 = vmatprep.subr.mxu0 0.0
    %1044 = vmatpush1.msra.mxu0 0.0
    %1045 = vmatprep.subr.mxu0 0.0
    %1046 = vmatpush1.msra.mxu0 0.0
    %1047 = vmatprep.subr.mxu0 0.0
    %1048 = vmatpush1.msra.mxu0 0.0
    %1049 = vmatprep.subr.mxu0 0.0
    %1050 = vmatpush1.msra.mxu0 0.0
    %1051 = vmatprep.subr.mxu0 0.0
    %1052 = vmatpush1.msra.mxu0 0.0
    %1053 = vmatprep.subr.mxu0 0.0
    %1054 = vmatpush1.msra.mxu0 0.0
    %1055 = vmatprep.subr.mxu0 0.0
    %1056 = vmatpush1.msra.mxu0 0.0
    %1057 = vmatprep.subr.mxu0 0.0
    %1058 = vmatpush1.msra.mxu0 0.0
    %1059 = vmatprep.subr.mxu0 0.0
    %1060 = vmatpush1.msra.mxu0 0.0
    %1061 = vmatprep.subr.mxu0 0.0
    %1062 = vmatpush1.msra.mxu0 0.0
    %1063 = vmatprep.subr.mxu0 0.0
    %1064 = vmatpush1.msra.mxu0 0.0
    %1065 = vmatprep.subr.mxu0 0.0
    %1066 = vmatpush1.msra.mxu0 0.0
    %1067 = vmatprep.subr.mxu0 0.0
    %1068 = vmatpush1.msra.mxu0 %v932
    %1069 = vmatprep.subr.mxu0 0.0
    %1070 = vmatpush1.msra.mxu0 %v931
    %1071 = vmatprep.subr.mxu0 0.0
    %1072 = vmatpush1.msra.mxu0 %v930
    %1073 = vmatprep.subr.mxu0 0.0
    %1074 = vmatpush1.msra.mxu0 %v929
    %1075 = vmatprep.subr.mxu0 0.0
    %1076 = vmatpush2.msra.mxu0 0.0
    %1077 = vmatprep.subr.mxu0 0.0
    %1078 = vmatpush2.msra.mxu0 0.0
    %1079 = vmatprep.subr.mxu0 0.0
    %1080 = vmatpush2.msra.mxu0 0.0
    %1081 = vmatprep.subr.mxu0 0.0
    %1082 = vmatpush2.msra.mxu0 0.0
    %1083 = vmatprep.subr.mxu0 0.0
    %1084 = vmatpush2.msra.mxu0 0.0
    %1085 = vmatprep.subr.mxu0 0.0
    %1086 = vmatpush2.msra.mxu0 0.0
    %1087 = vmatprep.subr.mxu0 0.0
    %1088 = vmatpush2.msra.mxu0 0.0
    %1089 = vmatprep.subr.mxu0 0.0
    %1090 = vmatpush2.msra.mxu0 0.0
    %1091 = vmatprep.subr.mxu0 0.0
    %1092 = vmatpush2.msra.mxu0 0.0
    %1093 = vmatprep.subr.mxu0 0.0
    %1094 = vmatpush2.msra.mxu0 0.0
    %1095 = vmatprep.subr.mxu0 0.0
    %1096 = vmatpush2.msra.mxu0 0.0
    %1097 = vmatprep.subr.mxu0 0.0
    %1098 = vmatpush2.msra.mxu0 0.0
    %1099 = vmatprep.subr.mxu0 0.0
    %1100 = vmatpush2.msra.mxu0 0.0
    %1101 = vmatprep.subr.mxu0 0.0
    %1102 = vmatpush2.msra.mxu0 0.0
    %1103 = vmatprep.subr.mxu0 0.0
    %1104 = vmatpush2.msra.mxu0 0.0
    %1105 = vmatprep.subr.mxu0 0.0
    %1106 = vmatpush2.msra.mxu0 0.0
    %1107 = vmatprep.mubr.f32.mxu0 0.0
    %1108 = vmatmul.mubr.f32.gmra.mxu0 %v1032
    %v1109 = vpop.f32.mrf.mxu0
    %v1110 = vadd.f32 0.0, %v1109
    %v1111 = vpop.f32.mrf.mxu0
    %1112 = vmatprep.mubr.f32.mxu0 0.0
    %1113 = vmatmul.mubr.f32.gmra.mxu0 %v1035
    %v1114 = vpop.f32.mrf.mxu0
    %v1115 = vadd.f32 0.0, %v1114
    %v1116 = vpop.f32.mrf.mxu0
    %1117 = vmatprep.mubr.f32.mxu0 0.0
    %1118 = vmatmul.mubr.f32.gmra.mxu0 %v1038
    %v1119 = vpop.f32.mrf.mxu0
    %v1120 = vadd.f32 0.0, %v1119
    %v1121 = vpop.f32.mrf.mxu0
    %1122 = vmatprep.mubr.f32.mxu0 0.0
    %1123 = vmatmul.mubr.f32.gmra.mxu0 %v1041
    %v1124 = vpop.f32.mrf.mxu0
    %v1125 = vadd.f32 0.0, %v1124
    %v1126 = vpop.f32.mrf.mxu0
    %1127 = vdwg.mxu0
    %v1128 = vld [vmem:[#allocation2] sm:$0xff]
    %v1129 = vld [vmem:[#allocation2 + $0x8] sm:$0xff]
    %v1130 = vld [vmem:[#allocation2 + $0x10] sm:$0xff]
    %v1131 = vld [vmem:[#allocation2 + $0x18] sm:$0xff]
    %v1132 = vld [vmem:[#allocation2 + $0x20] sm:$0xff]
    %v1133 = vld [vmem:[#allocation2 + $0x28] sm:$0xff]
    %v1134 = vld [vmem:[#allocation2 + $0x30] sm:$0xff]
    %v1135 = vld [vmem:[#allocation2 + $0x38] sm:$0xff]
    %s1136 = scalar_lea.vmem [#allocation2], 64
    %v1137 = vld [vmem:[%s1136] sm:$0xff]
    %v1138 = vld [vmem:[%s1136 + $0x8] sm:$0xff]
    %v1139 = vld [vmem:[%s1136 + $0x10] sm:$0xff]
    %v1140 = vld [vmem:[%s1136 + $0x18] sm:$0xff]
    %v1141 = vld [vmem:[%s1136 + $0x20] sm:$0xff]
    %v1142 = vld [vmem:[%s1136 + $0x28] sm:$0xff]
    %v1143 = vld [vmem:[%s1136 + $0x30] sm:$0xff]
    %v1144 = vld [vmem:[%s1136 + $0x38] sm:$0xff]
    %vm1145 = vcmask 523264
    %v1147 = vsel %vm1145, %v929, 0
    %v1150 = vsel %vm1145, %v930, 0
    %v1153 = vsel %vm1145, %v931, 0
    %v1156 = vsel %vm1145, %v932, 0
    %1158 = vmatprep.subr.mxu0 0.0
    %1159 = vmatpush1.msra.mxu0 0.0
    %1160 = vmatprep.subr.mxu0 0.0
    %1161 = vmatpush1.msra.mxu0 0.0
    %1162 = vmatprep.subr.mxu0 0.0
    %1163 = vmatpush1.msra.mxu0 0.0
    %1164 = vmatprep.subr.mxu0 0.0
    %1165 = vmatpush1.msra.mxu0 0.0
    %1166 = vmatprep.subr.mxu0 0.0
    %1167 = vmatpush1.msra.mxu0 0.0
    %1168 = vmatprep.subr.mxu0 0.0
    %1169 = vmatpush1.msra.mxu0 0.0
    %1170 = vmatprep.subr.mxu0 0.0
    %1171 = vmatpush1.msra.mxu0 0.0
    %1172 = vmatprep.subr.mxu0 0.0
    %1173 = vmatpush1.msra.mxu0 0.0
    %1174 = vmatprep.subr.mxu0 0.0
    %1175 = vmatpush1.msra.mxu0 %v1144
    %1176 = vmatprep.subr.mxu0 0.0
    %1177 = vmatpush1.msra.mxu0 %v1143
    %1178 = vmatprep.subr.mxu0 0.0
    %1179 = vmatpush1.msra.mxu0 %v1142
    %1180 = vmatprep.subr.mxu0 0.0
    %1181 = vmatpush1.msra.mxu0 %v1141
    %1182 = vmatprep.subr.mxu0 0.0
    %1183 = vmatpush1.msra.mxu0 %v1140
    %1184 = vmatprep.subr.mxu0 0.0
    %1185 = vmatpush1.msra.mxu0 %v1139
    %1186 = vmatprep.subr.mxu0 0.0
    %1187 = vmatpush1.msra.mxu0 %v1138
    %1188 = vmatprep.subr.mxu0 0.0
    %1189 = vmatpush1.msra.mxu0 %v1137
    %1190 = vmatprep.subr.mxu0 0.0
    %1191 = vmatpush2.msra.mxu0 0.0
    %1192 = vmatprep.subr.mxu0 0.0
    %1193 = vmatpush2.msra.mxu0 0.0
    %1194 = vmatprep.subr.mxu0 0.0
    %1195 = vmatpush2.msra.mxu0 0.0
    %1196 = vmatprep.subr.mxu0 0.0
    %1197 = vmatpush2.msra.mxu0 0.0
    %1198 = vmatprep.subr.mxu0 0.0
    %1199 = vmatpush2.msra.mxu0 0.0
    %1200 = vmatprep.subr.mxu0 0.0
    %1201 = vmatpush2.msra.mxu0 0.0
    %1202 = vmatprep.subr.mxu0 0.0
    %1203 = vmatpush2.msra.mxu0 0.0
    %1204 = vmatprep.subr.mxu0 0.0
    %1205 = vmatpush2.msra.mxu0 0.0
    %1206 = vmatprep.subr.mxu0 0.0
    %1207 = vmatpush2.msra.mxu0 0.0
    %1208 = vmatprep.subr.mxu0 0.0
    %1209 = vmatpush2.msra.mxu0 0.0
    %1210 = vmatprep.subr.mxu0 0.0
    %1211 = vmatpush2.msra.mxu0 0.0
    %1212 = vmatprep.subr.mxu0 0.0
    %1213 = vmatpush2.msra.mxu0 0.0
    %1214 = vmatprep.subr.mxu0 0.0
    %1215 = vmatpush2.msra.mxu0 0.0
    %1216 = vmatprep.subr.mxu0 0.0
    %1217 = vmatpush2.msra.mxu0 0.0
    %1218 = vmatprep.subr.mxu0 0.0
    %1219 = vmatpush2.msra.mxu0 0.0
    %1220 = vmatprep.subr.mxu0 0.0
    %1221 = vmatpush2.msra.mxu0 0.0
    %1222 = vmatprep.mubr.f32.mxu0 0.0
    %1223 = vmatmul.mubr.f32.gmra.mxu0 %v1147
    %v1224 = vpop.f32.mrf.mxu0
    %v1225 = vadd.f32 0.0, %v1224
    %v1226 = vpop.f32.mrf.mxu0
    %1227 = vmatprep.mubr.f32.mxu0 0.0
    %1228 = vmatmul.mubr.f32.gmra.mxu0 %v1150
    %v1229 = vpop.f32.mrf.mxu0
    %v1230 = vadd.f32 0.0, %v1229
    %v1231 = vpop.f32.mrf.mxu0
    %1232 = vmatprep.mubr.f32.mxu0 0.0
    %1233 = vmatmul.mubr.f32.gmra.mxu0 %v1153
    %v1234 = vpop.f32.mrf.mxu0
    %v1235 = vadd.f32 0.0, %v1234
    %v1236 = vpop.f32.mrf.mxu0
    %1237 = vmatprep.mubr.f32.mxu0 0.0
    %1238 = vmatmul.mubr.f32.gmra.mxu0 %v1156
    %v1239 = vpop.f32.mrf.mxu0
    %v1240 = vadd.f32 0.0, %v1239
    %v1241 = vpop.f32.mrf.mxu0
    %1242 = vdwg.mxu0
    %v1244 = vsel %vm1145, %v1013, 0
    %v1247 = vsel %vm1145, %v1018, 0
    %v1250 = vsel %vm1145, %v1023, 0
    %v1253 = vsel %vm1145, %v1028, 0
    %1255 = vmatprep.subr.mxu0 0.0
    %1256 = vmatpush1.msra.mxu0 0.0
    %1257 = vmatprep.subr.mxu0 0.0
    %1258 = vmatpush1.msra.mxu0 0.0
    %1259 = vmatprep.subr.mxu0 0.0
    %1260 = vmatpush1.msra.mxu0 0.0
    %1261 = vmatprep.subr.mxu0 0.0
    %1262 = vmatpush1.msra.mxu0 0.0
    %1263 = vmatprep.subr.mxu0 0.0
    %1264 = vmatpush1.msra.mxu0 0.0
    %1265 = vmatprep.subr.mxu0 0.0
    %1266 = vmatpush1.msra.mxu0 0.0
    %1267 = vmatprep.subr.mxu0 0.0
    %1268 = vmatpush1.msra.mxu0 0.0
    %1269 = vmatprep.subr.mxu0 0.0
    %1270 = vmatpush1.msra.mxu0 0.0
    %1271 = vmatprep.subr.mxu0 0.0
    %1272 = vmatpush1.msra.mxu0 %v1135
    %1273 = vmatprep.subr.mxu0 0.0
    %1274 = vmatpush1.msra.mxu0 %v1134
    %1275 = vmatprep.subr.mxu0 0.0
    %1276 = vmatpush1.msra.mxu0 %v1133
    %1277 = vmatprep.subr.mxu0 0.0
    %1278 = vmatpush1.msra.mxu0 %v1132
    %1279 = vmatprep.subr.mxu0 0.0
    %1280 = vmatpush1.msra.mxu0 %v1131
    %1281 = vmatprep.subr.mxu0 0.0
    %1282 = vmatpush1.msra.mxu0 %v1130
    %1283 = vmatprep.subr.mxu0 0.0
    %1284 = vmatpush1.msra.mxu0 %v1129
    %1285 = vmatprep.subr.mxu0 0.0
    %1286 = vmatpush1.msra.mxu0 %v1128
    %1287 = vmatprep.subr.mxu0 0.0
    %1288 = vmatpush2.msra.mxu0 0.0
    %1289 = vmatprep.subr.mxu0 0.0
    %1290 = vmatpush2.msra.mxu0 0.0
    %1291 = vmatprep.subr.mxu0 0.0
    %1292 = vmatpush2.msra.mxu0 0.0
    %1293 = vmatprep.subr.mxu0 0.0
    %1294 = vmatpush2.msra.mxu0 0.0
    %1295 = vmatprep.subr.mxu0 0.0
    %1296 = vmatpush2.msra.mxu0 0.0
    %1297 = vmatprep.subr.mxu0 0.0
    %1298 = vmatpush2.msra.mxu0 0.0
    %1299 = vmatprep.subr.mxu0 0.0
    %1300 = vmatpush2.msra.mxu0 0.0
    %1301 = vmatprep.subr.mxu0 0.0
    %1302 = vmatpush2.msra.mxu0 0.0
    %1303 = vmatprep.subr.mxu0 0.0
    %1304 = vmatpush2.msra.mxu0 0.0
    %1305 = vmatprep.subr.mxu0 0.0
    %1306 = vmatpush2.msra.mxu0 0.0
    %1307 = vmatprep.subr.mxu0 0.0
    %1308 = vmatpush2.msra.mxu0 0.0
    %1309 = vmatprep.subr.mxu0 0.0
    %1310 = vmatpush2.msra.mxu0 0.0
    %1311 = vmatprep.subr.mxu0 0.0
    %1312 = vmatpush2.msra.mxu0 0.0
    %1313 = vmatprep.subr.mxu0 0.0
    %1314 = vmatpush2.msra.mxu0 0.0
    %1315 = vmatprep.subr.mxu0 0.0
    %1316 = vmatpush2.msra.mxu0 0.0
    %1317 = vmatprep.subr.mxu0 0.0
    %1318 = vmatpush2.msra.mxu0 0.0
    %1319 = vmatprep.mubr.f32.mxu0 0.0
    %1320 = vmatmul.mubr.f32.gmra.mxu0 %v1244
    %v1321 = vpop.f32.mrf.mxu0
    %v1322 = vadd.f32 %v1225, %v1321
    %v1323 = vpop.f32.mrf.mxu0
    %1324 = vmatprep.mubr.f32.mxu0 0.0
    %1325 = vmatmul.mubr.f32.gmra.mxu0 %v1247
    %v1326 = vpop.f32.mrf.mxu0
    %v1327 = vadd.f32 %v1230, %v1326
    %v1328 = vpop.f32.mrf.mxu0
    %1329 = vmatprep.mubr.f32.mxu0 0.0
    %1330 = vmatmul.mubr.f32.gmra.mxu0 %v1250
    %v1331 = vpop.f32.mrf.mxu0
    %v1332 = vadd.f32 %v1235, %v1331
    %v1333 = vpop.f32.mrf.mxu0
    %1334 = vmatprep.mubr.f32.mxu0 0.0
    %1335 = vmatmul.mubr.f32.gmra.mxu0 %v1253
    %v1336 = vpop.f32.mrf.mxu0
    %v1337 = vadd.f32 %v1240, %v1336
    %v1338 = vpop.f32.mrf.mxu0
    %1339 = vdwg.mxu0
    %s1340 = scalar_lea.vmem [#allocation2], 128
    %v1341 = vld [vmem:[%s1340] sm:$0xff]
    %v1342 = vld [vmem:[%s1340 + $0x8] sm:$0xff]
    %v1343 = vld [vmem:[%s1340 + $0x10] sm:$0xff]
    %v1344 = vld [vmem:[%s1340 + $0x18] sm:$0xff]
    %v1345 = vld [vmem:[%s1340 + $0x20] sm:$0xff]
    %v1346 = vld [vmem:[%s1340 + $0x28] sm:$0xff]
    %v1347 = vld [vmem:[%s1340 + $0x30] sm:$0xff]
    %v1348 = vld [vmem:[%s1340 + $0x38] sm:$0xff]
    %v1350 = vsel %vm1145, %v1110, 0
    %v1353 = vsel %vm1145, %v1115, 0
    %v1356 = vsel %vm1145, %v1120, 0
    %v1359 = vsel %vm1145, %v1125, 0
    %1361 = vmatprep.subr.mxu0 0.0
    %1362 = vmatpush1.msra.mxu0 0.0
    %1363 = vmatprep.subr.mxu0 0.0
    %1364 = vmatpush1.msra.mxu0 0.0
    %1365 = vmatprep.subr.mxu0 0.0
    %1366 = vmatpush1.msra.mxu0 0.0
    %1367 = vmatprep.subr.mxu0 0.0
    %1368 = vmatpush1.msra.mxu0 0.0
    %1369 = vmatprep.subr.mxu0 0.0
    %1370 = vmatpush1.msra.mxu0 0.0
    %1371 = vmatprep.subr.mxu0 0.0
    %1372 = vmatpush1.msra.mxu0 0.0
    %1373 = vmatprep.subr.mxu0 0.0
    %1374 = vmatpush1.msra.mxu0 0.0
    %1375 = vmatprep.subr.mxu0 0.0
    %1376 = vmatpush1.msra.mxu0 0.0
    %1377 = vmatprep.subr.mxu0 0.0
    %1378 = vmatpush1.msra.mxu0 %v1348
    %1379 = vmatprep.subr.mxu0 0.0
    %1380 = vmatpush1.msra.mxu0 %v1347
    %1381 = vmatprep.subr.mxu0 0.0
    %1382 = vmatpush1.msra.mxu0 %v1346
    %1383 = vmatprep.subr.mxu0 0.0
    %1384 = vmatpush1.msra.mxu0 %v1345
    %1385 = vmatprep.subr.mxu0 0.0
    %1386 = vmatpush1.msra.mxu0 %v1344
    %1387 = vmatprep.subr.mxu0 0.0
    %1388 = vmatpush1.msra.mxu0 %v1343
    %1389 = vmatprep.subr.mxu0 0.0
    %1390 = vmatpush1.msra.mxu0 %v1342
    %1391 = vmatprep.subr.mxu0 0.0
    %1392 = vmatpush1.msra.mxu0 %v1341
    %1393 = vmatprep.subr.mxu0 0.0
    %1394 = vmatpush2.msra.mxu0 0.0
    %1395 = vmatprep.subr.mxu0 0.0
    %1396 = vmatpush2.msra.mxu0 0.0
    %1397 = vmatprep.subr.mxu0 0.0
    %1398 = vmatpush2.msra.mxu0 0.0
    %1399 = vmatprep.subr.mxu0 0.0
    %1400 = vmatpush2.msra.mxu0 0.0
    %1401 = vmatprep.subr.mxu0 0.0
    %1402 = vmatpush2.msra.mxu0 0.0
    %1403 = vmatprep.subr.mxu0 0.0
    %1404 = vmatpush2.msra.mxu0 0.0
    %1405 = vmatprep.subr.mxu0 0.0
    %1406 = vmatpush2.msra.mxu0 0.0
    %1407 = vmatprep.subr.mxu0 0.0
    %1408 = vmatpush2.msra.mxu0 0.0
    %1409 = vmatprep.subr.mxu0 0.0
    %1410 = vmatpush2.msra.mxu0 0.0
    %1411 = vmatprep.subr.mxu0 0.0
    %1412 = vmatpush2.msra.mxu0 0.0
    %1413 = vmatprep.subr.mxu0 0.0
    %1414 = vmatpush2.msra.mxu0 0.0
    %1415 = vmatprep.subr.mxu0 0.0
    %1416 = vmatpush2.msra.mxu0 0.0
    %1417 = vmatprep.subr.mxu0 0.0
    %1418 = vmatpush2.msra.mxu0 0.0
    %1419 = vmatprep.subr.mxu0 0.0
    %1420 = vmatpush2.msra.mxu0 0.0
    %1421 = vmatprep.subr.mxu0 0.0
    %1422 = vmatpush2.msra.mxu0 0.0
    %1423 = vmatprep.subr.mxu0 0.0
    %1424 = vmatpush2.msra.mxu0 0.0
    %1425 = vmatprep.mubr.f32.mxu0 0.0
    %1426 = vmatmul.mubr.f32.gmra.mxu0 %v1350
    %v1427 = vpop.f32.mrf.mxu0
    %v1428 = vadd.f32 0.0, %v1427
    %v1429 = vpop.f32.mrf.mxu0
    %1430 = vmatprep.mubr.f32.mxu0 0.0
    %1431 = vmatmul.mubr.f32.gmra.mxu0 %v1353
    %v1432 = vpop.f32.mrf.mxu0
    %v1433 = vadd.f32 0.0, %v1432
    %v1434 = vpop.f32.mrf.mxu0
    %1435 = vmatprep.mubr.f32.mxu0 0.0
    %1436 = vmatmul.mubr.f32.gmra.mxu0 %v1356
    %v1437 = vpop.f32.mrf.mxu0
    %v1438 = vadd.f32 0.0, %v1437
    %v1439 = vpop.f32.mrf.mxu0
    %1440 = vmatprep.mubr.f32.mxu0 0.0
    %1441 = vmatmul.mubr.f32.gmra.mxu0 %v1359
    %v1442 = vpop.f32.mrf.mxu0
    %v1443 = vadd.f32 0.0, %v1442
    %v1444 = vpop.f32.mrf.mxu0
    %1445 = vdwg.mxu0
    %v1446 = vadd.f32 %v1322, %v1428
    %v1447 = vadd.f32 %v1327, %v1433
    %v1448 = vadd.f32 %v1332, %v1438
    %v1449 = vadd.f32 %v1337, %v1443
    %v1450 = vld [vmem:[#allocation4] sm:$0x1]
    %v1452 = vlaneseq
    %v1453 = vshrl.u32 %v1452, 7
    %v1454 = vsub.s32 0, %v1453
    %v1455 = vrot.slane %v1450, %v1454
    %v1457 = vadd.f32 %v1446, %v1455
    %v1458 = vadd.f32 %v1447, %v1455
    %v1459 = vadd.f32 %v1448, %v1455
    %v1460 = vadd.f32 %v1449, %v1455
    %v1461 = vld [vmem:[#allocation6] sm:$0x1]
    %v1462 = vld [vmem:[#allocation7] sm:$0x1]
    %v1463 = vsel %vm1145, %v1457, 0.0
    %v1464 = vsel %vm1145, %v1458, 0.0
    %v1465 = vadd.f32 %v1463, %v1464
    %v1466 = vsel %vm1145, %v1459, 0.0
    %v1467 = vadd.f32 %v1465, %v1466
    %v1468 = vsel %vm1145, %v1460, 0.0
    %v1469 = vadd.f32 %v1467, %v1468
    %v1470 = vrot.slane %v1469, 4
    %v1471 = vadd.f32 %v1469, %v1470
    %v1472 = vrot.slane %v1471, 2
    %v1473 = vadd.f32 %v1471, %v1472
    %v1474 = vrot.slane %v1473, 1
    %v1475 = vadd.f32 %v1473, %v1474
    %v1476 = vrcp.pop 32.0
    %v1477 = vmul.f32 %v1475, %v1476
    %v1478 = vsub.f32 %v1457, %v1477
    %v1479 = vsub.f32 %v1458, %v1477
    %v1480 = vsub.f32 %v1459, %v1477
    %v1481 = vsub.f32 %v1460, %v1477
    %v1482 = vmul.f32 %v1478, %v1478
    %v1483 = vmul.f32 %v1479, %v1479
    %v1484 = vmul.f32 %v1480, %v1480
    %v1485 = vmul.f32 %v1481, %v1481
    %v1486 = vsel %vm1145, %v1482, 0.0
    %v1487 = vsel %vm1145, %v1483, 0.0
    %v1488 = vadd.f32 %v1486, %v1487
    %v1489 = vsel %vm1145, %v1484, 0.0
    %v1490 = vadd.f32 %v1488, %v1489
    %v1491 = vsel %vm1145, %v1485, 0.0
    %v1492 = vadd.f32 %v1490, %v1491
    %v1493 = vrot.slane %v1492, 4
    %v1494 = vadd.f32 %v1492, %v1493
    %v1495 = vrot.slane %v1494, 2
    %v1496 = vadd.f32 %v1494, %v1495
    %v1497 = vrot.slane %v1496, 1
    %v1498 = vadd.f32 %v1496, %v1497
    %v1499 = vmul.f32 %v1498, %v1476
    %v1500 = vadd.f32 %v1499, 1e-05
    %v1501 = vrsqrt.pop %v1500
    %v1502 = vmul.f32 %v1478, %v1501
    %v1503 = vmul.f32 %v1479, %v1501
    %v1504 = vmul.f32 %v1480, %v1501
    %v1505 = vmul.f32 %v1481, %v1501
    %v1507 = vlaneseq
    %v1508 = vshrl.u32 %v1507, 7
    %v1509 = vsub.s32 0, %v1508
    %v1510 = vrot.slane %v1461, %v1509
    %v1512 = vmul.f32 %v1502, %v1510
    %v1513 = vmul.f32 %v1503, %v1510
    %v1514 = vmul.f32 %v1504, %v1510
    %v1515 = vmul.f32 %v1505, %v1510
    %v1517 = vlaneseq
    %v1518 = vshrl.u32 %v1517, 7
    %v1519 = vsub.s32 0, %v1518
    %v1520 = vrot.slane %v1462, %v1519
    %v1522 = vadd.f32 %v1512, %v1520
    %v1523 = vadd.f32 %v1513, %v1520
    %v1524 = vadd.f32 %v1514, %v1520
    %v1525 = vadd.f32 %v1515, %v1520
    %v1526 = vmax.f32 %v1522, 0.0
    %v1527 = vmax.f32 %v1523, 0.0
    %v1528 = vmax.f32 %v1524, 0.0
    %v1529 = vmax.f32 %v1525, 0.0
    %1530 = vmatprep.subr.mxu0 0.0
    %1531 = vmatpush1.msra.mxu0 0.0
    %1532 = vmatprep.subr.mxu0 0.0
    %1533 = vmatpush1.msra.mxu0 0.0
    %1534 = vmatprep.subr.mxu0 0.0
    %1535 = vmatpush1.msra.mxu0 0.0
    %1536 = vmatprep.subr.mxu0 0.0
    %1537 = vmatpush1.msra.mxu0 0.0
    %1538 = vmatprep.subr.mxu0 0.0
    %1539 = vmatpush1.msra.mxu0 0.0
    %1540 = vmatprep.subr.mxu0 0.0
    %1541 = vmatpush1.msra.mxu0 0.0
    %1542 = vmatprep.subr.mxu0 0.0
    %1543 = vmatpush1.msra.mxu0 0.0
    %1544 = vmatprep.subr.mxu0 0.0
    %1545 = vmatpush1.msra.mxu0 0.0
    %1546 = vmatprep.subr.mxu0 0.0
    %1547 = vmatpush1.msra.mxu0 0.0
    %1548 = vmatprep.subr.mxu0 0.0
    %1549 = vmatpush1.msra.mxu0 0.0
    %1550 = vmatprep.subr.mxu0 0.0
    %1551 = vmatpush1.msra.mxu0 0.0
    %1552 = vmatprep.subr.mxu0 0.0
    %1553 = vmatpush1.msra.mxu0 0.0
    %1554 = vmatprep.subr.mxu0 0.0
    %1555 = vmatpush1.msra.mxu0 %v1529
    %1556 = vmatprep.subr.mxu0 0.0
    %1557 = vmatpush1.msra.mxu0 %v1528
    %1558 = vmatprep.subr.mxu0 0.0
    %1559 = vmatpush1.msra.mxu0 %v1527
    %1560 = vmatprep.subr.mxu0 0.0
    %1561 = vmatpush1.msra.mxu0 %v1526
    %1562 = vmatprep.subr.mxu0 0.0
    %1563 = vmatpush2.msra.mxu0 0.0
    %1564 = vmatprep.subr.mxu0 0.0
    %1565 = vmatpush2.msra.mxu0 0.0
    %1566 = vmatprep.subr.mxu0 0.0
    %1567 = vmatpush2.msra.mxu0 0.0
    %1568 = vmatprep.subr.mxu0 0.0
    %1569 = vmatpush2.msra.mxu0 0.0
    %1570 = vmatprep.subr.mxu0 0.0
    %1571 = vmatpush2.msra.mxu0 0.0
    %1572 = vmatprep.subr.mxu0 0.0
    %1573 = vmatpush2.msra.mxu0 0.0
    %1574 = vmatprep.subr.mxu0 0.0
    %1575 = vmatpush2.msra.mxu0 0.0
    %1576 = vmatprep.subr.mxu0 0.0
    %1577 = vmatpush2.msra.mxu0 0.0
    %1578 = vmatprep.subr.mxu0 0.0
    %1579 = vmatpush2.msra.mxu0 0.0
    %1580 = vmatprep.subr.mxu0 0.0
    %1581 = vmatpush2.msra.mxu0 0.0
    %1582 = vmatprep.subr.mxu0 0.0
    %1583 = vmatpush2.msra.mxu0 0.0
    %1584 = vmatprep.subr.mxu0 0.0
    %1585 = vmatpush2.msra.mxu0 0.0
    %1586 = vmatprep.subr.mxu0 0.0
    %1587 = vmatpush2.msra.mxu0 0.0
    %1588 = vmatprep.subr.mxu0 0.0
    %1589 = vmatpush2.msra.mxu0 0.0
    %1590 = vmatprep.subr.mxu0 0.0
    %1591 = vmatpush2.msra.mxu0 0.0
    %1592 = vmatprep.subr.mxu0 0.0
    %1593 = vmatpush2.msra.mxu0 0.0
    %1594 = vmatprep.mubr.f32.mxu0 0.0
    %1595 = vmatmul.mubr.f32.gmra.mxu0 %v935
    %v1596 = vpop.f32.mrf.mxu0
    %v1597 = vadd.f32 0.0, %v1596
    %v1598 = vpop.f32.mrf.mxu0
    %1599 = vmatprep.mubr.f32.mxu0 0.0
    %1600 = vmatmul.mubr.f32.gmra.mxu0 %v938
    %v1601 = vpop.f32.mrf.mxu0
    %v1602 = vadd.f32 0.0, %v1601
    %v1603 = vpop.f32.mrf.mxu0
    %1604 = vmatprep.mubr.f32.mxu0 0.0
    %1605 = vmatmul.mubr.f32.gmra.mxu0 %v941
    %v1606 = vpop.f32.mrf.mxu0
    %v1607 = vadd.f32 0.0, %v1606
    %v1608 = vpop.f32.mrf.mxu0
    %1609 = vmatprep.mubr.f32.mxu0 0.0
    %1610 = vmatmul.mubr.f32.gmra.mxu0 %v944
    %v1611 = vpop.f32.mrf.mxu0
    %v1612 = vadd.f32 0.0, %v1611
    %v1613 = vpop.f32.mrf.mxu0
    %1614 = vdwg.mxu0
    %1615 = vmatprep.subr.mxu0 0.0
    %1616 = vmatpush1.msra.mxu0 0.0
    %1617 = vmatprep.subr.mxu0 0.0
    %1618 = vmatpush1.msra.mxu0 0.0
    %1619 = vmatprep.subr.mxu0 0.0
    %1620 = vmatpush1.msra.mxu0 0.0
    %1621 = vmatprep.subr.mxu0 0.0
    %1622 = vmatpush1.msra.mxu0 0.0
    %1623 = vmatprep.subr.mxu0 0.0
    %1624 = vmatpush1.msra.mxu0 0.0
    %1625 = vmatprep.subr.mxu0 0.0
    %1626 = vmatpush1.msra.mxu0 0.0
    %1627 = vmatprep.subr.mxu0 0.0
    %1628 = vmatpush1.msra.mxu0 0.0
    %1629 = vmatprep.subr.mxu0 0.0
    %1630 = vmatpush1.msra.mxu0 0.0
    %1631 = vmatprep.subr.mxu0 0.0
    %1632 = vmatpush1.msra.mxu0 0.0
    %1633 = vmatprep.subr.mxu0 0.0
    %1634 = vmatpush1.msra.mxu0 0.0
    %1635 = vmatprep.subr.mxu0 0.0
    %1636 = vmatpush1.msra.mxu0 0.0
    %1637 = vmatprep.subr.mxu0 0.0
    %1638 = vmatpush1.msra.mxu0 0.0
    %1639 = vmatprep.subr.mxu0 0.0
    %1640 = vmatpush1.msra.mxu0 %v1529
    %1641 = vmatprep.subr.mxu0 0.0
    %1642 = vmatpush1.msra.mxu0 %v1528
    %1643 = vmatprep.subr.mxu0 0.0
    %1644 = vmatpush1.msra.mxu0 %v1527
    %1645 = vmatprep.subr.mxu0 0.0
    %1646 = vmatpush1.msra.mxu0 %v1526
    %1647 = vmatprep.subr.mxu0 0.0
    %1648 = vmatpush2.msra.mxu0 0.0
    %1649 = vmatprep.subr.mxu0 0.0
    %1650 = vmatpush2.msra.mxu0 0.0
    %1651 = vmatprep.subr.mxu0 0.0
    %1652 = vmatpush2.msra.mxu0 0.0
    %1653 = vmatprep.subr.mxu0 0.0
    %1654 = vmatpush2.msra.mxu0 0.0
    %1655 = vmatprep.subr.mxu0 0.0
    %1656 = vmatpush2.msra.mxu0 0.0
    %1657 = vmatprep.subr.mxu0 0.0
    %1658 = vmatpush2.msra.mxu0 0.0
    %1659 = vmatprep.subr.mxu0 0.0
    %1660 = vmatpush2.msra.mxu0 0.0
    %1661 = vmatprep.subr.mxu0 0.0
    %1662 = vmatpush2.msra.mxu0 0.0
    %1663 = vmatprep.subr.mxu0 0.0
    %1664 = vmatpush2.msra.mxu0 0.0
    %1665 = vmatprep.subr.mxu0 0.0
    %1666 = vmatpush2.msra.mxu0 0.0
    %1667 = vmatprep.subr.mxu0 0.0
    %1668 = vmatpush2.msra.mxu0 0.0
    %1669 = vmatprep.subr.mxu0 0.0
    %1670 = vmatpush2.msra.mxu0 0.0
    %1671 = vmatprep.subr.mxu0 0.0
    %1672 = vmatpush2.msra.mxu0 0.0
    %1673 = vmatprep.subr.mxu0 0.0
    %1674 = vmatpush2.msra.mxu0 0.0
    %1675 = vmatprep.subr.mxu0 0.0
    %1676 = vmatpush2.msra.mxu0 0.0
    %1677 = vmatprep.subr.mxu0 0.0
    %1678 = vmatpush2.msra.mxu0 0.0
    %1679 = vmatprep.mubr.f32.mxu0 0.0
    %1680 = vmatmul.mubr.f32.gmra.mxu0 %v1032
    %v1681 = vpop.f32.mrf.mxu0
    %v1682 = vadd.f32 0.0, %v1681
    %v1683 = vpop.f32.mrf.mxu0
    %1684 = vmatprep.mubr.f32.mxu0 0.0
    %1685 = vmatmul.mubr.f32.gmra.mxu0 %v1035
    %v1686 = vpop.f32.mrf.mxu0
    %v1687 = vadd.f32 0.0, %v1686
    %v1688 = vpop.f32.mrf.mxu0
    %1689 = vmatprep.mubr.f32.mxu0 0.0
    %1690 = vmatmul.mubr.f32.gmra.mxu0 %v1038
    %v1691 = vpop.f32.mrf.mxu0
    %v1692 = vadd.f32 0.0, %v1691
    %v1693 = vpop.f32.mrf.mxu0
    %1694 = vmatprep.mubr.f32.mxu0 0.0
    %1695 = vmatmul.mubr.f32.gmra.mxu0 %v1041
    %v1696 = vpop.f32.mrf.mxu0
    %v1697 = vadd.f32 0.0, %v1696
    %v1698 = vpop.f32.mrf.mxu0
    %1699 = vdwg.mxu0
    %v1700 = vld [vmem:[#allocation9] sm:$0xff]
    %v1701 = vld [vmem:[#allocation9 + $0x8] sm:$0xff]
    %v1702 = vld [vmem:[#allocation9 + $0x10] sm:$0xff]
    %v1703 = vld [vmem:[#allocation9 + $0x18] sm:$0xff]
    %v1704 = vld [vmem:[#allocation9 + $0x20] sm:$0xff]
    %v1705 = vld [vmem:[#allocation9 + $0x28] sm:$0xff]
    %v1706 = vld [vmem:[#allocation9 + $0x30] sm:$0xff]
    %v1707 = vld [vmem:[#allocation9 + $0x38] sm:$0xff]
    %s1708 = scalar_lea.vmem [#allocation9], 64
    %v1709 = vld [vmem:[%s1708] sm:$0xff]
    %v1710 = vld [vmem:[%s1708 + $0x8] sm:$0xff]
    %v1711 = vld [vmem:[%s1708 + $0x10] sm:$0xff]
    %v1712 = vld [vmem:[%s1708 + $0x18] sm:$0xff]
    %v1713 = vld [vmem:[%s1708 + $0x20] sm:$0xff]
    %v1714 = vld [vmem:[%s1708 + $0x28] sm:$0xff]
    %v1715 = vld [vmem:[%s1708 + $0x30] sm:$0xff]
    %v1716 = vld [vmem:[%s1708 + $0x38] sm:$0xff]
    %v1718 = vsel %vm1145, %v1526, 0
    %v1721 = vsel %vm1145, %v1527, 0
    %v1724 = vsel %vm1145, %v1528, 0
    %v1727 = vsel %vm1145, %v1529, 0
    %1729 = vmatprep.subr.mxu0 0.0
    %1730 = vmatpush1.msra.mxu0 0.0
    %1731 = vmatprep.subr.mxu0 0.0
    %1732 = vmatpush1.msra.mxu0 0.0
    %1733 = vmatprep.subr.mxu0 0.0
    %1734 = vmatpush1.msra.mxu0 0.0
    %1735 = vmatprep.subr.mxu0 0.0
    %1736 = vmatpush1.msra.mxu0 0.0
    %1737 = vmatprep.subr.mxu0 0.0
    %1738 = vmatpush1.msra.mxu0 0.0
    %1739 = vmatprep.subr.mxu0 0.0
    %1740 = vmatpush1.msra.mxu0 0.0
    %1741 = vmatprep.subr.mxu0 0.0
    %1742 = vmatpush1.msra.mxu0 0.0
    %1743 = vmatprep.subr.mxu0 0.0
    %1744 = vmatpush1.msra.mxu0 0.0
    %1745 = vmatprep.subr.mxu0 0.0
    %1746 = vmatpush1.msra.mxu0 %v1716
    %1747 = vmatprep.subr.mxu0 0.0
    %1748 = vmatpush1.msra.mxu0 %v1715
    %1749 = vmatprep.subr.mxu0 0.0
    %1750 = vmatpush1.msra.mxu0 %v1714
    %1751 = vmatprep.subr.mxu0 0.0
    %1752 = vmatpush1.msra.mxu0 %v1713
    %1753 = vmatprep.subr.mxu0 0.0
    %1754 = vmatpush1.msra.mxu0 %v1712
    %1755 = vmatprep.subr.mxu0 0.0
    %1756 = vmatpush1.msra.mxu0 %v1711
    %1757 = vmatprep.subr.mxu0 0.0
    %1758 = vmatpush1.msra.mxu0 %v1710
    %1759 = vmatprep.subr.mxu0 0.0
    %1760 = vmatpush1.msra.mxu0 %v1709
    %1761 = vmatprep.subr.mxu0 0.0
    %1762 = vmatpush2.msra.mxu0 0.0
    %1763 = vmatprep.subr.mxu0 0.0
    %1764 = vmatpush2.msra.mxu0 0.0
    %1765 = vmatprep.subr.mxu0 0.0
    %1766 = vmatpush2.msra.mxu0 0.0
    %1767 = vmatprep.subr.mxu0 0.0
    %1768 = vmatpush2.msra.mxu0 0.0
    %1769 = vmatprep.subr.mxu0 0.0
    %1770 = vmatpush2.msra.mxu0 0.0
    %1771 = vmatprep.subr.mxu0 0.0
    %1772 = vmatpush2.msra.mxu0 0.0
    %1773 = vmatprep.subr.mxu0 0.0
    %1774 = vmatpush2.msra.mxu0 0.0
    %1775 = vmatprep.subr.mxu0 0.0
    %1776 = vmatpush2.msra.mxu0 0.0
    %1777 = vmatprep.subr.mxu0 0.0
    %1778 = vmatpush2.msra.mxu0 0.0
    %1779 = vmatprep.subr.mxu0 0.0
    %1780 = vmatpush2.msra.mxu0 0.0
    %1781 = vmatprep.subr.mxu0 0.0
    %1782 = vmatpush2.msra.mxu0 0.0
    %1783 = vmatprep.subr.mxu0 0.0
    %1784 = vmatpush2.msra.mxu0 0.0
    %1785 = vmatprep.subr.mxu0 0.0
    %1786 = vmatpush2.msra.mxu0 0.0
    %1787 = vmatprep.subr.mxu0 0.0
    %1788 = vmatpush2.msra.mxu0 0.0
    %1789 = vmatprep.subr.mxu0 0.0
    %1790 = vmatpush2.msra.mxu0 0.0
    %1791 = vmatprep.subr.mxu0 0.0
    %1792 = vmatpush2.msra.mxu0 0.0
    %1793 = vmatprep.mubr.f32.mxu0 0.0
    %1794 = vmatmul.mubr.f32.gmra.mxu0 %v1718
    %v1795 = vpop.f32.mrf.mxu0
    %v1796 = vadd.f32 0.0, %v1795
    %v1797 = vpop.f32.mrf.mxu0
    %1798 = vmatprep.mubr.f32.mxu0 0.0
    %1799 = vmatmul.mubr.f32.gmra.mxu0 %v1721
    %v1800 = vpop.f32.mrf.mxu0
    %v1801 = vadd.f32 0.0, %v1800
    %v1802 = vpop.f32.mrf.mxu0
    %1803 = vmatprep.mubr.f32.mxu0 0.0
    %1804 = vmatmul.mubr.f32.gmra.mxu0 %v1724
    %v1805 = vpop.f32.mrf.mxu0
    %v1806 = vadd.f32 0.0, %v1805
    %v1807 = vpop.f32.mrf.mxu0
    %1808 = vmatprep.mubr.f32.mxu0 0.0
    %1809 = vmatmul.mubr.f32.gmra.mxu0 %v1727
    %v1810 = vpop.f32.mrf.mxu0
    %v1811 = vadd.f32 0.0, %v1810
    %v1812 = vpop.f32.mrf.mxu0
    %1813 = vdwg.mxu0
    %v1815 = vsel %vm1145, %v1597, 0
    %v1818 = vsel %vm1145, %v1602, 0
    %v1821 = vsel %vm1145, %v1607, 0
    %v1824 = vsel %vm1145, %v1612, 0
    %1826 = vmatprep.subr.mxu0 0.0
    %1827 = vmatpush1.msra.mxu0 0.0
    %1828 = vmatprep.subr.mxu0 0.0
    %1829 = vmatpush1.msra.mxu0 0.0
    %1830 = vmatprep.subr.mxu0 0.0
    %1831 = vmatpush1.msra.mxu0 0.0
    %1832 = vmatprep.subr.mxu0 0.0
    %1833 = vmatpush1.msra.mxu0 0.0
    %1834 = vmatprep.subr.mxu0 0.0
    %1835 = vmatpush1.msra.mxu0 0.0
    %1836 = vmatprep.subr.mxu0 0.0
    %1837 = vmatpush1.msra.mxu0 0.0
    %1838 = vmatprep.subr.mxu0 0.0
    %1839 = vmatpush1.msra.mxu0 0.0
    %1840 = vmatprep.subr.mxu0 0.0
    %1841 = vmatpush1.msra.mxu0 0.0
    %1842 = vmatprep.subr.mxu0 0.0
    %1843 = vmatpush1.msra.mxu0 %v1707
    %1844 = vmatprep.subr.mxu0 0.0
    %1845 = vmatpush1.msra.mxu0 %v1706
    %1846 = vmatprep.subr.mxu0 0.0
    %1847 = vmatpush1.msra.mxu0 %v1705
    %1848 = vmatprep.subr.mxu0 0.0
    %1849 = vmatpush1.msra.mxu0 %v1704
    %1850 = vmatprep.subr.mxu0 0.0
    %1851 = vmatpush1.msra.mxu0 %v1703
    %1852 = vmatprep.subr.mxu0 0.0
    %1853 = vmatpush1.msra.mxu0 %v1702
    %1854 = vmatprep.subr.mxu0 0.0
    %1855 = vmatpush1.msra.mxu0 %v1701
    %1856 = vmatprep.subr.mxu0 0.0
    %1857 = vmatpush1.msra.mxu0 %v1700
    %1858 = vmatprep.subr.mxu0 0.0
    %1859 = vmatpush2.msra.mxu0 0.0
    %1860 = vmatprep.subr.mxu0 0.0
    %1861 = vmatpush2.msra.mxu0 0.0
    %1862 = vmatprep.subr.mxu0 0.0
    %1863 = vmatpush2.msra.mxu0 0.0
    %1864 = vmatprep.subr.mxu0 0.0
    %1865 = vmatpush2.msra.mxu0 0.0
    %1866 = vmatprep.subr.mxu0 0.0
    %1867 = vmatpush2.msra.mxu0 0.0
    %1868 = vmatprep.subr.mxu0 0.0
    %1869 = vmatpush2.msra.mxu0 0.0
    %1870 = vmatprep.subr.mxu0 0.0
    %1871 = vmatpush2.msra.mxu0 0.0
    %1872 = vmatprep.subr.mxu0 0.0
    %1873 = vmatpush2.msra.mxu0 0.0
    %1874 = vmatprep.subr.mxu0 0.0
    %1875 = vmatpush2.msra.mxu0 0.0
    %1876 = vmatprep.subr.mxu0 0.0
    %1877 = vmatpush2.msra.mxu0 0.0
    %1878 = vmatprep.subr.mxu0 0.0
    %1879 = vmatpush2.msra.mxu0 0.0
    %1880 = vmatprep.subr.mxu0 0.0
    %1881 = vmatpush2.msra.mxu0 0.0
    %1882 = vmatprep.subr.mxu0 0.0
    %1883 = vmatpush2.msra.mxu0 0.0
    %1884 = vmatprep.subr.mxu0 0.0
    %1885 = vmatpush2.msra.mxu0 0.0
    %1886 = vmatprep.subr.mxu0 0.0
    %1887 = vmatpush2.msra.mxu0 0.0
    %1888 = vmatprep.subr.mxu0 0.0
    %1889 = vmatpush2.msra.mxu0 0.0
    %1890 = vmatprep.mubr.f32.mxu0 0.0
    %1891 = vmatmul.mubr.f32.gmra.mxu0 %v1815
    %v1892 = vpop.f32.mrf.mxu0
    %v1893 = vadd.f32 %v1796, %v1892
    %v1894 = vpop.f32.mrf.mxu0
    %1895 = vmatprep.mubr.f32.mxu0 0.0
    %1896 = vmatmul.mubr.f32.gmra.mxu0 %v1818
    %v1897 = vpop.f32.mrf.mxu0
    %v1898 = vadd.f32 %v1801, %v1897
    %v1899 = vpop.f32.mrf.mxu0
    %1900 = vmatprep.mubr.f32.mxu0 0.0
    %1901 = vmatmul.mubr.f32.gmra.mxu0 %v1821
    %v1902 = vpop.f32.mrf.mxu0
    %v1903 = vadd.f32 %v1806, %v1902
    %v1904 = vpop.f32.mrf.mxu0
    %1905 = vmatprep.mubr.f32.mxu0 0.0
    %1906 = vmatmul.mubr.f32.gmra.mxu0 %v1824
    %v1907 = vpop.f32.mrf.mxu0
    %v1908 = vadd.f32 %v1811, %v1907
    %v1909 = vpop.f32.mrf.mxu0
    %1910 = vdwg.mxu0
    %s1911 = scalar_lea.vmem [#allocation9], 128
    %v1912 = vld [vmem:[%s1911] sm:$0xff]
    %v1913 = vld [vmem:[%s1911 + $0x8] sm:$0xff]
    %v1914 = vld [vmem:[%s1911 + $0x10] sm:$0xff]
    %v1915 = vld [vmem:[%s1911 + $0x18] sm:$0xff]
    %v1916 = vld [vmem:[%s1911 + $0x20] sm:$0xff]
    %v1917 = vld [vmem:[%s1911 + $0x28] sm:$0xff]
    %v1918 = vld [vmem:[%s1911 + $0x30] sm:$0xff]
    %v1919 = vld [vmem:[%s1911 + $0x38] sm:$0xff]
    %v1921 = vsel %vm1145, %v1682, 0
    %v1924 = vsel %vm1145, %v1687, 0
    %v1927 = vsel %vm1145, %v1692, 0
    %v1930 = vsel %vm1145, %v1697, 0
    %1932 = vmatprep.subr.mxu0 0.0
    %1933 = vmatpush1.msra.mxu0 0.0
    %1934 = vmatprep.subr.mxu0 0.0
    %1935 = vmatpush1.msra.mxu0 0.0
    %1936 = vmatprep.subr.mxu0 0.0
    %1937 = vmatpush1.msra.mxu0 0.0
    %1938 = vmatprep.subr.mxu0 0.0
    %1939 = vmatpush1.msra.mxu0 0.0
    %1940 = vmatprep.subr.mxu0 0.0
    %1941 = vmatpush1.msra.mxu0 0.0
    %1942 = vmatprep.subr.mxu0 0.0
    %1943 = vmatpush1.msra.mxu0 0.0
    %1944 = vmatprep.subr.mxu0 0.0
    %1945 = vmatpush1.msra.mxu0 0.0
    %1946 = vmatprep.subr.mxu0 0.0
    %1947 = vmatpush1.msra.mxu0 0.0
    %1948 = vmatprep.subr.mxu0 0.0
    %1949 = vmatpush1.msra.mxu0 %v1919
    %1950 = vmatprep.subr.mxu0 0.0
    %1951 = vmatpush1.msra.mxu0 %v1918
    %1952 = vmatprep.subr.mxu0 0.0
    %1953 = vmatpush1.msra.mxu0 %v1917
    %1954 = vmatprep.subr.mxu0 0.0
    %1955 = vmatpush1.msra.mxu0 %v1916
    %1956 = vmatprep.subr.mxu0 0.0
    %1957 = vmatpush1.msra.mxu0 %v1915
    %1958 = vmatprep.subr.mxu0 0.0
    %1959 = vmatpush1.msra.mxu0 %v1914
    %1960 = vmatprep.subr.mxu0 0.0
    %1961 = vmatpush1.msra.mxu0 %v1913
    %1962 = vmatprep.subr.mxu0 0.0
    %1963 = vmatpush1.msra.mxu0 %v1912
    %1964 = vmatprep.subr.mxu0 0.0
    %1965 = vmatpush2.msra.mxu0 0.0
    %1966 = vmatprep.subr.mxu0 0.0
    %1967 = vmatpush2.msra.mxu0 0.0
    %1968 = vmatprep.subr.mxu0 0.0
    %1969 = vmatpush2.msra.mxu0 0.0
    %1970 = vmatprep.subr.mxu0 0.0
    %1971 = vmatpush2.msra.mxu0 0.0
    %1972 = vmatprep.subr.mxu0 0.0
    %1973 = vmatpush2.msra.mxu0 0.0
    %1974 = vmatprep.subr.mxu0 0.0
    %1975 = vmatpush2.msra.mxu0 0.0
    %1976 = vmatprep.subr.mxu0 0.0
    %1977 = vmatpush2.msra.mxu0 0.0
    %1978 = vmatprep.subr.mxu0 0.0
    %1979 = vmatpush2.msra.mxu0 0.0
    %1980 = vmatprep.subr.mxu0 0.0
    %1981 = vmatpush2.msra.mxu0 0.0
    %1982 = vmatprep.subr.mxu0 0.0
    %1983 = vmatpush2.msra.mxu0 0.0
    %1984 = vmatprep.subr.mxu0 0.0
    %1985 = vmatpush2.msra.mxu0 0.0
    %1986 = vmatprep.subr.mxu0 0.0
    %1987 = vmatpush2.msra.mxu0 0.0
    %1988 = vmatprep.subr.mxu0 0.0
    %1989 = vmatpush2.msra.mxu0 0.0
    %1990 = vmatprep.subr.mxu0 0.0
    %1991 = vmatpush2.msra.mxu0 0.0
    %1992 = vmatprep.subr.mxu0 0.0
    %1993 = vmatpush2.msra.mxu0 0.0
    %1994 = vmatprep.subr.mxu0 0.0
    %1995 = vmatpush2.msra.mxu0 0.0
    %1996 = vmatprep.mubr.f32.mxu0 0.0
    %1997 = vmatmul.mubr.f32.gmra.mxu0 %v1921
    %v1998 = vpop.f32.mrf.mxu0
    %v1999 = vadd.f32 0.0, %v1998
    %v2000 = vpop.f32.mrf.mxu0
    %2001 = vmatprep.mubr.f32.mxu0 0.0
    %2002 = vmatmul.mubr.f32.gmra.mxu0 %v1924
    %v2003 = vpop.f32.mrf.mxu0
    %v2004 = vadd.f32 0.0, %v2003
    %v2005 = vpop.f32.mrf.mxu0
    %2006 = vmatprep.mubr.f32.mxu0 0.0
    %2007 = vmatmul.mubr.f32.gmra.mxu0 %v1927
    %v2008 = vpop.f32.mrf.mxu0
    %v2009 = vadd.f32 0.0, %v2008
    %v2010 = vpop.f32.mrf.mxu0
    %2011 = vmatprep.mubr.f32.mxu0 0.0
    %2012 = vmatmul.mubr.f32.gmra.mxu0 %v1930
    %v2013 = vpop.f32.mrf.mxu0
    %v2014 = vadd.f32 0.0, %v2013
    %v2015 = vpop.f32.mrf.mxu0
    %2016 = vdwg.mxu0
    %v2017 = vadd.f32 %v1893, %v1999
    %v2018 = vadd.f32 %v1898, %v2004
    %v2019 = vadd.f32 %v1903, %v2009
    %v2020 = vadd.f32 %v1908, %v2014
    %v2021 = vld [vmem:[#allocation10] sm:$0x1]
    %v2023 = vlaneseq
    %v2024 = vshrl.u32 %v2023, 7
    %v2025 = vsub.s32 0, %v2024
    %v2026 = vrot.slane %v2021, %v2025
    %v2028 = vadd.f32 %v2017, %v2026
    %v2029 = vadd.f32 %v2018, %v2026
    %v2030 = vadd.f32 %v2019, %v2026
    %v2031 = vadd.f32 %v2020, %v2026
    %v2032 = vld [vmem:[#allocation12] sm:$0x1]
    %v2033 = vld [vmem:[#allocation13] sm:$0x1]
    %v2034 = vsel %vm1145, %v2028, 0.0
    %v2035 = vsel %vm1145, %v2029, 0.0
    %v2036 = vadd.f32 %v2034, %v2035
    %v2037 = vsel %vm1145, %v2030, 0.0
    %v2038 = vadd.f32 %v2036, %v2037
    %v2039 = vsel %vm1145, %v2031, 0.0
    %v2040 = vadd.f32 %v2038, %v2039
    %v2041 = vrot.slane %v2040, 4
    %v2042 = vadd.f32 %v2040, %v2041
    %v2043 = vrot.slane %v2042, 2
    %v2044 = vadd.f32 %v2042, %v2043
    %v2045 = vrot.slane %v2044, 1
    %v2046 = vadd.f32 %v2044, %v2045
    %v2047 = vmul.f32 %v2046, %v1476
    %v2048 = vsub.f32 %v2028, %v2047
    %v2049 = vsub.f32 %v2029, %v2047
    %v2050 = vsub.f32 %v2030, %v2047
    %v2051 = vsub.f32 %v2031, %v2047
    %v2052 = vmul.f32 %v2048, %v2048
    %v2053 = vmul.f32 %v2049, %v2049
    %v2054 = vmul.f32 %v2050, %v2050
    %v2055 = vmul.f32 %v2051, %v2051
    %v2056 = vsel %vm1145, %v2052, 0.0
    %v2057 = vsel %vm1145, %v2053, 0.0
    %v2058 = vadd.f32 %v2056, %v2057
    %v2059 = vsel %vm1145, %v2054, 0.0
    %v2060 = vadd.f32 %v2058, %v2059
    %v2061 = vsel %vm1145, %v2055, 0.0
    %v2062 = vadd.f32 %v2060, %v2061
    %v2063 = vrot.slane %v2062, 4
    %v2064 = vadd.f32 %v2062, %v2063
    %v2065 = vrot.slane %v2064, 2
    %v2066 = vadd.f32 %v2064, %v2065
    %v2067 = vrot.slane %v2066, 1
    %v2068 = vadd.f32 %v2066, %v2067
    %v2069 = vmul.f32 %v2068, %v1476
    %v2070 = vadd.f32 %v2069, 1e-05
    %v2071 = vrsqrt.pop %v2070
    %v2072 = vmul.f32 %v2048, %v2071
    %v2073 = vmul.f32 %v2049, %v2071
    %v2074 = vmul.f32 %v2050, %v2071
    %v2075 = vmul.f32 %v2051, %v2071
    %v2077 = vlaneseq
    %v2078 = vshrl.u32 %v2077, 7
    %v2079 = vsub.s32 0, %v2078
    %v2080 = vrot.slane %v2032, %v2079
    %v2082 = vmul.f32 %v2072, %v2080
    %v2083 = vmul.f32 %v2073, %v2080
    %v2084 = vmul.f32 %v2074, %v2080
    %v2085 = vmul.f32 %v2075, %v2080
    %v2087 = vlaneseq
    %v2088 = vshrl.u32 %v2087, 7
    %v2089 = vsub.s32 0, %v2088
    %v2090 = vrot.slane %v2033, %v2089
    %v2092 = vadd.f32 %v2082, %v2090
    %v2093 = vadd.f32 %v2083, %v2090
    %v2094 = vadd.f32 %v2084, %v2090
    %v2095 = vadd.f32 %v2085, %v2090
    %v2096 = vmax.f32 %v2092, 0.0
    %v2097 = vmax.f32 %v2093, 0.0
    %v2098 = vmax.f32 %v2094, 0.0
    %v2099 = vmax.f32 %v2095, 0.0
    %v2100 = vadd.f32 %v2096, %v929
    %v2101 = vadd.f32 %v2097, %v930
    %v2102 = vadd.f32 %v2098, %v931
    %v2103 = vadd.f32 %v2099, %v932
    %v2104 = vld [vmem:[%s23] sm:$0xff]
    %v2105 = vld [vmem:[%s23 + $0x8] sm:$0xff]
    %v2106 = vld [vmem:[%s23 + $0x10] sm:$0xff]
    %v2107 = vld [vmem:[%s23 + $0x18] sm:$0xff]
    %v2108 = vld [vmem:[%s23 + $0x20] sm:$0xff]
    %v2109 = vld [vmem:[%s23 + $0x28] sm:$0xff]
    %v2110 = vld [vmem:[%s23 + $0x30] sm:$0xff]
    %v2111 = vld [vmem:[%s23 + $0x38] sm:$0xff]
    %v2112 = vld [vmem:[#allocation15] sm:$0x1]
    %v2114 = vlaneseq
    %v2115 = vshrl.u32 %v2114, 7
    %v2116 = vsub.s32 0, %v2115
    %v2117 = vrot.slane %v2112, %v2116
    %v2120 = vsel %vm1145, %v2100, 0
    %v2123 = vsel %vm1145, %v2101, 0
    %v2126 = vsel %vm1145, %v2102, 0
    %v2129 = vsel %vm1145, %v2103, 0
    %2131 = vmatprep.subr.mxu0 0.0
    %2132 = vmatpush1.msra.mxu0 0.0
    %2133 = vmatprep.subr.mxu0 0.0
    %2134 = vmatpush1.msra.mxu0 0.0
    %2135 = vmatprep.subr.mxu0 0.0
    %2136 = vmatpush1.msra.mxu0 0.0
    %2137 = vmatprep.subr.mxu0 0.0
    %2138 = vmatpush1.msra.mxu0 0.0
    %2139 = vmatprep.subr.mxu0 0.0
    %2140 = vmatpush1.msra.mxu0 0.0
    %2141 = vmatprep.subr.mxu0 0.0
    %2142 = vmatpush1.msra.mxu0 0.0
    %2143 = vmatprep.subr.mxu0 0.0
    %2144 = vmatpush1.msra.mxu0 0.0
    %2145 = vmatprep.subr.mxu0 0.0
    %2146 = vmatpush1.msra.mxu0 0.0
    %2147 = vmatprep.subr.mxu0 0.0
    %2148 = vmatpush1.msra.mxu0 %v2111
    %2149 = vmatprep.subr.mxu0 0.0
    %2150 = vmatpush1.msra.mxu0 %v2110
    %2151 = vmatprep.subr.mxu0 0.0
    %2152 = vmatpush1.msra.mxu0 %v2109
    %2153 = vmatprep.subr.mxu0 0.0
    %2154 = vmatpush1.msra.mxu0 %v2108
    %2155 = vmatprep.subr.mxu0 0.0
    %2156 = vmatpush1.msra.mxu0 %v2107
    %2157 = vmatprep.subr.mxu0 0.0
    %2158 = vmatpush1.msra.mxu0 %v2106
    %2159 = vmatprep.subr.mxu0 0.0
    %2160 = vmatpush1.msra.mxu0 %v2105
    %2161 = vmatprep.subr.mxu0 0.0
    %2162 = vmatpush1.msra.mxu0 %v2104
    %2163 = vmatprep.subr.mxu0 0.0
    %2164 = vmatpush2.msra.mxu0 0.0
    %2165 = vmatprep.subr.mxu0 0.0
    %2166 = vmatpush2.msra.mxu0 0.0
    %2167 = vmatprep.subr.mxu0 0.0
    %2168 = vmatpush2.msra.mxu0 0.0
    %2169 = vmatprep.subr.mxu0 0.0
    %2170 = vmatpush2.msra.mxu0 0.0
    %2171 = vmatprep.subr.mxu0 0.0
    %2172 = vmatpush2.msra.mxu0 0.0
    %2173 = vmatprep.subr.mxu0 0.0
    %2174 = vmatpush2.msra.mxu0 0.0
    %2175 = vmatprep.subr.mxu0 0.0
    %2176 = vmatpush2.msra.mxu0 0.0
    %2177 = vmatprep.subr.mxu0 0.0
    %2178 = vmatpush2.msra.mxu0 0.0
    %2179 = vmatprep.subr.mxu0 0.0
    %2180 = vmatpush2.msra.mxu0 0.0
    %2181 = vmatprep.subr.mxu0 0.0
    %2182 = vmatpush2.msra.mxu0 0.0
    %2183 = vmatprep.subr.mxu0 0.0
    %2184 = vmatpush2.msra.mxu0 0.0
    %2185 = vmatprep.subr.mxu0 0.0
    %2186 = vmatpush2.msra.mxu0 0.0
    %2187 = vmatprep.subr.mxu0 0.0
    %2188 = vmatpush2.msra.mxu0 0.0
    %2189 = vmatprep.subr.mxu0 0.0
    %2190 = vmatpush2.msra.mxu0 0.0
    %2191 = vmatprep.subr.mxu0 0.0
    %2192 = vmatpush2.msra.mxu0 0.0
    %2193 = vmatprep.subr.mxu0 0.0
    %2194 = vmatpush2.msra.mxu0 0.0
    %2195 = vmatprep.mubr.f32.mxu0 0.0
    %2196 = vmatmul.mubr.f32.gmra.mxu0 %v2120
    %v2197 = vpop.f32.mrf.mxu0
    %v2198 = vadd.f32 %v2117, %v2197
    %v2199 = vpop.f32.mrf.mxu0
    %2200 = vmatprep.mubr.f32.mxu0 0.0
    %2201 = vmatmul.mubr.f32.gmra.mxu0 %v2123
    %v2202 = vpop.f32.mrf.mxu0
    %v2203 = vadd.f32 %v2117, %v2202
    %v2204 = vpop.f32.mrf.mxu0
    %2205 = vmatprep.mubr.f32.mxu0 0.0
    %2206 = vmatmul.mubr.f32.gmra.mxu0 %v2126
    %v2207 = vpop.f32.mrf.mxu0
    %v2208 = vadd.f32 %v2117, %v2207
    %v2209 = vpop.f32.mrf.mxu0
    %2210 = vmatprep.mubr.f32.mxu0 0.0
    %2211 = vmatmul.mubr.f32.gmra.mxu0 %v2129
    %v2212 = vpop.f32.mrf.mxu0
    %v2213 = vadd.f32 %v2117, %v2212
    %v2214 = vpop.f32.mrf.mxu0
    %2215 = vdwg.mxu0
    %v2216 = vld [vmem:[#allocation16] sm:$0x1]
    %v2217 = vld [vmem:[#allocation18] sm:$0x1]
    %v2218 = vsel %vm933, %v2198, 0.0
    %v2219 = vsel %vm933, %v2203, 0.0
    %v2220 = vadd.f32 %v2218, %v2219
    %v2221 = vsel %vm933, %v2208, 0.0
    %v2222 = vadd.f32 %v2220, %v2221
    %v2223 = vsel %vm933, %v2213, 0.0
    %v2224 = vadd.f32 %v2222, %v2223
    %v2225 = vrot.slane %v2224, 4
    %v2226 = vadd.f32 %v2224, %v2225
    %v2227 = vrot.slane %v2226, 2
    %v2228 = vadd.f32 %v2226, %v2227
    %v2229 = vrot.slane %v2228, 1
    %v2230 = vadd.f32 %v2228, %v2229
    %v2231 = vmul.f32 %v2230, %v1476
    %v2232 = vsub.f32 %v2198, %v2231
    %v2233 = vsub.f32 %v2203, %v2231
    %v2234 = vsub.f32 %v2208, %v2231
    %v2235 = vsub.f32 %v2213, %v2231
    %v2236 = vmul.f32 %v2232, %v2232
    %v2237 = vmul.f32 %v2233, %v2233
    %v2238 = vmul.f32 %v2234, %v2234
    %v2239 = vmul.f32 %v2235, %v2235
    %v2240 = vsel %vm933, %v2236, 0.0
    %v2241 = vsel %vm933, %v2237, 0.0
    %v2242 = vadd.f32 %v2240, %v2241
    %v2243 = vsel %vm933, %v2238, 0.0
    %v2244 = vadd.f32 %v2242, %v2243
    %v2245 = vsel %vm933, %v2239, 0.0
    %v2246 = vadd.f32 %v2244, %v2245
    %v2247 = vrot.slane %v2246, 4
    %v2248 = vadd.f32 %v2246, %v2247
    %v2249 = vrot.slane %v2248, 2
    %v2250 = vadd.f32 %v2248, %v2249
    %v2251 = vrot.slane %v2250, 1
    %v2252 = vadd.f32 %v2250, %v2251
    %v2253 = vmul.f32 %v2252, %v1476
    %v2254 = vadd.f32 %v2253, 1e-05
    %v2255 = vrsqrt.pop %v2254
    %v2256 = vmul.f32 %v2232, %v2255
    %v2257 = vmul.f32 %v2233, %v2255
    %v2258 = vmul.f32 %v2234, %v2255
    %v2259 = vmul.f32 %v2235, %v2255
    %v2261 = vlaneseq
    %v2262 = vshrl.u32 %v2261, 7
    %v2263 = vsub.s32 0, %v2262
    %v2264 = vrot.slane %v2216, %v2263
    %v2266 = vmul.f32 %v2256, %v2264
    %v2267 = vmul.f32 %v2257, %v2264
    %v2268 = vmul.f32 %v2258, %v2264
    %v2269 = vmul.f32 %v2259, %v2264
    %v2271 = vlaneseq
    %v2272 = vshrl.u32 %v2271, 7
    %v2273 = vsub.s32 0, %v2272
    %v2274 = vrot.slane %v2217, %v2273
    %v2276 = vadd.f32 %v2266, %v2274
    %v2277 = vadd.f32 %v2267, %v2274
    %v2278 = vadd.f32 %v2268, %v2274
    %v2279 = vadd.f32 %v2269, %v2274
    %v2280 = vmax.f32 %v2276, 0.0
    %v2281 = vmax.f32 %v2277, 0.0
    %v2282 = vmax.f32 %v2278, 0.0
    %v2283 = vmax.f32 %v2279, 0.0
    %2284 = vmatprep.subr.mxu0 0.0
    %2285 = vmatpush1.msra.mxu0 0.0
    %2286 = vmatprep.subr.mxu0 0.0
    %2287 = vmatpush1.msra.mxu0 0.0
    %2288 = vmatprep.subr.mxu0 0.0
    %2289 = vmatpush1.msra.mxu0 0.0
    %2290 = vmatprep.subr.mxu0 0.0
    %2291 = vmatpush1.msra.mxu0 0.0
    %2292 = vmatprep.subr.mxu0 0.0
    %2293 = vmatpush1.msra.mxu0 0.0
    %2294 = vmatprep.subr.mxu0 0.0
    %2295 = vmatpush1.msra.mxu0 0.0
    %2296 = vmatprep.subr.mxu0 0.0
    %2297 = vmatpush1.msra.mxu0 0.0
    %2298 = vmatprep.subr.mxu0 0.0
    %2299 = vmatpush1.msra.mxu0 0.0
    %2300 = vmatprep.subr.mxu0 0.0
    %2301 = vmatpush1.msra.mxu0 0.0
    %2302 = vmatprep.subr.mxu0 0.0
    %2303 = vmatpush1.msra.mxu0 0.0
    %2304 = vmatprep.subr.mxu0 0.0
    %2305 = vmatpush1.msra.mxu0 0.0
    %2306 = vmatprep.subr.mxu0 0.0
    %2307 = vmatpush1.msra.mxu0 0.0
    %2308 = vmatprep.subr.mxu0 0.0
    %2309 = vmatpush1.msra.mxu0 %v2283
    %2310 = vmatprep.subr.mxu0 0.0
    %2311 = vmatpush1.msra.mxu0 %v2282
    %2312 = vmatprep.subr.mxu0 0.0
    %2313 = vmatpush1.msra.mxu0 %v2281
    %2314 = vmatprep.subr.mxu0 0.0
    %2315 = vmatpush1.msra.mxu0 %v2280
    %2316 = vmatprep.subr.mxu0 0.0
    %2317 = vmatpush2.msra.mxu0 0.0
    %2318 = vmatprep.subr.mxu0 0.0
    %2319 = vmatpush2.msra.mxu0 0.0
    %2320 = vmatprep.subr.mxu0 0.0
    %2321 = vmatpush2.msra.mxu0 0.0
    %2322 = vmatprep.subr.mxu0 0.0
    %2323 = vmatpush2.msra.mxu0 0.0
    %2324 = vmatprep.subr.mxu0 0.0
    %2325 = vmatpush2.msra.mxu0 0.0
    %2326 = vmatprep.subr.mxu0 0.0
    %2327 = vmatpush2.msra.mxu0 0.0
    %2328 = vmatprep.subr.mxu0 0.0
    %2329 = vmatpush2.msra.mxu0 0.0
    %2330 = vmatprep.subr.mxu0 0.0
    %2331 = vmatpush2.msra.mxu0 0.0
    %2332 = vmatprep.subr.mxu0 0.0
    %2333 = vmatpush2.msra.mxu0 0.0
    %2334 = vmatprep.subr.mxu0 0.0
    %2335 = vmatpush2.msra.mxu0 0.0
    %2336 = vmatprep.subr.mxu0 0.0
    %2337 = vmatpush2.msra.mxu0 0.0
    %2338 = vmatprep.subr.mxu0 0.0
    %2339 = vmatpush2.msra.mxu0 0.0
    %2340 = vmatprep.subr.mxu0 0.0
    %2341 = vmatpush2.msra.mxu0 0.0
    %2342 = vmatprep.subr.mxu0 0.0
    %2343 = vmatpush2.msra.mxu0 0.0
    %2344 = vmatprep.subr.mxu0 0.0
    %2345 = vmatpush2.msra.mxu0 0.0
    %2346 = vmatprep.subr.mxu0 0.0
    %2347 = vmatpush2.msra.mxu0 0.0
    %2348 = vmatprep.mubr.f32.mxu0 0.0
    %2349 = vmatmul.mubr.f32.gmra.mxu0 %v935
    %v2350 = vpop.f32.mrf.mxu0
    %v2351 = vadd.f32 0.0, %v2350
    %v2352 = vpop.f32.mrf.mxu0
    %2353 = vmatprep.mubr.f32.mxu0 0.0
    %2354 = vmatmul.mubr.f32.gmra.mxu0 %v938
    %v2355 = vpop.f32.mrf.mxu0
    %v2356 = vadd.f32 0.0, %v2355
    %v2357 = vpop.f32.mrf.mxu0
    %2358 = vmatprep.mubr.f32.mxu0 0.0
    %2359 = vmatmul.mubr.f32.gmra.mxu0 %v941
    %v2360 = vpop.f32.mrf.mxu0
    %v2361 = vadd.f32 0.0, %v2360
    %v2362 = vpop.f32.mrf.mxu0
    %2363 = vmatprep.mubr.f32.mxu0 0.0
    %2364 = vmatmul.mubr.f32.gmra.mxu0 %v944
    %v2365 = vpop.f32.mrf.mxu0
    %v2366 = vadd.f32 0.0, %v2365
    %v2367 = vpop.f32.mrf.mxu0
    %2368 = vdwg.mxu0
    %2369 = vmatprep.subr.mxu0 0.0
    %2370 = vmatpush1.msra.mxu0 0.0
    %2371 = vmatprep.subr.mxu0 0.0
    %2372 = vmatpush1.msra.mxu0 0.0
    %2373 = vmatprep.subr.mxu0 0.0
    %2374 = vmatpush1.msra.mxu0 0.0
    %2375 = vmatprep.subr.mxu0 0.0
    %2376 = vmatpush1.msra.mxu0 0.0
    %2377 = vmatprep.subr.mxu0 0.0
    %2378 = vmatpush1.msra.mxu0 0.0
    %2379 = vmatprep.subr.mxu0 0.0
    %2380 = vmatpush1.msra.mxu0 0.0
    %2381 = vmatprep.subr.mxu0 0.0
    %2382 = vmatpush1.msra.mxu0 0.0
    %2383 = vmatprep.subr.mxu0 0.0
    %2384 = vmatpush1.msra.mxu0 0.0
    %2385 = vmatprep.subr.mxu0 0.0
    %2386 = vmatpush1.msra.mxu0 0.0
    %2387 = vmatprep.subr.mxu0 0.0
    %2388 = vmatpush1.msra.mxu0 0.0
    %2389 = vmatprep.subr.mxu0 0.0
    %2390 = vmatpush1.msra.mxu0 0.0
    %2391 = vmatprep.subr.mxu0 0.0
    %2392 = vmatpush1.msra.mxu0 0.0
    %2393 = vmatprep.subr.mxu0 0.0
    %2394 = vmatpush1.msra.mxu0 %v2283
    %2395 = vmatprep.subr.mxu0 0.0
    %2396 = vmatpush1.msra.mxu0 %v2282
    %2397 = vmatprep.subr.mxu0 0.0
    %2398 = vmatpush1.msra.mxu0 %v2281
    %2399 = vmatprep.subr.mxu0 0.0
    %2400 = vmatpush1.msra.mxu0 %v2280
    %2401 = vmatprep.subr.mxu0 0.0
    %2402 = vmatpush2.msra.mxu0 0.0
    %2403 = vmatprep.subr.mxu0 0.0
    %2404 = vmatpush2.msra.mxu0 0.0
    %2405 = vmatprep.subr.mxu0 0.0
    %2406 = vmatpush2.msra.mxu0 0.0
    %2407 = vmatprep.subr.mxu0 0.0
    %2408 = vmatpush2.msra.mxu0 0.0
    %2409 = vmatprep.subr.mxu0 0.0
    %2410 = vmatpush2.msra.mxu0 0.0
    %2411 = vmatprep.subr.mxu0 0.0
    %2412 = vmatpush2.msra.mxu0 0.0
    %2413 = vmatprep.subr.mxu0 0.0
    %2414 = vmatpush2.msra.mxu0 0.0
    %2415 = vmatprep.subr.mxu0 0.0
    %2416 = vmatpush2.msra.mxu0 0.0
    %2417 = vmatprep.subr.mxu0 0.0
    %2418 = vmatpush2.msra.mxu0 0.0
    %2419 = vmatprep.subr.mxu0 0.0
    %2420 = vmatpush2.msra.mxu0 0.0
    %2421 = vmatprep.subr.mxu0 0.0
    %2422 = vmatpush2.msra.mxu0 0.0
    %2423 = vmatprep.subr.mxu0 0.0
    %2424 = vmatpush2.msra.mxu0 0.0
    %2425 = vmatprep.subr.mxu0 0.0
    %2426 = vmatpush2.msra.mxu0 0.0
    %2427 = vmatprep.subr.mxu0 0.0
    %2428 = vmatpush2.msra.mxu0 0.0
    %2429 = vmatprep.subr.mxu0 0.0
    %2430 = vmatpush2.msra.mxu0 0.0
    %2431 = vmatprep.subr.mxu0 0.0
    %2432 = vmatpush2.msra.mxu0 0.0
    %2433 = vmatprep.mubr.f32.mxu0 0.0
    %2434 = vmatmul.mubr.f32.gmra.mxu0 %v1032
    %v2435 = vpop.f32.mrf.mxu0
    %v2436 = vadd.f32 0.0, %v2435
    %v2437 = vpop.f32.mrf.mxu0
    %2438 = vmatprep.mubr.f32.mxu0 0.0
    %2439 = vmatmul.mubr.f32.gmra.mxu0 %v1035
    %v2440 = vpop.f32.mrf.mxu0
    %v2441 = vadd.f32 0.0, %v2440
    %v2442 = vpop.f32.mrf.mxu0
    %2443 = vmatprep.mubr.f32.mxu0 0.0
    %2444 = vmatmul.mubr.f32.gmra.mxu0 %v1038
    %v2445 = vpop.f32.mrf.mxu0
    %v2446 = vadd.f32 0.0, %v2445
    %v2447 = vpop.f32.mrf.mxu0
    %2448 = vmatprep.mubr.f32.mxu0 0.0
    %2449 = vmatmul.mubr.f32.gmra.mxu0 %v1041
    %v2450 = vpop.f32.mrf.mxu0
    %v2451 = vadd.f32 0.0, %v2450
    %v2452 = vpop.f32.mrf.mxu0
    %2453 = vdwg.mxu0
    %v2454 = vld [vmem:[#allocation19] sm:$0xff]
    %v2455 = vld [vmem:[#allocation19 + $0x8] sm:$0xff]
    %v2456 = vld [vmem:[#allocation19 + $0x10] sm:$0xff]
    %v2457 = vld [vmem:[#allocation19 + $0x18] sm:$0xff]
    %s2458 = scalar_lea.vmem [#allocation19], 32
    %v2459 = vld [vmem:[%s2458] sm:$0xff]
    %v2460 = vld [vmem:[%s2458 + $0x8] sm:$0xff]
    %v2461 = vld [vmem:[%s2458 + $0x10] sm:$0xff]
    %v2462 = vld [vmem:[%s2458 + $0x18] sm:$0xff]
    %v2464 = vsel %vm933, %v2280, 0
    %v2467 = vsel %vm933, %v2281, 0
    %v2470 = vsel %vm933, %v2282, 0
    %v2473 = vsel %vm933, %v2283, 0
    %2475 = vmatprep.subr.mxu0 0.0
    %2476 = vmatpush1.msra.mxu0 0.0
    %2477 = vmatprep.subr.mxu0 0.0
    %2478 = vmatpush1.msra.mxu0 0.0
    %2479 = vmatprep.subr.mxu0 0.0
    %2480 = vmatpush1.msra.mxu0 0.0
    %2481 = vmatprep.subr.mxu0 0.0
    %2482 = vmatpush1.msra.mxu0 0.0
    %2483 = vmatprep.subr.mxu0 0.0
    %2484 = vmatpush1.msra.mxu0 0.0
    %2485 = vmatprep.subr.mxu0 0.0
    %2486 = vmatpush1.msra.mxu0 0.0
    %2487 = vmatprep.subr.mxu0 0.0
    %2488 = vmatpush1.msra.mxu0 0.0
    %2489 = vmatprep.subr.mxu0 0.0
    %2490 = vmatpush1.msra.mxu0 0.0
    %2491 = vmatprep.subr.mxu0 0.0
    %2492 = vmatpush1.msra.mxu0 0.0
    %2493 = vmatprep.subr.mxu0 0.0
    %2494 = vmatpush1.msra.mxu0 0.0
    %2495 = vmatprep.subr.mxu0 0.0
    %2496 = vmatpush1.msra.mxu0 0.0
    %2497 = vmatprep.subr.mxu0 0.0
    %2498 = vmatpush1.msra.mxu0 0.0
    %2499 = vmatprep.subr.mxu0 0.0
    %2500 = vmatpush1.msra.mxu0 %v2462
    %2501 = vmatprep.subr.mxu0 0.0
    %2502 = vmatpush1.msra.mxu0 %v2461
    %2503 = vmatprep.subr.mxu0 0.0
    %2504 = vmatpush1.msra.mxu0 %v2460
    %2505 = vmatprep.subr.mxu0 0.0
    %2506 = vmatpush1.msra.mxu0 %v2459
    %2507 = vmatprep.subr.mxu0 0.0
    %2508 = vmatpush2.msra.mxu0 0.0
    %2509 = vmatprep.subr.mxu0 0.0
    %2510 = vmatpush2.msra.mxu0 0.0
    %2511 = vmatprep.subr.mxu0 0.0
    %2512 = vmatpush2.msra.mxu0 0.0
    %2513 = vmatprep.subr.mxu0 0.0
    %2514 = vmatpush2.msra.mxu0 0.0
    %2515 = vmatprep.subr.mxu0 0.0
    %2516 = vmatpush2.msra.mxu0 0.0
    %2517 = vmatprep.subr.mxu0 0.0
    %2518 = vmatpush2.msra.mxu0 0.0
    %2519 = vmatprep.subr.mxu0 0.0
    %2520 = vmatpush2.msra.mxu0 0.0
    %2521 = vmatprep.subr.mxu0 0.0
    %2522 = vmatpush2.msra.mxu0 0.0
    %2523 = vmatprep.subr.mxu0 0.0
    %2524 = vmatpush2.msra.mxu0 0.0
    %2525 = vmatprep.subr.mxu0 0.0
    %2526 = vmatpush2.msra.mxu0 0.0
    %2527 = vmatprep.subr.mxu0 0.0
    %2528 = vmatpush2.msra.mxu0 0.0
    %2529 = vmatprep.subr.mxu0 0.0
    %2530 = vmatpush2.msra.mxu0 0.0
    %2531 = vmatprep.subr.mxu0 0.0
    %2532 = vmatpush2.msra.mxu0 0.0
    %2533 = vmatprep.subr.mxu0 0.0
    %2534 = vmatpush2.msra.mxu0 0.0
    %2535 = vmatprep.subr.mxu0 0.0
    %2536 = vmatpush2.msra.mxu0 0.0
    %2537 = vmatprep.subr.mxu0 0.0
    %2538 = vmatpush2.msra.mxu0 0.0
    %2539 = vmatprep.mubr.f32.mxu0 0.0
    %2540 = vmatmul.mubr.f32.gmra.mxu0 %v2464
    %v2541 = vpop.f32.mrf.mxu0
    %v2542 = vadd.f32 0.0, %v2541
    %v2543 = vpop.f32.mrf.mxu0
    %2544 = vmatprep.mubr.f32.mxu0 0.0
    %2545 = vmatmul.mubr.f32.gmra.mxu0 %v2467
    %v2546 = vpop.f32.mrf.mxu0
    %v2547 = vadd.f32 0.0, %v2546
    %v2548 = vpop.f32.mrf.mxu0
    %2549 = vmatprep.mubr.f32.mxu0 0.0
    %2550 = vmatmul.mubr.f32.gmra.mxu0 %v2470
    %v2551 = vpop.f32.mrf.mxu0
    %v2552 = vadd.f32 0.0, %v2551
    %v2553 = vpop.f32.mrf.mxu0
    %2554 = vmatprep.mubr.f32.mxu0 0.0
    %2555 = vmatmul.mubr.f32.gmra.mxu0 %v2473
    %v2556 = vpop.f32.mrf.mxu0
    %v2557 = vadd.f32 0.0, %v2556
    %v2558 = vpop.f32.mrf.mxu0
    %2559 = vdwg.mxu0
    %v2561 = vsel %vm933, %v2351, 0
    %v2564 = vsel %vm933, %v2356, 0
    %v2567 = vsel %vm933, %v2361, 0
    %v2570 = vsel %vm933, %v2366, 0
    %2572 = vmatprep.subr.mxu0 0.0
    %2573 = vmatpush1.msra.mxu0 0.0
    %2574 = vmatprep.subr.mxu0 0.0
    %2575 = vmatpush1.msra.mxu0 0.0
    %2576 = vmatprep.subr.mxu0 0.0
    %2577 = vmatpush1.msra.mxu0 0.0
    %2578 = vmatprep.subr.mxu0 0.0
    %2579 = vmatpush1.msra.mxu0 0.0
    %2580 = vmatprep.subr.mxu0 0.0
    %2581 = vmatpush1.msra.mxu0 0.0
    %2582 = vmatprep.subr.mxu0 0.0
    %2583 = vmatpush1.msra.mxu0 0.0
    %2584 = vmatprep.subr.mxu0 0.0
    %2585 = vmatpush1.msra.mxu0 0.0
    %2586 = vmatprep.subr.mxu0 0.0
    %2587 = vmatpush1.msra.mxu0 0.0
    %2588 = vmatprep.subr.mxu0 0.0
    %2589 = vmatpush1.msra.mxu0 0.0
    %2590 = vmatprep.subr.mxu0 0.0
    %2591 = vmatpush1.msra.mxu0 0.0
    %2592 = vmatprep.subr.mxu0 0.0
    %2593 = vmatpush1.msra.mxu0 0.0
    %2594 = vmatprep.subr.mxu0 0.0
    %2595 = vmatpush1.msra.mxu0 0.0
    %2596 = vmatprep.subr.mxu0 0.0
    %2597 = vmatpush1.msra.mxu0 %v2457
    %2598 = vmatprep.subr.mxu0 0.0
    %2599 = vmatpush1.msra.mxu0 %v2456
    %2600 = vmatprep.subr.mxu0 0.0
    %2601 = vmatpush1.msra.mxu0 %v2455
    %2602 = vmatprep.subr.mxu0 0.0
    %2603 = vmatpush1.msra.mxu0 %v2454
    %2604 = vmatprep.subr.mxu0 0.0
    %2605 = vmatpush2.msra.mxu0 0.0
    %2606 = vmatprep.subr.mxu0 0.0
    %2607 = vmatpush2.msra.mxu0 0.0
    %2608 = vmatprep.subr.mxu0 0.0
    %2609 = vmatpush2.msra.mxu0 0.0
    %2610 = vmatprep.subr.mxu0 0.0
    %2611 = vmatpush2.msra.mxu0 0.0
    %2612 = vmatprep.subr.mxu0 0.0
    %2613 = vmatpush2.msra.mxu0 0.0
    %2614 = vmatprep.subr.mxu0 0.0
    %2615 = vmatpush2.msra.mxu0 0.0
    %2616 = vmatprep.subr.mxu0 0.0
    %2617 = vmatpush2.msra.mxu0 0.0
    %2618 = vmatprep.subr.mxu0 0.0
    %2619 = vmatpush2.msra.mxu0 0.0
    %2620 = vmatprep.subr.mxu0 0.0
    %2621 = vmatpush2.msra.mxu0 0.0
    %2622 = vmatprep.subr.mxu0 0.0
    %2623 = vmatpush2.msra.mxu0 0.0
    %2624 = vmatprep.subr.mxu0 0.0
    %2625 = vmatpush2.msra.mxu0 0.0
    %2626 = vmatprep.subr.mxu0 0.0
    %2627 = vmatpush2.msra.mxu0 0.0
    %2628 = vmatprep.subr.mxu0 0.0
    %2629 = vmatpush2.msra.mxu0 0.0
    %2630 = vmatprep.subr.mxu0 0.0
    %2631 = vmatpush2.msra.mxu0 0.0
    %2632 = vmatprep.subr.mxu0 0.0
    %2633 = vmatpush2.msra.mxu0 0.0
    %2634 = vmatprep.subr.mxu0 0.0
    %2635 = vmatpush2.msra.mxu0 0.0
    %2636 = vmatprep.mubr.f32.mxu0 0.0
    %2637 = vmatmul.mubr.f32.gmra.mxu0 %v2561
    %v2638 = vpop.f32.mrf.mxu0
    %v2639 = vadd.f32 %v2542, %v2638
    %v2640 = vpop.f32.mrf.mxu0
    %2641 = vmatprep.mubr.f32.mxu0 0.0
    %2642 = vmatmul.mubr.f32.gmra.mxu0 %v2564
    %v2643 = vpop.f32.mrf.mxu0
    %v2644 = vadd.f32 %v2547, %v2643
    %v2645 = vpop.f32.mrf.mxu0
    %2646 = vmatprep.mubr.f32.mxu0 0.0
    %2647 = vmatmul.mubr.f32.gmra.mxu0 %v2567
    %v2648 = vpop.f32.mrf.mxu0
    %v2649 = vadd.f32 %v2552, %v2648
    %v2650 = vpop.f32.mrf.mxu0
    %2651 = vmatprep.mubr.f32.mxu0 0.0
    %2652 = vmatmul.mubr.f32.gmra.mxu0 %v2570
    %v2653 = vpop.f32.mrf.mxu0
    %v2654 = vadd.f32 %v2557, %v2653
    %v2655 = vpop.f32.mrf.mxu0
    %2656 = vdwg.mxu0
    %s2657 = scalar_lea.vmem [#allocation19], 64
    %v2658 = vld [vmem:[%s2657] sm:$0xff]
    %v2659 = vld [vmem:[%s2657 + $0x8] sm:$0xff]
    %v2660 = vld [vmem:[%s2657 + $0x10] sm:$0xff]
    %v2661 = vld [vmem:[%s2657 + $0x18] sm:$0xff]
    %v2663 = vsel %vm933, %v2436, 0
    %v2666 = vsel %vm933, %v2441, 0
    %v2669 = vsel %vm933, %v2446, 0
    %v2672 = vsel %vm933, %v2451, 0
    %2674 = vmatprep.subr.mxu0 0.0
    %2675 = vmatpush1.msra.mxu0 0.0
    %2676 = vmatprep.subr.mxu0 0.0
    %2677 = vmatpush1.msra.mxu0 0.0
    %2678 = vmatprep.subr.mxu0 0.0
    %2679 = vmatpush1.msra.mxu0 0.0
    %2680 = vmatprep.subr.mxu0 0.0
    %2681 = vmatpush1.msra.mxu0 0.0
    %2682 = vmatprep.subr.mxu0 0.0
    %2683 = vmatpush1.msra.mxu0 0.0
    %2684 = vmatprep.subr.mxu0 0.0
    %2685 = vmatpush1.msra.mxu0 0.0
    %2686 = vmatprep.subr.mxu0 0.0
    %2687 = vmatpush1.msra.mxu0 0.0
    %2688 = vmatprep.subr.mxu0 0.0
    %2689 = vmatpush1.msra.mxu0 0.0
    %2690 = vmatprep.subr.mxu0 0.0
    %2691 = vmatpush1.msra.mxu0 0.0
    %2692 = vmatprep.subr.mxu0 0.0
    %2693 = vmatpush1.msra.mxu0 0.0
    %2694 = vmatprep.subr.mxu0 0.0
    %2695 = vmatpush1.msra.mxu0 0.0
    %2696 = vmatprep.subr.mxu0 0.0
    %2697 = vmatpush1.msra.mxu0 0.0
    %2698 = vmatprep.subr.mxu0 0.0
    %2699 = vmatpush1.msra.mxu0 %v2661
    %2700 = vmatprep.subr.mxu0 0.0
    %2701 = vmatpush1.msra.mxu0 %v2660
    %2702 = vmatprep.subr.mxu0 0.0
    %2703 = vmatpush1.msra.mxu0 %v2659
    %2704 = vmatprep.subr.mxu0 0.0
    %2705 = vmatpush1.msra.mxu0 %v2658
    %2706 = vmatprep.subr.mxu0 0.0
    %2707 = vmatpush2.msra.mxu0 0.0
    %2708 = vmatprep.subr.mxu0 0.0
    %2709 = vmatpush2.msra.mxu0 0.0
    %2710 = vmatprep.subr.mxu0 0.0
    %2711 = vmatpush2.msra.mxu0 0.0
    %2712 = vmatprep.subr.mxu0 0.0
    %2713 = vmatpush2.msra.mxu0 0.0
    %2714 = vmatprep.subr.mxu0 0.0
    %2715 = vmatpush2.msra.mxu0 0.0
    %2716 = vmatprep.subr.mxu0 0.0
    %2717 = vmatpush2.msra.mxu0 0.0
    %2718 = vmatprep.subr.mxu0 0.0
    %2719 = vmatpush2.msra.mxu0 0.0
    %2720 = vmatprep.subr.mxu0 0.0
    %2721 = vmatpush2.msra.mxu0 0.0
    %2722 = vmatprep.subr.mxu0 0.0
    %2723 = vmatpush2.msra.mxu0 0.0
    %2724 = vmatprep.subr.mxu0 0.0
    %2725 = vmatpush2.msra.mxu0 0.0
    %2726 = vmatprep.subr.mxu0 0.0
    %2727 = vmatpush2.msra.mxu0 0.0
    %2728 = vmatprep.subr.mxu0 0.0
    %2729 = vmatpush2.msra.mxu0 0.0
    %2730 = vmatprep.subr.mxu0 0.0
    %2731 = vmatpush2.msra.mxu0 0.0
    %2732 = vmatprep.subr.mxu0 0.0
    %2733 = vmatpush2.msra.mxu0 0.0
    %2734 = vmatprep.subr.mxu0 0.0
    %2735 = vmatpush2.msra.mxu0 0.0
    %2736 = vmatprep.subr.mxu0 0.0
    %2737 = vmatpush2.msra.mxu0 0.0
    %2738 = vmatprep.mubr.f32.mxu0 0.0
    %2739 = vmatmul.mubr.f32.gmra.mxu0 %v2663
    %v2740 = vpop.f32.mrf.mxu0
    %v2741 = vadd.f32 0.0, %v2740
    %v2742 = vpop.f32.mrf.mxu0
    %2743 = vmatprep.mubr.f32.mxu0 0.0
    %2744 = vmatmul.mubr.f32.gmra.mxu0 %v2666
    %v2745 = vpop.f32.mrf.mxu0
    %v2746 = vadd.f32 0.0, %v2745
    %v2747 = vpop.f32.mrf.mxu0
    %2748 = vmatprep.mubr.f32.mxu0 0.0
    %2749 = vmatmul.mubr.f32.gmra.mxu0 %v2669
    %v2750 = vpop.f32.mrf.mxu0
    %v2751 = vadd.f32 0.0, %v2750
    %v2752 = vpop.f32.mrf.mxu0
    %2753 = vmatprep.mubr.f32.mxu0 0.0
    %2754 = vmatmul.mubr.f32.gmra.mxu0 %v2672
    %v2755 = vpop.f32.mrf.mxu0
    %v2756 = vadd.f32 0.0, %v2755
    %v2757 = vpop.f32.mrf.mxu0
    %2758 = vdwg.mxu0
    %v2759 = vadd.f32 %v2639, %v2741
    %v2760 = vadd.f32 %v2644, %v2746
    %v2761 = vadd.f32 %v2649, %v2751
    %v2762 = vadd.f32 %v2654, %v2756
    %v2763 = vld [vmem:[#allocation21] sm:$0x1]
    %v2765 = vlaneseq
    %v2766 = vshrl.u32 %v2765, 7
    %v2767 = vsub.s32 0, %v2766
    %v2768 = vrot.slane %v2763, %v2767
    %v2770 = vadd.f32 %v2759, %v2768
    %v2771 = vadd.f32 %v2760, %v2768
    %v2772 = vadd.f32 %v2761, %v2768
    %v2773 = vadd.f32 %v2762, %v2768
    %v2774 = vld [vmem:[#allocation22] sm:$0x1]
    %v2775 = vld [vmem:[#allocation24] sm:$0x1]
    %v2776 = vsel %vm933, %v2770, 0.0
    %v2777 = vsel %vm933, %v2771, 0.0
    %v2778 = vadd.f32 %v2776, %v2777
    %v2779 = vsel %vm933, %v2772, 0.0
    %v2780 = vadd.f32 %v2778, %v2779
    %v2781 = vsel %vm933, %v2773, 0.0
    %v2782 = vadd.f32 %v2780, %v2781
    %v2783 = vrot.slane %v2782, 4
    %v2784 = vadd.f32 %v2782, %v2783
    %v2785 = vrot.slane %v2784, 2
    %v2786 = vadd.f32 %v2784, %v2785
    %v2787 = vrot.slane %v2786, 1
    %v2788 = vadd.f32 %v2786, %v2787
    %v2789 = vmul.f32 %v2788, %v1476
    %v2790 = vsub.f32 %v2770, %v2789
    %v2791 = vsub.f32 %v2771, %v2789
    %v2792 = vsub.f32 %v2772, %v2789
    %v2793 = vsub.f32 %v2773, %v2789
    %v2794 = vmul.f32 %v2790, %v2790
    %v2795 = vmul.f32 %v2791, %v2791
    %v2796 = vmul.f32 %v2792, %v2792
    %v2797 = vmul.f32 %v2793, %v2793
    %v2798 = vsel %vm933, %v2794, 0.0
    %v2799 = vsel %vm933, %v2795, 0.0
    %v2800 = vadd.f32 %v2798, %v2799
    %v2801 = vsel %vm933, %v2796, 0.0
    %v2802 = vadd.f32 %v2800, %v2801
    %v2803 = vsel %vm933, %v2797, 0.0
    %v2804 = vadd.f32 %v2802, %v2803
    %v2805 = vrot.slane %v2804, 4
    %v2806 = vadd.f32 %v2804, %v2805
    %v2807 = vrot.slane %v2806, 2
    %v2808 = vadd.f32 %v2806, %v2807
    %v2809 = vrot.slane %v2808, 1
    %v2810 = vadd.f32 %v2808, %v2809
    %v2811 = vmul.f32 %v2810, %v1476
    %v2812 = vadd.f32 %v2811, 1e-05
    %v2813 = vrsqrt.pop %v2812
    %v2814 = vmul.f32 %v2790, %v2813
    %v2815 = vmul.f32 %v2791, %v2813
    %v2816 = vmul.f32 %v2792, %v2813
    %v2817 = vmul.f32 %v2793, %v2813
    %v2819 = vlaneseq
    %v2820 = vshrl.u32 %v2819, 7
    %v2821 = vsub.s32 0, %v2820
    %v2822 = vrot.slane %v2774, %v2821
    %v2824 = vmul.f32 %v2814, %v2822
    %v2825 = vmul.f32 %v2815, %v2822
    %v2826 = vmul.f32 %v2816, %v2822
    %v2827 = vmul.f32 %v2817, %v2822
    %v2829 = vlaneseq
    %v2830 = vshrl.u32 %v2829, 7
    %v2831 = vsub.s32 0, %v2830
    %v2832 = vrot.slane %v2775, %v2831
    %v2834 = vadd.f32 %v2824, %v2832
    %v2835 = vadd.f32 %v2825, %v2832
    %v2836 = vadd.f32 %v2826, %v2832
    %v2837 = vadd.f32 %v2827, %v2832
    %v2838 = vmax.f32 %v2834, 0.0
    %v2839 = vmax.f32 %v2835, 0.0
    %v2840 = vmax.f32 %v2836, 0.0
    %v2841 = vmax.f32 %v2837, 0.0
    %2842 = vmatprep.subr.mxu0 0.0
    %2843 = vmatpush1.msra.mxu0 0.0
    %2844 = vmatprep.subr.mxu0 0.0
    %2845 = vmatpush1.msra.mxu0 0.0
    %2846 = vmatprep.subr.mxu0 0.0
    %2847 = vmatpush1.msra.mxu0 0.0
    %2848 = vmatprep.subr.mxu0 0.0
    %2849 = vmatpush1.msra.mxu0 0.0
    %2850 = vmatprep.subr.mxu0 0.0
    %2851 = vmatpush1.msra.mxu0 0.0
    %2852 = vmatprep.subr.mxu0 0.0
    %2853 = vmatpush1.msra.mxu0 0.0
    %2854 = vmatprep.subr.mxu0 0.0
    %2855 = vmatpush1.msra.mxu0 0.0
    %2856 = vmatprep.subr.mxu0 0.0
    %2857 = vmatpush1.msra.mxu0 0.0
    %2858 = vmatprep.subr.mxu0 0.0
    %2859 = vmatpush1.msra.mxu0 0.0
    %2860 = vmatprep.subr.mxu0 0.0
    %2861 = vmatpush1.msra.mxu0 0.0
    %2862 = vmatprep.subr.mxu0 0.0
    %2863 = vmatpush1.msra.mxu0 0.0
    %2864 = vmatprep.subr.mxu0 0.0
    %2865 = vmatpush1.msra.mxu0 0.0
    %2866 = vmatprep.subr.mxu0 0.0
    %2867 = vmatpush1.msra.mxu0 %v2841
    %2868 = vmatprep.subr.mxu0 0.0
    %2869 = vmatpush1.msra.mxu0 %v2840
    %2870 = vmatprep.subr.mxu0 0.0
    %2871 = vmatpush1.msra.mxu0 %v2839
    %2872 = vmatprep.subr.mxu0 0.0
    %2873 = vmatpush1.msra.mxu0 %v2838
    %2874 = vmatprep.subr.mxu0 0.0
    %2875 = vmatpush2.msra.mxu0 0.0
    %2876 = vmatprep.subr.mxu0 0.0
    %2877 = vmatpush2.msra.mxu0 0.0
    %2878 = vmatprep.subr.mxu0 0.0
    %2879 = vmatpush2.msra.mxu0 0.0
    %2880 = vmatprep.subr.mxu0 0.0
    %2881 = vmatpush2.msra.mxu0 0.0
    %2882 = vmatprep.subr.mxu0 0.0
    %2883 = vmatpush2.msra.mxu0 0.0
    %2884 = vmatprep.subr.mxu0 0.0
    %2885 = vmatpush2.msra.mxu0 0.0
    %2886 = vmatprep.subr.mxu0 0.0
    %2887 = vmatpush2.msra.mxu0 0.0
    %2888 = vmatprep.subr.mxu0 0.0
    %2889 = vmatpush2.msra.mxu0 0.0
    %2890 = vmatprep.subr.mxu0 0.0
    %2891 = vmatpush2.msra.mxu0 0.0
    %2892 = vmatprep.subr.mxu0 0.0
    %2893 = vmatpush2.msra.mxu0 0.0
    %2894 = vmatprep.subr.mxu0 0.0
    %2895 = vmatpush2.msra.mxu0 0.0
    %2896 = vmatprep.subr.mxu0 0.0
    %2897 = vmatpush2.msra.mxu0 0.0
    %2898 = vmatprep.subr.mxu0 0.0
    %2899 = vmatpush2.msra.mxu0 0.0
    %2900 = vmatprep.subr.mxu0 0.0
    %2901 = vmatpush2.msra.mxu0 0.0
    %2902 = vmatprep.subr.mxu0 0.0
    %2903 = vmatpush2.msra.mxu0 0.0
    %2904 = vmatprep.subr.mxu0 0.0
    %2905 = vmatpush2.msra.mxu0 0.0
    %2906 = vmatprep.mubr.f32.mxu0 0.0
    %2907 = vmatmul.mubr.f32.gmra.mxu0 %v935
    %v2908 = vpop.f32.mrf.mxu0
    %v2909 = vadd.f32 0.0, %v2908
    %v2910 = vpop.f32.mrf.mxu0
    %2911 = vmatprep.mubr.f32.mxu0 0.0
    %2912 = vmatmul.mubr.f32.gmra.mxu0 %v938
    %v2913 = vpop.f32.mrf.mxu0
    %v2914 = vadd.f32 0.0, %v2913
    %v2915 = vpop.f32.mrf.mxu0
    %2916 = vmatprep.mubr.f32.mxu0 0.0
    %2917 = vmatmul.mubr.f32.gmra.mxu0 %v941
    %v2918 = vpop.f32.mrf.mxu0
    %v2919 = vadd.f32 0.0, %v2918
    %v2920 = vpop.f32.mrf.mxu0
    %2921 = vmatprep.mubr.f32.mxu0 0.0
    %2922 = vmatmul.mubr.f32.gmra.mxu0 %v944
    %v2923 = vpop.f32.mrf.mxu0
    %v2924 = vadd.f32 0.0, %v2923
    %v2925 = vpop.f32.mrf.mxu0
    %2926 = vdwg.mxu0
    %2927 = vmatprep.subr.mxu0 0.0
    %2928 = vmatpush1.msra.mxu0 0.0
    %2929 = vmatprep.subr.mxu0 0.0
    %2930 = vmatpush1.msra.mxu0 0.0
    %2931 = vmatprep.subr.mxu0 0.0
    %2932 = vmatpush1.msra.mxu0 0.0
    %2933 = vmatprep.subr.mxu0 0.0
    %2934 = vmatpush1.msra.mxu0 0.0
    %2935 = vmatprep.subr.mxu0 0.0
    %2936 = vmatpush1.msra.mxu0 0.0
    %2937 = vmatprep.subr.mxu0 0.0
    %2938 = vmatpush1.msra.mxu0 0.0
    %2939 = vmatprep.subr.mxu0 0.0
    %2940 = vmatpush1.msra.mxu0 0.0
    %2941 = vmatprep.subr.mxu0 0.0
    %2942 = vmatpush1.msra.mxu0 0.0
    %2943 = vmatprep.subr.mxu0 0.0
    %2944 = vmatpush1.msra.mxu0 0.0
    %2945 = vmatprep.subr.mxu0 0.0
    %2946 = vmatpush1.msra.mxu0 0.0
    %2947 = vmatprep.subr.mxu0 0.0
    %2948 = vmatpush1.msra.mxu0 0.0
    %2949 = vmatprep.subr.mxu0 0.0
    %2950 = vmatpush1.msra.mxu0 0.0
    %2951 = vmatprep.subr.mxu0 0.0
    %2952 = vmatpush1.msra.mxu0 %v2841
    %2953 = vmatprep.subr.mxu0 0.0
    %2954 = vmatpush1.msra.mxu0 %v2840
    %2955 = vmatprep.subr.mxu0 0.0
    %2956 = vmatpush1.msra.mxu0 %v2839
    %2957 = vmatprep.subr.mxu0 0.0
    %2958 = vmatpush1.msra.mxu0 %v2838
    %2959 = vmatprep.subr.mxu0 0.0
    %2960 = vmatpush2.msra.mxu0 0.0
    %2961 = vmatprep.subr.mxu0 0.0
    %2962 = vmatpush2.msra.mxu0 0.0
    %2963 = vmatprep.subr.mxu0 0.0
    %2964 = vmatpush2.msra.mxu0 0.0
    %2965 = vmatprep.subr.mxu0 0.0
    %2966 = vmatpush2.msra.mxu0 0.0
    %2967 = vmatprep.subr.mxu0 0.0
    %2968 = vmatpush2.msra.mxu0 0.0
    %2969 = vmatprep.subr.mxu0 0.0
    %2970 = vmatpush2.msra.mxu0 0.0
    %2971 = vmatprep.subr.mxu0 0.0
    %2972 = vmatpush2.msra.mxu0 0.0
    %2973 = vmatprep.subr.mxu0 0.0
    %2974 = vmatpush2.msra.mxu0 0.0
    %2975 = vmatprep.subr.mxu0 0.0
    %2976 = vmatpush2.msra.mxu0 0.0
    %2977 = vmatprep.subr.mxu0 0.0
    %2978 = vmatpush2.msra.mxu0 0.0
    %2979 = vmatprep.subr.mxu0 0.0
    %2980 = vmatpush2.msra.mxu0 0.0
    %2981 = vmatprep.subr.mxu0 0.0
    %2982 = vmatpush2.msra.mxu0 0.0
    %2983 = vmatprep.subr.mxu0 0.0
    %2984 = vmatpush2.msra.mxu0 0.0
    %2985 = vmatprep.subr.mxu0 0.0
    %2986 = vmatpush2.msra.mxu0 0.0
    %2987 = vmatprep.subr.mxu0 0.0
    %2988 = vmatpush2.msra.mxu0 0.0
    %2989 = vmatprep.subr.mxu0 0.0
    %2990 = vmatpush2.msra.mxu0 0.0
    %2991 = vmatprep.mubr.f32.mxu0 0.0
    %2992 = vmatmul.mubr.f32.gmra.mxu0 %v1032
    %v2993 = vpop.f32.mrf.mxu0
    %v2994 = vadd.f32 0.0, %v2993
    %v2995 = vpop.f32.mrf.mxu0
    %2996 = vmatprep.mubr.f32.mxu0 0.0
    %2997 = vmatmul.mubr.f32.gmra.mxu0 %v1035
    %v2998 = vpop.f32.mrf.mxu0
    %v2999 = vadd.f32 0.0, %v2998
    %v3000 = vpop.f32.mrf.mxu0
    %3001 = vmatprep.mubr.f32.mxu0 0.0
    %3002 = vmatmul.mubr.f32.gmra.mxu0 %v1038
    %v3003 = vpop.f32.mrf.mxu0
    %v3004 = vadd.f32 0.0, %v3003
    %v3005 = vpop.f32.mrf.mxu0
    %3006 = vmatprep.mubr.f32.mxu0 0.0
    %3007 = vmatmul.mubr.f32.gmra.mxu0 %v1041
    %v3008 = vpop.f32.mrf.mxu0
    %v3009 = vadd.f32 0.0, %v3008
    %v3010 = vpop.f32.mrf.mxu0
    %3011 = vdwg.mxu0
    %v3012 = vld [vmem:[#allocation25] sm:$0xff]
    %v3013 = vld [vmem:[#allocation25 + $0x8] sm:$0xff]
    %v3014 = vld [vmem:[#allocation25 + $0x10] sm:$0xff]
    %v3015 = vld [vmem:[#allocation25 + $0x18] sm:$0xff]
    %s3016 = scalar_lea.vmem [#allocation25], 32
    %v3017 = vld [vmem:[%s3016] sm:$0xff]
    %v3018 = vld [vmem:[%s3016 + $0x8] sm:$0xff]
    %v3019 = vld [vmem:[%s3016 + $0x10] sm:$0xff]
    %v3020 = vld [vmem:[%s3016 + $0x18] sm:$0xff]
    %v3022 = vsel %vm933, %v2838, 0
    %v3025 = vsel %vm933, %v2839, 0
    %v3028 = vsel %vm933, %v2840, 0
    %v3031 = vsel %vm933, %v2841, 0
    %3033 = vmatprep.subr.mxu0 0.0
    %3034 = vmatpush1.msra.mxu0 0.0
    %3035 = vmatprep.subr.mxu0 0.0
    %3036 = vmatpush1.msra.mxu0 0.0
    %3037 = vmatprep.subr.mxu0 0.0
    %3038 = vmatpush1.msra.mxu0 0.0
    %3039 = vmatprep.subr.mxu0 0.0
    %3040 = vmatpush1.msra.mxu0 0.0
    %3041 = vmatprep.subr.mxu0 0.0
    %3042 = vmatpush1.msra.mxu0 0.0
    %3043 = vmatprep.subr.mxu0 0.0
    %3044 = vmatpush1.msra.mxu0 0.0
    %3045 = vmatprep.subr.mxu0 0.0
    %3046 = vmatpush1.msra.mxu0 0.0
    %3047 = vmatprep.subr.mxu0 0.0
    %3048 = vmatpush1.msra.mxu0 0.0
    %3049 = vmatprep.subr.mxu0 0.0
    %3050 = vmatpush1.msra.mxu0 0.0
    %3051 = vmatprep.subr.mxu0 0.0
    %3052 = vmatpush1.msra.mxu0 0.0
    %3053 = vmatprep.subr.mxu0 0.0
    %3054 = vmatpush1.msra.mxu0 0.0
    %3055 = vmatprep.subr.mxu0 0.0
    %3056 = vmatpush1.msra.mxu0 0.0
    %3057 = vmatprep.subr.mxu0 0.0
    %3058 = vmatpush1.msra.mxu0 %v3020
    %3059 = vmatprep.subr.mxu0 0.0
    %3060 = vmatpush1.msra.mxu0 %v3019
    %3061 = vmatprep.subr.mxu0 0.0
    %3062 = vmatpush1.msra.mxu0 %v3018
    %3063 = vmatprep.subr.mxu0 0.0
    %3064 = vmatpush1.msra.mxu0 %v3017
    %3065 = vmatprep.subr.mxu0 0.0
    %3066 = vmatpush2.msra.mxu0 0.0
    %3067 = vmatprep.subr.mxu0 0.0
    %3068 = vmatpush2.msra.mxu0 0.0
    %3069 = vmatprep.subr.mxu0 0.0
    %3070 = vmatpush2.msra.mxu0 0.0
    %3071 = vmatprep.subr.mxu0 0.0
    %3072 = vmatpush2.msra.mxu0 0.0
    %3073 = vmatprep.subr.mxu0 0.0
    %3074 = vmatpush2.msra.mxu0 0.0
    %3075 = vmatprep.subr.mxu0 0.0
    %3076 = vmatpush2.msra.mxu0 0.0
    %3077 = vmatprep.subr.mxu0 0.0
    %3078 = vmatpush2.msra.mxu0 0.0
    %3079 = vmatprep.subr.mxu0 0.0
    %3080 = vmatpush2.msra.mxu0 0.0
    %3081 = vmatprep.subr.mxu0 0.0
    %3082 = vmatpush2.msra.mxu0 0.0
    %3083 = vmatprep.subr.mxu0 0.0
    %3084 = vmatpush2.msra.mxu0 0.0
    %3085 = vmatprep.subr.mxu0 0.0
    %3086 = vmatpush2.msra.mxu0 0.0
    %3087 = vmatprep.subr.mxu0 0.0
    %3088 = vmatpush2.msra.mxu0 0.0
    %3089 = vmatprep.subr.mxu0 0.0
    %3090 = vmatpush2.msra.mxu0 0.0
    %3091 = vmatprep.subr.mxu0 0.0
    %3092 = vmatpush2.msra.mxu0 0.0
    %3093 = vmatprep.subr.mxu0 0.0
    %3094 = vmatpush2.msra.mxu0 0.0
    %3095 = vmatprep.subr.mxu0 0.0
    %3096 = vmatpush2.msra.mxu0 0.0
    %3097 = vmatprep.mubr.f32.mxu0 0.0
    %3098 = vmatmul.mubr.f32.gmra.mxu0 %v3022
    %v3099 = vpop.f32.mrf.mxu0
    %v3100 = vadd.f32 0.0, %v3099
    %v3101 = vpop.f32.mrf.mxu0
    %3102 = vmatprep.mubr.f32.mxu0 0.0
    %3103 = vmatmul.mubr.f32.gmra.mxu0 %v3025
    %v3104 = vpop.f32.mrf.mxu0
    %v3105 = vadd.f32 0.0, %v3104
    %v3106 = vpop.f32.mrf.mxu0
    %3107 = vmatprep.mubr.f32.mxu0 0.0
    %3108 = vmatmul.mubr.f32.gmra.mxu0 %v3028
    %v3109 = vpop.f32.mrf.mxu0
    %v3110 = vadd.f32 0.0, %v3109
    %v3111 = vpop.f32.mrf.mxu0
    %3112 = vmatprep.mubr.f32.mxu0 0.0
    %3113 = vmatmul.mubr.f32.gmra.mxu0 %v3031
    %v3114 = vpop.f32.mrf.mxu0
    %v3115 = vadd.f32 0.0, %v3114
    %v3116 = vpop.f32.mrf.mxu0
    %3117 = vdwg.mxu0
    %v3119 = vsel %vm933, %v2909, 0
    %v3122 = vsel %vm933, %v2914, 0
    %v3125 = vsel %vm933, %v2919, 0
    %v3128 = vsel %vm933, %v2924, 0
    %3130 = vmatprep.subr.mxu0 0.0
    %3131 = vmatpush1.msra.mxu0 0.0
    %3132 = vmatprep.subr.mxu0 0.0
    %3133 = vmatpush1.msra.mxu0 0.0
    %3134 = vmatprep.subr.mxu0 0.0
    %3135 = vmatpush1.msra.mxu0 0.0
    %3136 = vmatprep.subr.mxu0 0.0
    %3137 = vmatpush1.msra.mxu0 0.0
    %3138 = vmatprep.subr.mxu0 0.0
    %3139 = vmatpush1.msra.mxu0 0.0
    %3140 = vmatprep.subr.mxu0 0.0
    %3141 = vmatpush1.msra.mxu0 0.0
    %3142 = vmatprep.subr.mxu0 0.0
    %3143 = vmatpush1.msra.mxu0 0.0
    %3144 = vmatprep.subr.mxu0 0.0
    %3145 = vmatpush1.msra.mxu0 0.0
    %3146 = vmatprep.subr.mxu0 0.0
    %3147 = vmatpush1.msra.mxu0 0.0
    %3148 = vmatprep.subr.mxu0 0.0
    %3149 = vmatpush1.msra.mxu0 0.0
    %3150 = vmatprep.subr.mxu0 0.0
    %3151 = vmatpush1.msra.mxu0 0.0
    %3152 = vmatprep.subr.mxu0 0.0
    %3153 = vmatpush1.msra.mxu0 0.0
    %3154 = vmatprep.subr.mxu0 0.0
    %3155 = vmatpush1.msra.mxu0 %v3015
    %3156 = vmatprep.subr.mxu0 0.0
    %3157 = vmatpush1.msra.mxu0 %v3014
    %3158 = vmatprep.subr.mxu0 0.0
    %3159 = vmatpush1.msra.mxu0 %v3013
    %3160 = vmatprep.subr.mxu0 0.0
    %3161 = vmatpush1.msra.mxu0 %v3012
    %3162 = vmatprep.subr.mxu0 0.0
    %3163 = vmatpush2.msra.mxu0 0.0
    %3164 = vmatprep.subr.mxu0 0.0
    %3165 = vmatpush2.msra.mxu0 0.0
    %3166 = vmatprep.subr.mxu0 0.0
    %3167 = vmatpush2.msra.mxu0 0.0
    %3168 = vmatprep.subr.mxu0 0.0
    %3169 = vmatpush2.msra.mxu0 0.0
    %3170 = vmatprep.subr.mxu0 0.0
    %3171 = vmatpush2.msra.mxu0 0.0
    %3172 = vmatprep.subr.mxu0 0.0
    %3173 = vmatpush2.msra.mxu0 0.0
    %3174 = vmatprep.subr.mxu0 0.0
    %3175 = vmatpush2.msra.mxu0 0.0
    %3176 = vmatprep.subr.mxu0 0.0
    %3177 = vmatpush2.msra.mxu0 0.0
    %3178 = vmatprep.subr.mxu0 0.0
    %3179 = vmatpush2.msra.mxu0 0.0
    %3180 = vmatprep.subr.mxu0 0.0
    %3181 = vmatpush2.msra.mxu0 0.0
    %3182 = vmatprep.subr.mxu0 0.0
    %3183 = vmatpush2.msra.mxu0 0.0
    %3184 = vmatprep.subr.mxu0 0.0
    %3185 = vmatpush2.msra.mxu0 0.0
    %3186 = vmatprep.subr.mxu0 0.0
    %3187 = vmatpush2.msra.mxu0 0.0
    %3188 = vmatprep.subr.mxu0 0.0
    %3189 = vmatpush2.msra.mxu0 0.0
    %3190 = vmatprep.subr.mxu0 0.0
    %3191 = vmatpush2.msra.mxu0 0.0
    %3192 = vmatprep.subr.mxu0 0.0
    %3193 = vmatpush2.msra.mxu0 0.0
    %3194 = vmatprep.mubr.f32.mxu0 0.0
    %3195 = vmatmul.mubr.f32.gmra.mxu0 %v3119
    %v3196 = vpop.f32.mrf.mxu0
    %v3197 = vadd.f32 %v3100, %v3196
    %v3198 = vpop.f32.mrf.mxu0
    %3199 = vmatprep.mubr.f32.mxu0 0.0
    %3200 = vmatmul.mubr.f32.gmra.mxu0 %v3122
    %v3201 = vpop.f32.mrf.mxu0
    %v3202 = vadd.f32 %v3105, %v3201
    %v3203 = vpop.f32.mrf.mxu0
    %3204 = vmatprep.mubr.f32.mxu0 0.0
    %3205 = vmatmul.mubr.f32.gmra.mxu0 %v3125
    %v3206 = vpop.f32.mrf.mxu0
    %v3207 = vadd.f32 %v3110, %v3206
    %v3208 = vpop.f32.mrf.mxu0
    %3209 = vmatprep.mubr.f32.mxu0 0.0
    %3210 = vmatmul.mubr.f32.gmra.mxu0 %v3128
    %v3211 = vpop.f32.mrf.mxu0
    %v3212 = vadd.f32 %v3115, %v3211
    %v3213 = vpop.f32.mrf.mxu0
    %3214 = vdwg.mxu0
    %s3215 = scalar_lea.vmem [#allocation25], 64
    %v3216 = vld [vmem:[%s3215] sm:$0xff]
    %v3217 = vld [vmem:[%s3215 + $0x8] sm:$0xff]
    %v3218 = vld [vmem:[%s3215 + $0x10] sm:$0xff]
    %v3219 = vld [vmem:[%s3215 + $0x18] sm:$0xff]
    %v3221 = vsel %vm933, %v2994, 0
    %v3224 = vsel %vm933, %v2999, 0
    %v3227 = vsel %vm933, %v3004, 0
    %v3230 = vsel %vm933, %v3009, 0
    %3232 = vmatprep.subr.mxu0 0.0
    %3233 = vmatpush1.msra.mxu0 0.0
    %3234 = vmatprep.subr.mxu0 0.0
    %3235 = vmatpush1.msra.mxu0 0.0
    %3236 = vmatprep.subr.mxu0 0.0
    %3237 = vmatpush1.msra.mxu0 0.0
    %3238 = vmatprep.subr.mxu0 0.0
    %3239 = vmatpush1.msra.mxu0 0.0
    %3240 = vmatprep.subr.mxu0 0.0
    %3241 = vmatpush1.msra.mxu0 0.0
    %3242 = vmatprep.subr.mxu0 0.0
    %3243 = vmatpush1.msra.mxu0 0.0
    %3244 = vmatprep.subr.mxu0 0.0
    %3245 = vmatpush1.msra.mxu0 0.0
    %3246 = vmatprep.subr.mxu0 0.0
    %3247 = vmatpush1.msra.mxu0 0.0
    %3248 = vmatprep.subr.mxu0 0.0
    %3249 = vmatpush1.msra.mxu0 0.0
    %3250 = vmatprep.subr.mxu0 0.0
    %3251 = vmatpush1.msra.mxu0 0.0
    %3252 = vmatprep.subr.mxu0 0.0
    %3253 = vmatpush1.msra.mxu0 0.0
    %3254 = vmatprep.subr.mxu0 0.0
    %3255 = vmatpush1.msra.mxu0 0.0
    %3256 = vmatprep.subr.mxu0 0.0
    %3257 = vmatpush1.msra.mxu0 %v3219
    %3258 = vmatprep.subr.mxu0 0.0
    %3259 = vmatpush1.msra.mxu0 %v3218
    %3260 = vmatprep.subr.mxu0 0.0
    %3261 = vmatpush1.msra.mxu0 %v3217
    %3262 = vmatprep.subr.mxu0 0.0
    %3263 = vmatpush1.msra.mxu0 %v3216
    %3264 = vmatprep.subr.mxu0 0.0
    %3265 = vmatpush2.msra.mxu0 0.0
    %3266 = vmatprep.subr.mxu0 0.0
    %3267 = vmatpush2.msra.mxu0 0.0
    %3268 = vmatprep.subr.mxu0 0.0
    %3269 = vmatpush2.msra.mxu0 0.0
    %3270 = vmatprep.subr.mxu0 0.0
    %3271 = vmatpush2.msra.mxu0 0.0
    %3272 = vmatprep.subr.mxu0 0.0
    %3273 = vmatpush2.msra.mxu0 0.0
    %3274 = vmatprep.subr.mxu0 0.0
    %3275 = vmatpush2.msra.mxu0 0.0
    %3276 = vmatprep.subr.mxu0 0.0
    %3277 = vmatpush2.msra.mxu0 0.0
    %3278 = vmatprep.subr.mxu0 0.0
    %3279 = vmatpush2.msra.mxu0 0.0
    %3280 = vmatprep.subr.mxu0 0.0
    %3281 = vmatpush2.msra.mxu0 0.0
    %3282 = vmatprep.subr.mxu0 0.0
    %3283 = vmatpush2.msra.mxu0 0.0
    %3284 = vmatprep.subr.mxu0 0.0
    %3285 = vmatpush2.msra.mxu0 0.0
    %3286 = vmatprep.subr.mxu0 0.0
    %3287 = vmatpush2.msra.mxu0 0.0
    %3288 = vmatprep.subr.mxu0 0.0
    %3289 = vmatpush2.msra.mxu0 0.0
    %3290 = vmatprep.subr.mxu0 0.0
    %3291 = vmatpush2.msra.mxu0 0.0
    %3292 = vmatprep.subr.mxu0 0.0
    %3293 = vmatpush2.msra.mxu0 0.0
    %3294 = vmatprep.subr.mxu0 0.0
    %3295 = vmatpush2.msra.mxu0 0.0
    %3296 = vmatprep.mubr.f32.mxu0 0.0
    %3297 = vmatmul.mubr.f32.gmra.mxu0 %v3221
    %v3298 = vpop.f32.mrf.mxu0
    %v3299 = vadd.f32 0.0, %v3298
    %v3300 = vpop.f32.mrf.mxu0
    %3301 = vmatprep.mubr.f32.mxu0 0.0
    %3302 = vmatmul.mubr.f32.gmra.mxu0 %v3224
    %v3303 = vpop.f32.mrf.mxu0
    %v3304 = vadd.f32 0.0, %v3303
    %v3305 = vpop.f32.mrf.mxu0
    %3306 = vmatprep.mubr.f32.mxu0 0.0
    %3307 = vmatmul.mubr.f32.gmra.mxu0 %v3227
    %v3308 = vpop.f32.mrf.mxu0
    %v3309 = vadd.f32 0.0, %v3308
    %v3310 = vpop.f32.mrf.mxu0
    %3311 = vmatprep.mubr.f32.mxu0 0.0
    %3312 = vmatmul.mubr.f32.gmra.mxu0 %v3230
    %v3313 = vpop.f32.mrf.mxu0
    %v3314 = vadd.f32 0.0, %v3313
    %v3315 = vpop.f32.mrf.mxu0
    %3316 = vdwg.mxu0
    %v3317 = vadd.f32 %v3197, %v3299
    %v3318 = vadd.f32 %v3202, %v3304
    %v3319 = vadd.f32 %v3207, %v3309
    %v3320 = vadd.f32 %v3212, %v3314
    %v3321 = vld [vmem:[#allocation27] sm:$0x1]
    %v3323 = vlaneseq
    %v3324 = vshrl.u32 %v3323, 7
    %v3325 = vsub.s32 0, %v3324
    %v3326 = vrot.slane %v3321, %v3325
    %v3328 = vadd.f32 %v3317, %v3326
    %v3329 = vadd.f32 %v3318, %v3326
    %v3330 = vadd.f32 %v3319, %v3326
    %v3331 = vadd.f32 %v3320, %v3326
    %v3332 = vld [vmem:[#allocation28] sm:$0x1]
    %v3333 = vld [vmem:[#allocation30] sm:$0x1]
    %v3334 = vsel %vm933, %v3328, 0.0
    %v3335 = vsel %vm933, %v3329, 0.0
    %v3336 = vadd.f32 %v3334, %v3335
    %v3337 = vsel %vm933, %v3330, 0.0
    %v3338 = vadd.f32 %v3336, %v3337
    %v3339 = vsel %vm933, %v3331, 0.0
    %v3340 = vadd.f32 %v3338, %v3339
    %v3341 = vrot.slane %v3340, 4
    %v3342 = vadd.f32 %v3340, %v3341
    %v3343 = vrot.slane %v3342, 2
    %v3344 = vadd.f32 %v3342, %v3343
    %v3345 = vrot.slane %v3344, 1
    %v3346 = vadd.f32 %v3344, %v3345
    %v3347 = vmul.f32 %v3346, %v1476
    %v3348 = vsub.f32 %v3328, %v3347
    %v3349 = vsub.f32 %v3329, %v3347
    %v3350 = vsub.f32 %v3330, %v3347
    %v3351 = vsub.f32 %v3331, %v3347
    %v3352 = vmul.f32 %v3348, %v3348
    %v3353 = vmul.f32 %v3349, %v3349
    %v3354 = vmul.f32 %v3350, %v3350
    %v3355 = vmul.f32 %v3351, %v3351
    %v3356 = vsel %vm933, %v3352, 0.0
    %v3357 = vsel %vm933, %v3353, 0.0
    %v3358 = vadd.f32 %v3356, %v3357
    %v3359 = vsel %vm933, %v3354, 0.0
    %v3360 = vadd.f32 %v3358, %v3359
    %v3361 = vsel %vm933, %v3355, 0.0
    %v3362 = vadd.f32 %v3360, %v3361
    %v3363 = vrot.slane %v3362, 4
    %v3364 = vadd.f32 %v3362, %v3363
    %v3365 = vrot.slane %v3364, 2
    %v3366 = vadd.f32 %v3364, %v3365
    %v3367 = vrot.slane %v3366, 1
    %v3368 = vadd.f32 %v3366, %v3367
    %v3369 = vmul.f32 %v3368, %v1476
    %v3370 = vadd.f32 %v3369, 1e-05
    %v3371 = vrsqrt.pop %v3370
    %v3372 = vmul.f32 %v3348, %v3371
    %v3373 = vmul.f32 %v3349, %v3371
    %v3374 = vmul.f32 %v3350, %v3371
    %v3375 = vmul.f32 %v3351, %v3371
    %v3377 = vlaneseq
    %v3378 = vshrl.u32 %v3377, 7
    %v3379 = vsub.s32 0, %v3378
    %v3380 = vrot.slane %v3332, %v3379
    %v3382 = vmul.f32 %v3372, %v3380
    %v3383 = vmul.f32 %v3373, %v3380
    %v3384 = vmul.f32 %v3374, %v3380
    %v3385 = vmul.f32 %v3375, %v3380
    %v3387 = vlaneseq
    %v3388 = vshrl.u32 %v3387, 7
    %v3389 = vsub.s32 0, %v3388
    %v3390 = vrot.slane %v3333, %v3389
    %v3392 = vadd.f32 %v3382, %v3390
    %v3393 = vadd.f32 %v3383, %v3390
    %v3394 = vadd.f32 %v3384, %v3390
    %v3395 = vadd.f32 %v3385, %v3390
    %v3396 = vmax.f32 %v3392, 0.0
    %v3397 = vmax.f32 %v3393, 0.0
    %v3398 = vmax.f32 %v3394, 0.0
    %v3399 = vmax.f32 %v3395, 0.0
    %v3400 = vadd.f32 %v3396, %v2280
    %v3401 = vadd.f32 %v3397, %v2281
    %v3402 = vadd.f32 %v3398, %v2282
    %v3403 = vadd.f32 %v3399, %v2283
    %v3404 = vld [vmem:[%s47] sm:$0xff]
    %v3405 = vld [vmem:[%s47 + $0x8] sm:$0xff]
    %v3406 = vld [vmem:[%s47 + $0x10] sm:$0xff]
    %v3407 = vld [vmem:[%s47 + $0x18] sm:$0xff]
    %v3408 = vld [vmem:[#allocation31] sm:$0x1]
    %v3410 = vlaneseq
    %v3411 = vshrl.u32 %v3410, 7
    %v3412 = vsub.s32 0, %v3411
    %v3413 = vrot.slane %v3408, %v3412
    %v3416 = vsel %vm933, %v3400, 0
    %v3419 = vsel %vm933, %v3401, 0
    %v3422 = vsel %vm933, %v3402, 0
    %v3425 = vsel %vm933, %v3403, 0
    %3427 = vmatprep.subr.mxu0 0.0
    %3428 = vmatpush1.msra.mxu0 0.0
    %3429 = vmatprep.subr.mxu0 0.0
    %3430 = vmatpush1.msra.mxu0 0.0
    %3431 = vmatprep.subr.mxu0 0.0
    %3432 = vmatpush1.msra.mxu0 0.0
    %3433 = vmatprep.subr.mxu0 0.0
    %3434 = vmatpush1.msra.mxu0 0.0
    %3435 = vmatprep.subr.mxu0 0.0
    %3436 = vmatpush1.msra.mxu0 0.0
    %3437 = vmatprep.subr.mxu0 0.0
    %3438 = vmatpush1.msra.mxu0 0.0
    %3439 = vmatprep.subr.mxu0 0.0
    %3440 = vmatpush1.msra.mxu0 0.0
    %3441 = vmatprep.subr.mxu0 0.0
    %3442 = vmatpush1.msra.mxu0 0.0
    %3443 = vmatprep.subr.mxu0 0.0
    %3444 = vmatpush1.msra.mxu0 0.0
    %3445 = vmatprep.subr.mxu0 0.0
    %3446 = vmatpush1.msra.mxu0 0.0
    %3447 = vmatprep.subr.mxu0 0.0
    %3448 = vmatpush1.msra.mxu0 0.0
    %3449 = vmatprep.subr.mxu0 0.0
    %3450 = vmatpush1.msra.mxu0 0.0
    %3451 = vmatprep.subr.mxu0 0.0
    %3452 = vmatpush1.msra.mxu0 %v3407
    %3453 = vmatprep.subr.mxu0 0.0
    %3454 = vmatpush1.msra.mxu0 %v3406
    %3455 = vmatprep.subr.mxu0 0.0
    %3456 = vmatpush1.msra.mxu0 %v3405
    %3457 = vmatprep.subr.mxu0 0.0
    %3458 = vmatpush1.msra.mxu0 %v3404
    %3459 = vmatprep.subr.mxu0 0.0
    %3460 = vmatpush2.msra.mxu0 0.0
    %3461 = vmatprep.subr.mxu0 0.0
    %3462 = vmatpush2.msra.mxu0 0.0
    %3463 = vmatprep.subr.mxu0 0.0
    %3464 = vmatpush2.msra.mxu0 0.0
    %3465 = vmatprep.subr.mxu0 0.0
    %3466 = vmatpush2.msra.mxu0 0.0
    %3467 = vmatprep.subr.mxu0 0.0
    %3468 = vmatpush2.msra.mxu0 0.0
    %3469 = vmatprep.subr.mxu0 0.0
    %3470 = vmatpush2.msra.mxu0 0.0
    %3471 = vmatprep.subr.mxu0 0.0
    %3472 = vmatpush2.msra.mxu0 0.0
    %3473 = vmatprep.subr.mxu0 0.0
    %3474 = vmatpush2.msra.mxu0 0.0
    %3475 = vmatprep.subr.mxu0 0.0
    %3476 = vmatpush2.msra.mxu0 0.0
    %3477 = vmatprep.subr.mxu0 0.0
    %3478 = vmatpush2.msra.mxu0 0.0
    %3479 = vmatprep.subr.mxu0 0.0
    %3480 = vmatpush2.msra.mxu0 0.0
    %3481 = vmatprep.subr.mxu0 0.0
    %3482 = vmatpush2.msra.mxu0 0.0
    %3483 = vmatprep.subr.mxu0 0.0
    %3484 = vmatpush2.msra.mxu0 0.0
    %3485 = vmatprep.subr.mxu0 0.0
    %3486 = vmatpush2.msra.mxu0 0.0
    %3487 = vmatprep.subr.mxu0 0.0
    %3488 = vmatpush2.msra.mxu0 0.0
    %3489 = vmatprep.subr.mxu0 0.0
    %3490 = vmatpush2.msra.mxu0 0.0
    %3491 = vmatprep.mubr.f32.mxu0 0.0
    %3492 = vmatmul.mubr.f32.gmra.mxu0 %v3416
    %v3493 = vpop.f32.mrf.mxu0
    %v3494 = vadd.f32 %v3413, %v3493
    %v3495 = vpop.f32.mrf.mxu0
    %3496 = vmatprep.mubr.f32.mxu0 0.0
    %3497 = vmatmul.mubr.f32.gmra.mxu0 %v3419
    %v3498 = vpop.f32.mrf.mxu0
    %v3499 = vadd.f32 %v3413, %v3498
    %v3500 = vpop.f32.mrf.mxu0
    %3501 = vmatprep.mubr.f32.mxu0 0.0
    %3502 = vmatmul.mubr.f32.gmra.mxu0 %v3422
    %v3503 = vpop.f32.mrf.mxu0
    %v3504 = vadd.f32 %v3413, %v3503
    %v3505 = vpop.f32.mrf.mxu0
    %3506 = vmatprep.mubr.f32.mxu0 0.0
    %3507 = vmatmul.mubr.f32.gmra.mxu0 %v3425
    %v3508 = vpop.f32.mrf.mxu0
    %v3509 = vadd.f32 %v3413, %v3508
    %v3510 = vpop.f32.mrf.mxu0
    %3511 = vdwg.mxu0
    %v3512 = vld [vmem:[#allocation33] sm:$0x1]
    %v3513 = vld [vmem:[#allocation34] sm:$0x1]
    %vm3514 = vcmask 130048
    %v3515 = vsel %vm3514, %v3494, 0.0
    %v3516 = vsel %vm3514, %v3499, 0.0
    %v3517 = vadd.f32 %v3515, %v3516
    %v3518 = vsel %vm3514, %v3504, 0.0
    %v3519 = vadd.f32 %v3517, %v3518
    %v3520 = vsel %vm3514, %v3509, 0.0
    %v3521 = vadd.f32 %v3519, %v3520
    %v3522 = vrot.slane %v3521, 4
    %v3523 = vadd.f32 %v3521, %v3522
    %v3524 = vrot.slane %v3523, 2
    %v3525 = vadd.f32 %v3523, %v3524
    %v3526 = vrot.slane %v3525, 1
    %v3527 = vadd.f32 %v3525, %v3526
    %v3528 = vmul.f32 %v3527, %v1476
    %v3529 = vsub.f32 %v3494, %v3528
    %v3530 = vsub.f32 %v3499, %v3528
    %v3531 = vsub.f32 %v3504, %v3528
    %v3532 = vsub.f32 %v3509, %v3528
    %v3533 = vmul.f32 %v3529, %v3529
    %v3534 = vmul.f32 %v3530, %v3530
    %v3535 = vmul.f32 %v3531, %v3531
    %v3536 = vmul.f32 %v3532, %v3532
    %v3537 = vsel %vm3514, %v3533, 0.0
    %v3538 = vsel %vm3514, %v3534, 0.0
    %v3539 = vadd.f32 %v3537, %v3538
    %v3540 = vsel %vm3514, %v3535, 0.0
    %v3541 = vadd.f32 %v3539, %v3540
    %v3542 = vsel %vm3514, %v3536, 0.0
    %v3543 = vadd.f32 %v3541, %v3542
    %v3544 = vrot.slane %v3543, 4
    %v3545 = vadd.f32 %v3543, %v3544
    %v3546 = vrot.slane %v3545, 2
    %v3547 = vadd.f32 %v3545, %v3546
    %v3548 = vrot.slane %v3547, 1
    %v3549 = vadd.f32 %v3547, %v3548
    %v3550 = vmul.f32 %v3549, %v1476
    %v3551 = vadd.f32 %v3550, 1e-05
    %v3552 = vrsqrt.pop %v3551
    %v3553 = vmul.f32 %v3529, %v3552
    %v3554 = vmul.f32 %v3530, %v3552
    %v3555 = vmul.f32 %v3531, %v3552
    %v3556 = vmul.f32 %v3532, %v3552
    %v3558 = vlaneseq
    %v3559 = vshrl.u32 %v3558, 7
    %v3560 = vsub.s32 0, %v3559
    %v3561 = vrot.slane %v3512, %v3560
    %v3563 = vmul.f32 %v3553, %v3561
    %v3564 = vmul.f32 %v3554, %v3561
    %v3565 = vmul.f32 %v3555, %v3561
    %v3566 = vmul.f32 %v3556, %v3561
    %v3568 = vlaneseq
    %v3569 = vshrl.u32 %v3568, 7
    %v3570 = vsub.s32 0, %v3569
    %v3571 = vrot.slane %v3513, %v3570
    %v3573 = vadd.f32 %v3563, %v3571
    %v3574 = vadd.f32 %v3564, %v3571
    %v3575 = vadd.f32 %v3565, %v3571
    %v3576 = vadd.f32 %v3566, %v3571
    %v3577 = vmax.f32 %v3573, 0.0
    %v3578 = vmax.f32 %v3574, 0.0
    %v3579 = vmax.f32 %v3575, 0.0
    %v3580 = vmax.f32 %v3576, 0.0
    %3581 = vmatprep.subr.mxu0 0.0
    %3582 = vmatpush1.msra.mxu0 0.0
    %3583 = vmatprep.subr.mxu0 0.0
    %3584 = vmatpush1.msra.mxu0 0.0
    %3585 = vmatprep.subr.mxu0 0.0
    %3586 = vmatpush1.msra.mxu0 0.0
    %3587 = vmatprep.subr.mxu0 0.0
    %3588 = vmatpush1.msra.mxu0 0.0
    %3589 = vmatprep.subr.mxu0 0.0
    %3590 = vmatpush1.msra.mxu0 0.0
    %3591 = vmatprep.subr.mxu0 0.0
    %3592 = vmatpush1.msra.mxu0 0.0
    %3593 = vmatprep.subr.mxu0 0.0
    %3594 = vmatpush1.msra.mxu0 0.0
    %3595 = vmatprep.subr.mxu0 0.0
    %3596 = vmatpush1.msra.mxu0 0.0
    %3597 = vmatprep.subr.mxu0 0.0
    %3598 = vmatpush1.msra.mxu0 0.0
    %3599 = vmatprep.subr.mxu0 0.0
    %3600 = vmatpush1.msra.mxu0 0.0
    %3601 = vmatprep.subr.mxu0 0.0
    %3602 = vmatpush1.msra.mxu0 0.0
    %3603 = vmatprep.subr.mxu0 0.0
    %3604 = vmatpush1.msra.mxu0 0.0
    %3605 = vmatprep.subr.mxu0 0.0
    %3606 = vmatpush1.msra.mxu0 %v3580
    %3607 = vmatprep.subr.mxu0 0.0
    %3608 = vmatpush1.msra.mxu0 %v3579
    %3609 = vmatprep.subr.mxu0 0.0
    %3610 = vmatpush1.msra.mxu0 %v3578
    %3611 = vmatprep.subr.mxu0 0.0
    %3612 = vmatpush1.msra.mxu0 %v3577
    %3613 = vmatprep.subr.mxu0 0.0
    %3614 = vmatpush2.msra.mxu0 0.0
    %3615 = vmatprep.subr.mxu0 0.0
    %3616 = vmatpush2.msra.mxu0 0.0
    %3617 = vmatprep.subr.mxu0 0.0
    %3618 = vmatpush2.msra.mxu0 0.0
    %3619 = vmatprep.subr.mxu0 0.0
    %3620 = vmatpush2.msra.mxu0 0.0
    %3621 = vmatprep.subr.mxu0 0.0
    %3622 = vmatpush2.msra.mxu0 0.0
    %3623 = vmatprep.subr.mxu0 0.0
    %3624 = vmatpush2.msra.mxu0 0.0
    %3625 = vmatprep.subr.mxu0 0.0
    %3626 = vmatpush2.msra.mxu0 0.0
    %3627 = vmatprep.subr.mxu0 0.0
    %3628 = vmatpush2.msra.mxu0 0.0
    %3629 = vmatprep.subr.mxu0 0.0
    %3630 = vmatpush2.msra.mxu0 0.0
    %3631 = vmatprep.subr.mxu0 0.0
    %3632 = vmatpush2.msra.mxu0 0.0
    %3633 = vmatprep.subr.mxu0 0.0
    %3634 = vmatpush2.msra.mxu0 0.0
    %3635 = vmatprep.subr.mxu0 0.0
    %3636 = vmatpush2.msra.mxu0 0.0
    %3637 = vmatprep.subr.mxu0 0.0
    %3638 = vmatpush2.msra.mxu0 0.0
    %3639 = vmatprep.subr.mxu0 0.0
    %3640 = vmatpush2.msra.mxu0 0.0
    %3641 = vmatprep.subr.mxu0 0.0
    %3642 = vmatpush2.msra.mxu0 0.0
    %3643 = vmatprep.subr.mxu0 0.0
    %3644 = vmatpush2.msra.mxu0 0.0
    %3645 = vmatprep.mubr.f32.mxu0 0.0
    %3646 = vmatmul.mubr.f32.gmra.mxu0 %v935
    %v3647 = vpop.f32.mrf.mxu0
    %v3648 = vadd.f32 0.0, %v3647
    %v3649 = vpop.f32.mrf.mxu0
    %3650 = vmatprep.mubr.f32.mxu0 0.0
    %3651 = vmatmul.mubr.f32.gmra.mxu0 %v938
    %v3652 = vpop.f32.mrf.mxu0
    %v3653 = vadd.f32 0.0, %v3652
    %v3654 = vpop.f32.mrf.mxu0
    %3655 = vmatprep.mubr.f32.mxu0 0.0
    %3656 = vmatmul.mubr.f32.gmra.mxu0 %v941
    %v3657 = vpop.f32.mrf.mxu0
    %v3658 = vadd.f32 0.0, %v3657
    %v3659 = vpop.f32.mrf.mxu0
    %3660 = vmatprep.mubr.f32.mxu0 0.0
    %3661 = vmatmul.mubr.f32.gmra.mxu0 %v944
    %v3662 = vpop.f32.mrf.mxu0
    %v3663 = vadd.f32 0.0, %v3662
    %v3664 = vpop.f32.mrf.mxu0
    %3665 = vdwg.mxu0
    %3666 = vmatprep.subr.mxu0 0.0
    %3667 = vmatpush1.msra.mxu0 0.0
    %3668 = vmatprep.subr.mxu0 0.0
    %3669 = vmatpush1.msra.mxu0 0.0
    %3670 = vmatprep.subr.mxu0 0.0
    %3671 = vmatpush1.msra.mxu0 0.0
    %3672 = vmatprep.subr.mxu0 0.0
    %3673 = vmatpush1.msra.mxu0 0.0
    %3674 = vmatprep.subr.mxu0 0.0
    %3675 = vmatpush1.msra.mxu0 0.0
    %3676 = vmatprep.subr.mxu0 0.0
    %3677 = vmatpush1.msra.mxu0 0.0
    %3678 = vmatprep.subr.mxu0 0.0
    %3679 = vmatpush1.msra.mxu0 0.0
    %3680 = vmatprep.subr.mxu0 0.0
    %3681 = vmatpush1.msra.mxu0 0.0
    %3682 = vmatprep.subr.mxu0 0.0
    %3683 = vmatpush1.msra.mxu0 0.0
    %3684 = vmatprep.subr.mxu0 0.0
    %3685 = vmatpush1.msra.mxu0 0.0
    %3686 = vmatprep.subr.mxu0 0.0
    %3687 = vmatpush1.msra.mxu0 0.0
    %3688 = vmatprep.subr.mxu0 0.0
    %3689 = vmatpush1.msra.mxu0 0.0
    %3690 = vmatprep.subr.mxu0 0.0
    %3691 = vmatpush1.msra.mxu0 %v3580
    %3692 = vmatprep.subr.mxu0 0.0
    %3693 = vmatpush1.msra.mxu0 %v3579
    %3694 = vmatprep.subr.mxu0 0.0
    %3695 = vmatpush1.msra.mxu0 %v3578
    %3696 = vmatprep.subr.mxu0 0.0
    %3697 = vmatpush1.msra.mxu0 %v3577
    %3698 = vmatprep.subr.mxu0 0.0
    %3699 = vmatpush2.msra.mxu0 0.0
    %3700 = vmatprep.subr.mxu0 0.0
    %3701 = vmatpush2.msra.mxu0 0.0
    %3702 = vmatprep.subr.mxu0 0.0
    %3703 = vmatpush2.msra.mxu0 0.0
    %3704 = vmatprep.subr.mxu0 0.0
    %3705 = vmatpush2.msra.mxu0 0.0
    %3706 = vmatprep.subr.mxu0 0.0
    %3707 = vmatpush2.msra.mxu0 0.0
    %3708 = vmatprep.subr.mxu0 0.0
    %3709 = vmatpush2.msra.mxu0 0.0
    %3710 = vmatprep.subr.mxu0 0.0
    %3711 = vmatpush2.msra.mxu0 0.0
    %3712 = vmatprep.subr.mxu0 0.0
    %3713 = vmatpush2.msra.mxu0 0.0
    %3714 = vmatprep.subr.mxu0 0.0
    %3715 = vmatpush2.msra.mxu0 0.0
    %3716 = vmatprep.subr.mxu0 0.0
    %3717 = vmatpush2.msra.mxu0 0.0
    %3718 = vmatprep.subr.mxu0 0.0
    %3719 = vmatpush2.msra.mxu0 0.0
    %3720 = vmatprep.subr.mxu0 0.0
    %3721 = vmatpush2.msra.mxu0 0.0
    %3722 = vmatprep.subr.mxu0 0.0
    %3723 = vmatpush2.msra.mxu0 0.0
    %3724 = vmatprep.subr.mxu0 0.0
    %3725 = vmatpush2.msra.mxu0 0.0
    %3726 = vmatprep.subr.mxu0 0.0
    %3727 = vmatpush2.msra.mxu0 0.0
    %3728 = vmatprep.subr.mxu0 0.0
    %3729 = vmatpush2.msra.mxu0 0.0
    %3730 = vmatprep.mubr.f32.mxu0 0.0
    %3731 = vmatmul.mubr.f32.gmra.mxu0 %v1032
    %v3732 = vpop.f32.mrf.mxu0
    %v3733 = vadd.f32 0.0, %v3732
    %v3734 = vpop.f32.mrf.mxu0
    %3735 = vmatprep.mubr.f32.mxu0 0.0
    %3736 = vmatmul.mubr.f32.gmra.mxu0 %v1035
    %v3737 = vpop.f32.mrf.mxu0
    %v3738 = vadd.f32 0.0, %v3737
    %v3739 = vpop.f32.mrf.mxu0
    %3740 = vmatprep.mubr.f32.mxu0 0.0
    %3741 = vmatmul.mubr.f32.gmra.mxu0 %v1038
    %v3742 = vpop.f32.mrf.mxu0
    %v3743 = vadd.f32 0.0, %v3742
    %v3744 = vpop.f32.mrf.mxu0
    %3745 = vmatprep.mubr.f32.mxu0 0.0
    %3746 = vmatmul.mubr.f32.gmra.mxu0 %v1041
    %v3747 = vpop.f32.mrf.mxu0
    %v3748 = vadd.f32 0.0, %v3747
    %v3749 = vpop.f32.mrf.mxu0
    %3750 = vdwg.mxu0
    %v3751 = vld [vmem:[#allocation36] sm:$0xff]
    %v3752 = vld [vmem:[#allocation36 + $0x8] sm:$0xff]
    %s3753 = scalar_lea.vmem [#allocation36], 16
    %v3754 = vld [vmem:[%s3753] sm:$0xff]
    %v3755 = vld [vmem:[%s3753 + $0x8] sm:$0xff]
    %v3757 = vsel %vm3514, %v3577, 0
    %v3760 = vsel %vm3514, %v3578, 0
    %v3763 = vsel %vm3514, %v3579, 0
    %v3766 = vsel %vm3514, %v3580, 0
    %3768 = vmatprep.subr.mxu0 0.0
    %3769 = vmatpush1.msra.mxu0 0.0
    %3770 = vmatprep.subr.mxu0 0.0
    %3771 = vmatpush1.msra.mxu0 0.0
    %3772 = vmatprep.subr.mxu0 0.0
    %3773 = vmatpush1.msra.mxu0 0.0
    %3774 = vmatprep.subr.mxu0 0.0
    %3775 = vmatpush1.msra.mxu0 0.0
    %3776 = vmatprep.subr.mxu0 0.0
    %3777 = vmatpush1.msra.mxu0 0.0
    %3778 = vmatprep.subr.mxu0 0.0
    %3779 = vmatpush1.msra.mxu0 0.0
    %3780 = vmatprep.subr.mxu0 0.0
    %3781 = vmatpush1.msra.mxu0 0.0
    %3782 = vmatprep.subr.mxu0 0.0
    %3783 = vmatpush1.msra.mxu0 0.0
    %3784 = vmatprep.subr.mxu0 0.0
    %3785 = vmatpush1.msra.mxu0 0.0
    %3786 = vmatprep.subr.mxu0 0.0
    %3787 = vmatpush1.msra.mxu0 0.0
    %3788 = vmatprep.subr.mxu0 0.0
    %3789 = vmatpush1.msra.mxu0 0.0
    %3790 = vmatprep.subr.mxu0 0.0
    %3791 = vmatpush1.msra.mxu0 0.0
    %3792 = vmatprep.subr.mxu0 0.0
    %3793 = vmatpush1.msra.mxu0 0.0
    %3794 = vmatprep.subr.mxu0 0.0
    %3795 = vmatpush1.msra.mxu0 0.0
    %3796 = vmatprep.subr.mxu0 0.0
    %3797 = vmatpush1.msra.mxu0 %v3755
    %3798 = vmatprep.subr.mxu0 0.0
    %3799 = vmatpush1.msra.mxu0 %v3754
    %3800 = vmatprep.subr.mxu0 0.0
    %3801 = vmatpush2.msra.mxu0 0.0
    %3802 = vmatprep.subr.mxu0 0.0
    %3803 = vmatpush2.msra.mxu0 0.0
    %3804 = vmatprep.subr.mxu0 0.0
    %3805 = vmatpush2.msra.mxu0 0.0
    %3806 = vmatprep.subr.mxu0 0.0
    %3807 = vmatpush2.msra.mxu0 0.0
    %3808 = vmatprep.subr.mxu0 0.0
    %3809 = vmatpush2.msra.mxu0 0.0
    %3810 = vmatprep.subr.mxu0 0.0
    %3811 = vmatpush2.msra.mxu0 0.0
    %3812 = vmatprep.subr.mxu0 0.0
    %3813 = vmatpush2.msra.mxu0 0.0
    %3814 = vmatprep.subr.mxu0 0.0
    %3815 = vmatpush2.msra.mxu0 0.0
    %3816 = vmatprep.subr.mxu0 0.0
    %3817 = vmatpush2.msra.mxu0 0.0
    %3818 = vmatprep.subr.mxu0 0.0
    %3819 = vmatpush2.msra.mxu0 0.0
    %3820 = vmatprep.subr.mxu0 0.0
    %3821 = vmatpush2.msra.mxu0 0.0
    %3822 = vmatprep.subr.mxu0 0.0
    %3823 = vmatpush2.msra.mxu0 0.0
    %3824 = vmatprep.subr.mxu0 0.0
    %3825 = vmatpush2.msra.mxu0 0.0
    %3826 = vmatprep.subr.mxu0 0.0
    %3827 = vmatpush2.msra.mxu0 0.0
    %3828 = vmatprep.subr.mxu0 0.0
    %3829 = vmatpush2.msra.mxu0 0.0
    %3830 = vmatprep.subr.mxu0 0.0
    %3831 = vmatpush2.msra.mxu0 0.0
    %3832 = vmatprep.mubr.f32.mxu0 0.0
    %3833 = vmatmul.mubr.f32.gmra.mxu0 %v3757
    %v3834 = vpop.f32.mrf.mxu0
    %v3835 = vadd.f32 0.0, %v3834
    %v3836 = vpop.f32.mrf.mxu0
    %3837 = vmatprep.mubr.f32.mxu0 0.0
    %3838 = vmatmul.mubr.f32.gmra.mxu0 %v3760
    %v3839 = vpop.f32.mrf.mxu0
    %v3840 = vadd.f32 0.0, %v3839
    %v3841 = vpop.f32.mrf.mxu0
    %3842 = vmatprep.mubr.f32.mxu0 0.0
    %3843 = vmatmul.mubr.f32.gmra.mxu0 %v3763
    %v3844 = vpop.f32.mrf.mxu0
    %v3845 = vadd.f32 0.0, %v3844
    %v3846 = vpop.f32.mrf.mxu0
    %3847 = vmatprep.mubr.f32.mxu0 0.0
    %3848 = vmatmul.mubr.f32.gmra.mxu0 %v3766
    %v3849 = vpop.f32.mrf.mxu0
    %v3850 = vadd.f32 0.0, %v3849
    %v3851 = vpop.f32.mrf.mxu0
    %3852 = vdwg.mxu0
    %v3854 = vsel %vm3514, %v3648, 0
    %v3857 = vsel %vm3514, %v3653, 0
    %v3860 = vsel %vm3514, %v3658, 0
    %v3863 = vsel %vm3514, %v3663, 0
    %3865 = vmatprep.subr.mxu0 0.0
    %3866 = vmatpush1.msra.mxu0 0.0
    %3867 = vmatprep.subr.mxu0 0.0
    %3868 = vmatpush1.msra.mxu0 0.0
    %3869 = vmatprep.subr.mxu0 0.0
    %3870 = vmatpush1.msra.mxu0 0.0
    %3871 = vmatprep.subr.mxu0 0.0
    %3872 = vmatpush1.msra.mxu0 0.0
    %3873 = vmatprep.subr.mxu0 0.0
    %3874 = vmatpush1.msra.mxu0 0.0
    %3875 = vmatprep.subr.mxu0 0.0
    %3876 = vmatpush1.msra.mxu0 0.0
    %3877 = vmatprep.subr.mxu0 0.0
    %3878 = vmatpush1.msra.mxu0 0.0
    %3879 = vmatprep.subr.mxu0 0.0
    %3880 = vmatpush1.msra.mxu0 0.0
    %3881 = vmatprep.subr.mxu0 0.0
    %3882 = vmatpush1.msra.mxu0 0.0
    %3883 = vmatprep.subr.mxu0 0.0
    %3884 = vmatpush1.msra.mxu0 0.0
    %3885 = vmatprep.subr.mxu0 0.0
    %3886 = vmatpush1.msra.mxu0 0.0
    %3887 = vmatprep.subr.mxu0 0.0
    %3888 = vmatpush1.msra.mxu0 0.0
    %3889 = vmatprep.subr.mxu0 0.0
    %3890 = vmatpush1.msra.mxu0 0.0
    %3891 = vmatprep.subr.mxu0 0.0
    %3892 = vmatpush1.msra.mxu0 0.0
    %3893 = vmatprep.subr.mxu0 0.0
    %3894 = vmatpush1.msra.mxu0 %v3752
    %3895 = vmatprep.subr.mxu0 0.0
    %3896 = vmatpush1.msra.mxu0 %v3751
    %3897 = vmatprep.subr.mxu0 0.0
    %3898 = vmatpush2.msra.mxu0 0.0
    %3899 = vmatprep.subr.mxu0 0.0
    %3900 = vmatpush2.msra.mxu0 0.0
    %3901 = vmatprep.subr.mxu0 0.0
    %3902 = vmatpush2.msra.mxu0 0.0
    %3903 = vmatprep.subr.mxu0 0.0
    %3904 = vmatpush2.msra.mxu0 0.0
    %3905 = vmatprep.subr.mxu0 0.0
    %3906 = vmatpush2.msra.mxu0 0.0
    %3907 = vmatprep.subr.mxu0 0.0
    %3908 = vmatpush2.msra.mxu0 0.0
    %3909 = vmatprep.subr.mxu0 0.0
    %3910 = vmatpush2.msra.mxu0 0.0
    %3911 = vmatprep.subr.mxu0 0.0
    %3912 = vmatpush2.msra.mxu0 0.0
    %3913 = vmatprep.subr.mxu0 0.0
    %3914 = vmatpush2.msra.mxu0 0.0
    %3915 = vmatprep.subr.mxu0 0.0
    %3916 = vmatpush2.msra.mxu0 0.0
    %3917 = vmatprep.subr.mxu0 0.0
    %3918 = vmatpush2.msra.mxu0 0.0
    %3919 = vmatprep.subr.mxu0 0.0
    %3920 = vmatpush2.msra.mxu0 0.0
    %3921 = vmatprep.subr.mxu0 0.0
    %3922 = vmatpush2.msra.mxu0 0.0
    %3923 = vmatprep.subr.mxu0 0.0
    %3924 = vmatpush2.msra.mxu0 0.0
    %3925 = vmatprep.subr.mxu0 0.0
    %3926 = vmatpush2.msra.mxu0 0.0
    %3927 = vmatprep.subr.mxu0 0.0
    %3928 = vmatpush2.msra.mxu0 0.0
    %3929 = vmatprep.mubr.f32.mxu0 0.0
    %3930 = vmatmul.mubr.f32.gmra.mxu0 %v3854
    %v3931 = vpop.f32.mrf.mxu0
    %v3932 = vadd.f32 %v3835, %v3931
    %v3933 = vpop.f32.mrf.mxu0
    %3934 = vmatprep.mubr.f32.mxu0 0.0
    %3935 = vmatmul.mubr.f32.gmra.mxu0 %v3857
    %v3936 = vpop.f32.mrf.mxu0
    %v3937 = vadd.f32 %v3840, %v3936
    %v3938 = vpop.f32.mrf.mxu0
    %3939 = vmatprep.mubr.f32.mxu0 0.0
    %3940 = vmatmul.mubr.f32.gmra.mxu0 %v3860
    %v3941 = vpop.f32.mrf.mxu0
    %v3942 = vadd.f32 %v3845, %v3941
    %v3943 = vpop.f32.mrf.mxu0
    %3944 = vmatprep.mubr.f32.mxu0 0.0
    %3945 = vmatmul.mubr.f32.gmra.mxu0 %v3863
    %v3946 = vpop.f32.mrf.mxu0
    %v3947 = vadd.f32 %v3850, %v3946
    %v3948 = vpop.f32.mrf.mxu0
    %3949 = vdwg.mxu0
    %s3950 = scalar_lea.vmem [#allocation36], 32
    %v3951 = vld [vmem:[%s3950] sm:$0xff]
    %v3952 = vld [vmem:[%s3950 + $0x8] sm:$0xff]
    %v3954 = vsel %vm3514, %v3733, 0
    %v3957 = vsel %vm3514, %v3738, 0
    %v3960 = vsel %vm3514, %v3743, 0
    %v3963 = vsel %vm3514, %v3748, 0
    %3965 = vmatprep.subr.mxu0 0.0
    %3966 = vmatpush1.msra.mxu0 0.0
    %3967 = vmatprep.subr.mxu0 0.0
    %3968 = vmatpush1.msra.mxu0 0.0
    %3969 = vmatprep.subr.mxu0 0.0
    %3970 = vmatpush1.msra.mxu0 0.0
    %3971 = vmatprep.subr.mxu0 0.0
    %3972 = vmatpush1.msra.mxu0 0.0
    %3973 = vmatprep.subr.mxu0 0.0
    %3974 = vmatpush1.msra.mxu0 0.0
    %3975 = vmatprep.subr.mxu0 0.0
    %3976 = vmatpush1.msra.mxu0 0.0
    %3977 = vmatprep.subr.mxu0 0.0
    %3978 = vmatpush1.msra.mxu0 0.0
    %3979 = vmatprep.subr.mxu0 0.0
    %3980 = vmatpush1.msra.mxu0 0.0
    %3981 = vmatprep.subr.mxu0 0.0
    %3982 = vmatpush1.msra.mxu0 0.0
    %3983 = vmatprep.subr.mxu0 0.0
    %3984 = vmatpush1.msra.mxu0 0.0
    %3985 = vmatprep.subr.mxu0 0.0
    %3986 = vmatpush1.msra.mxu0 0.0
    %3987 = vmatprep.subr.mxu0 0.0
    %3988 = vmatpush1.msra.mxu0 0.0
    %3989 = vmatprep.subr.mxu0 0.0
    %3990 = vmatpush1.msra.mxu0 0.0
    %3991 = vmatprep.subr.mxu0 0.0
    %3992 = vmatpush1.msra.mxu0 0.0
    %3993 = vmatprep.subr.mxu0 0.0
    %3994 = vmatpush1.msra.mxu0 %v3952
    %3995 = vmatprep.subr.mxu0 0.0
    %3996 = vmatpush1.msra.mxu0 %v3951
    %3997 = vmatprep.subr.mxu0 0.0
    %3998 = vmatpush2.msra.mxu0 0.0
    %3999 = vmatprep.subr.mxu0 0.0
    %4000 = vmatpush2.msra.mxu0 0.0
    %4001 = vmatprep.subr.mxu0 0.0
    %4002 = vmatpush2.msra.mxu0 0.0
    %4003 = vmatprep.subr.mxu0 0.0
    %4004 = vmatpush2.msra.mxu0 0.0
    %4005 = vmatprep.subr.mxu0 0.0
    %4006 = vmatpush2.msra.mxu0 0.0
    %4007 = vmatprep.subr.mxu0 0.0
    %4008 = vmatpush2.msra.mxu0 0.0
    %4009 = vmatprep.subr.mxu0 0.0
    %4010 = vmatpush2.msra.mxu0 0.0
    %4011 = vmatprep.subr.mxu0 0.0
    %4012 = vmatpush2.msra.mxu0 0.0
    %4013 = vmatprep.subr.mxu0 0.0
    %4014 = vmatpush2.msra.mxu0 0.0
    %4015 = vmatprep.subr.mxu0 0.0
    %4016 = vmatpush2.msra.mxu0 0.0
    %4017 = vmatprep.subr.mxu0 0.0
    %4018 = vmatpush2.msra.mxu0 0.0
    %4019 = vmatprep.subr.mxu0 0.0
    %4020 = vmatpush2.msra.mxu0 0.0
    %4021 = vmatprep.subr.mxu0 0.0
    %4022 = vmatpush2.msra.mxu0 0.0
    %4023 = vmatprep.subr.mxu0 0.0
    %4024 = vmatpush2.msra.mxu0 0.0
    %4025 = vmatprep.subr.mxu0 0.0
    %4026 = vmatpush2.msra.mxu0 0.0
    %4027 = vmatprep.subr.mxu0 0.0
    %4028 = vmatpush2.msra.mxu0 0.0
    %4029 = vmatprep.mubr.f32.mxu0 0.0
    %4030 = vmatmul.mubr.f32.gmra.mxu0 %v3954
    %v4031 = vpop.f32.mrf.mxu0
    %v4032 = vadd.f32 0.0, %v4031
    %v4033 = vpop.f32.mrf.mxu0
    %4034 = vmatprep.mubr.f32.mxu0 0.0
    %4035 = vmatmul.mubr.f32.gmra.mxu0 %v3957
    %v4036 = vpop.f32.mrf.mxu0
    %v4037 = vadd.f32 0.0, %v4036
    %v4038 = vpop.f32.mrf.mxu0
    %4039 = vmatprep.mubr.f32.mxu0 0.0
    %4040 = vmatmul.mubr.f32.gmra.mxu0 %v3960
    %v4041 = vpop.f32.mrf.mxu0
    %v4042 = vadd.f32 0.0, %v4041
    %v4043 = vpop.f32.mrf.mxu0
    %4044 = vmatprep.mubr.f32.mxu0 0.0
    %4045 = vmatmul.mubr.f32.gmra.mxu0 %v3963
    %v4046 = vpop.f32.mrf.mxu0
    %v4047 = vadd.f32 0.0, %v4046
    %v4048 = vpop.f32.mrf.mxu0
    %4049 = vdwg.mxu0
    %v4050 = vadd.f32 %v3932, %v4032
    %v4051 = vadd.f32 %v3937, %v4037
    %v4052 = vadd.f32 %v3942, %v4042
    %v4053 = vadd.f32 %v3947, %v4047
    %v4054 = vld [vmem:[#allocation37] sm:$0x1]
    %v4056 = vlaneseq
    %v4057 = vshrl.u32 %v4056, 7
    %v4058 = vsub.s32 0, %v4057
    %v4059 = vrot.slane %v4054, %v4058
    %v4061 = vadd.f32 %v4050, %v4059
    %v4062 = vadd.f32 %v4051, %v4059
    %v4063 = vadd.f32 %v4052, %v4059
    %v4064 = vadd.f32 %v4053, %v4059
    %v4065 = vld [vmem:[#allocation39] sm:$0x1]
    %v4066 = vld [vmem:[#allocation40] sm:$0x1]
    %v4067 = vsel %vm3514, %v4061, 0.0
    %v4068 = vsel %vm3514, %v4062, 0.0
    %v4069 = vadd.f32 %v4067, %v4068
    %v4070 = vsel %vm3514, %v4063, 0.0
    %v4071 = vadd.f32 %v4069, %v4070
    %v4072 = vsel %vm3514, %v4064, 0.0
    %v4073 = vadd.f32 %v4071, %v4072
    %v4074 = vrot.slane %v4073, 4
    %v4075 = vadd.f32 %v4073, %v4074
    %v4076 = vrot.slane %v4075, 2
    %v4077 = vadd.f32 %v4075, %v4076
    %v4078 = vrot.slane %v4077, 1
    %v4079 = vadd.f32 %v4077, %v4078
    %v4080 = vmul.f32 %v4079, %v1476
    %v4081 = vsub.f32 %v4061, %v4080
    %v4082 = vsub.f32 %v4062, %v4080
    %v4083 = vsub.f32 %v4063, %v4080
    %v4084 = vsub.f32 %v4064, %v4080
    %v4085 = vmul.f32 %v4081, %v4081
    %v4086 = vmul.f32 %v4082, %v4082
    %v4087 = vmul.f32 %v4083, %v4083
    %v4088 = vmul.f32 %v4084, %v4084
    %v4089 = vsel %vm3514, %v4085, 0.0
    %v4090 = vsel %vm3514, %v4086, 0.0
    %v4091 = vadd.f32 %v4089, %v4090
    %v4092 = vsel %vm3514, %v4087, 0.0
    %v4093 = vadd.f32 %v4091, %v4092
    %v4094 = vsel %vm3514, %v4088, 0.0
    %v4095 = vadd.f32 %v4093, %v4094
    %v4096 = vrot.slane %v4095, 4
    %v4097 = vadd.f32 %v4095, %v4096
    %v4098 = vrot.slane %v4097, 2
    %v4099 = vadd.f32 %v4097, %v4098
    %v4100 = vrot.slane %v4099, 1
    %v4101 = vadd.f32 %v4099, %v4100
    %v4102 = vmul.f32 %v4101, %v1476
    %v4103 = vadd.f32 %v4102, 1e-05
    %v4104 = vrsqrt.pop %v4103
    %v4105 = vmul.f32 %v4081, %v4104
    %v4106 = vmul.f32 %v4082, %v4104
    %v4107 = vmul.f32 %v4083, %v4104
    %v4108 = vmul.f32 %v4084, %v4104
    %v4110 = vlaneseq
    %v4111 = vshrl.u32 %v4110, 7
    %v4112 = vsub.s32 0, %v4111
    %v4113 = vrot.slane %v4065, %v4112
    %v4115 = vmul.f32 %v4105, %v4113
    %v4116 = vmul.f32 %v4106, %v4113
    %v4117 = vmul.f32 %v4107, %v4113
    %v4118 = vmul.f32 %v4108, %v4113
    %v4120 = vlaneseq
    %v4121 = vshrl.u32 %v4120, 7
    %v4122 = vsub.s32 0, %v4121
    %v4123 = vrot.slane %v4066, %v4122
    %v4125 = vadd.f32 %v4115, %v4123
    %v4126 = vadd.f32 %v4116, %v4123
    %v4127 = vadd.f32 %v4117, %v4123
    %v4128 = vadd.f32 %v4118, %v4123
    %v4129 = vmax.f32 %v4125, 0.0
    %v4130 = vmax.f32 %v4126, 0.0
    %v4131 = vmax.f32 %v4127, 0.0
    %v4132 = vmax.f32 %v4128, 0.0
    %4133 = vmatprep.subr.mxu0 0.0
    %4134 = vmatpush1.msra.mxu0 0.0
    %4135 = vmatprep.subr.mxu0 0.0
    %4136 = vmatpush1.msra.mxu0 0.0
    %4137 = vmatprep.subr.mxu0 0.0
    %4138 = vmatpush1.msra.mxu0 0.0
    %4139 = vmatprep.subr.mxu0 0.0
    %4140 = vmatpush1.msra.mxu0 0.0
    %4141 = vmatprep.subr.mxu0 0.0
    %4142 = vmatpush1.msra.mxu0 0.0
    %4143 = vmatprep.subr.mxu0 0.0
    %4144 = vmatpush1.msra.mxu0 0.0
    %4145 = vmatprep.subr.mxu0 0.0
    %4146 = vmatpush1.msra.mxu0 0.0
    %4147 = vmatprep.subr.mxu0 0.0
    %4148 = vmatpush1.msra.mxu0 0.0
    %4149 = vmatprep.subr.mxu0 0.0
    %4150 = vmatpush1.msra.mxu0 0.0
    %4151 = vmatprep.subr.mxu0 0.0
    %4152 = vmatpush1.msra.mxu0 0.0
    %4153 = vmatprep.subr.mxu0 0.0
    %4154 = vmatpush1.msra.mxu0 0.0
    %4155 = vmatprep.subr.mxu0 0.0
    %4156 = vmatpush1.msra.mxu0 0.0
    %4157 = vmatprep.subr.mxu0 0.0
    %4158 = vmatpush1.msra.mxu0 %v4132
    %4159 = vmatprep.subr.mxu0 0.0
    %4160 = vmatpush1.msra.mxu0 %v4131
    %4161 = vmatprep.subr.mxu0 0.0
    %4162 = vmatpush1.msra.mxu0 %v4130
    %4163 = vmatprep.subr.mxu0 0.0
    %4164 = vmatpush1.msra.mxu0 %v4129
    %4165 = vmatprep.subr.mxu0 0.0
    %4166 = vmatpush2.msra.mxu0 0.0
    %4167 = vmatprep.subr.mxu0 0.0
    %4168 = vmatpush2.msra.mxu0 0.0
    %4169 = vmatprep.subr.mxu0 0.0
    %4170 = vmatpush2.msra.mxu0 0.0
    %4171 = vmatprep.subr.mxu0 0.0
    %4172 = vmatpush2.msra.mxu0 0.0
    %4173 = vmatprep.subr.mxu0 0.0
    %4174 = vmatpush2.msra.mxu0 0.0
    %4175 = vmatprep.subr.mxu0 0.0
    %4176 = vmatpush2.msra.mxu0 0.0
    %4177 = vmatprep.subr.mxu0 0.0
    %4178 = vmatpush2.msra.mxu0 0.0
    %4179 = vmatprep.subr.mxu0 0.0
    %4180 = vmatpush2.msra.mxu0 0.0
    %4181 = vmatprep.subr.mxu0 0.0
    %4182 = vmatpush2.msra.mxu0 0.0
    %4183 = vmatprep.subr.mxu0 0.0
    %4184 = vmatpush2.msra.mxu0 0.0
    %4185 = vmatprep.subr.mxu0 0.0
    %4186 = vmatpush2.msra.mxu0 0.0
    %4187 = vmatprep.subr.mxu0 0.0
    %4188 = vmatpush2.msra.mxu0 0.0
    %4189 = vmatprep.subr.mxu0 0.0
    %4190 = vmatpush2.msra.mxu0 0.0
    %4191 = vmatprep.subr.mxu0 0.0
    %4192 = vmatpush2.msra.mxu0 0.0
    %4193 = vmatprep.subr.mxu0 0.0
    %4194 = vmatpush2.msra.mxu0 0.0
    %4195 = vmatprep.subr.mxu0 0.0
    %4196 = vmatpush2.msra.mxu0 0.0
    %4197 = vmatprep.mubr.f32.mxu0 0.0
    %4198 = vmatmul.mubr.f32.gmra.mxu0 %v935
    %v4199 = vpop.f32.mrf.mxu0
    %v4200 = vadd.f32 0.0, %v4199
    %v4201 = vpop.f32.mrf.mxu0
    %4202 = vmatprep.mubr.f32.mxu0 0.0
    %4203 = vmatmul.mubr.f32.gmra.mxu0 %v938
    %v4204 = vpop.f32.mrf.mxu0
    %v4205 = vadd.f32 0.0, %v4204
    %v4206 = vpop.f32.mrf.mxu0
    %4207 = vmatprep.mubr.f32.mxu0 0.0
    %4208 = vmatmul.mubr.f32.gmra.mxu0 %v941
    %v4209 = vpop.f32.mrf.mxu0
    %v4210 = vadd.f32 0.0, %v4209
    %v4211 = vpop.f32.mrf.mxu0
    %4212 = vmatprep.mubr.f32.mxu0 0.0
    %4213 = vmatmul.mubr.f32.gmra.mxu0 %v944
    %v4214 = vpop.f32.mrf.mxu0
    %v4215 = vadd.f32 0.0, %v4214
    %v4216 = vpop.f32.mrf.mxu0
    %4217 = vdwg.mxu0
    %4218 = vmatprep.subr.mxu0 0.0
    %4219 = vmatpush1.msra.mxu0 0.0
    %4220 = vmatprep.subr.mxu0 0.0
    %4221 = vmatpush1.msra.mxu0 0.0
    %4222 = vmatprep.subr.mxu0 0.0
    %4223 = vmatpush1.msra.mxu0 0.0
    %4224 = vmatprep.subr.mxu0 0.0
    %4225 = vmatpush1.msra.mxu0 0.0
    %4226 = vmatprep.subr.mxu0 0.0
    %4227 = vmatpush1.msra.mxu0 0.0
    %4228 = vmatprep.subr.mxu0 0.0
    %4229 = vmatpush1.msra.mxu0 0.0
    %4230 = vmatprep.subr.mxu0 0.0
    %4231 = vmatpush1.msra.mxu0 0.0
    %4232 = vmatprep.subr.mxu0 0.0
    %4233 = vmatpush1.msra.mxu0 0.0
    %4234 = vmatprep.subr.mxu0 0.0
    %4235 = vmatpush1.msra.mxu0 0.0
    %4236 = vmatprep.subr.mxu0 0.0
    %4237 = vmatpush1.msra.mxu0 0.0
    %4238 = vmatprep.subr.mxu0 0.0
    %4239 = vmatpush1.msra.mxu0 0.0
    %4240 = vmatprep.subr.mxu0 0.0
    %4241 = vmatpush1.msra.mxu0 0.0
    %4242 = vmatprep.subr.mxu0 0.0
    %4243 = vmatpush1.msra.mxu0 %v4132
    %4244 = vmatprep.subr.mxu0 0.0
    %4245 = vmatpush1.msra.mxu0 %v4131
    %4246 = vmatprep.subr.mxu0 0.0
    %4247 = vmatpush1.msra.mxu0 %v4130
    %4248 = vmatprep.subr.mxu0 0.0
    %4249 = vmatpush1.msra.mxu0 %v4129
    %4250 = vmatprep.subr.mxu0 0.0
    %4251 = vmatpush2.msra.mxu0 0.0
    %4252 = vmatprep.subr.mxu0 0.0
    %4253 = vmatpush2.msra.mxu0 0.0
    %4254 = vmatprep.subr.mxu0 0.0
    %4255 = vmatpush2.msra.mxu0 0.0
    %4256 = vmatprep.subr.mxu0 0.0
    %4257 = vmatpush2.msra.mxu0 0.0
    %4258 = vmatprep.subr.mxu0 0.0
    %4259 = vmatpush2.msra.mxu0 0.0
    %4260 = vmatprep.subr.mxu0 0.0
    %4261 = vmatpush2.msra.mxu0 0.0
    %4262 = vmatprep.subr.mxu0 0.0
    %4263 = vmatpush2.msra.mxu0 0.0
    %4264 = vmatprep.subr.mxu0 0.0
    %4265 = vmatpush2.msra.mxu0 0.0
    %4266 = vmatprep.subr.mxu0 0.0
    %4267 = vmatpush2.msra.mxu0 0.0
    %4268 = vmatprep.subr.mxu0 0.0
    %4269 = vmatpush2.msra.mxu0 0.0
    %4270 = vmatprep.subr.mxu0 0.0
    %4271 = vmatpush2.msra.mxu0 0.0
    %4272 = vmatprep.subr.mxu0 0.0
    %4273 = vmatpush2.msra.mxu0 0.0
    %4274 = vmatprep.subr.mxu0 0.0
    %4275 = vmatpush2.msra.mxu0 0.0
    %4276 = vmatprep.subr.mxu0 0.0
    %4277 = vmatpush2.msra.mxu0 0.0
    %4278 = vmatprep.subr.mxu0 0.0
    %4279 = vmatpush2.msra.mxu0 0.0
    %4280 = vmatprep.subr.mxu0 0.0
    %4281 = vmatpush2.msra.mxu0 0.0
    %4282 = vmatprep.mubr.f32.mxu0 0.0
    %4283 = vmatmul.mubr.f32.gmra.mxu0 %v1032
    %v4284 = vpop.f32.mrf.mxu0
    %v4285 = vadd.f32 0.0, %v4284
    %v4286 = vpop.f32.mrf.mxu0
    %4287 = vmatprep.mubr.f32.mxu0 0.0
    %4288 = vmatmul.mubr.f32.gmra.mxu0 %v1035
    %v4289 = vpop.f32.mrf.mxu0
    %v4290 = vadd.f32 0.0, %v4289
    %v4291 = vpop.f32.mrf.mxu0
    %4292 = vmatprep.mubr.f32.mxu0 0.0
    %4293 = vmatmul.mubr.f32.gmra.mxu0 %v1038
    %v4294 = vpop.f32.mrf.mxu0
    %v4295 = vadd.f32 0.0, %v4294
    %v4296 = vpop.f32.mrf.mxu0
    %4297 = vmatprep.mubr.f32.mxu0 0.0
    %4298 = vmatmul.mubr.f32.gmra.mxu0 %v1041
    %v4299 = vpop.f32.mrf.mxu0
    %v4300 = vadd.f32 0.0, %v4299
    %v4301 = vpop.f32.mrf.mxu0
    %4302 = vdwg.mxu0
    %v4303 = vld [vmem:[#allocation42] sm:$0xff]
    %v4304 = vld [vmem:[#allocation42 + $0x8] sm:$0xff]
    %s4305 = scalar_lea.vmem [#allocation42], 16
    %v4306 = vld [vmem:[%s4305] sm:$0xff]
    %v4307 = vld [vmem:[%s4305 + $0x8] sm:$0xff]
    %v4309 = vsel %vm3514, %v4129, 0
    %v4312 = vsel %vm3514, %v4130, 0
    %v4315 = vsel %vm3514, %v4131, 0
    %v4318 = vsel %vm3514, %v4132, 0
    %4320 = vmatprep.subr.mxu0 0.0
    %4321 = vmatpush1.msra.mxu0 0.0
    %4322 = vmatprep.subr.mxu0 0.0
    %4323 = vmatpush1.msra.mxu0 0.0
    %4324 = vmatprep.subr.mxu0 0.0
    %4325 = vmatpush1.msra.mxu0 0.0
    %4326 = vmatprep.subr.mxu0 0.0
    %4327 = vmatpush1.msra.mxu0 0.0
    %4328 = vmatprep.subr.mxu0 0.0
    %4329 = vmatpush1.msra.mxu0 0.0
    %4330 = vmatprep.subr.mxu0 0.0
    %4331 = vmatpush1.msra.mxu0 0.0
    %4332 = vmatprep.subr.mxu0 0.0
    %4333 = vmatpush1.msra.mxu0 0.0
    %4334 = vmatprep.subr.mxu0 0.0
    %4335 = vmatpush1.msra.mxu0 0.0
    %4336 = vmatprep.subr.mxu0 0.0
    %4337 = vmatpush1.msra.mxu0 0.0
    %4338 = vmatprep.subr.mxu0 0.0
    %4339 = vmatpush1.msra.mxu0 0.0
    %4340 = vmatprep.subr.mxu0 0.0
    %4341 = vmatpush1.msra.mxu0 0.0
    %4342 = vmatprep.subr.mxu0 0.0
    %4343 = vmatpush1.msra.mxu0 0.0
    %4344 = vmatprep.subr.mxu0 0.0
    %4345 = vmatpush1.msra.mxu0 0.0
    %4346 = vmatprep.subr.mxu0 0.0
    %4347 = vmatpush1.msra.mxu0 0.0
    %4348 = vmatprep.subr.mxu0 0.0
    %4349 = vmatpush1.msra.mxu0 %v4307
    %4350 = vmatprep.subr.mxu0 0.0
    %4351 = vmatpush1.msra.mxu0 %v4306
    %4352 = vmatprep.subr.mxu0 0.0
    %4353 = vmatpush2.msra.mxu0 0.0
    %4354 = vmatprep.subr.mxu0 0.0
    %4355 = vmatpush2.msra.mxu0 0.0
    %4356 = vmatprep.subr.mxu0 0.0
    %4357 = vmatpush2.msra.mxu0 0.0
    %4358 = vmatprep.subr.mxu0 0.0
    %4359 = vmatpush2.msra.mxu0 0.0
    %4360 = vmatprep.subr.mxu0 0.0
    %4361 = vmatpush2.msra.mxu0 0.0
    %4362 = vmatprep.subr.mxu0 0.0
    %4363 = vmatpush2.msra.mxu0 0.0
    %4364 = vmatprep.subr.mxu0 0.0
    %4365 = vmatpush2.msra.mxu0 0.0
    %4366 = vmatprep.subr.mxu0 0.0
    %4367 = vmatpush2.msra.mxu0 0.0
    %4368 = vmatprep.subr.mxu0 0.0
    %4369 = vmatpush2.msra.mxu0 0.0
    %4370 = vmatprep.subr.mxu0 0.0
    %4371 = vmatpush2.msra.mxu0 0.0
    %4372 = vmatprep.subr.mxu0 0.0
    %4373 = vmatpush2.msra.mxu0 0.0
    %4374 = vmatprep.subr.mxu0 0.0
    %4375 = vmatpush2.msra.mxu0 0.0
    %4376 = vmatprep.subr.mxu0 0.0
    %4377 = vmatpush2.msra.mxu0 0.0
    %4378 = vmatprep.subr.mxu0 0.0
    %4379 = vmatpush2.msra.mxu0 0.0
    %4380 = vmatprep.subr.mxu0 0.0
    %4381 = vmatpush2.msra.mxu0 0.0
    %4382 = vmatprep.subr.mxu0 0.0
    %4383 = vmatpush2.msra.mxu0 0.0
    %4384 = vmatprep.mubr.f32.mxu0 0.0
    %4385 = vmatmul.mubr.f32.gmra.mxu0 %v4309
    %v4386 = vpop.f32.mrf.mxu0
    %v4387 = vadd.f32 0.0, %v4386
    %v4388 = vpop.f32.mrf.mxu0
    %4389 = vmatprep.mubr.f32.mxu0 0.0
    %4390 = vmatmul.mubr.f32.gmra.mxu0 %v4312
    %v4391 = vpop.f32.mrf.mxu0
    %v4392 = vadd.f32 0.0, %v4391
    %v4393 = vpop.f32.mrf.mxu0
    %4394 = vmatprep.mubr.f32.mxu0 0.0
    %4395 = vmatmul.mubr.f32.gmra.mxu0 %v4315
    %v4396 = vpop.f32.mrf.mxu0
    %v4397 = vadd.f32 0.0, %v4396
    %v4398 = vpop.f32.mrf.mxu0
    %4399 = vmatprep.mubr.f32.mxu0 0.0
    %4400 = vmatmul.mubr.f32.gmra.mxu0 %v4318
    %v4401 = vpop.f32.mrf.mxu0
    %v4402 = vadd.f32 0.0, %v4401
    %v4403 = vpop.f32.mrf.mxu0
    %4404 = vdwg.mxu0
    %v4406 = vsel %vm3514, %v4200, 0
    %v4409 = vsel %vm3514, %v4205, 0
    %v4412 = vsel %vm3514, %v4210, 0
    %v4415 = vsel %vm3514, %v4215, 0
    %4417 = vmatprep.subr.mxu0 0.0
    %4418 = vmatpush1.msra.mxu0 0.0
    %4419 = vmatprep.subr.mxu0 0.0
    %4420 = vmatpush1.msra.mxu0 0.0
    %4421 = vmatprep.subr.mxu0 0.0
    %4422 = vmatpush1.msra.mxu0 0.0
    %4423 = vmatprep.subr.mxu0 0.0
    %4424 = vmatpush1.msra.mxu0 0.0
    %4425 = vmatprep.subr.mxu0 0.0
    %4426 = vmatpush1.msra.mxu0 0.0
    %4427 = vmatprep.subr.mxu0 0.0
    %4428 = vmatpush1.msra.mxu0 0.0
    %4429 = vmatprep.subr.mxu0 0.0
    %4430 = vmatpush1.msra.mxu0 0.0
    %4431 = vmatprep.subr.mxu0 0.0
    %4432 = vmatpush1.msra.mxu0 0.0
    %4433 = vmatprep.subr.mxu0 0.0
    %4434 = vmatpush1.msra.mxu0 0.0
    %4435 = vmatprep.subr.mxu0 0.0
    %4436 = vmatpush1.msra.mxu0 0.0
    %4437 = vmatprep.subr.mxu0 0.0
    %4438 = vmatpush1.msra.mxu0 0.0
    %4439 = vmatprep.subr.mxu0 0.0
    %4440 = vmatpush1.msra.mxu0 0.0
    %4441 = vmatprep.subr.mxu0 0.0
    %4442 = vmatpush1.msra.mxu0 0.0
    %4443 = vmatprep.subr.mxu0 0.0
    %4444 = vmatpush1.msra.mxu0 0.0
    %4445 = vmatprep.subr.mxu0 0.0
    %4446 = vmatpush1.msra.mxu0 %v4304
    %4447 = vmatprep.subr.mxu0 0.0
    %4448 = vmatpush1.msra.mxu0 %v4303
    %4449 = vmatprep.subr.mxu0 0.0
    %4450 = vmatpush2.msra.mxu0 0.0
    %4451 = vmatprep.subr.mxu0 0.0
    %4452 = vmatpush2.msra.mxu0 0.0
    %4453 = vmatprep.subr.mxu0 0.0
    %4454 = vmatpush2.msra.mxu0 0.0
    %4455 = vmatprep.subr.mxu0 0.0
    %4456 = vmatpush2.msra.mxu0 0.0
    %4457 = vmatprep.subr.mxu0 0.0
    %4458 = vmatpush2.msra.mxu0 0.0
    %4459 = vmatprep.subr.mxu0 0.0
    %4460 = vmatpush2.msra.mxu0 0.0
    %4461 = vmatprep.subr.mxu0 0.0
    %4462 = vmatpush2.msra.mxu0 0.0
    %4463 = vmatprep.subr.mxu0 0.0
    %4464 = vmatpush2.msra.mxu0 0.0
    %4465 = vmatprep.subr.mxu0 0.0
    %4466 = vmatpush2.msra.mxu0 0.0
    %4467 = vmatprep.subr.mxu0 0.0
    %4468 = vmatpush2.msra.mxu0 0.0
    %4469 = vmatprep.subr.mxu0 0.0
    %4470 = vmatpush2.msra.mxu0 0.0
    %4471 = vmatprep.subr.mxu0 0.0
    %4472 = vmatpush2.msra.mxu0 0.0
    %4473 = vmatprep.subr.mxu0 0.0
    %4474 = vmatpush2.msra.mxu0 0.0
    %4475 = vmatprep.subr.mxu0 0.0
    %4476 = vmatpush2.msra.mxu0 0.0
    %4477 = vmatprep.subr.mxu0 0.0
    %4478 = vmatpush2.msra.mxu0 0.0
    %4479 = vmatprep.subr.mxu0 0.0
    %4480 = vmatpush2.msra.mxu0 0.0
    %4481 = vmatprep.mubr.f32.mxu0 0.0
    %4482 = vmatmul.mubr.f32.gmra.mxu0 %v4406
    %v4483 = vpop.f32.mrf.mxu0
    %v4484 = vadd.f32 %v4387, %v4483
    %v4485 = vpop.f32.mrf.mxu0
    %4486 = vmatprep.mubr.f32.mxu0 0.0
    %4487 = vmatmul.mubr.f32.gmra.mxu0 %v4409
    %v4488 = vpop.f32.mrf.mxu0
    %v4489 = vadd.f32 %v4392, %v4488
    %v4490 = vpop.f32.mrf.mxu0
    %4491 = vmatprep.mubr.f32.mxu0 0.0
    %4492 = vmatmul.mubr.f32.gmra.mxu0 %v4412
    %v4493 = vpop.f32.mrf.mxu0
    %v4494 = vadd.f32 %v4397, %v4493
    %v4495 = vpop.f32.mrf.mxu0
    %4496 = vmatprep.mubr.f32.mxu0 0.0
    %4497 = vmatmul.mubr.f32.gmra.mxu0 %v4415
    %v4498 = vpop.f32.mrf.mxu0
    %v4499 = vadd.f32 %v4402, %v4498
    %v4500 = vpop.f32.mrf.mxu0
    %4501 = vdwg.mxu0
    %s4502 = scalar_lea.vmem [#allocation42], 32
    %v4503 = vld [vmem:[%s4502] sm:$0xff]
    %v4504 = vld [vmem:[%s4502 + $0x8] sm:$0xff]
    %v4506 = vsel %vm3514, %v4285, 0
    %v4509 = vsel %vm3514, %v4290, 0
    %v4512 = vsel %vm3514, %v4295, 0
    %v4515 = vsel %vm3514, %v4300, 0
    %4517 = vmatprep.subr.mxu0 0.0
    %4518 = vmatpush1.msra.mxu0 0.0
    %4519 = vmatprep.subr.mxu0 0.0
    %4520 = vmatpush1.msra.mxu0 0.0
    %4521 = vmatprep.subr.mxu0 0.0
    %4522 = vmatpush1.msra.mxu0 0.0
    %4523 = vmatprep.subr.mxu0 0.0
    %4524 = vmatpush1.msra.mxu0 0.0
    %4525 = vmatprep.subr.mxu0 0.0
    %4526 = vmatpush1.msra.mxu0 0.0
    %4527 = vmatprep.subr.mxu0 0.0
    %4528 = vmatpush1.msra.mxu0 0.0
    %4529 = vmatprep.subr.mxu0 0.0
    %4530 = vmatpush1.msra.mxu0 0.0
    %4531 = vmatprep.subr.mxu0 0.0
    %4532 = vmatpush1.msra.mxu0 0.0
    %4533 = vmatprep.subr.mxu0 0.0
    %4534 = vmatpush1.msra.mxu0 0.0
    %4535 = vmatprep.subr.mxu0 0.0
    %4536 = vmatpush1.msra.mxu0 0.0
    %4537 = vmatprep.subr.mxu0 0.0
    %4538 = vmatpush1.msra.mxu0 0.0
    %4539 = vmatprep.subr.mxu0 0.0
    %4540 = vmatpush1.msra.mxu0 0.0
    %4541 = vmatprep.subr.mxu0 0.0
    %4542 = vmatpush1.msra.mxu0 0.0
    %4543 = vmatprep.subr.mxu0 0.0
    %4544 = vmatpush1.msra.mxu0 0.0
    %4545 = vmatprep.subr.mxu0 0.0
    %4546 = vmatpush1.msra.mxu0 %v4504
    %4547 = vmatprep.subr.mxu0 0.0
    %4548 = vmatpush1.msra.mxu0 %v4503
    %4549 = vmatprep.subr.mxu0 0.0
    %4550 = vmatpush2.msra.mxu0 0.0
    %4551 = vmatprep.subr.mxu0 0.0
    %4552 = vmatpush2.msra.mxu0 0.0
    %4553 = vmatprep.subr.mxu0 0.0
    %4554 = vmatpush2.msra.mxu0 0.0
    %4555 = vmatprep.subr.mxu0 0.0
    %4556 = vmatpush2.msra.mxu0 0.0
    %4557 = vmatprep.subr.mxu0 0.0
    %4558 = vmatpush2.msra.mxu0 0.0
    %4559 = vmatprep.subr.mxu0 0.0
    %4560 = vmatpush2.msra.mxu0 0.0
    %4561 = vmatprep.subr.mxu0 0.0
    %4562 = vmatpush2.msra.mxu0 0.0
    %4563 = vmatprep.subr.mxu0 0.0
    %4564 = vmatpush2.msra.mxu0 0.0
    %4565 = vmatprep.subr.mxu0 0.0
    %4566 = vmatpush2.msra.mxu0 0.0
    %4567 = vmatprep.subr.mxu0 0.0
    %4568 = vmatpush2.msra.mxu0 0.0
    %4569 = vmatprep.subr.mxu0 0.0
    %4570 = vmatpush2.msra.mxu0 0.0
    %4571 = vmatprep.subr.mxu0 0.0
    %4572 = vmatpush2.msra.mxu0 0.0
    %4573 = vmatprep.subr.mxu0 0.0
    %4574 = vmatpush2.msra.mxu0 0.0
    %4575 = vmatprep.subr.mxu0 0.0
    %4576 = vmatpush2.msra.mxu0 0.0
    %4577 = vmatprep.subr.mxu0 0.0
    %4578 = vmatpush2.msra.mxu0 0.0
    %4579 = vmatprep.subr.mxu0 0.0
    %4580 = vmatpush2.msra.mxu0 0.0
    %4581 = vmatprep.mubr.f32.mxu0 0.0
    %4582 = vmatmul.mubr.f32.gmra.mxu0 %v4506
    %v4583 = vpop.f32.mrf.mxu0
    %v4584 = vadd.f32 0.0, %v4583
    %v4585 = vpop.f32.mrf.mxu0
    %4586 = vmatprep.mubr.f32.mxu0 0.0
    %4587 = vmatmul.mubr.f32.gmra.mxu0 %v4509
    %v4588 = vpop.f32.mrf.mxu0
    %v4589 = vadd.f32 0.0, %v4588
    %v4590 = vpop.f32.mrf.mxu0
    %4591 = vmatprep.mubr.f32.mxu0 0.0
    %4592 = vmatmul.mubr.f32.gmra.mxu0 %v4512
    %v4593 = vpop.f32.mrf.mxu0
    %v4594 = vadd.f32 0.0, %v4593
    %v4595 = vpop.f32.mrf.mxu0
    %4596 = vmatprep.mubr.f32.mxu0 0.0
    %4597 = vmatmul.mubr.f32.gmra.mxu0 %v4515
    %v4598 = vpop.f32.mrf.mxu0
    %v4599 = vadd.f32 0.0, %v4598
    %v4600 = vpop.f32.mrf.mxu0
    %4601 = vdwg.mxu0
    %v4602 = vadd.f32 %v4484, %v4584
    %v4603 = vadd.f32 %v4489, %v4589
    %v4604 = vadd.f32 %v4494, %v4594
    %v4605 = vadd.f32 %v4499, %v4599
    %v4606 = vld [vmem:[#allocation43] sm:$0x1]
    %v4608 = vlaneseq
    %v4609 = vshrl.u32 %v4608, 7
    %v4610 = vsub.s32 0, %v4609
    %v4611 = vrot.slane %v4606, %v4610
    %v4613 = vadd.f32 %v4602, %v4611
    %v4614 = vadd.f32 %v4603, %v4611
    %v4615 = vadd.f32 %v4604, %v4611
    %v4616 = vadd.f32 %v4605, %v4611
    %v4617 = vld [vmem:[#allocation45] sm:$0x1]
    %v4618 = vld [vmem:[#allocation46] sm:$0x1]
    %v4619 = vsel %vm3514, %v4613, 0.0
    %v4620 = vsel %vm3514, %v4614, 0.0
    %v4621 = vadd.f32 %v4619, %v4620
    %v4622 = vsel %vm3514, %v4615, 0.0
    %v4623 = vadd.f32 %v4621, %v4622
    %v4624 = vsel %vm3514, %v4616, 0.0
    %v4625 = vadd.f32 %v4623, %v4624
    %v4626 = vrot.slane %v4625, 4
    %v4627 = vadd.f32 %v4625, %v4626
    %v4628 = vrot.slane %v4627, 2
    %v4629 = vadd.f32 %v4627, %v4628
    %v4630 = vrot.slane %v4629, 1
    %v4631 = vadd.f32 %v4629, %v4630
    %v4632 = vmul.f32 %v4631, %v1476
    %v4633 = vsub.f32 %v4613, %v4632
    %v4634 = vsub.f32 %v4614, %v4632
    %v4635 = vsub.f32 %v4615, %v4632
    %v4636 = vsub.f32 %v4616, %v4632
    %v4637 = vmul.f32 %v4633, %v4633
    %v4638 = vmul.f32 %v4634, %v4634
    %v4639 = vmul.f32 %v4635, %v4635
    %v4640 = vmul.f32 %v4636, %v4636
    %v4641 = vsel %vm3514, %v4637, 0.0
    %v4642 = vsel %vm3514, %v4638, 0.0
    %v4643 = vadd.f32 %v4641, %v4642
    %v4644 = vsel %vm3514, %v4639, 0.0
    %v4645 = vadd.f32 %v4643, %v4644
    %v4646 = vsel %vm3514, %v4640, 0.0
    %v4647 = vadd.f32 %v4645, %v4646
    %v4648 = vrot.slane %v4647, 4
    %v4649 = vadd.f32 %v4647, %v4648
    %v4650 = vrot.slane %v4649, 2
    %v4651 = vadd.f32 %v4649, %v4650
    %v4652 = vrot.slane %v4651, 1
    %v4653 = vadd.f32 %v4651, %v4652
    %v4654 = vmul.f32 %v4653, %v1476
    %v4655 = vadd.f32 %v4654, 1e-05
    %v4656 = vrsqrt.pop %v4655
    %v4657 = vmul.f32 %v4633, %v4656
    %v4658 = vmul.f32 %v4634, %v4656
    %v4659 = vmul.f32 %v4635, %v4656
    %v4660 = vmul.f32 %v4636, %v4656
    %v4662 = vlaneseq
    %v4663 = vshrl.u32 %v4662, 7
    %v4664 = vsub.s32 0, %v4663
    %v4665 = vrot.slane %v4617, %v4664
    %v4667 = vmul.f32 %v4657, %v4665
    %v4668 = vmul.f32 %v4658, %v4665
    %v4669 = vmul.f32 %v4659, %v4665
    %v4670 = vmul.f32 %v4660, %v4665
    %v4672 = vlaneseq
    %v4673 = vshrl.u32 %v4672, 7
    %v4674 = vsub.s32 0, %v4673
    %v4675 = vrot.slane %v4618, %v4674
    %v4677 = vadd.f32 %v4667, %v4675
    %v4678 = vadd.f32 %v4668, %v4675
    %v4679 = vadd.f32 %v4669, %v4675
    %v4680 = vadd.f32 %v4670, %v4675
    %v4681 = vmax.f32 %v4677, 0.0
    %v4682 = vmax.f32 %v4678, 0.0
    %v4683 = vmax.f32 %v4679, 0.0
    %v4684 = vmax.f32 %v4680, 0.0
    %v4685 = vadd.f32 %v4681, %v3577
    %v4686 = vadd.f32 %v4682, %v3578
    %v4687 = vadd.f32 %v4683, %v3579
    %v4688 = vadd.f32 %v4684, %v3580
    %v4689 = vld [vmem:[#allocation48] sm:$0xff]
    %v4690 = vld [vmem:[#allocation48 + $0x8] sm:$0xff]
    %v4691 = vld [vmem:[#allocation49] sm:$0x1]
    %v4693 = vlaneseq
    %v4694 = vshrl.u32 %v4693, 7
    %v4695 = vsub.s32 0, %v4694
    %v4696 = vrot.slane %v4691, %v4695
    %v4699 = vsel %vm3514, %v4685, 0
    %v4702 = vsel %vm3514, %v4686, 0
    %v4705 = vsel %vm3514, %v4687, 0
    %v4708 = vsel %vm3514, %v4688, 0
    %4710 = vmatprep.subr.mxu0 0.0
    %4711 = vmatpush1.msra.mxu0 0.0
    %4712 = vmatprep.subr.mxu0 0.0
    %4713 = vmatpush1.msra.mxu0 0.0
    %4714 = vmatprep.subr.mxu0 0.0
    %4715 = vmatpush1.msra.mxu0 0.0
    %4716 = vmatprep.subr.mxu0 0.0
    %4717 = vmatpush1.msra.mxu0 0.0
    %4718 = vmatprep.subr.mxu0 0.0
    %4719 = vmatpush1.msra.mxu0 0.0
    %4720 = vmatprep.subr.mxu0 0.0
    %4721 = vmatpush1.msra.mxu0 0.0
    %4722 = vmatprep.subr.mxu0 0.0
    %4723 = vmatpush1.msra.mxu0 0.0
    %4724 = vmatprep.subr.mxu0 0.0
    %4725 = vmatpush1.msra.mxu0 0.0
    %4726 = vmatprep.subr.mxu0 0.0
    %4727 = vmatpush1.msra.mxu0 0.0
    %4728 = vmatprep.subr.mxu0 0.0
    %4729 = vmatpush1.msra.mxu0 0.0
    %4730 = vmatprep.subr.mxu0 0.0
    %4731 = vmatpush1.msra.mxu0 0.0
    %4732 = vmatprep.subr.mxu0 0.0
    %4733 = vmatpush1.msra.mxu0 0.0
    %4734 = vmatprep.subr.mxu0 0.0
    %4735 = vmatpush1.msra.mxu0 0.0
    %4736 = vmatprep.subr.mxu0 0.0
    %4737 = vmatpush1.msra.mxu0 0.0
    %4738 = vmatprep.subr.mxu0 0.0
    %4739 = vmatpush1.msra.mxu0 %v4690
    %4740 = vmatprep.subr.mxu0 0.0
    %4741 = vmatpush1.msra.mxu0 %v4689
    %4742 = vmatprep.subr.mxu0 0.0
    %4743 = vmatpush2.msra.mxu0 0.0
    %4744 = vmatprep.subr.mxu0 0.0
    %4745 = vmatpush2.msra.mxu0 0.0
    %4746 = vmatprep.subr.mxu0 0.0
    %4747 = vmatpush2.msra.mxu0 0.0
    %4748 = vmatprep.subr.mxu0 0.0
    %4749 = vmatpush2.msra.mxu0 0.0
    %4750 = vmatprep.subr.mxu0 0.0
    %4751 = vmatpush2.msra.mxu0 0.0
    %4752 = vmatprep.subr.mxu0 0.0
    %4753 = vmatpush2.msra.mxu0 0.0
    %4754 = vmatprep.subr.mxu0 0.0
    %4755 = vmatpush2.msra.mxu0 0.0
    %4756 = vmatprep.subr.mxu0 0.0
    %4757 = vmatpush2.msra.mxu0 0.0
    %4758 = vmatprep.subr.mxu0 0.0
    %4759 = vmatpush2.msra.mxu0 0.0
    %4760 = vmatprep.subr.mxu0 0.0
    %4761 = vmatpush2.msra.mxu0 0.0
    %4762 = vmatprep.subr.mxu0 0.0
    %4763 = vmatpush2.msra.mxu0 0.0
    %4764 = vmatprep.subr.mxu0 0.0
    %4765 = vmatpush2.msra.mxu0 0.0
    %4766 = vmatprep.subr.mxu0 0.0
    %4767 = vmatpush2.msra.mxu0 0.0
    %4768 = vmatprep.subr.mxu0 0.0
    %4769 = vmatpush2.msra.mxu0 0.0
    %4770 = vmatprep.subr.mxu0 0.0
    %4771 = vmatpush2.msra.mxu0 0.0
    %4772 = vmatprep.subr.mxu0 0.0
    %4773 = vmatpush2.msra.mxu0 0.0
    %4774 = vmatprep.mubr.f32.mxu0 0.0
    %4775 = vmatmul.mubr.f32.gmra.mxu0 %v4699
    %v4776 = vpop.f32.mrf.mxu0
    %v4777 = vadd.f32 %v4696, %v4776
    %v4778 = vpop.f32.mrf.mxu0
    %4779 = vmatprep.mubr.f32.mxu0 0.0
    %4780 = vmatmul.mubr.f32.gmra.mxu0 %v4702
    %v4781 = vpop.f32.mrf.mxu0
    %v4782 = vadd.f32 %v4696, %v4781
    %v4783 = vpop.f32.mrf.mxu0
    %4784 = vmatprep.mubr.f32.mxu0 0.0
    %4785 = vmatmul.mubr.f32.gmra.mxu0 %v4705
    %v4786 = vpop.f32.mrf.mxu0
    %v4787 = vadd.f32 %v4696, %v4786
    %v4788 = vpop.f32.mrf.mxu0
    %4789 = vmatprep.mubr.f32.mxu0 0.0
    %4790 = vmatmul.mubr.f32.gmra.mxu0 %v4708
    %v4791 = vpop.f32.mrf.mxu0
    %v4792 = vadd.f32 %v4696, %v4791
    %v4793 = vpop.f32.mrf.mxu0
    %4794 = vdwg.mxu0
    %v4795 = vld [vmem:[#allocation51] sm:$0x1]
    %v4796 = vld [vmem:[#allocation52] sm:$0x1]
    %v4797 = vsel %vm933, %v4777, 0.0
    %v4798 = vsel %vm933, %v4782, 0.0
    %v4799 = vadd.f32 %v4797, %v4798
    %v4800 = vsel %vm933, %v4787, 0.0
    %v4801 = vadd.f32 %v4799, %v4800
    %v4802 = vsel %vm933, %v4792, 0.0
    %v4803 = vadd.f32 %v4801, %v4802
    %v4804 = vrot.slane %v4803, 4
    %v4805 = vadd.f32 %v4803, %v4804
    %v4806 = vrot.slane %v4805, 2
    %v4807 = vadd.f32 %v4805, %v4806
    %v4808 = vrot.slane %v4807, 1
    %v4809 = vadd.f32 %v4807, %v4808
    %v4810 = vmul.f32 %v4809, %v1476
    %v4811 = vsub.f32 %v4777, %v4810
    %v4812 = vsub.f32 %v4782, %v4810
    %v4813 = vsub.f32 %v4787, %v4810
    %v4814 = vsub.f32 %v4792, %v4810
    %v4815 = vmul.f32 %v4811, %v4811
    %v4816 = vmul.f32 %v4812, %v4812
    %v4817 = vmul.f32 %v4813, %v4813
    %v4818 = vmul.f32 %v4814, %v4814
    %v4819 = vsel %vm933, %v4815, 0.0
    %v4820 = vsel %vm933, %v4816, 0.0
    %v4821 = vadd.f32 %v4819, %v4820
    %v4822 = vsel %vm933, %v4817, 0.0
    %v4823 = vadd.f32 %v4821, %v4822
    %v4824 = vsel %vm933, %v4818, 0.0
    %v4825 = vadd.f32 %v4823, %v4824
    %v4826 = vrot.slane %v4825, 4
    %v4827 = vadd.f32 %v4825, %v4826
    %v4828 = vrot.slane %v4827, 2
    %v4829 = vadd.f32 %v4827, %v4828
    %v4830 = vrot.slane %v4829, 1
    %v4831 = vadd.f32 %v4829, %v4830
    %v4832 = vmul.f32 %v4831, %v1476
    %v4833 = vadd.f32 %v4832, 1e-05
    %v4834 = vrsqrt.pop %v4833
    %v4835 = vmul.f32 %v4811, %v4834
    %v4836 = vmul.f32 %v4812, %v4834
    %v4837 = vmul.f32 %v4813, %v4834
    %v4838 = vmul.f32 %v4814, %v4834
    %v4840 = vlaneseq
    %v4841 = vshrl.u32 %v4840, 7
    %v4842 = vsub.s32 0, %v4841
    %v4843 = vrot.slane %v4795, %v4842
    %v4845 = vmul.f32 %v4835, %v4843
    %v4846 = vmul.f32 %v4836, %v4843
    %v4847 = vmul.f32 %v4837, %v4843
    %v4848 = vmul.f32 %v4838, %v4843
    %v4850 = vlaneseq
    %v4851 = vshrl.u32 %v4850, 7
    %v4852 = vsub.s32 0, %v4851
    %v4853 = vrot.slane %v4796, %v4852
    %v4855 = vadd.f32 %v4845, %v4853
    %v4856 = vadd.f32 %v4846, %v4853
    %v4857 = vadd.f32 %v4847, %v4853
    %v4858 = vadd.f32 %v4848, %v4853
    %v4859 = vmax.f32 %v4855, 0.0
    %v4860 = vmax.f32 %v4856, 0.0
    %v4861 = vmax.f32 %v4857, 0.0
    %v4862 = vmax.f32 %v4858, 0.0
    %4863 = vmatprep.subr.mxu0 0.0
    %4864 = vmatpush1.msra.mxu0 0.0
    %4865 = vmatprep.subr.mxu0 0.0
    %4866 = vmatpush1.msra.mxu0 0.0
    %4867 = vmatprep.subr.mxu0 0.0
    %4868 = vmatpush1.msra.mxu0 0.0
    %4869 = vmatprep.subr.mxu0 0.0
    %4870 = vmatpush1.msra.mxu0 0.0
    %4871 = vmatprep.subr.mxu0 0.0
    %4872 = vmatpush1.msra.mxu0 0.0
    %4873 = vmatprep.subr.mxu0 0.0
    %4874 = vmatpush1.msra.mxu0 0.0
    %4875 = vmatprep.subr.mxu0 0.0
    %4876 = vmatpush1.msra.mxu0 0.0
    %4877 = vmatprep.subr.mxu0 0.0
    %4878 = vmatpush1.msra.mxu0 0.0
    %4879 = vmatprep.subr.mxu0 0.0
    %4880 = vmatpush1.msra.mxu0 0.0
    %4881 = vmatprep.subr.mxu0 0.0
    %4882 = vmatpush1.msra.mxu0 0.0
    %4883 = vmatprep.subr.mxu0 0.0
    %4884 = vmatpush1.msra.mxu0 0.0
    %4885 = vmatprep.subr.mxu0 0.0
    %4886 = vmatpush1.msra.mxu0 0.0
    %4887 = vmatprep.subr.mxu0 0.0
    %4888 = vmatpush1.msra.mxu0 %v4862
    %4889 = vmatprep.subr.mxu0 0.0
    %4890 = vmatpush1.msra.mxu0 %v4861
    %4891 = vmatprep.subr.mxu0 0.0
    %4892 = vmatpush1.msra.mxu0 %v4860
    %4893 = vmatprep.subr.mxu0 0.0
    %4894 = vmatpush1.msra.mxu0 %v4859
    %4895 = vmatprep.subr.mxu0 0.0
    %4896 = vmatpush2.msra.mxu0 0.0
    %4897 = vmatprep.subr.mxu0 0.0
    %4898 = vmatpush2.msra.mxu0 0.0
    %4899 = vmatprep.subr.mxu0 0.0
    %4900 = vmatpush2.msra.mxu0 0.0
    %4901 = vmatprep.subr.mxu0 0.0
    %4902 = vmatpush2.msra.mxu0 0.0
    %4903 = vmatprep.subr.mxu0 0.0
    %4904 = vmatpush2.msra.mxu0 0.0
    %4905 = vmatprep.subr.mxu0 0.0
    %4906 = vmatpush2.msra.mxu0 0.0
    %4907 = vmatprep.subr.mxu0 0.0
    %4908 = vmatpush2.msra.mxu0 0.0
    %4909 = vmatprep.subr.mxu0 0.0
    %4910 = vmatpush2.msra.mxu0 0.0
    %4911 = vmatprep.subr.mxu0 0.0
    %4912 = vmatpush2.msra.mxu0 0.0
    %4913 = vmatprep.subr.mxu0 0.0
    %4914 = vmatpush2.msra.mxu0 0.0
    %4915 = vmatprep.subr.mxu0 0.0
    %4916 = vmatpush2.msra.mxu0 0.0
    %4917 = vmatprep.subr.mxu0 0.0
    %4918 = vmatpush2.msra.mxu0 0.0
    %4919 = vmatprep.subr.mxu0 0.0
    %4920 = vmatpush2.msra.mxu0 0.0
    %4921 = vmatprep.subr.mxu0 0.0
    %4922 = vmatpush2.msra.mxu0 0.0
    %4923 = vmatprep.subr.mxu0 0.0
    %4924 = vmatpush2.msra.mxu0 0.0
    %4925 = vmatprep.subr.mxu0 0.0
    %4926 = vmatpush2.msra.mxu0 0.0
    %4927 = vmatprep.mubr.f32.mxu0 0.0
    %4928 = vmatmul.mubr.f32.gmra.mxu0 %v935
    %v4929 = vpop.f32.mrf.mxu0
    %v4930 = vadd.f32 0.0, %v4929
    %v4931 = vpop.f32.mrf.mxu0
    %4932 = vmatprep.mubr.f32.mxu0 0.0
    %4933 = vmatmul.mubr.f32.gmra.mxu0 %v938
    %v4934 = vpop.f32.mrf.mxu0
    %v4935 = vadd.f32 0.0, %v4934
    %v4936 = vpop.f32.mrf.mxu0
    %4937 = vmatprep.mubr.f32.mxu0 0.0
    %4938 = vmatmul.mubr.f32.gmra.mxu0 %v941
    %v4939 = vpop.f32.mrf.mxu0
    %v4940 = vadd.f32 0.0, %v4939
    %v4941 = vpop.f32.mrf.mxu0
    %4942 = vmatprep.mubr.f32.mxu0 0.0
    %4943 = vmatmul.mubr.f32.gmra.mxu0 %v944
    %v4944 = vpop.f32.mrf.mxu0
    %v4945 = vadd.f32 0.0, %v4944
    %v4946 = vpop.f32.mrf.mxu0
    %4947 = vdwg.mxu0
    %4948 = vmatprep.subr.mxu0 0.0
    %4949 = vmatpush1.msra.mxu0 0.0
    %4950 = vmatprep.subr.mxu0 0.0
    %4951 = vmatpush1.msra.mxu0 0.0
    %4952 = vmatprep.subr.mxu0 0.0
    %4953 = vmatpush1.msra.mxu0 0.0
    %4954 = vmatprep.subr.mxu0 0.0
    %4955 = vmatpush1.msra.mxu0 0.0
    %4956 = vmatprep.subr.mxu0 0.0
    %4957 = vmatpush1.msra.mxu0 0.0
    %4958 = vmatprep.subr.mxu0 0.0
    %4959 = vmatpush1.msra.mxu0 0.0
    %4960 = vmatprep.subr.mxu0 0.0
    %4961 = vmatpush1.msra.mxu0 0.0
    %4962 = vmatprep.subr.mxu0 0.0
    %4963 = vmatpush1.msra.mxu0 0.0
    %4964 = vmatprep.subr.mxu0 0.0
    %4965 = vmatpush1.msra.mxu0 0.0
    %4966 = vmatprep.subr.mxu0 0.0
    %4967 = vmatpush1.msra.mxu0 0.0
    %4968 = vmatprep.subr.mxu0 0.0
    %4969 = vmatpush1.msra.mxu0 0.0
    %4970 = vmatprep.subr.mxu0 0.0
    %4971 = vmatpush1.msra.mxu0 0.0
    %4972 = vmatprep.subr.mxu0 0.0
    %4973 = vmatpush1.msra.mxu0 %v4862
    %4974 = vmatprep.subr.mxu0 0.0
    %4975 = vmatpush1.msra.mxu0 %v4861
    %4976 = vmatprep.subr.mxu0 0.0
    %4977 = vmatpush1.msra.mxu0 %v4860
    %4978 = vmatprep.subr.mxu0 0.0
    %4979 = vmatpush1.msra.mxu0 %v4859
    %4980 = vmatprep.subr.mxu0 0.0
    %4981 = vmatpush2.msra.mxu0 0.0
    %4982 = vmatprep.subr.mxu0 0.0
    %4983 = vmatpush2.msra.mxu0 0.0
    %4984 = vmatprep.subr.mxu0 0.0
    %4985 = vmatpush2.msra.mxu0 0.0
    %4986 = vmatprep.subr.mxu0 0.0
    %4987 = vmatpush2.msra.mxu0 0.0
    %4988 = vmatprep.subr.mxu0 0.0
    %4989 = vmatpush2.msra.mxu0 0.0
    %4990 = vmatprep.subr.mxu0 0.0
    %4991 = vmatpush2.msra.mxu0 0.0
    %4992 = vmatprep.subr.mxu0 0.0
    %4993 = vmatpush2.msra.mxu0 0.0
    %4994 = vmatprep.subr.mxu0 0.0
    %4995 = vmatpush2.msra.mxu0 0.0
    %4996 = vmatprep.subr.mxu0 0.0
    %4997 = vmatpush2.msra.mxu0 0.0
    %4998 = vmatprep.subr.mxu0 0.0
    %4999 = vmatpush2.msra.mxu0 0.0
    %5000 = vmatprep.subr.mxu0 0.0
    %5001 = vmatpush2.msra.mxu0 0.0
    %5002 = vmatprep.subr.mxu0 0.0
    %5003 = vmatpush2.msra.mxu0 0.0
    %5004 = vmatprep.subr.mxu0 0.0
    %5005 = vmatpush2.msra.mxu0 0.0
    %5006 = vmatprep.subr.mxu0 0.0
    %5007 = vmatpush2.msra.mxu0 0.0
    %5008 = vmatprep.subr.mxu0 0.0
    %5009 = vmatpush2.msra.mxu0 0.0
    %5010 = vmatprep.subr.mxu0 0.0
    %5011 = vmatpush2.msra.mxu0 0.0
    %5012 = vmatprep.mubr.f32.mxu0 0.0
    %5013 = vmatmul.mubr.f32.gmra.mxu0 %v1032
    %v5014 = vpop.f32.mrf.mxu0
    %v5015 = vadd.f32 0.0, %v5014
    %v5016 = vpop.f32.mrf.mxu0
    %5017 = vmatprep.mubr.f32.mxu0 0.0
    %5018 = vmatmul.mubr.f32.gmra.mxu0 %v1035
    %v5019 = vpop.f32.mrf.mxu0
    %v5020 = vadd.f32 0.0, %v5019
    %v5021 = vpop.f32.mrf.mxu0
    %5022 = vmatprep.mubr.f32.mxu0 0.0
    %5023 = vmatmul.mubr.f32.gmra.mxu0 %v1038
    %v5024 = vpop.f32.mrf.mxu0
    %v5025 = vadd.f32 0.0, %v5024
    %v5026 = vpop.f32.mrf.mxu0
    %5027 = vmatprep.mubr.f32.mxu0 0.0
    %5028 = vmatmul.mubr.f32.gmra.mxu0 %v1041
    %v5029 = vpop.f32.mrf.mxu0
    %v5030 = vadd.f32 0.0, %v5029
    %v5031 = vpop.f32.mrf.mxu0
    %5032 = vdwg.mxu0
    %v5033 = vld [vmem:[#allocation54] sm:$0xff]
    %v5034 = vld [vmem:[#allocation54 + $0x8] sm:$0xff]
    %v5035 = vld [vmem:[#allocation54 + $0x10] sm:$0xff]
    %v5036 = vld [vmem:[#allocation54 + $0x18] sm:$0xff]
    %s5037 = scalar_lea.vmem [#allocation54], 32
    %v5038 = vld [vmem:[%s5037] sm:$0xff]
    %v5039 = vld [vmem:[%s5037 + $0x8] sm:$0xff]
    %v5040 = vld [vmem:[%s5037 + $0x10] sm:$0xff]
    %v5041 = vld [vmem:[%s5037 + $0x18] sm:$0xff]
    %v5043 = vsel %vm933, %v4859, 0
    %v5046 = vsel %vm933, %v4860, 0
    %v5049 = vsel %vm933, %v4861, 0
    %v5052 = vsel %vm933, %v4862, 0
    %5054 = vmatprep.subr.mxu0 0.0
    %5055 = vmatpush1.msra.mxu0 0.0
    %5056 = vmatprep.subr.mxu0 0.0
    %5057 = vmatpush1.msra.mxu0 0.0
    %5058 = vmatprep.subr.mxu0 0.0
    %5059 = vmatpush1.msra.mxu0 0.0
    %5060 = vmatprep.subr.mxu0 0.0
    %5061 = vmatpush1.msra.mxu0 0.0
    %5062 = vmatprep.subr.mxu0 0.0
    %5063 = vmatpush1.msra.mxu0 0.0
    %5064 = vmatprep.subr.mxu0 0.0
    %5065 = vmatpush1.msra.mxu0 0.0
    %5066 = vmatprep.subr.mxu0 0.0
    %5067 = vmatpush1.msra.mxu0 0.0
    %5068 = vmatprep.subr.mxu0 0.0
    %5069 = vmatpush1.msra.mxu0 0.0
    %5070 = vmatprep.subr.mxu0 0.0
    %5071 = vmatpush1.msra.mxu0 0.0
    %5072 = vmatprep.subr.mxu0 0.0
    %5073 = vmatpush1.msra.mxu0 0.0
    %5074 = vmatprep.subr.mxu0 0.0
    %5075 = vmatpush1.msra.mxu0 0.0
    %5076 = vmatprep.subr.mxu0 0.0
    %5077 = vmatpush1.msra.mxu0 0.0
    %5078 = vmatprep.subr.mxu0 0.0
    %5079 = vmatpush1.msra.mxu0 %v5041
    %5080 = vmatprep.subr.mxu0 0.0
    %5081 = vmatpush1.msra.mxu0 %v5040
    %5082 = vmatprep.subr.mxu0 0.0
    %5083 = vmatpush1.msra.mxu0 %v5039
    %5084 = vmatprep.subr.mxu0 0.0
    %5085 = vmatpush1.msra.mxu0 %v5038
    %5086 = vmatprep.subr.mxu0 0.0
    %5087 = vmatpush2.msra.mxu0 0.0
    %5088 = vmatprep.subr.mxu0 0.0
    %5089 = vmatpush2.msra.mxu0 0.0
    %5090 = vmatprep.subr.mxu0 0.0
    %5091 = vmatpush2.msra.mxu0 0.0
    %5092 = vmatprep.subr.mxu0 0.0
    %5093 = vmatpush2.msra.mxu0 0.0
    %5094 = vmatprep.subr.mxu0 0.0
    %5095 = vmatpush2.msra.mxu0 0.0
    %5096 = vmatprep.subr.mxu0 0.0
    %5097 = vmatpush2.msra.mxu0 0.0
    %5098 = vmatprep.subr.mxu0 0.0
    %5099 = vmatpush2.msra.mxu0 0.0
    %5100 = vmatprep.subr.mxu0 0.0
    %5101 = vmatpush2.msra.mxu0 0.0
    %5102 = vmatprep.subr.mxu0 0.0
    %5103 = vmatpush2.msra.mxu0 0.0
    %5104 = vmatprep.subr.mxu0 0.0
    %5105 = vmatpush2.msra.mxu0 0.0
    %5106 = vmatprep.subr.mxu0 0.0
    %5107 = vmatpush2.msra.mxu0 0.0
    %5108 = vmatprep.subr.mxu0 0.0
    %5109 = vmatpush2.msra.mxu0 0.0
    %5110 = vmatprep.subr.mxu0 0.0
    %5111 = vmatpush2.msra.mxu0 0.0
    %5112 = vmatprep.subr.mxu0 0.0
    %5113 = vmatpush2.msra.mxu0 0.0
    %5114 = vmatprep.subr.mxu0 0.0
    %5115 = vmatpush2.msra.mxu0 0.0
    %5116 = vmatprep.subr.mxu0 0.0
    %5117 = vmatpush2.msra.mxu0 0.0
    %5118 = vmatprep.mubr.f32.mxu0 0.0
    %5119 = vmatmul.mubr.f32.gmra.mxu0 %v5043
    %v5120 = vpop.f32.mrf.mxu0
    %v5121 = vadd.f32 0.0, %v5120
    %v5122 = vpop.f32.mrf.mxu0
    %5123 = vmatprep.mubr.f32.mxu0 0.0
    %5124 = vmatmul.mubr.f32.gmra.mxu0 %v5046
    %v5125 = vpop.f32.mrf.mxu0
    %v5126 = vadd.f32 0.0, %v5125
    %v5127 = vpop.f32.mrf.mxu0
    %5128 = vmatprep.mubr.f32.mxu0 0.0
    %5129 = vmatmul.mubr.f32.gmra.mxu0 %v5049
    %v5130 = vpop.f32.mrf.mxu0
    %v5131 = vadd.f32 0.0, %v5130
    %v5132 = vpop.f32.mrf.mxu0
    %5133 = vmatprep.mubr.f32.mxu0 0.0
    %5134 = vmatmul.mubr.f32.gmra.mxu0 %v5052
    %v5135 = vpop.f32.mrf.mxu0
    %v5136 = vadd.f32 0.0, %v5135
    %v5137 = vpop.f32.mrf.mxu0
    %5138 = vdwg.mxu0
    %v5140 = vsel %vm933, %v4930, 0
    %v5143 = vsel %vm933, %v4935, 0
    %v5146 = vsel %vm933, %v4940, 0
    %v5149 = vsel %vm933, %v4945, 0
    %5151 = vmatprep.subr.mxu0 0.0
    %5152 = vmatpush1.msra.mxu0 0.0
    %5153 = vmatprep.subr.mxu0 0.0
    %5154 = vmatpush1.msra.mxu0 0.0
    %5155 = vmatprep.subr.mxu0 0.0
    %5156 = vmatpush1.msra.mxu0 0.0
    %5157 = vmatprep.subr.mxu0 0.0
    %5158 = vmatpush1.msra.mxu0 0.0
    %5159 = vmatprep.subr.mxu0 0.0
    %5160 = vmatpush1.msra.mxu0 0.0
    %5161 = vmatprep.subr.mxu0 0.0
    %5162 = vmatpush1.msra.mxu0 0.0
    %5163 = vmatprep.subr.mxu0 0.0
    %5164 = vmatpush1.msra.mxu0 0.0
    %5165 = vmatprep.subr.mxu0 0.0
    %5166 = vmatpush1.msra.mxu0 0.0
    %5167 = vmatprep.subr.mxu0 0.0
    %5168 = vmatpush1.msra.mxu0 0.0
    %5169 = vmatprep.subr.mxu0 0.0
    %5170 = vmatpush1.msra.mxu0 0.0
    %5171 = vmatprep.subr.mxu0 0.0
    %5172 = vmatpush1.msra.mxu0 0.0
    %5173 = vmatprep.subr.mxu0 0.0
    %5174 = vmatpush1.msra.mxu0 0.0
    %5175 = vmatprep.subr.mxu0 0.0
    %5176 = vmatpush1.msra.mxu0 %v5036
    %5177 = vmatprep.subr.mxu0 0.0
    %5178 = vmatpush1.msra.mxu0 %v5035
    %5179 = vmatprep.subr.mxu0 0.0
    %5180 = vmatpush1.msra.mxu0 %v5034
    %5181 = vmatprep.subr.mxu0 0.0
    %5182 = vmatpush1.msra.mxu0 %v5033
    %5183 = vmatprep.subr.mxu0 0.0
    %5184 = vmatpush2.msra.mxu0 0.0
    %5185 = vmatprep.subr.mxu0 0.0
    %5186 = vmatpush2.msra.mxu0 0.0
    %5187 = vmatprep.subr.mxu0 0.0
    %5188 = vmatpush2.msra.mxu0 0.0
    %5189 = vmatprep.subr.mxu0 0.0
    %5190 = vmatpush2.msra.mxu0 0.0
    %5191 = vmatprep.subr.mxu0 0.0
    %5192 = vmatpush2.msra.mxu0 0.0
    %5193 = vmatprep.subr.mxu0 0.0
    %5194 = vmatpush2.msra.mxu0 0.0
    %5195 = vmatprep.subr.mxu0 0.0
    %5196 = vmatpush2.msra.mxu0 0.0
    %5197 = vmatprep.subr.mxu0 0.0
    %5198 = vmatpush2.msra.mxu0 0.0
    %5199 = vmatprep.subr.mxu0 0.0
    %5200 = vmatpush2.msra.mxu0 0.0
    %5201 = vmatprep.subr.mxu0 0.0
    %5202 = vmatpush2.msra.mxu0 0.0
    %5203 = vmatprep.subr.mxu0 0.0
    %5204 = vmatpush2.msra.mxu0 0.0
    %5205 = vmatprep.subr.mxu0 0.0
    %5206 = vmatpush2.msra.mxu0 0.0
    %5207 = vmatprep.subr.mxu0 0.0
    %5208 = vmatpush2.msra.mxu0 0.0
    %5209 = vmatprep.subr.mxu0 0.0
    %5210 = vmatpush2.msra.mxu0 0.0
    %5211 = vmatprep.subr.mxu0 0.0
    %5212 = vmatpush2.msra.mxu0 0.0
    %5213 = vmatprep.subr.mxu0 0.0
    %5214 = vmatpush2.msra.mxu0 0.0
    %5215 = vmatprep.mubr.f32.mxu0 0.0
    %5216 = vmatmul.mubr.f32.gmra.mxu0 %v5140
    %v5217 = vpop.f32.mrf.mxu0
    %v5218 = vadd.f32 %v5121, %v5217
    %v5219 = vpop.f32.mrf.mxu0
    %5220 = vmatprep.mubr.f32.mxu0 0.0
    %5221 = vmatmul.mubr.f32.gmra.mxu0 %v5143
    %v5222 = vpop.f32.mrf.mxu0
    %v5223 = vadd.f32 %v5126, %v5222
    %v5224 = vpop.f32.mrf.mxu0
    %5225 = vmatprep.mubr.f32.mxu0 0.0
    %5226 = vmatmul.mubr.f32.gmra.mxu0 %v5146
    %v5227 = vpop.f32.mrf.mxu0
    %v5228 = vadd.f32 %v5131, %v5227
    %v5229 = vpop.f32.mrf.mxu0
    %5230 = vmatprep.mubr.f32.mxu0 0.0
    %5231 = vmatmul.mubr.f32.gmra.mxu0 %v5149
    %v5232 = vpop.f32.mrf.mxu0
    %v5233 = vadd.f32 %v5136, %v5232
    %v5234 = vpop.f32.mrf.mxu0
    %5235 = vdwg.mxu0
    %s5236 = scalar_lea.vmem [#allocation54], 64
    %v5237 = vld [vmem:[%s5236] sm:$0xff]
    %v5238 = vld [vmem:[%s5236 + $0x8] sm:$0xff]
    %v5239 = vld [vmem:[%s5236 + $0x10] sm:$0xff]
    %v5240 = vld [vmem:[%s5236 + $0x18] sm:$0xff]
    %v5242 = vsel %vm933, %v5015, 0
    %v5245 = vsel %vm933, %v5020, 0
    %v5248 = vsel %vm933, %v5025, 0
    %v5251 = vsel %vm933, %v5030, 0
    %5253 = vmatprep.subr.mxu0 0.0
    %5254 = vmatpush1.msra.mxu0 0.0
    %5255 = vmatprep.subr.mxu0 0.0
    %5256 = vmatpush1.msra.mxu0 0.0
    %5257 = vmatprep.subr.mxu0 0.0
    %5258 = vmatpush1.msra.mxu0 0.0
    %5259 = vmatprep.subr.mxu0 0.0
    %5260 = vmatpush1.msra.mxu0 0.0
    %5261 = vmatprep.subr.mxu0 0.0
    %5262 = vmatpush1.msra.mxu0 0.0
    %5263 = vmatprep.subr.mxu0 0.0
    %5264 = vmatpush1.msra.mxu0 0.0
    %5265 = vmatprep.subr.mxu0 0.0
    %5266 = vmatpush1.msra.mxu0 0.0
    %5267 = vmatprep.subr.mxu0 0.0
    %5268 = vmatpush1.msra.mxu0 0.0
    %5269 = vmatprep.subr.mxu0 0.0
    %5270 = vmatpush1.msra.mxu0 0.0
    %5271 = vmatprep.subr.mxu0 0.0
    %5272 = vmatpush1.msra.mxu0 0.0
    %5273 = vmatprep.subr.mxu0 0.0
    %5274 = vmatpush1.msra.mxu0 0.0
    %5275 = vmatprep.subr.mxu0 0.0
    %5276 = vmatpush1.msra.mxu0 0.0
    %5277 = vmatprep.subr.mxu0 0.0
    %5278 = vmatpush1.msra.mxu0 %v5240
    %5279 = vmatprep.subr.mxu0 0.0
    %5280 = vmatpush1.msra.mxu0 %v5239
    %5281 = vmatprep.subr.mxu0 0.0
    %5282 = vmatpush1.msra.mxu0 %v5238
    %5283 = vmatprep.subr.mxu0 0.0
    %5284 = vmatpush1.msra.mxu0 %v5237
    %5285 = vmatprep.subr.mxu0 0.0
    %5286 = vmatpush2.msra.mxu0 0.0
    %5287 = vmatprep.subr.mxu0 0.0
    %5288 = vmatpush2.msra.mxu0 0.0
    %5289 = vmatprep.subr.mxu0 0.0
    %5290 = vmatpush2.msra.mxu0 0.0
    %5291 = vmatprep.subr.mxu0 0.0
    %5292 = vmatpush2.msra.mxu0 0.0
    %5293 = vmatprep.subr.mxu0 0.0
    %5294 = vmatpush2.msra.mxu0 0.0
    %5295 = vmatprep.subr.mxu0 0.0
    %5296 = vmatpush2.msra.mxu0 0.0
    %5297 = vmatprep.subr.mxu0 0.0
    %5298 = vmatpush2.msra.mxu0 0.0
    %5299 = vmatprep.subr.mxu0 0.0
    %5300 = vmatpush2.msra.mxu0 0.0
    %5301 = vmatprep.subr.mxu0 0.0
    %5302 = vmatpush2.msra.mxu0 0.0
    %5303 = vmatprep.subr.mxu0 0.0
    %5304 = vmatpush2.msra.mxu0 0.0
    %5305 = vmatprep.subr.mxu0 0.0
    %5306 = vmatpush2.msra.mxu0 0.0
    %5307 = vmatprep.subr.mxu0 0.0
    %5308 = vmatpush2.msra.mxu0 0.0
    %5309 = vmatprep.subr.mxu0 0.0
    %5310 = vmatpush2.msra.mxu0 0.0
    %5311 = vmatprep.subr.mxu0 0.0
    %5312 = vmatpush2.msra.mxu0 0.0
    %5313 = vmatprep.subr.mxu0 0.0
    %5314 = vmatpush2.msra.mxu0 0.0
    %5315 = vmatprep.subr.mxu0 0.0
    %5316 = vmatpush2.msra.mxu0 0.0
    %5317 = vmatprep.mubr.f32.mxu0 0.0
    %5318 = vmatmul.mubr.f32.gmra.mxu0 %v5242
    %v5319 = vpop.f32.mrf.mxu0
    %v5320 = vadd.f32 0.0, %v5319
    %v5321 = vpop.f32.mrf.mxu0
    %5322 = vmatprep.mubr.f32.mxu0 0.0
    %5323 = vmatmul.mubr.f32.gmra.mxu0 %v5245
    %v5324 = vpop.f32.mrf.mxu0
    %v5325 = vadd.f32 0.0, %v5324
    %v5326 = vpop.f32.mrf.mxu0
    %5327 = vmatprep.mubr.f32.mxu0 0.0
    %5328 = vmatmul.mubr.f32.gmra.mxu0 %v5248
    %v5329 = vpop.f32.mrf.mxu0
    %v5330 = vadd.f32 0.0, %v5329
    %v5331 = vpop.f32.mrf.mxu0
    %5332 = vmatprep.mubr.f32.mxu0 0.0
    %5333 = vmatmul.mubr.f32.gmra.mxu0 %v5251
    %v5334 = vpop.f32.mrf.mxu0
    %v5335 = vadd.f32 0.0, %v5334
    %v5336 = vpop.f32.mrf.mxu0
    %5337 = vdwg.mxu0
    %v5338 = vadd.f32 %v5218, %v5320
    %v5339 = vadd.f32 %v5223, %v5325
    %v5340 = vadd.f32 %v5228, %v5330
    %v5341 = vadd.f32 %v5233, %v5335
    %v5342 = vld [vmem:[#allocation55] sm:$0x1]
    %v5344 = vlaneseq
    %v5345 = vshrl.u32 %v5344, 7
    %v5346 = vsub.s32 0, %v5345
    %v5347 = vrot.slane %v5342, %v5346
    %v5349 = vadd.f32 %v5338, %v5347
    %v5350 = vadd.f32 %v5339, %v5347
    %v5351 = vadd.f32 %v5340, %v5347
    %v5352 = vadd.f32 %v5341, %v5347
    %v5353 = vld [vmem:[#allocation57] sm:$0x1]
    %v5354 = vld [vmem:[#allocation58] sm:$0x1]
    %v5355 = vsel %vm933, %v5349, 0.0
    %v5356 = vsel %vm933, %v5350, 0.0
    %v5357 = vadd.f32 %v5355, %v5356
    %v5358 = vsel %vm933, %v5351, 0.0
    %v5359 = vadd.f32 %v5357, %v5358
    %v5360 = vsel %vm933, %v5352, 0.0
    %v5361 = vadd.f32 %v5359, %v5360
    %v5362 = vrot.slane %v5361, 4
    %v5363 = vadd.f32 %v5361, %v5362
    %v5364 = vrot.slane %v5363, 2
    %v5365 = vadd.f32 %v5363, %v5364
    %v5366 = vrot.slane %v5365, 1
    %v5367 = vadd.f32 %v5365, %v5366
    %v5368 = vmul.f32 %v5367, %v1476
    %v5369 = vsub.f32 %v5349, %v5368
    %v5370 = vsub.f32 %v5350, %v5368
    %v5371 = vsub.f32 %v5351, %v5368
    %v5372 = vsub.f32 %v5352, %v5368
    %v5373 = vmul.f32 %v5369, %v5369
    %v5374 = vmul.f32 %v5370, %v5370
    %v5375 = vmul.f32 %v5371, %v5371
    %v5376 = vmul.f32 %v5372, %v5372
    %v5377 = vsel %vm933, %v5373, 0.0
    %v5378 = vsel %vm933, %v5374, 0.0
    %v5379 = vadd.f32 %v5377, %v5378
    %v5380 = vsel %vm933, %v5375, 0.0
    %v5381 = vadd.f32 %v5379, %v5380
    %v5382 = vsel %vm933, %v5376, 0.0
    %v5383 = vadd.f32 %v5381, %v5382
    %v5384 = vrot.slane %v5383, 4
    %v5385 = vadd.f32 %v5383, %v5384
    %v5386 = vrot.slane %v5385, 2
    %v5387 = vadd.f32 %v5385, %v5386
    %v5388 = vrot.slane %v5387, 1
    %v5389 = vadd.f32 %v5387, %v5388
    %v5390 = vmul.f32 %v5389, %v1476
    %v5391 = vadd.f32 %v5390, 1e-05
    %v5392 = vrsqrt.pop %v5391
    %v5393 = vmul.f32 %v5369, %v5392
    %v5394 = vmul.f32 %v5370, %v5392
    %v5395 = vmul.f32 %v5371, %v5392
    %v5396 = vmul.f32 %v5372, %v5392
    %v5398 = vlaneseq
    %v5399 = vshrl.u32 %v5398, 7
    %v5400 = vsub.s32 0, %v5399
    %v5401 = vrot.slane %v5353, %v5400
    %v5403 = vmul.f32 %v5393, %v5401
    %v5404 = vmul.f32 %v5394, %v5401
    %v5405 = vmul.f32 %v5395, %v5401
    %v5406 = vmul.f32 %v5396, %v5401
    %v5408 = vlaneseq
    %v5409 = vshrl.u32 %v5408, 7
    %v5410 = vsub.s32 0, %v5409
    %v5411 = vrot.slane %v5354, %v5410
    %v5413 = vadd.f32 %v5403, %v5411
    %v5414 = vadd.f32 %v5404, %v5411
    %v5415 = vadd.f32 %v5405, %v5411
    %v5416 = vadd.f32 %v5406, %v5411
    %v5417 = vmax.f32 %v5413, 0.0
    %v5418 = vmax.f32 %v5414, 0.0
    %v5419 = vmax.f32 %v5415, 0.0
    %v5420 = vmax.f32 %v5416, 0.0
    %5421 = vmatprep.subr.mxu0 0.0
    %5422 = vmatpush1.msra.mxu0 0.0
    %5423 = vmatprep.subr.mxu0 0.0
    %5424 = vmatpush1.msra.mxu0 0.0
    %5425 = vmatprep.subr.mxu0 0.0
    %5426 = vmatpush1.msra.mxu0 0.0
    %5427 = vmatprep.subr.mxu0 0.0
    %5428 = vmatpush1.msra.mxu0 0.0
    %5429 = vmatprep.subr.mxu0 0.0
    %5430 = vmatpush1.msra.mxu0 0.0
    %5431 = vmatprep.subr.mxu0 0.0
    %5432 = vmatpush1.msra.mxu0 0.0
    %5433 = vmatprep.subr.mxu0 0.0
    %5434 = vmatpush1.msra.mxu0 0.0
    %5435 = vmatprep.subr.mxu0 0.0
    %5436 = vmatpush1.msra.mxu0 0.0
    %5437 = vmatprep.subr.mxu0 0.0
    %5438 = vmatpush1.msra.mxu0 0.0
    %5439 = vmatprep.subr.mxu0 0.0
    %5440 = vmatpush1.msra.mxu0 0.0
    %5441 = vmatprep.subr.mxu0 0.0
    %5442 = vmatpush1.msra.mxu0 0.0
    %5443 = vmatprep.subr.mxu0 0.0
    %5444 = vmatpush1.msra.mxu0 0.0
    %5445 = vmatprep.subr.mxu0 0.0
    %5446 = vmatpush1.msra.mxu0 %v5420
    %5447 = vmatprep.subr.mxu0 0.0
    %5448 = vmatpush1.msra.mxu0 %v5419
    %5449 = vmatprep.subr.mxu0 0.0
    %5450 = vmatpush1.msra.mxu0 %v5418
    %5451 = vmatprep.subr.mxu0 0.0
    %5452 = vmatpush1.msra.mxu0 %v5417
    %5453 = vmatprep.subr.mxu0 0.0
    %5454 = vmatpush2.msra.mxu0 0.0
    %5455 = vmatprep.subr.mxu0 0.0
    %5456 = vmatpush2.msra.mxu0 0.0
    %5457 = vmatprep.subr.mxu0 0.0
    %5458 = vmatpush2.msra.mxu0 0.0
    %5459 = vmatprep.subr.mxu0 0.0
    %5460 = vmatpush2.msra.mxu0 0.0
    %5461 = vmatprep.subr.mxu0 0.0
    %5462 = vmatpush2.msra.mxu0 0.0
    %5463 = vmatprep.subr.mxu0 0.0
    %5464 = vmatpush2.msra.mxu0 0.0
    %5465 = vmatprep.subr.mxu0 0.0
    %5466 = vmatpush2.msra.mxu0 0.0
    %5467 = vmatprep.subr.mxu0 0.0
    %5468 = vmatpush2.msra.mxu0 0.0
    %5469 = vmatprep.subr.mxu0 0.0
    %5470 = vmatpush2.msra.mxu0 0.0
    %5471 = vmatprep.subr.mxu0 0.0
    %5472 = vmatpush2.msra.mxu0 0.0
    %5473 = vmatprep.subr.mxu0 0.0
    %5474 = vmatpush2.msra.mxu0 0.0
    %5475 = vmatprep.subr.mxu0 0.0
    %5476 = vmatpush2.msra.mxu0 0.0
    %5477 = vmatprep.subr.mxu0 0.0
    %5478 = vmatpush2.msra.mxu0 0.0
    %5479 = vmatprep.subr.mxu0 0.0
    %5480 = vmatpush2.msra.mxu0 0.0
    %5481 = vmatprep.subr.mxu0 0.0
    %5482 = vmatpush2.msra.mxu0 0.0
    %5483 = vmatprep.subr.mxu0 0.0
    %5484 = vmatpush2.msra.mxu0 0.0
    %5485 = vmatprep.mubr.f32.mxu0 0.0
    %5486 = vmatmul.mubr.f32.gmra.mxu0 %v935
    %v5487 = vpop.f32.mrf.mxu0
    %v5488 = vadd.f32 0.0, %v5487
    %v5489 = vpop.f32.mrf.mxu0
    %5490 = vmatprep.mubr.f32.mxu0 0.0
    %5491 = vmatmul.mubr.f32.gmra.mxu0 %v938
    %v5492 = vpop.f32.mrf.mxu0
    %v5493 = vadd.f32 0.0, %v5492
    %v5494 = vpop.f32.mrf.mxu0
    %5495 = vmatprep.mubr.f32.mxu0 0.0
    %5496 = vmatmul.mubr.f32.gmra.mxu0 %v941
    %v5497 = vpop.f32.mrf.mxu0
    %v5498 = vadd.f32 0.0, %v5497
    %v5499 = vpop.f32.mrf.mxu0
    %5500 = vmatprep.mubr.f32.mxu0 0.0
    %5501 = vmatmul.mubr.f32.gmra.mxu0 %v944
    %v5502 = vpop.f32.mrf.mxu0
    %v5503 = vadd.f32 0.0, %v5502
    %v5504 = vpop.f32.mrf.mxu0
    %5505 = vdwg.mxu0
    %5506 = vmatprep.subr.mxu0 0.0
    %5507 = vmatpush1.msra.mxu0 0.0
    %5508 = vmatprep.subr.mxu0 0.0
    %5509 = vmatpush1.msra.mxu0 0.0
    %5510 = vmatprep.subr.mxu0 0.0
    %5511 = vmatpush1.msra.mxu0 0.0
    %5512 = vmatprep.subr.mxu0 0.0
    %5513 = vmatpush1.msra.mxu0 0.0
    %5514 = vmatprep.subr.mxu0 0.0
    %5515 = vmatpush1.msra.mxu0 0.0
    %5516 = vmatprep.subr.mxu0 0.0
    %5517 = vmatpush1.msra.mxu0 0.0
    %5518 = vmatprep.subr.mxu0 0.0
    %5519 = vmatpush1.msra.mxu0 0.0
    %5520 = vmatprep.subr.mxu0 0.0
    %5521 = vmatpush1.msra.mxu0 0.0
    %5522 = vmatprep.subr.mxu0 0.0
    %5523 = vmatpush1.msra.mxu0 0.0
    %5524 = vmatprep.subr.mxu0 0.0
    %5525 = vmatpush1.msra.mxu0 0.0
    %5526 = vmatprep.subr.mxu0 0.0
    %5527 = vmatpush1.msra.mxu0 0.0
    %5528 = vmatprep.subr.mxu0 0.0
    %5529 = vmatpush1.msra.mxu0 0.0
    %5530 = vmatprep.subr.mxu0 0.0
    %5531 = vmatpush1.msra.mxu0 %v5420
    %5532 = vmatprep.subr.mxu0 0.0
    %5533 = vmatpush1.msra.mxu0 %v5419
    %5534 = vmatprep.subr.mxu0 0.0
    %5535 = vmatpush1.msra.mxu0 %v5418
    %5536 = vmatprep.subr.mxu0 0.0
    %5537 = vmatpush1.msra.mxu0 %v5417
    %5538 = vmatprep.subr.mxu0 0.0
    %5539 = vmatpush2.msra.mxu0 0.0
    %5540 = vmatprep.subr.mxu0 0.0
    %5541 = vmatpush2.msra.mxu0 0.0
    %5542 = vmatprep.subr.mxu0 0.0
    %5543 = vmatpush2.msra.mxu0 0.0
    %5544 = vmatprep.subr.mxu0 0.0
    %5545 = vmatpush2.msra.mxu0 0.0
    %5546 = vmatprep.subr.mxu0 0.0
    %5547 = vmatpush2.msra.mxu0 0.0
    %5548 = vmatprep.subr.mxu0 0.0
    %5549 = vmatpush2.msra.mxu0 0.0
    %5550 = vmatprep.subr.mxu0 0.0
    %5551 = vmatpush2.msra.mxu0 0.0
    %5552 = vmatprep.subr.mxu0 0.0
    %5553 = vmatpush2.msra.mxu0 0.0
    %5554 = vmatprep.subr.mxu0 0.0
    %5555 = vmatpush2.msra.mxu0 0.0
    %5556 = vmatprep.subr.mxu0 0.0
    %5557 = vmatpush2.msra.mxu0 0.0
    %5558 = vmatprep.subr.mxu0 0.0
    %5559 = vmatpush2.msra.mxu0 0.0
    %5560 = vmatprep.subr.mxu0 0.0
    %5561 = vmatpush2.msra.mxu0 0.0
    %5562 = vmatprep.subr.mxu0 0.0
    %5563 = vmatpush2.msra.mxu0 0.0
    %5564 = vmatprep.subr.mxu0 0.0
    %5565 = vmatpush2.msra.mxu0 0.0
    %5566 = vmatprep.subr.mxu0 0.0
    %5567 = vmatpush2.msra.mxu0 0.0
    %5568 = vmatprep.subr.mxu0 0.0
    %5569 = vmatpush2.msra.mxu0 0.0
    %5570 = vmatprep.mubr.f32.mxu0 0.0
    %5571 = vmatmul.mubr.f32.gmra.mxu0 %v1032
    %v5572 = vpop.f32.mrf.mxu0
    %v5573 = vadd.f32 0.0, %v5572
    %v5574 = vpop.f32.mrf.mxu0
    %5575 = vmatprep.mubr.f32.mxu0 0.0
    %5576 = vmatmul.mubr.f32.gmra.mxu0 %v1035
    %v5577 = vpop.f32.mrf.mxu0
    %v5578 = vadd.f32 0.0, %v5577
    %v5579 = vpop.f32.mrf.mxu0
    %5580 = vmatprep.mubr.f32.mxu0 0.0
    %5581 = vmatmul.mubr.f32.gmra.mxu0 %v1038
    %v5582 = vpop.f32.mrf.mxu0
    %v5583 = vadd.f32 0.0, %v5582
    %v5584 = vpop.f32.mrf.mxu0
    %5585 = vmatprep.mubr.f32.mxu0 0.0
    %5586 = vmatmul.mubr.f32.gmra.mxu0 %v1041
    %v5587 = vpop.f32.mrf.mxu0
    %v5588 = vadd.f32 0.0, %v5587
    %v5589 = vpop.f32.mrf.mxu0
    %5590 = vdwg.mxu0
    %v5591 = vld [vmem:[#allocation60] sm:$0xff]
    %v5592 = vld [vmem:[#allocation60 + $0x8] sm:$0xff]
    %v5593 = vld [vmem:[#allocation60 + $0x10] sm:$0xff]
    %v5594 = vld [vmem:[#allocation60 + $0x18] sm:$0xff]
    %s5595 = scalar_lea.vmem [#allocation60], 32
    %v5596 = vld [vmem:[%s5595] sm:$0xff]
    %v5597 = vld [vmem:[%s5595 + $0x8] sm:$0xff]
    %v5598 = vld [vmem:[%s5595 + $0x10] sm:$0xff]
    %v5599 = vld [vmem:[%s5595 + $0x18] sm:$0xff]
    %v5601 = vsel %vm933, %v5417, 0
    %v5604 = vsel %vm933, %v5418, 0
    %v5607 = vsel %vm933, %v5419, 0
    %v5610 = vsel %vm933, %v5420, 0
    %5612 = vmatprep.subr.mxu0 0.0
    %5613 = vmatpush1.msra.mxu0 0.0
    %5614 = vmatprep.subr.mxu0 0.0
    %5615 = vmatpush1.msra.mxu0 0.0
    %5616 = vmatprep.subr.mxu0 0.0
    %5617 = vmatpush1.msra.mxu0 0.0
    %5618 = vmatprep.subr.mxu0 0.0
    %5619 = vmatpush1.msra.mxu0 0.0
    %5620 = vmatprep.subr.mxu0 0.0
    %5621 = vmatpush1.msra.mxu0 0.0
    %5622 = vmatprep.subr.mxu0 0.0
    %5623 = vmatpush1.msra.mxu0 0.0
    %5624 = vmatprep.subr.mxu0 0.0
    %5625 = vmatpush1.msra.mxu0 0.0
    %5626 = vmatprep.subr.mxu0 0.0
    %5627 = vmatpush1.msra.mxu0 0.0
    %5628 = vmatprep.subr.mxu0 0.0
    %5629 = vmatpush1.msra.mxu0 0.0
    %5630 = vmatprep.subr.mxu0 0.0
    %5631 = vmatpush1.msra.mxu0 0.0
    %5632 = vmatprep.subr.mxu0 0.0
    %5633 = vmatpush1.msra.mxu0 0.0
    %5634 = vmatprep.subr.mxu0 0.0
    %5635 = vmatpush1.msra.mxu0 0.0
    %5636 = vmatprep.subr.mxu0 0.0
    %5637 = vmatpush1.msra.mxu0 %v5599
    %5638 = vmatprep.subr.mxu0 0.0
    %5639 = vmatpush1.msra.mxu0 %v5598
    %5640 = vmatprep.subr.mxu0 0.0
    %5641 = vmatpush1.msra.mxu0 %v5597
    %5642 = vmatprep.subr.mxu0 0.0
    %5643 = vmatpush1.msra.mxu0 %v5596
    %5644 = vmatprep.subr.mxu0 0.0
    %5645 = vmatpush2.msra.mxu0 0.0
    %5646 = vmatprep.subr.mxu0 0.0
    %5647 = vmatpush2.msra.mxu0 0.0
    %5648 = vmatprep.subr.mxu0 0.0
    %5649 = vmatpush2.msra.mxu0 0.0
    %5650 = vmatprep.subr.mxu0 0.0
    %5651 = vmatpush2.msra.mxu0 0.0
    %5652 = vmatprep.subr.mxu0 0.0
    %5653 = vmatpush2.msra.mxu0 0.0
    %5654 = vmatprep.subr.mxu0 0.0
    %5655 = vmatpush2.msra.mxu0 0.0
    %5656 = vmatprep.subr.mxu0 0.0
    %5657 = vmatpush2.msra.mxu0 0.0
    %5658 = vmatprep.subr.mxu0 0.0
    %5659 = vmatpush2.msra.mxu0 0.0
    %5660 = vmatprep.subr.mxu0 0.0
    %5661 = vmatpush2.msra.mxu0 0.0
    %5662 = vmatprep.subr.mxu0 0.0
    %5663 = vmatpush2.msra.mxu0 0.0
    %5664 = vmatprep.subr.mxu0 0.0
    %5665 = vmatpush2.msra.mxu0 0.0
    %5666 = vmatprep.subr.mxu0 0.0
    %5667 = vmatpush2.msra.mxu0 0.0
    %5668 = vmatprep.subr.mxu0 0.0
    %5669 = vmatpush2.msra.mxu0 0.0
    %5670 = vmatprep.subr.mxu0 0.0
    %5671 = vmatpush2.msra.mxu0 0.0
    %5672 = vmatprep.subr.mxu0 0.0
    %5673 = vmatpush2.msra.mxu0 0.0
    %5674 = vmatprep.subr.mxu0 0.0
    %5675 = vmatpush2.msra.mxu0 0.0
    %5676 = vmatprep.mubr.f32.mxu0 0.0
    %5677 = vmatmul.mubr.f32.gmra.mxu0 %v5601
    %v5678 = vpop.f32.mrf.mxu0
    %v5679 = vadd.f32 0.0, %v5678
    %v5680 = vpop.f32.mrf.mxu0
    %5681 = vmatprep.mubr.f32.mxu0 0.0
    %5682 = vmatmul.mubr.f32.gmra.mxu0 %v5604
    %v5683 = vpop.f32.mrf.mxu0
    %v5684 = vadd.f32 0.0, %v5683
    %v5685 = vpop.f32.mrf.mxu0
    %5686 = vmatprep.mubr.f32.mxu0 0.0
    %5687 = vmatmul.mubr.f32.gmra.mxu0 %v5607
    %v5688 = vpop.f32.mrf.mxu0
    %v5689 = vadd.f32 0.0, %v5688
    %v5690 = vpop.f32.mrf.mxu0
    %5691 = vmatprep.mubr.f32.mxu0 0.0
    %5692 = vmatmul.mubr.f32.gmra.mxu0 %v5610
    %v5693 = vpop.f32.mrf.mxu0
    %v5694 = vadd.f32 0.0, %v5693
    %v5695 = vpop.f32.mrf.mxu0
    %5696 = vdwg.mxu0
    %v5698 = vsel %vm933, %v5488, 0
    %v5701 = vsel %vm933, %v5493, 0
    %v5704 = vsel %vm933, %v5498, 0
    %v5707 = vsel %vm933, %v5503, 0
    %5709 = vmatprep.subr.mxu0 0.0
    %5710 = vmatpush1.msra.mxu0 0.0
    %5711 = vmatprep.subr.mxu0 0.0
    %5712 = vmatpush1.msra.mxu0 0.0
    %5713 = vmatprep.subr.mxu0 0.0
    %5714 = vmatpush1.msra.mxu0 0.0
    %5715 = vmatprep.subr.mxu0 0.0
    %5716 = vmatpush1.msra.mxu0 0.0
    %5717 = vmatprep.subr.mxu0 0.0
    %5718 = vmatpush1.msra.mxu0 0.0
    %5719 = vmatprep.subr.mxu0 0.0
    %5720 = vmatpush1.msra.mxu0 0.0
    %5721 = vmatprep.subr.mxu0 0.0
    %5722 = vmatpush1.msra.mxu0 0.0
    %5723 = vmatprep.subr.mxu0 0.0
    %5724 = vmatpush1.msra.mxu0 0.0
    %5725 = vmatprep.subr.mxu0 0.0
    %5726 = vmatpush1.msra.mxu0 0.0
    %5727 = vmatprep.subr.mxu0 0.0
    %5728 = vmatpush1.msra.mxu0 0.0
    %5729 = vmatprep.subr.mxu0 0.0
    %5730 = vmatpush1.msra.mxu0 0.0
    %5731 = vmatprep.subr.mxu0 0.0
    %5732 = vmatpush1.msra.mxu0 0.0
    %5733 = vmatprep.subr.mxu0 0.0
    %5734 = vmatpush1.msra.mxu0 %v5594
    %5735 = vmatprep.subr.mxu0 0.0
    %5736 = vmatpush1.msra.mxu0 %v5593
    %5737 = vmatprep.subr.mxu0 0.0
    %5738 = vmatpush1.msra.mxu0 %v5592
    %5739 = vmatprep.subr.mxu0 0.0
    %5740 = vmatpush1.msra.mxu0 %v5591
    %5741 = vmatprep.subr.mxu0 0.0
    %5742 = vmatpush2.msra.mxu0 0.0
    %5743 = vmatprep.subr.mxu0 0.0
    %5744 = vmatpush2.msra.mxu0 0.0
    %5745 = vmatprep.subr.mxu0 0.0
    %5746 = vmatpush2.msra.mxu0 0.0
    %5747 = vmatprep.subr.mxu0 0.0
    %5748 = vmatpush2.msra.mxu0 0.0
    %5749 = vmatprep.subr.mxu0 0.0
    %5750 = vmatpush2.msra.mxu0 0.0
    %5751 = vmatprep.subr.mxu0 0.0
    %5752 = vmatpush2.msra.mxu0 0.0
    %5753 = vmatprep.subr.mxu0 0.0
    %5754 = vmatpush2.msra.mxu0 0.0
    %5755 = vmatprep.subr.mxu0 0.0
    %5756 = vmatpush2.msra.mxu0 0.0
    %5757 = vmatprep.subr.mxu0 0.0
    %5758 = vmatpush2.msra.mxu0 0.0
    %5759 = vmatprep.subr.mxu0 0.0
    %5760 = vmatpush2.msra.mxu0 0.0
    %5761 = vmatprep.subr.mxu0 0.0
    %5762 = vmatpush2.msra.mxu0 0.0
    %5763 = vmatprep.subr.mxu0 0.0
    %5764 = vmatpush2.msra.mxu0 0.0
    %5765 = vmatprep.subr.mxu0 0.0
    %5766 = vmatpush2.msra.mxu0 0.0
    %5767 = vmatprep.subr.mxu0 0.0
    %5768 = vmatpush2.msra.mxu0 0.0
    %5769 = vmatprep.subr.mxu0 0.0
    %5770 = vmatpush2.msra.mxu0 0.0
    %5771 = vmatprep.subr.mxu0 0.0
    %5772 = vmatpush2.msra.mxu0 0.0
    %5773 = vmatprep.mubr.f32.mxu0 0.0
    %5774 = vmatmul.mubr.f32.gmra.mxu0 %v5698
    %v5775 = vpop.f32.mrf.mxu0
    %v5776 = vadd.f32 %v5679, %v5775
    %v5777 = vpop.f32.mrf.mxu0
    %5778 = vmatprep.mubr.f32.mxu0 0.0
    %5779 = vmatmul.mubr.f32.gmra.mxu0 %v5701
    %v5780 = vpop.f32.mrf.mxu0
    %v5781 = vadd.f32 %v5684, %v5780
    %v5782 = vpop.f32.mrf.mxu0
    %5783 = vmatprep.mubr.f32.mxu0 0.0
    %5784 = vmatmul.mubr.f32.gmra.mxu0 %v5704
    %v5785 = vpop.f32.mrf.mxu0
    %v5786 = vadd.f32 %v5689, %v5785
    %v5787 = vpop.f32.mrf.mxu0
    %5788 = vmatprep.mubr.f32.mxu0 0.0
    %5789 = vmatmul.mubr.f32.gmra.mxu0 %v5707
    %v5790 = vpop.f32.mrf.mxu0
    %v5791 = vadd.f32 %v5694, %v5790
    %v5792 = vpop.f32.mrf.mxu0
    %5793 = vdwg.mxu0
    %s5794 = scalar_lea.vmem [#allocation60], 64
    %v5795 = vld [vmem:[%s5794] sm:$0xff]
    %v5796 = vld [vmem:[%s5794 + $0x8] sm:$0xff]
    %v5797 = vld [vmem:[%s5794 + $0x10] sm:$0xff]
    %v5798 = vld [vmem:[%s5794 + $0x18] sm:$0xff]
    %v5800 = vsel %vm933, %v5573, 0
    %v5803 = vsel %vm933, %v5578, 0
    %v5806 = vsel %vm933, %v5583, 0
    %v5809 = vsel %vm933, %v5588, 0
    %5811 = vmatprep.subr.mxu0 0.0
    %5812 = vmatpush1.msra.mxu0 0.0
    %5813 = vmatprep.subr.mxu0 0.0
    %5814 = vmatpush1.msra.mxu0 0.0
    %5815 = vmatprep.subr.mxu0 0.0
    %5816 = vmatpush1.msra.mxu0 0.0
    %5817 = vmatprep.subr.mxu0 0.0
    %5818 = vmatpush1.msra.mxu0 0.0
    %5819 = vmatprep.subr.mxu0 0.0
    %5820 = vmatpush1.msra.mxu0 0.0
    %5821 = vmatprep.subr.mxu0 0.0
    %5822 = vmatpush1.msra.mxu0 0.0
    %5823 = vmatprep.subr.mxu0 0.0
    %5824 = vmatpush1.msra.mxu0 0.0
    %5825 = vmatprep.subr.mxu0 0.0
    %5826 = vmatpush1.msra.mxu0 0.0
    %5827 = vmatprep.subr.mxu0 0.0
    %5828 = vmatpush1.msra.mxu0 0.0
    %5829 = vmatprep.subr.mxu0 0.0
    %5830 = vmatpush1.msra.mxu0 0.0
    %5831 = vmatprep.subr.mxu0 0.0
    %5832 = vmatpush1.msra.mxu0 0.0
    %5833 = vmatprep.subr.mxu0 0.0
    %5834 = vmatpush1.msra.mxu0 0.0
    %5835 = vmatprep.subr.mxu0 0.0
    %5836 = vmatpush1.msra.mxu0 %v5798
    %5837 = vmatprep.subr.mxu0 0.0
    %5838 = vmatpush1.msra.mxu0 %v5797
    %5839 = vmatprep.subr.mxu0 0.0
    %5840 = vmatpush1.msra.mxu0 %v5796
    %5841 = vmatprep.subr.mxu0 0.0
    %5842 = vmatpush1.msra.mxu0 %v5795
    %5843 = vmatprep.subr.mxu0 0.0
    %5844 = vmatpush2.msra.mxu0 0.0
    %5845 = vmatprep.subr.mxu0 0.0
    %5846 = vmatpush2.msra.mxu0 0.0
    %5847 = vmatprep.subr.mxu0 0.0
    %5848 = vmatpush2.msra.mxu0 0.0
    %5849 = vmatprep.subr.mxu0 0.0
    %5850 = vmatpush2.msra.mxu0 0.0
    %5851 = vmatprep.subr.mxu0 0.0
    %5852 = vmatpush2.msra.mxu0 0.0
    %5853 = vmatprep.subr.mxu0 0.0
    %5854 = vmatpush2.msra.mxu0 0.0
    %5855 = vmatprep.subr.mxu0 0.0
    %5856 = vmatpush2.msra.mxu0 0.0
    %5857 = vmatprep.subr.mxu0 0.0
    %5858 = vmatpush2.msra.mxu0 0.0
    %5859 = vmatprep.subr.mxu0 0.0
    %5860 = vmatpush2.msra.mxu0 0.0
    %5861 = vmatprep.subr.mxu0 0.0
    %5862 = vmatpush2.msra.mxu0 0.0
    %5863 = vmatprep.subr.mxu0 0.0
    %5864 = vmatpush2.msra.mxu0 0.0
    %5865 = vmatprep.subr.mxu0 0.0
    %5866 = vmatpush2.msra.mxu0 0.0
    %5867 = vmatprep.subr.mxu0 0.0
    %5868 = vmatpush2.msra.mxu0 0.0
    %5869 = vmatprep.subr.mxu0 0.0
    %5870 = vmatpush2.msra.mxu0 0.0
    %5871 = vmatprep.subr.mxu0 0.0
    %5872 = vmatpush2.msra.mxu0 0.0
    %5873 = vmatprep.subr.mxu0 0.0
    %5874 = vmatpush2.msra.mxu0 0.0
    %5875 = vmatprep.mubr.f32.mxu0 0.0
    %5876 = vmatmul.mubr.f32.gmra.mxu0 %v5800
    %v5877 = vpop.f32.mrf.mxu0
    %v5878 = vadd.f32 0.0, %v5877
    %v5879 = vpop.f32.mrf.mxu0
    %5880 = vmatprep.mubr.f32.mxu0 0.0
    %5881 = vmatmul.mubr.f32.gmra.mxu0 %v5803
    %v5882 = vpop.f32.mrf.mxu0
    %v5883 = vadd.f32 0.0, %v5882
    %v5884 = vpop.f32.mrf.mxu0
    %5885 = vmatprep.mubr.f32.mxu0 0.0
    %5886 = vmatmul.mubr.f32.gmra.mxu0 %v5806
    %v5887 = vpop.f32.mrf.mxu0
    %v5888 = vadd.f32 0.0, %v5887
    %v5889 = vpop.f32.mrf.mxu0
    %5890 = vmatprep.mubr.f32.mxu0 0.0
    %5891 = vmatmul.mubr.f32.gmra.mxu0 %v5809
    %v5892 = vpop.f32.mrf.mxu0
    %v5893 = vadd.f32 0.0, %v5892
    %v5894 = vpop.f32.mrf.mxu0
    %5895 = vdwg.mxu0
    %v5896 = vadd.f32 %v5776, %v5878
    %v5897 = vadd.f32 %v5781, %v5883
    %v5898 = vadd.f32 %v5786, %v5888
    %v5899 = vadd.f32 %v5791, %v5893
    %v5900 = vld [vmem:[#allocation61] sm:$0x1]
    %v5902 = vlaneseq
    %v5903 = vshrl.u32 %v5902, 7
    %v5904 = vsub.s32 0, %v5903
    %v5905 = vrot.slane %v5900, %v5904
    %v5907 = vadd.f32 %v5896, %v5905
    %v5908 = vadd.f32 %v5897, %v5905
    %v5909 = vadd.f32 %v5898, %v5905
    %v5910 = vadd.f32 %v5899, %v5905
    %v5911 = vld [vmem:[#allocation63] sm:$0x1]
    %v5912 = vld [vmem:[#allocation64] sm:$0x1]
    %v5913 = vsel %vm933, %v5907, 0.0
    %v5914 = vsel %vm933, %v5908, 0.0
    %v5915 = vadd.f32 %v5913, %v5914
    %v5916 = vsel %vm933, %v5909, 0.0
    %v5917 = vadd.f32 %v5915, %v5916
    %v5918 = vsel %vm933, %v5910, 0.0
    %v5919 = vadd.f32 %v5917, %v5918
    %v5920 = vrot.slane %v5919, 4
    %v5921 = vadd.f32 %v5919, %v5920
    %v5922 = vrot.slane %v5921, 2
    %v5923 = vadd.f32 %v5921, %v5922
    %v5924 = vrot.slane %v5923, 1
    %v5925 = vadd.f32 %v5923, %v5924
    %v5926 = vmul.f32 %v5925, %v1476
    %v5927 = vsub.f32 %v5907, %v5926
    %v5928 = vsub.f32 %v5908, %v5926
    %v5929 = vsub.f32 %v5909, %v5926
    %v5930 = vsub.f32 %v5910, %v5926
    %v5931 = vmul.f32 %v5927, %v5927
    %v5932 = vmul.f32 %v5928, %v5928
    %v5933 = vmul.f32 %v5929, %v5929
    %v5934 = vmul.f32 %v5930, %v5930
    %v5935 = vsel %vm933, %v5931, 0.0
    %v5936 = vsel %vm933, %v5932, 0.0
    %v5937 = vadd.f32 %v5935, %v5936
    %v5938 = vsel %vm933, %v5933, 0.0
    %v5939 = vadd.f32 %v5937, %v5938
    %v5940 = vsel %vm933, %v5934, 0.0
    %v5941 = vadd.f32 %v5939, %v5940
    %v5942 = vrot.slane %v5941, 4
    %v5943 = vadd.f32 %v5941, %v5942
    %v5944 = vrot.slane %v5943, 2
    %v5945 = vadd.f32 %v5943, %v5944
    %v5946 = vrot.slane %v5945, 1
    %v5947 = vadd.f32 %v5945, %v5946
    %v5948 = vmul.f32 %v5947, %v1476
    %v5949 = vadd.f32 %v5948, 1e-05
    %v5950 = vrsqrt.pop %v5949
    %v5951 = vmul.f32 %v5927, %v5950
    %v5952 = vmul.f32 %v5928, %v5950
    %v5953 = vmul.f32 %v5929, %v5950
    %v5954 = vmul.f32 %v5930, %v5950
    %v5956 = vlaneseq
    %v5957 = vshrl.u32 %v5956, 7
    %v5958 = vsub.s32 0, %v5957
    %v5959 = vrot.slane %v5911, %v5958
    %v5961 = vmul.f32 %v5951, %v5959
    %v5962 = vmul.f32 %v5952, %v5959
    %v5963 = vmul.f32 %v5953, %v5959
    %v5964 = vmul.f32 %v5954, %v5959
    %v5966 = vlaneseq
    %v5967 = vshrl.u32 %v5966, 7
    %v5968 = vsub.s32 0, %v5967
    %v5969 = vrot.slane %v5912, %v5968
    %v5971 = vadd.f32 %v5961, %v5969
    %v5972 = vadd.f32 %v5962, %v5969
    %v5973 = vadd.f32 %v5963, %v5969
    %v5974 = vadd.f32 %v5964, %v5969
    %v5975 = vmax.f32 %v5971, 0.0
    %v5976 = vmax.f32 %v5972, 0.0
    %v5977 = vmax.f32 %v5973, 0.0
    %v5978 = vmax.f32 %v5974, 0.0
    %v5979 = vadd.f32 %v5975, %v4859
    %v5980 = vadd.f32 %v5976, %v4860
    %v5981 = vadd.f32 %v5977, %v4861
    %v5982 = vadd.f32 %v5978, %v4862
    %v5983 = vld [vmem:[#allocation66] sm:$0xff]
    %v5984 = vld [vmem:[#allocation66 + $0x8] sm:$0xff]
    %v5985 = vld [vmem:[#allocation66 + $0x10] sm:$0xff]
    %v5986 = vld [vmem:[#allocation66 + $0x18] sm:$0xff]
    %v5987 = vld [vmem:[#allocation67] sm:$0x1]
    %v5989 = vlaneseq
    %v5990 = vshrl.u32 %v5989, 7
    %v5991 = vsub.s32 0, %v5990
    %v5992 = vrot.slane %v5987, %v5991
    %v5995 = vsel %vm933, %v5979, 0
    %v5998 = vsel %vm933, %v5980, 0
    %v6001 = vsel %vm933, %v5981, 0
    %v6004 = vsel %vm933, %v5982, 0
    %6006 = vmatprep.subr.mxu0 0.0
    %6007 = vmatpush1.msra.mxu0 0.0
    %6008 = vmatprep.subr.mxu0 0.0
    %6009 = vmatpush1.msra.mxu0 0.0
    %6010 = vmatprep.subr.mxu0 0.0
    %6011 = vmatpush1.msra.mxu0 0.0
    %6012 = vmatprep.subr.mxu0 0.0
    %6013 = vmatpush1.msra.mxu0 0.0
    %6014 = vmatprep.subr.mxu0 0.0
    %6015 = vmatpush1.msra.mxu0 0.0
    %6016 = vmatprep.subr.mxu0 0.0
    %6017 = vmatpush1.msra.mxu0 0.0
    %6018 = vmatprep.subr.mxu0 0.0
    %6019 = vmatpush1.msra.mxu0 0.0
    %6020 = vmatprep.subr.mxu0 0.0
    %6021 = vmatpush1.msra.mxu0 0.0
    %6022 = vmatprep.subr.mxu0 0.0
    %6023 = vmatpush1.msra.mxu0 0.0
    %6024 = vmatprep.subr.mxu0 0.0
    %6025 = vmatpush1.msra.mxu0 0.0
    %6026 = vmatprep.subr.mxu0 0.0
    %6027 = vmatpush1.msra.mxu0 0.0
    %6028 = vmatprep.subr.mxu0 0.0
    %6029 = vmatpush1.msra.mxu0 0.0
    %6030 = vmatprep.subr.mxu0 0.0
    %6031 = vmatpush1.msra.mxu0 %v5986
    %6032 = vmatprep.subr.mxu0 0.0
    %6033 = vmatpush1.msra.mxu0 %v5985
    %6034 = vmatprep.subr.mxu0 0.0
    %6035 = vmatpush1.msra.mxu0 %v5984
    %6036 = vmatprep.subr.mxu0 0.0
    %6037 = vmatpush1.msra.mxu0 %v5983
    %6038 = vmatprep.subr.mxu0 0.0
    %6039 = vmatpush2.msra.mxu0 0.0
    %6040 = vmatprep.subr.mxu0 0.0
    %6041 = vmatpush2.msra.mxu0 0.0
    %6042 = vmatprep.subr.mxu0 0.0
    %6043 = vmatpush2.msra.mxu0 0.0
    %6044 = vmatprep.subr.mxu0 0.0
    %6045 = vmatpush2.msra.mxu0 0.0
    %6046 = vmatprep.subr.mxu0 0.0
    %6047 = vmatpush2.msra.mxu0 0.0
    %6048 = vmatprep.subr.mxu0 0.0
    %6049 = vmatpush2.msra.mxu0 0.0
    %6050 = vmatprep.subr.mxu0 0.0
    %6051 = vmatpush2.msra.mxu0 0.0
    %6052 = vmatprep.subr.mxu0 0.0
    %6053 = vmatpush2.msra.mxu0 0.0
    %6054 = vmatprep.subr.mxu0 0.0
    %6055 = vmatpush2.msra.mxu0 0.0
    %6056 = vmatprep.subr.mxu0 0.0
    %6057 = vmatpush2.msra.mxu0 0.0
    %6058 = vmatprep.subr.mxu0 0.0
    %6059 = vmatpush2.msra.mxu0 0.0
    %6060 = vmatprep.subr.mxu0 0.0
    %6061 = vmatpush2.msra.mxu0 0.0
    %6062 = vmatprep.subr.mxu0 0.0
    %6063 = vmatpush2.msra.mxu0 0.0
    %6064 = vmatprep.subr.mxu0 0.0
    %6065 = vmatpush2.msra.mxu0 0.0
    %6066 = vmatprep.subr.mxu0 0.0
    %6067 = vmatpush2.msra.mxu0 0.0
    %6068 = vmatprep.subr.mxu0 0.0
    %6069 = vmatpush2.msra.mxu0 0.0
    %6070 = vmatprep.mubr.f32.mxu0 0.0
    %6071 = vmatmul.mubr.f32.gmra.mxu0 %v5995
    %v6072 = vpop.f32.mrf.mxu0
    %v6073 = vadd.f32 %v5992, %v6072
    %v6074 = vpop.f32.mrf.mxu0
    %6075 = vmatprep.mubr.f32.mxu0 0.0
    %6076 = vmatmul.mubr.f32.gmra.mxu0 %v5998
    %v6077 = vpop.f32.mrf.mxu0
    %v6078 = vadd.f32 %v5992, %v6077
    %v6079 = vpop.f32.mrf.mxu0
    %6080 = vmatprep.mubr.f32.mxu0 0.0
    %6081 = vmatmul.mubr.f32.gmra.mxu0 %v6001
    %v6082 = vpop.f32.mrf.mxu0
    %v6083 = vadd.f32 %v5992, %v6082
    %v6084 = vpop.f32.mrf.mxu0
    %6085 = vmatprep.mubr.f32.mxu0 0.0
    %6086 = vmatmul.mubr.f32.gmra.mxu0 %v6004
    %v6087 = vpop.f32.mrf.mxu0
    %v6088 = vadd.f32 %v5992, %v6087
    %v6089 = vpop.f32.mrf.mxu0
    %6090 = vdwg.mxu0
    %v6091 = vld [vmem:[#allocation69] sm:$0x1]
    %v6092 = vld [vmem:[#allocation70] sm:$0x1]
    %v6093 = vsel %vm1145, %v6073, 0.0
    %v6094 = vsel %vm1145, %v6078, 0.0
    %v6095 = vadd.f32 %v6093, %v6094
    %v6096 = vsel %vm1145, %v6083, 0.0
    %v6097 = vadd.f32 %v6095, %v6096
    %v6098 = vsel %vm1145, %v6088, 0.0
    %v6099 = vadd.f32 %v6097, %v6098
    %v6100 = vrot.slane %v6099, 4
    %v6101 = vadd.f32 %v6099, %v6100
    %v6102 = vrot.slane %v6101, 2
    %v6103 = vadd.f32 %v6101, %v6102
    %v6104 = vrot.slane %v6103, 1
    %v6105 = vadd.f32 %v6103, %v6104
    %v6106 = vmul.f32 %v6105, %v1476
    %v6107 = vsub.f32 %v6073, %v6106
    %v6108 = vsub.f32 %v6078, %v6106
    %v6109 = vsub.f32 %v6083, %v6106
    %v6110 = vsub.f32 %v6088, %v6106
    %v6111 = vmul.f32 %v6107, %v6107
    %v6112 = vmul.f32 %v6108, %v6108
    %v6113 = vmul.f32 %v6109, %v6109
    %v6114 = vmul.f32 %v6110, %v6110
    %v6115 = vsel %vm1145, %v6111, 0.0
    %v6116 = vsel %vm1145, %v6112, 0.0
    %v6117 = vadd.f32 %v6115, %v6116
    %v6118 = vsel %vm1145, %v6113, 0.0
    %v6119 = vadd.f32 %v6117, %v6118
    %v6120 = vsel %vm1145, %v6114, 0.0
    %v6121 = vadd.f32 %v6119, %v6120
    %v6122 = vrot.slane %v6121, 4
    %v6123 = vadd.f32 %v6121, %v6122
    %v6124 = vrot.slane %v6123, 2
    %v6125 = vadd.f32 %v6123, %v6124
    %v6126 = vrot.slane %v6125, 1
    %v6127 = vadd.f32 %v6125, %v6126
    %v6128 = vmul.f32 %v6127, %v1476
    %v6129 = vadd.f32 %v6128, 1e-05
    %v6130 = vrsqrt.pop %v6129
    %v6131 = vmul.f32 %v6107, %v6130
    %v6132 = vmul.f32 %v6108, %v6130
    %v6133 = vmul.f32 %v6109, %v6130
    %v6134 = vmul.f32 %v6110, %v6130
    %v6136 = vlaneseq
    %v6137 = vshrl.u32 %v6136, 7
    %v6138 = vsub.s32 0, %v6137
    %v6139 = vrot.slane %v6091, %v6138
    %v6141 = vmul.f32 %v6131, %v6139
    %v6142 = vmul.f32 %v6132, %v6139
    %v6143 = vmul.f32 %v6133, %v6139
    %v6144 = vmul.f32 %v6134, %v6139
    %v6146 = vlaneseq
    %v6147 = vshrl.u32 %v6146, 7
    %v6148 = vsub.s32 0, %v6147
    %v6149 = vrot.slane %v6092, %v6148
    %v6151 = vadd.f32 %v6141, %v6149
    %v6152 = vadd.f32 %v6142, %v6149
    %v6153 = vadd.f32 %v6143, %v6149
    %v6154 = vadd.f32 %v6144, %v6149
    %v6155 = vmax.f32 %v6151, 0.0
    %v6156 = vmax.f32 %v6152, 0.0
    %v6157 = vmax.f32 %v6153, 0.0
    %v6158 = vmax.f32 %v6154, 0.0
    %6159 = vmatprep.subr.mxu0 0.0
    %6160 = vmatpush1.msra.mxu0 0.0
    %6161 = vmatprep.subr.mxu0 0.0
    %6162 = vmatpush1.msra.mxu0 0.0
    %6163 = vmatprep.subr.mxu0 0.0
    %6164 = vmatpush1.msra.mxu0 0.0
    %6165 = vmatprep.subr.mxu0 0.0
    %6166 = vmatpush1.msra.mxu0 0.0
    %6167 = vmatprep.subr.mxu0 0.0
    %6168 = vmatpush1.msra.mxu0 0.0
    %6169 = vmatprep.subr.mxu0 0.0
    %6170 = vmatpush1.msra.mxu0 0.0
    %6171 = vmatprep.subr.mxu0 0.0
    %6172 = vmatpush1.msra.mxu0 0.0
    %6173 = vmatprep.subr.mxu0 0.0
    %6174 = vmatpush1.msra.mxu0 0.0
    %6175 = vmatprep.subr.mxu0 0.0
    %6176 = vmatpush1.msra.mxu0 0.0
    %6177 = vmatprep.subr.mxu0 0.0
    %6178 = vmatpush1.msra.mxu0 0.0
    %6179 = vmatprep.subr.mxu0 0.0
    %6180 = vmatpush1.msra.mxu0 0.0
    %6181 = vmatprep.subr.mxu0 0.0
    %6182 = vmatpush1.msra.mxu0 0.0
    %6183 = vmatprep.subr.mxu0 0.0
    %6184 = vmatpush1.msra.mxu0 %v6158
    %6185 = vmatprep.subr.mxu0 0.0
    %6186 = vmatpush1.msra.mxu0 %v6157
    %6187 = vmatprep.subr.mxu0 0.0
    %6188 = vmatpush1.msra.mxu0 %v6156
    %6189 = vmatprep.subr.mxu0 0.0
    %6190 = vmatpush1.msra.mxu0 %v6155
    %6191 = vmatprep.subr.mxu0 0.0
    %6192 = vmatpush2.msra.mxu0 0.0
    %6193 = vmatprep.subr.mxu0 0.0
    %6194 = vmatpush2.msra.mxu0 0.0
    %6195 = vmatprep.subr.mxu0 0.0
    %6196 = vmatpush2.msra.mxu0 0.0
    %6197 = vmatprep.subr.mxu0 0.0
    %6198 = vmatpush2.msra.mxu0 0.0
    %6199 = vmatprep.subr.mxu0 0.0
    %6200 = vmatpush2.msra.mxu0 0.0
    %6201 = vmatprep.subr.mxu0 0.0
    %6202 = vmatpush2.msra.mxu0 0.0
    %6203 = vmatprep.subr.mxu0 0.0
    %6204 = vmatpush2.msra.mxu0 0.0
    %6205 = vmatprep.subr.mxu0 0.0
    %6206 = vmatpush2.msra.mxu0 0.0
    %6207 = vmatprep.subr.mxu0 0.0
    %6208 = vmatpush2.msra.mxu0 0.0
    %6209 = vmatprep.subr.mxu0 0.0
    %6210 = vmatpush2.msra.mxu0 0.0
    %6211 = vmatprep.subr.mxu0 0.0
    %6212 = vmatpush2.msra.mxu0 0.0
    %6213 = vmatprep.subr.mxu0 0.0
    %6214 = vmatpush2.msra.mxu0 0.0
    %6215 = vmatprep.subr.mxu0 0.0
    %6216 = vmatpush2.msra.mxu0 0.0
    %6217 = vmatprep.subr.mxu0 0.0
    %6218 = vmatpush2.msra.mxu0 0.0
    %6219 = vmatprep.subr.mxu0 0.0
    %6220 = vmatpush2.msra.mxu0 0.0
    %6221 = vmatprep.subr.mxu0 0.0
    %6222 = vmatpush2.msra.mxu0 0.0
    %6223 = vmatprep.mubr.f32.mxu0 0.0
    %6224 = vmatmul.mubr.f32.gmra.mxu0 %v935
    %v6225 = vpop.f32.mrf.mxu0
    %v6226 = vadd.f32 0.0, %v6225
    %v6227 = vpop.f32.mrf.mxu0
    %6228 = vmatprep.mubr.f32.mxu0 0.0
    %6229 = vmatmul.mubr.f32.gmra.mxu0 %v938
    %v6230 = vpop.f32.mrf.mxu0
    %v6231 = vadd.f32 0.0, %v6230
    %v6232 = vpop.f32.mrf.mxu0
    %6233 = vmatprep.mubr.f32.mxu0 0.0
    %6234 = vmatmul.mubr.f32.gmra.mxu0 %v941
    %v6235 = vpop.f32.mrf.mxu0
    %v6236 = vadd.f32 0.0, %v6235
    %v6237 = vpop.f32.mrf.mxu0
    %6238 = vmatprep.mubr.f32.mxu0 0.0
    %6239 = vmatmul.mubr.f32.gmra.mxu0 %v944
    %v6240 = vpop.f32.mrf.mxu0
    %v6241 = vadd.f32 0.0, %v6240
    %v6242 = vpop.f32.mrf.mxu0
    %6243 = vdwg.mxu0
    %6244 = vmatprep.subr.mxu0 0.0
    %6245 = vmatpush1.msra.mxu0 0.0
    %6246 = vmatprep.subr.mxu0 0.0
    %6247 = vmatpush1.msra.mxu0 0.0
    %6248 = vmatprep.subr.mxu0 0.0
    %6249 = vmatpush1.msra.mxu0 0.0
    %6250 = vmatprep.subr.mxu0 0.0
    %6251 = vmatpush1.msra.mxu0 0.0
    %6252 = vmatprep.subr.mxu0 0.0
    %6253 = vmatpush1.msra.mxu0 0.0
    %6254 = vmatprep.subr.mxu0 0.0
    %6255 = vmatpush1.msra.mxu0 0.0
    %6256 = vmatprep.subr.mxu0 0.0
    %6257 = vmatpush1.msra.mxu0 0.0
    %6258 = vmatprep.subr.mxu0 0.0
    %6259 = vmatpush1.msra.mxu0 0.0
    %6260 = vmatprep.subr.mxu0 0.0
    %6261 = vmatpush1.msra.mxu0 0.0
    %6262 = vmatprep.subr.mxu0 0.0
    %6263 = vmatpush1.msra.mxu0 0.0
    %6264 = vmatprep.subr.mxu0 0.0
    %6265 = vmatpush1.msra.mxu0 0.0
    %6266 = vmatprep.subr.mxu0 0.0
    %6267 = vmatpush1.msra.mxu0 0.0
    %6268 = vmatprep.subr.mxu0 0.0
    %6269 = vmatpush1.msra.mxu0 %v6158
    %6270 = vmatprep.subr.mxu0 0.0
    %6271 = vmatpush1.msra.mxu0 %v6157
    %6272 = vmatprep.subr.mxu0 0.0
    %6273 = vmatpush1.msra.mxu0 %v6156
    %6274 = vmatprep.subr.mxu0 0.0
    %6275 = vmatpush1.msra.mxu0 %v6155
    %6276 = vmatprep.subr.mxu0 0.0
    %6277 = vmatpush2.msra.mxu0 0.0
    %6278 = vmatprep.subr.mxu0 0.0
    %6279 = vmatpush2.msra.mxu0 0.0
    %6280 = vmatprep.subr.mxu0 0.0
    %6281 = vmatpush2.msra.mxu0 0.0
    %6282 = vmatprep.subr.mxu0 0.0
    %6283 = vmatpush2.msra.mxu0 0.0
    %6284 = vmatprep.subr.mxu0 0.0
    %6285 = vmatpush2.msra.mxu0 0.0
    %6286 = vmatprep.subr.mxu0 0.0
    %6287 = vmatpush2.msra.mxu0 0.0
    %6288 = vmatprep.subr.mxu0 0.0
    %6289 = vmatpush2.msra.mxu0 0.0
    %6290 = vmatprep.subr.mxu0 0.0
    %6291 = vmatpush2.msra.mxu0 0.0
    %6292 = vmatprep.subr.mxu0 0.0
    %6293 = vmatpush2.msra.mxu0 0.0
    %6294 = vmatprep.subr.mxu0 0.0
    %6295 = vmatpush2.msra.mxu0 0.0
    %6296 = vmatprep.subr.mxu0 0.0
    %6297 = vmatpush2.msra.mxu0 0.0
    %6298 = vmatprep.subr.mxu0 0.0
    %6299 = vmatpush2.msra.mxu0 0.0
    %6300 = vmatprep.subr.mxu0 0.0
    %6301 = vmatpush2.msra.mxu0 0.0
    %6302 = vmatprep.subr.mxu0 0.0
    %6303 = vmatpush2.msra.mxu0 0.0
    %6304 = vmatprep.subr.mxu0 0.0
    %6305 = vmatpush2.msra.mxu0 0.0
    %6306 = vmatprep.subr.mxu0 0.0
    %6307 = vmatpush2.msra.mxu0 0.0
    %6308 = vmatprep.mubr.f32.mxu0 0.0
    %6309 = vmatmul.mubr.f32.gmra.mxu0 %v1032
    %v6310 = vpop.f32.mrf.mxu0
    %v6311 = vadd.f32 0.0, %v6310
    %v6312 = vpop.f32.mrf.mxu0
    %6313 = vmatprep.mubr.f32.mxu0 0.0
    %6314 = vmatmul.mubr.f32.gmra.mxu0 %v1035
    %v6315 = vpop.f32.mrf.mxu0
    %v6316 = vadd.f32 0.0, %v6315
    %v6317 = vpop.f32.mrf.mxu0
    %6318 = vmatprep.mubr.f32.mxu0 0.0
    %6319 = vmatmul.mubr.f32.gmra.mxu0 %v1038
    %v6320 = vpop.f32.mrf.mxu0
    %v6321 = vadd.f32 0.0, %v6320
    %v6322 = vpop.f32.mrf.mxu0
    %6323 = vmatprep.mubr.f32.mxu0 0.0
    %6324 = vmatmul.mubr.f32.gmra.mxu0 %v1041
    %v6325 = vpop.f32.mrf.mxu0
    %v6326 = vadd.f32 0.0, %v6325
    %v6327 = vpop.f32.mrf.mxu0
    %6328 = vdwg.mxu0
    %v6329 = vld [vmem:[#allocation72] sm:$0xff]
    %v6330 = vld [vmem:[#allocation72 + $0x8] sm:$0xff]
    %v6331 = vld [vmem:[#allocation72 + $0x10] sm:$0xff]
    %v6332 = vld [vmem:[#allocation72 + $0x18] sm:$0xff]
    %v6333 = vld [vmem:[#allocation72 + $0x20] sm:$0xff]
    %v6334 = vld [vmem:[#allocation72 + $0x28] sm:$0xff]
    %v6335 = vld [vmem:[#allocation72 + $0x30] sm:$0xff]
    %v6336 = vld [vmem:[#allocation72 + $0x38] sm:$0xff]
    %s6337 = scalar_lea.vmem [#allocation72], 64
    %v6338 = vld [vmem:[%s6337] sm:$0xff]
    %v6339 = vld [vmem:[%s6337 + $0x8] sm:$0xff]
    %v6340 = vld [vmem:[%s6337 + $0x10] sm:$0xff]
    %v6341 = vld [vmem:[%s6337 + $0x18] sm:$0xff]
    %v6342 = vld [vmem:[%s6337 + $0x20] sm:$0xff]
    %v6343 = vld [vmem:[%s6337 + $0x28] sm:$0xff]
    %v6344 = vld [vmem:[%s6337 + $0x30] sm:$0xff]
    %v6345 = vld [vmem:[%s6337 + $0x38] sm:$0xff]
    %v6347 = vsel %vm1145, %v6155, 0
    %v6350 = vsel %vm1145, %v6156, 0
    %v6353 = vsel %vm1145, %v6157, 0
    %v6356 = vsel %vm1145, %v6158, 0
    %6358 = vmatprep.subr.mxu0 0.0
    %6359 = vmatpush1.msra.mxu0 0.0
    %6360 = vmatprep.subr.mxu0 0.0
    %6361 = vmatpush1.msra.mxu0 0.0
    %6362 = vmatprep.subr.mxu0 0.0
    %6363 = vmatpush1.msra.mxu0 0.0
    %6364 = vmatprep.subr.mxu0 0.0
    %6365 = vmatpush1.msra.mxu0 0.0
    %6366 = vmatprep.subr.mxu0 0.0
    %6367 = vmatpush1.msra.mxu0 0.0
    %6368 = vmatprep.subr.mxu0 0.0
    %6369 = vmatpush1.msra.mxu0 0.0
    %6370 = vmatprep.subr.mxu0 0.0
    %6371 = vmatpush1.msra.mxu0 0.0
    %6372 = vmatprep.subr.mxu0 0.0
    %6373 = vmatpush1.msra.mxu0 0.0
    %6374 = vmatprep.subr.mxu0 0.0
    %6375 = vmatpush1.msra.mxu0 %v6345
    %6376 = vmatprep.subr.mxu0 0.0
    %6377 = vmatpush1.msra.mxu0 %v6344
    %6378 = vmatprep.subr.mxu0 0.0
    %6379 = vmatpush1.msra.mxu0 %v6343
    %6380 = vmatprep.subr.mxu0 0.0
    %6381 = vmatpush1.msra.mxu0 %v6342
    %6382 = vmatprep.subr.mxu0 0.0
    %6383 = vmatpush1.msra.mxu0 %v6341
    %6384 = vmatprep.subr.mxu0 0.0
    %6385 = vmatpush1.msra.mxu0 %v6340
    %6386 = vmatprep.subr.mxu0 0.0
    %6387 = vmatpush1.msra.mxu0 %v6339
    %6388 = vmatprep.subr.mxu0 0.0
    %6389 = vmatpush1.msra.mxu0 %v6338
    %6390 = vmatprep.subr.mxu0 0.0
    %6391 = vmatpush2.msra.mxu0 0.0
    %6392 = vmatprep.subr.mxu0 0.0
    %6393 = vmatpush2.msra.mxu0 0.0
    %6394 = vmatprep.subr.mxu0 0.0
    %6395 = vmatpush2.msra.mxu0 0.0
    %6396 = vmatprep.subr.mxu0 0.0
    %6397 = vmatpush2.msra.mxu0 0.0
    %6398 = vmatprep.subr.mxu0 0.0
    %6399 = vmatpush2.msra.mxu0 0.0
    %6400 = vmatprep.subr.mxu0 0.0
    %6401 = vmatpush2.msra.mxu0 0.0
    %6402 = vmatprep.subr.mxu0 0.0
    %6403 = vmatpush2.msra.mxu0 0.0
    %6404 = vmatprep.subr.mxu0 0.0
    %6405 = vmatpush2.msra.mxu0 0.0
    %6406 = vmatprep.subr.mxu0 0.0
    %6407 = vmatpush2.msra.mxu0 0.0
    %6408 = vmatprep.subr.mxu0 0.0
    %6409 = vmatpush2.msra.mxu0 0.0
    %6410 = vmatprep.subr.mxu0 0.0
    %6411 = vmatpush2.msra.mxu0 0.0
    %6412 = vmatprep.subr.mxu0 0.0
    %6413 = vmatpush2.msra.mxu0 0.0
    %6414 = vmatprep.subr.mxu0 0.0
    %6415 = vmatpush2.msra.mxu0 0.0
    %6416 = vmatprep.subr.mxu0 0.0
    %6417 = vmatpush2.msra.mxu0 0.0
    %6418 = vmatprep.subr.mxu0 0.0
    %6419 = vmatpush2.msra.mxu0 0.0
    %6420 = vmatprep.subr.mxu0 0.0
    %6421 = vmatpush2.msra.mxu0 0.0
    %6422 = vmatprep.mubr.f32.mxu0 0.0
    %6423 = vmatmul.mubr.f32.gmra.mxu0 %v6347
    %v6424 = vpop.f32.mrf.mxu0
    %v6425 = vadd.f32 0.0, %v6424
    %v6426 = vpop.f32.mrf.mxu0
    %6427 = vmatprep.mubr.f32.mxu0 0.0
    %6428 = vmatmul.mubr.f32.gmra.mxu0 %v6350
    %v6429 = vpop.f32.mrf.mxu0
    %v6430 = vadd.f32 0.0, %v6429
    %v6431 = vpop.f32.mrf.mxu0
    %6432 = vmatprep.mubr.f32.mxu0 0.0
    %6433 = vmatmul.mubr.f32.gmra.mxu0 %v6353
    %v6434 = vpop.f32.mrf.mxu0
    %v6435 = vadd.f32 0.0, %v6434
    %v6436 = vpop.f32.mrf.mxu0
    %6437 = vmatprep.mubr.f32.mxu0 0.0
    %6438 = vmatmul.mubr.f32.gmra.mxu0 %v6356
    %v6439 = vpop.f32.mrf.mxu0
    %v6440 = vadd.f32 0.0, %v6439
    %v6441 = vpop.f32.mrf.mxu0
    %6442 = vdwg.mxu0
    %v6444 = vsel %vm1145, %v6226, 0
    %v6447 = vsel %vm1145, %v6231, 0
    %v6450 = vsel %vm1145, %v6236, 0
    %v6453 = vsel %vm1145, %v6241, 0
    %6455 = vmatprep.subr.mxu0 0.0
    %6456 = vmatpush1.msra.mxu0 0.0
    %6457 = vmatprep.subr.mxu0 0.0
    %6458 = vmatpush1.msra.mxu0 0.0
    %6459 = vmatprep.subr.mxu0 0.0
    %6460 = vmatpush1.msra.mxu0 0.0
    %6461 = vmatprep.subr.mxu0 0.0
    %6462 = vmatpush1.msra.mxu0 0.0
    %6463 = vmatprep.subr.mxu0 0.0
    %6464 = vmatpush1.msra.mxu0 0.0
    %6465 = vmatprep.subr.mxu0 0.0
    %6466 = vmatpush1.msra.mxu0 0.0
    %6467 = vmatprep.subr.mxu0 0.0
    %6468 = vmatpush1.msra.mxu0 0.0
    %6469 = vmatprep.subr.mxu0 0.0
    %6470 = vmatpush1.msra.mxu0 0.0
    %6471 = vmatprep.subr.mxu0 0.0
    %6472 = vmatpush1.msra.mxu0 %v6336
    %6473 = vmatprep.subr.mxu0 0.0
    %6474 = vmatpush1.msra.mxu0 %v6335
    %6475 = vmatprep.subr.mxu0 0.0
    %6476 = vmatpush1.msra.mxu0 %v6334
    %6477 = vmatprep.subr.mxu0 0.0
    %6478 = vmatpush1.msra.mxu0 %v6333
    %6479 = vmatprep.subr.mxu0 0.0
    %6480 = vmatpush1.msra.mxu0 %v6332
    %6481 = vmatprep.subr.mxu0 0.0
    %6482 = vmatpush1.msra.mxu0 %v6331
    %6483 = vmatprep.subr.mxu0 0.0
    %6484 = vmatpush1.msra.mxu0 %v6330
    %6485 = vmatprep.subr.mxu0 0.0
    %6486 = vmatpush1.msra.mxu0 %v6329
    %6487 = vmatprep.subr.mxu0 0.0
    %6488 = vmatpush2.msra.mxu0 0.0
    %6489 = vmatprep.subr.mxu0 0.0
    %6490 = vmatpush2.msra.mxu0 0.0
    %6491 = vmatprep.subr.mxu0 0.0
    %6492 = vmatpush2.msra.mxu0 0.0
    %6493 = vmatprep.subr.mxu0 0.0
    %6494 = vmatpush2.msra.mxu0 0.0
    %6495 = vmatprep.subr.mxu0 0.0
    %6496 = vmatpush2.msra.mxu0 0.0
    %6497 = vmatprep.subr.mxu0 0.0
    %6498 = vmatpush2.msra.mxu0 0.0
    %6499 = vmatprep.subr.mxu0 0.0
    %6500 = vmatpush2.msra.mxu0 0.0
    %6501 = vmatprep.subr.mxu0 0.0
    %6502 = vmatpush2.msra.mxu0 0.0
    %6503 = vmatprep.subr.mxu0 0.0
    %6504 = vmatpush2.msra.mxu0 0.0
    %6505 = vmatprep.subr.mxu0 0.0
    %6506 = vmatpush2.msra.mxu0 0.0
    %6507 = vmatprep.subr.mxu0 0.0
    %6508 = vmatpush2.msra.mxu0 0.0
    %6509 = vmatprep.subr.mxu0 0.0
    %6510 = vmatpush2.msra.mxu0 0.0
    %6511 = vmatprep.subr.mxu0 0.0
    %6512 = vmatpush2.msra.mxu0 0.0
    %6513 = vmatprep.subr.mxu0 0.0
    %6514 = vmatpush2.msra.mxu0 0.0
    %6515 = vmatprep.subr.mxu0 0.0
    %6516 = vmatpush2.msra.mxu0 0.0
    %6517 = vmatprep.subr.mxu0 0.0
    %6518 = vmatpush2.msra.mxu0 0.0
    %6519 = vmatprep.mubr.f32.mxu0 0.0
    %6520 = vmatmul.mubr.f32.gmra.mxu0 %v6444
    %v6521 = vpop.f32.mrf.mxu0
    %v6522 = vadd.f32 %v6425, %v6521
    %v6523 = vpop.f32.mrf.mxu0
    %6524 = vmatprep.mubr.f32.mxu0 0.0
    %6525 = vmatmul.mubr.f32.gmra.mxu0 %v6447
    %v6526 = vpop.f32.mrf.mxu0
    %v6527 = vadd.f32 %v6430, %v6526
    %v6528 = vpop.f32.mrf.mxu0
    %6529 = vmatprep.mubr.f32.mxu0 0.0
    %6530 = vmatmul.mubr.f32.gmra.mxu0 %v6450
    %v6531 = vpop.f32.mrf.mxu0
    %v6532 = vadd.f32 %v6435, %v6531
    %v6533 = vpop.f32.mrf.mxu0
    %6534 = vmatprep.mubr.f32.mxu0 0.0
    %6535 = vmatmul.mubr.f32.gmra.mxu0 %v6453
    %v6536 = vpop.f32.mrf.mxu0
    %v6537 = vadd.f32 %v6440, %v6536
    %v6538 = vpop.f32.mrf.mxu0
    %6539 = vdwg.mxu0
    %s6540 = scalar_lea.vmem [#allocation72], 128
    %v6541 = vld [vmem:[%s6540] sm:$0xff]
    %v6542 = vld [vmem:[%s6540 + $0x8] sm:$0xff]
    %v6543 = vld [vmem:[%s6540 + $0x10] sm:$0xff]
    %v6544 = vld [vmem:[%s6540 + $0x18] sm:$0xff]
    %v6545 = vld [vmem:[%s6540 + $0x20] sm:$0xff]
    %v6546 = vld [vmem:[%s6540 + $0x28] sm:$0xff]
    %v6547 = vld [vmem:[%s6540 + $0x30] sm:$0xff]
    %v6548 = vld [vmem:[%s6540 + $0x38] sm:$0xff]
    %v6550 = vsel %vm1145, %v6311, 0
    %v6553 = vsel %vm1145, %v6316, 0
    %v6556 = vsel %vm1145, %v6321, 0
    %v6559 = vsel %vm1145, %v6326, 0
    %6561 = vmatprep.subr.mxu0 0.0
    %6562 = vmatpush1.msra.mxu0 0.0
    %6563 = vmatprep.subr.mxu0 0.0
    %6564 = vmatpush1.msra.mxu0 0.0
    %6565 = vmatprep.subr.mxu0 0.0
    %6566 = vmatpush1.msra.mxu0 0.0
    %6567 = vmatprep.subr.mxu0 0.0
    %6568 = vmatpush1.msra.mxu0 0.0
    %6569 = vmatprep.subr.mxu0 0.0
    %6570 = vmatpush1.msra.mxu0 0.0
    %6571 = vmatprep.subr.mxu0 0.0
    %6572 = vmatpush1.msra.mxu0 0.0
    %6573 = vmatprep.subr.mxu0 0.0
    %6574 = vmatpush1.msra.mxu0 0.0
    %6575 = vmatprep.subr.mxu0 0.0
    %6576 = vmatpush1.msra.mxu0 0.0
    %6577 = vmatprep.subr.mxu0 0.0
    %6578 = vmatpush1.msra.mxu0 %v6548
    %6579 = vmatprep.subr.mxu0 0.0
    %6580 = vmatpush1.msra.mxu0 %v6547
    %6581 = vmatprep.subr.mxu0 0.0
    %6582 = vmatpush1.msra.mxu0 %v6546
    %6583 = vmatprep.subr.mxu0 0.0
    %6584 = vmatpush1.msra.mxu0 %v6545
    %6585 = vmatprep.subr.mxu0 0.0
    %6586 = vmatpush1.msra.mxu0 %v6544
    %6587 = vmatprep.subr.mxu0 0.0
    %6588 = vmatpush1.msra.mxu0 %v6543
    %6589 = vmatprep.subr.mxu0 0.0
    %6590 = vmatpush1.msra.mxu0 %v6542
    %6591 = vmatprep.subr.mxu0 0.0
    %6592 = vmatpush1.msra.mxu0 %v6541
    %6593 = vmatprep.subr.mxu0 0.0
    %6594 = vmatpush2.msra.mxu0 0.0
    %6595 = vmatprep.subr.mxu0 0.0
    %6596 = vmatpush2.msra.mxu0 0.0
    %6597 = vmatprep.subr.mxu0 0.0
    %6598 = vmatpush2.msra.mxu0 0.0
    %6599 = vmatprep.subr.mxu0 0.0
    %6600 = vmatpush2.msra.mxu0 0.0
    %6601 = vmatprep.subr.mxu0 0.0
    %6602 = vmatpush2.msra.mxu0 0.0
    %6603 = vmatprep.subr.mxu0 0.0
    %6604 = vmatpush2.msra.mxu0 0.0
    %6605 = vmatprep.subr.mxu0 0.0
    %6606 = vmatpush2.msra.mxu0 0.0
    %6607 = vmatprep.subr.mxu0 0.0
    %6608 = vmatpush2.msra.mxu0 0.0
    %6609 = vmatprep.subr.mxu0 0.0
    %6610 = vmatpush2.msra.mxu0 0.0
    %6611 = vmatprep.subr.mxu0 0.0
    %6612 = vmatpush2.msra.mxu0 0.0
    %6613 = vmatprep.subr.mxu0 0.0
    %6614 = vmatpush2.msra.mxu0 0.0
    %6615 = vmatprep.subr.mxu0 0.0
    %6616 = vmatpush2.msra.mxu0 0.0
    %6617 = vmatprep.subr.mxu0 0.0
    %6618 = vmatpush2.msra.mxu0 0.0
    %6619 = vmatprep.subr.mxu0 0.0
    %6620 = vmatpush2.msra.mxu0 0.0
    %6621 = vmatprep.subr.mxu0 0.0
    %6622 = vmatpush2.msra.mxu0 0.0
    %6623 = vmatprep.subr.mxu0 0.0
    %6624 = vmatpush2.msra.mxu0 0.0
    %6625 = vmatprep.mubr.f32.mxu0 0.0
    %6626 = vmatmul.mubr.f32.gmra.mxu0 %v6550
    %v6627 = vpop.f32.mrf.mxu0
    %v6628 = vadd.f32 0.0, %v6627
    %v6629 = vpop.f32.mrf.mxu0
    %6630 = vmatprep.mubr.f32.mxu0 0.0
    %6631 = vmatmul.mubr.f32.gmra.mxu0 %v6553
    %v6632 = vpop.f32.mrf.mxu0
    %v6633 = vadd.f32 0.0, %v6632
    %v6634 = vpop.f32.mrf.mxu0
    %6635 = vmatprep.mubr.f32.mxu0 0.0
    %6636 = vmatmul.mubr.f32.gmra.mxu0 %v6556
    %v6637 = vpop.f32.mrf.mxu0
    %v6638 = vadd.f32 0.0, %v6637
    %v6639 = vpop.f32.mrf.mxu0
    %6640 = vmatprep.mubr.f32.mxu0 0.0
    %6641 = vmatmul.mubr.f32.gmra.mxu0 %v6559
    %v6642 = vpop.f32.mrf.mxu0
    %v6643 = vadd.f32 0.0, %v6642
    %v6644 = vpop.f32.mrf.mxu0
    %6645 = vdwg.mxu0
    %v6646 = vadd.f32 %v6522, %v6628
    %v6647 = vadd.f32 %v6527, %v6633
    %v6648 = vadd.f32 %v6532, %v6638
    %v6649 = vadd.f32 %v6537, %v6643
    %v6650 = vld [vmem:[#allocation73] sm:$0x1]
    %v6652 = vlaneseq
    %v6653 = vshrl.u32 %v6652, 7
    %v6654 = vsub.s32 0, %v6653
    %v6655 = vrot.slane %v6650, %v6654
    %v6657 = vadd.f32 %v6646, %v6655
    %v6658 = vadd.f32 %v6647, %v6655
    %v6659 = vadd.f32 %v6648, %v6655
    %v6660 = vadd.f32 %v6649, %v6655
    %v6661 = vld [vmem:[#allocation75] sm:$0x1]
    %v6662 = vld [vmem:[#allocation76] sm:$0x1]
    %v6663 = vsel %vm1145, %v6657, 0.0
    %v6664 = vsel %vm1145, %v6658, 0.0
    %v6665 = vadd.f32 %v6663, %v6664
    %v6666 = vsel %vm1145, %v6659, 0.0
    %v6667 = vadd.f32 %v6665, %v6666
    %v6668 = vsel %vm1145, %v6660, 0.0
    %v6669 = vadd.f32 %v6667, %v6668
    %v6670 = vrot.slane %v6669, 4
    %v6671 = vadd.f32 %v6669, %v6670
    %v6672 = vrot.slane %v6671, 2
    %v6673 = vadd.f32 %v6671, %v6672
    %v6674 = vrot.slane %v6673, 1
    %v6675 = vadd.f32 %v6673, %v6674
    %v6676 = vmul.f32 %v6675, %v1476
    %v6677 = vsub.f32 %v6657, %v6676
    %v6678 = vsub.f32 %v6658, %v6676
    %v6679 = vsub.f32 %v6659, %v6676
    %v6680 = vsub.f32 %v6660, %v6676
    %v6681 = vmul.f32 %v6677, %v6677
    %v6682 = vmul.f32 %v6678, %v6678
    %v6683 = vmul.f32 %v6679, %v6679
    %v6684 = vmul.f32 %v6680, %v6680
    %v6685 = vsel %vm1145, %v6681, 0.0
    %v6686 = vsel %vm1145, %v6682, 0.0
    %v6687 = vadd.f32 %v6685, %v6686
    %v6688 = vsel %vm1145, %v6683, 0.0
    %v6689 = vadd.f32 %v6687, %v6688
    %v6690 = vsel %vm1145, %v6684, 0.0
    %v6691 = vadd.f32 %v6689, %v6690
    %v6692 = vrot.slane %v6691, 4
    %v6693 = vadd.f32 %v6691, %v6692
    %v6694 = vrot.slane %v6693, 2
    %v6695 = vadd.f32 %v6693, %v6694
    %v6696 = vrot.slane %v6695, 1
    %v6697 = vadd.f32 %v6695, %v6696
    %v6698 = vmul.f32 %v6697, %v1476
    %v6699 = vadd.f32 %v6698, 1e-05
    %v6700 = vrsqrt.pop %v6699
    %v6701 = vmul.f32 %v6677, %v6700
    %v6702 = vmul.f32 %v6678, %v6700
    %v6703 = vmul.f32 %v6679, %v6700
    %v6704 = vmul.f32 %v6680, %v6700
    %v6706 = vlaneseq
    %v6707 = vshrl.u32 %v6706, 7
    %v6708 = vsub.s32 0, %v6707
    %v6709 = vrot.slane %v6661, %v6708
    %v6711 = vmul.f32 %v6701, %v6709
    %v6712 = vmul.f32 %v6702, %v6709
    %v6713 = vmul.f32 %v6703, %v6709
    %v6714 = vmul.f32 %v6704, %v6709
    %v6716 = vlaneseq
    %v6717 = vshrl.u32 %v6716, 7
    %v6718 = vsub.s32 0, %v6717
    %v6719 = vrot.slane %v6662, %v6718
    %v6721 = vadd.f32 %v6711, %v6719
    %v6722 = vadd.f32 %v6712, %v6719
    %v6723 = vadd.f32 %v6713, %v6719
    %v6724 = vadd.f32 %v6714, %v6719
    %v6725 = vmax.f32 %v6721, 0.0
    %v6726 = vmax.f32 %v6722, 0.0
    %v6727 = vmax.f32 %v6723, 0.0
    %v6728 = vmax.f32 %v6724, 0.0
    %6729 = vmatprep.subr.mxu0 0.0
    %6730 = vmatpush1.msra.mxu0 0.0
    %6731 = vmatprep.subr.mxu0 0.0
    %6732 = vmatpush1.msra.mxu0 0.0
    %6733 = vmatprep.subr.mxu0 0.0
    %6734 = vmatpush1.msra.mxu0 0.0
    %6735 = vmatprep.subr.mxu0 0.0
    %6736 = vmatpush1.msra.mxu0 0.0
    %6737 = vmatprep.subr.mxu0 0.0
    %6738 = vmatpush1.msra.mxu0 0.0
    %6739 = vmatprep.subr.mxu0 0.0
    %6740 = vmatpush1.msra.mxu0 0.0
    %6741 = vmatprep.subr.mxu0 0.0
    %6742 = vmatpush1.msra.mxu0 0.0
    %6743 = vmatprep.subr.mxu0 0.0
    %6744 = vmatpush1.msra.mxu0 0.0
    %6745 = vmatprep.subr.mxu0 0.0
    %6746 = vmatpush1.msra.mxu0 0.0
    %6747 = vmatprep.subr.mxu0 0.0
    %6748 = vmatpush1.msra.mxu0 0.0
    %6749 = vmatprep.subr.mxu0 0.0
    %6750 = vmatpush1.msra.mxu0 0.0
    %6751 = vmatprep.subr.mxu0 0.0
    %6752 = vmatpush1.msra.mxu0 0.0
    %6753 = vmatprep.subr.mxu0 0.0
    %6754 = vmatpush1.msra.mxu0 %v6728
    %6755 = vmatprep.subr.mxu0 0.0
    %6756 = vmatpush1.msra.mxu0 %v6727
    %6757 = vmatprep.subr.mxu0 0.0
    %6758 = vmatpush1.msra.mxu0 %v6726
    %6759 = vmatprep.subr.mxu0 0.0
    %6760 = vmatpush1.msra.mxu0 %v6725
    %6761 = vmatprep.subr.mxu0 0.0
    %6762 = vmatpush2.msra.mxu0 0.0
    %6763 = vmatprep.subr.mxu0 0.0
    %6764 = vmatpush2.msra.mxu0 0.0
    %6765 = vmatprep.subr.mxu0 0.0
    %6766 = vmatpush2.msra.mxu0 0.0
    %6767 = vmatprep.subr.mxu0 0.0
    %6768 = vmatpush2.msra.mxu0 0.0
    %6769 = vmatprep.subr.mxu0 0.0
    %6770 = vmatpush2.msra.mxu0 0.0
    %6771 = vmatprep.subr.mxu0 0.0
    %6772 = vmatpush2.msra.mxu0 0.0
    %6773 = vmatprep.subr.mxu0 0.0
    %6774 = vmatpush2.msra.mxu0 0.0
    %6775 = vmatprep.subr.mxu0 0.0
    %6776 = vmatpush2.msra.mxu0 0.0
    %6777 = vmatprep.subr.mxu0 0.0
    %6778 = vmatpush2.msra.mxu0 0.0
    %6779 = vmatprep.subr.mxu0 0.0
    %6780 = vmatpush2.msra.mxu0 0.0
    %6781 = vmatprep.subr.mxu0 0.0
    %6782 = vmatpush2.msra.mxu0 0.0
    %6783 = vmatprep.subr.mxu0 0.0
    %6784 = vmatpush2.msra.mxu0 0.0
    %6785 = vmatprep.subr.mxu0 0.0
    %6786 = vmatpush2.msra.mxu0 0.0
    %6787 = vmatprep.subr.mxu0 0.0
    %6788 = vmatpush2.msra.mxu0 0.0
    %6789 = vmatprep.subr.mxu0 0.0
    %6790 = vmatpush2.msra.mxu0 0.0
    %6791 = vmatprep.subr.mxu0 0.0
    %6792 = vmatpush2.msra.mxu0 0.0
    %6793 = vmatprep.mubr.f32.mxu0 0.0
    %6794 = vmatmul.mubr.f32.gmra.mxu0 %v935
    %v6795 = vpop.f32.mrf.mxu0
    %v6796 = vadd.f32 0.0, %v6795
    %v6797 = vpop.f32.mrf.mxu0
    %6798 = vmatprep.mubr.f32.mxu0 0.0
    %6799 = vmatmul.mubr.f32.gmra.mxu0 %v938
    %v6800 = vpop.f32.mrf.mxu0
    %v6801 = vadd.f32 0.0, %v6800
    %v6802 = vpop.f32.mrf.mxu0
    %6803 = vmatprep.mubr.f32.mxu0 0.0
    %6804 = vmatmul.mubr.f32.gmra.mxu0 %v941
    %v6805 = vpop.f32.mrf.mxu0
    %v6806 = vadd.f32 0.0, %v6805
    %v6807 = vpop.f32.mrf.mxu0
    %6808 = vmatprep.mubr.f32.mxu0 0.0
    %6809 = vmatmul.mubr.f32.gmra.mxu0 %v944
    %v6810 = vpop.f32.mrf.mxu0
    %v6811 = vadd.f32 0.0, %v6810
    %v6812 = vpop.f32.mrf.mxu0
    %6813 = vdwg.mxu0
    %6814 = vmatprep.subr.mxu0 0.0
    %6815 = vmatpush1.msra.mxu0 0.0
    %6816 = vmatprep.subr.mxu0 0.0
    %6817 = vmatpush1.msra.mxu0 0.0
    %6818 = vmatprep.subr.mxu0 0.0
    %6819 = vmatpush1.msra.mxu0 0.0
    %6820 = vmatprep.subr.mxu0 0.0
    %6821 = vmatpush1.msra.mxu0 0.0
    %6822 = vmatprep.subr.mxu0 0.0
    %6823 = vmatpush1.msra.mxu0 0.0
    %6824 = vmatprep.subr.mxu0 0.0
    %6825 = vmatpush1.msra.mxu0 0.0
    %6826 = vmatprep.subr.mxu0 0.0
    %6827 = vmatpush1.msra.mxu0 0.0
    %6828 = vmatprep.subr.mxu0 0.0
    %6829 = vmatpush1.msra.mxu0 0.0
    %6830 = vmatprep.subr.mxu0 0.0
    %6831 = vmatpush1.msra.mxu0 0.0
    %6832 = vmatprep.subr.mxu0 0.0
    %6833 = vmatpush1.msra.mxu0 0.0
    %6834 = vmatprep.subr.mxu0 0.0
    %6835 = vmatpush1.msra.mxu0 0.0
    %6836 = vmatprep.subr.mxu0 0.0
    %6837 = vmatpush1.msra.mxu0 0.0
    %6838 = vmatprep.subr.mxu0 0.0
    %6839 = vmatpush1.msra.mxu0 %v6728
    %6840 = vmatprep.subr.mxu0 0.0
    %6841 = vmatpush1.msra.mxu0 %v6727
    %6842 = vmatprep.subr.mxu0 0.0
    %6843 = vmatpush1.msra.mxu0 %v6726
    %6844 = vmatprep.subr.mxu0 0.0
    %6845 = vmatpush1.msra.mxu0 %v6725
    %6846 = vmatprep.subr.mxu0 0.0
    %6847 = vmatpush2.msra.mxu0 0.0
    %6848 = vmatprep.subr.mxu0 0.0
    %6849 = vmatpush2.msra.mxu0 0.0
    %6850 = vmatprep.subr.mxu0 0.0
    %6851 = vmatpush2.msra.mxu0 0.0
    %6852 = vmatprep.subr.mxu0 0.0
    %6853 = vmatpush2.msra.mxu0 0.0
    %6854 = vmatprep.subr.mxu0 0.0
    %6855 = vmatpush2.msra.mxu0 0.0
    %6856 = vmatprep.subr.mxu0 0.0
    %6857 = vmatpush2.msra.mxu0 0.0
    %6858 = vmatprep.subr.mxu0 0.0
    %6859 = vmatpush2.msra.mxu0 0.0
    %6860 = vmatprep.subr.mxu0 0.0
    %6861 = vmatpush2.msra.mxu0 0.0
    %6862 = vmatprep.subr.mxu0 0.0
    %6863 = vmatpush2.msra.mxu0 0.0
    %6864 = vmatprep.subr.mxu0 0.0
    %6865 = vmatpush2.msra.mxu0 0.0
    %6866 = vmatprep.subr.mxu0 0.0
    %6867 = vmatpush2.msra.mxu0 0.0
    %6868 = vmatprep.subr.mxu0 0.0
    %6869 = vmatpush2.msra.mxu0 0.0
    %6870 = vmatprep.subr.mxu0 0.0
    %6871 = vmatpush2.msra.mxu0 0.0
    %6872 = vmatprep.subr.mxu0 0.0
    %6873 = vmatpush2.msra.mxu0 0.0
    %6874 = vmatprep.subr.mxu0 0.0
    %6875 = vmatpush2.msra.mxu0 0.0
    %6876 = vmatprep.subr.mxu0 0.0
    %6877 = vmatpush2.msra.mxu0 0.0
    %6878 = vmatprep.mubr.f32.mxu0 0.0
    %6879 = vmatmul.mubr.f32.gmra.mxu0 %v1032
    %v6880 = vpop.f32.mrf.mxu0
    %v6881 = vadd.f32 0.0, %v6880
    %v6882 = vpop.f32.mrf.mxu0
    %6883 = vmatprep.mubr.f32.mxu0 0.0
    %6884 = vmatmul.mubr.f32.gmra.mxu0 %v1035
    %v6885 = vpop.f32.mrf.mxu0
    %v6886 = vadd.f32 0.0, %v6885
    %v6887 = vpop.f32.mrf.mxu0
    %6888 = vmatprep.mubr.f32.mxu0 0.0
    %6889 = vmatmul.mubr.f32.gmra.mxu0 %v1038
    %v6890 = vpop.f32.mrf.mxu0
    %v6891 = vadd.f32 0.0, %v6890
    %v6892 = vpop.f32.mrf.mxu0
    %6893 = vmatprep.mubr.f32.mxu0 0.0
    %6894 = vmatmul.mubr.f32.gmra.mxu0 %v1041
    %v6895 = vpop.f32.mrf.mxu0
    %v6896 = vadd.f32 0.0, %v6895
    %v6897 = vpop.f32.mrf.mxu0
    %6898 = vdwg.mxu0
    %v6899 = vld [vmem:[#allocation78] sm:$0xff]
    %v6900 = vld [vmem:[#allocation78 + $0x8] sm:$0xff]
    %v6901 = vld [vmem:[#allocation78 + $0x10] sm:$0xff]
    %v6902 = vld [vmem:[#allocation78 + $0x18] sm:$0xff]
    %v6903 = vld [vmem:[#allocation78 + $0x20] sm:$0xff]
    %v6904 = vld [vmem:[#allocation78 + $0x28] sm:$0xff]
    %v6905 = vld [vmem:[#allocation78 + $0x30] sm:$0xff]
    %v6906 = vld [vmem:[#allocation78 + $0x38] sm:$0xff]
    %s6907 = scalar_lea.vmem [#allocation78], 64
    %v6908 = vld [vmem:[%s6907] sm:$0xff]
    %v6909 = vld [vmem:[%s6907 + $0x8] sm:$0xff]
    %v6910 = vld [vmem:[%s6907 + $0x10] sm:$0xff]
    %v6911 = vld [vmem:[%s6907 + $0x18] sm:$0xff]
    %v6912 = vld [vmem:[%s6907 + $0x20] sm:$0xff]
    %v6913 = vld [vmem:[%s6907 + $0x28] sm:$0xff]
    %v6914 = vld [vmem:[%s6907 + $0x30] sm:$0xff]
    %v6915 = vld [vmem:[%s6907 + $0x38] sm:$0xff]
    %v6917 = vsel %vm1145, %v6725, 0
    %v6920 = vsel %vm1145, %v6726, 0
    %v6923 = vsel %vm1145, %v6727, 0
    %v6926 = vsel %vm1145, %v6728, 0
    %6928 = vmatprep.subr.mxu0 0.0
    %6929 = vmatpush1.msra.mxu0 0.0
    %6930 = vmatprep.subr.mxu0 0.0
    %6931 = vmatpush1.msra.mxu0 0.0
    %6932 = vmatprep.subr.mxu0 0.0
    %6933 = vmatpush1.msra.mxu0 0.0
    %6934 = vmatprep.subr.mxu0 0.0
    %6935 = vmatpush1.msra.mxu0 0.0
    %6936 = vmatprep.subr.mxu0 0.0
    %6937 = vmatpush1.msra.mxu0 0.0
    %6938 = vmatprep.subr.mxu0 0.0
    %6939 = vmatpush1.msra.mxu0 0.0
    %6940 = vmatprep.subr.mxu0 0.0
    %6941 = vmatpush1.msra.mxu0 0.0
    %6942 = vmatprep.subr.mxu0 0.0
    %6943 = vmatpush1.msra.mxu0 0.0
    %6944 = vmatprep.subr.mxu0 0.0
    %6945 = vmatpush1.msra.mxu0 %v6915
    %6946 = vmatprep.subr.mxu0 0.0
    %6947 = vmatpush1.msra.mxu0 %v6914
    %6948 = vmatprep.subr.mxu0 0.0
    %6949 = vmatpush1.msra.mxu0 %v6913
    %6950 = vmatprep.subr.mxu0 0.0
    %6951 = vmatpush1.msra.mxu0 %v6912
    %6952 = vmatprep.subr.mxu0 0.0
    %6953 = vmatpush1.msra.mxu0 %v6911
    %6954 = vmatprep.subr.mxu0 0.0
    %6955 = vmatpush1.msra.mxu0 %v6910
    %6956 = vmatprep.subr.mxu0 0.0
    %6957 = vmatpush1.msra.mxu0 %v6909
    %6958 = vmatprep.subr.mxu0 0.0
    %6959 = vmatpush1.msra.mxu0 %v6908
    %6960 = vmatprep.subr.mxu0 0.0
    %6961 = vmatpush2.msra.mxu0 0.0
    %6962 = vmatprep.subr.mxu0 0.0
    %6963 = vmatpush2.msra.mxu0 0.0
    %6964 = vmatprep.subr.mxu0 0.0
    %6965 = vmatpush2.msra.mxu0 0.0
    %6966 = vmatprep.subr.mxu0 0.0
    %6967 = vmatpush2.msra.mxu0 0.0
    %6968 = vmatprep.subr.mxu0 0.0
    %6969 = vmatpush2.msra.mxu0 0.0
    %6970 = vmatprep.subr.mxu0 0.0
    %6971 = vmatpush2.msra.mxu0 0.0
    %6972 = vmatprep.subr.mxu0 0.0
    %6973 = vmatpush2.msra.mxu0 0.0
    %6974 = vmatprep.subr.mxu0 0.0
    %6975 = vmatpush2.msra.mxu0 0.0
    %6976 = vmatprep.subr.mxu0 0.0
    %6977 = vmatpush2.msra.mxu0 0.0
    %6978 = vmatprep.subr.mxu0 0.0
    %6979 = vmatpush2.msra.mxu0 0.0
    %6980 = vmatprep.subr.mxu0 0.0
    %6981 = vmatpush2.msra.mxu0 0.0
    %6982 = vmatprep.subr.mxu0 0.0
    %6983 = vmatpush2.msra.mxu0 0.0
    %6984 = vmatprep.subr.mxu0 0.0
    %6985 = vmatpush2.msra.mxu0 0.0
    %6986 = vmatprep.subr.mxu0 0.0
    %6987 = vmatpush2.msra.mxu0 0.0
    %6988 = vmatprep.subr.mxu0 0.0
    %6989 = vmatpush2.msra.mxu0 0.0
    %6990 = vmatprep.subr.mxu0 0.0
    %6991 = vmatpush2.msra.mxu0 0.0
    %6992 = vmatprep.mubr.f32.mxu0 0.0
    %6993 = vmatmul.mubr.f32.gmra.mxu0 %v6917
    %v6994 = vpop.f32.mrf.mxu0
    %v6995 = vadd.f32 0.0, %v6994
    %v6996 = vpop.f32.mrf.mxu0
    %6997 = vmatprep.mubr.f32.mxu0 0.0
    %6998 = vmatmul.mubr.f32.gmra.mxu0 %v6920
    %v6999 = vpop.f32.mrf.mxu0
    %v7000 = vadd.f32 0.0, %v6999
    %v7001 = vpop.f32.mrf.mxu0
    %7002 = vmatprep.mubr.f32.mxu0 0.0
    %7003 = vmatmul.mubr.f32.gmra.mxu0 %v6923
    %v7004 = vpop.f32.mrf.mxu0
    %v7005 = vadd.f32 0.0, %v7004
    %v7006 = vpop.f32.mrf.mxu0
    %7007 = vmatprep.mubr.f32.mxu0 0.0
    %7008 = vmatmul.mubr.f32.gmra.mxu0 %v6926
    %v7009 = vpop.f32.mrf.mxu0
    %v7010 = vadd.f32 0.0, %v7009
    %v7011 = vpop.f32.mrf.mxu0
    %7012 = vdwg.mxu0
    %v7014 = vsel %vm1145, %v6796, 0
    %v7017 = vsel %vm1145, %v6801, 0
    %v7020 = vsel %vm1145, %v6806, 0
    %v7023 = vsel %vm1145, %v6811, 0
    %7025 = vmatprep.subr.mxu0 0.0
    %7026 = vmatpush1.msra.mxu0 0.0
    %7027 = vmatprep.subr.mxu0 0.0
    %7028 = vmatpush1.msra.mxu0 0.0
    %7029 = vmatprep.subr.mxu0 0.0
    %7030 = vmatpush1.msra.mxu0 0.0
    %7031 = vmatprep.subr.mxu0 0.0
    %7032 = vmatpush1.msra.mxu0 0.0
    %7033 = vmatprep.subr.mxu0 0.0
    %7034 = vmatpush1.msra.mxu0 0.0
    %7035 = vmatprep.subr.mxu0 0.0
    %7036 = vmatpush1.msra.mxu0 0.0
    %7037 = vmatprep.subr.mxu0 0.0
    %7038 = vmatpush1.msra.mxu0 0.0
    %7039 = vmatprep.subr.mxu0 0.0
    %7040 = vmatpush1.msra.mxu0 0.0
    %7041 = vmatprep.subr.mxu0 0.0
    %7042 = vmatpush1.msra.mxu0 %v6906
    %7043 = vmatprep.subr.mxu0 0.0
    %7044 = vmatpush1.msra.mxu0 %v6905
    %7045 = vmatprep.subr.mxu0 0.0
    %7046 = vmatpush1.msra.mxu0 %v6904
    %7047 = vmatprep.subr.mxu0 0.0
    %7048 = vmatpush1.msra.mxu0 %v6903
    %7049 = vmatprep.subr.mxu0 0.0
    %7050 = vmatpush1.msra.mxu0 %v6902
    %7051 = vmatprep.subr.mxu0 0.0
    %7052 = vmatpush1.msra.mxu0 %v6901
    %7053 = vmatprep.subr.mxu0 0.0
    %7054 = vmatpush1.msra.mxu0 %v6900
    %7055 = vmatprep.subr.mxu0 0.0
    %7056 = vmatpush1.msra.mxu0 %v6899
    %7057 = vmatprep.subr.mxu0 0.0
    %7058 = vmatpush2.msra.mxu0 0.0
    %7059 = vmatprep.subr.mxu0 0.0
    %7060 = vmatpush2.msra.mxu0 0.0
    %7061 = vmatprep.subr.mxu0 0.0
    %7062 = vmatpush2.msra.mxu0 0.0
    %7063 = vmatprep.subr.mxu0 0.0
    %7064 = vmatpush2.msra.mxu0 0.0
    %7065 = vmatprep.subr.mxu0 0.0
    %7066 = vmatpush2.msra.mxu0 0.0
    %7067 = vmatprep.subr.mxu0 0.0
    %7068 = vmatpush2.msra.mxu0 0.0
    %7069 = vmatprep.subr.mxu0 0.0
    %7070 = vmatpush2.msra.mxu0 0.0
    %7071 = vmatprep.subr.mxu0 0.0
    %7072 = vmatpush2.msra.mxu0 0.0
    %7073 = vmatprep.subr.mxu0 0.0
    %7074 = vmatpush2.msra.mxu0 0.0
    %7075 = vmatprep.subr.mxu0 0.0
    %7076 = vmatpush2.msra.mxu0 0.0
    %7077 = vmatprep.subr.mxu0 0.0
    %7078 = vmatpush2.msra.mxu0 0.0
    %7079 = vmatprep.subr.mxu0 0.0
    %7080 = vmatpush2.msra.mxu0 0.0
    %7081 = vmatprep.subr.mxu0 0.0
    %7082 = vmatpush2.msra.mxu0 0.0
    %7083 = vmatprep.subr.mxu0 0.0
    %7084 = vmatpush2.msra.mxu0 0.0
    %7085 = vmatprep.subr.mxu0 0.0
    %7086 = vmatpush2.msra.mxu0 0.0
    %7087 = vmatprep.subr.mxu0 0.0
    %7088 = vmatpush2.msra.mxu0 0.0
    %7089 = vmatprep.mubr.f32.mxu0 0.0
    %7090 = vmatmul.mubr.f32.gmra.mxu0 %v7014
    %v7091 = vpop.f32.mrf.mxu0
    %v7092 = vadd.f32 %v6995, %v7091
    %v7093 = vpop.f32.mrf.mxu0
    %7094 = vmatprep.mubr.f32.mxu0 0.0
    %7095 = vmatmul.mubr.f32.gmra.mxu0 %v7017
    %v7096 = vpop.f32.mrf.mxu0
    %v7097 = vadd.f32 %v7000, %v7096
    %v7098 = vpop.f32.mrf.mxu0
    %7099 = vmatprep.mubr.f32.mxu0 0.0
    %7100 = vmatmul.mubr.f32.gmra.mxu0 %v7020
    %v7101 = vpop.f32.mrf.mxu0
    %v7102 = vadd.f32 %v7005, %v7101
    %v7103 = vpop.f32.mrf.mxu0
    %7104 = vmatprep.mubr.f32.mxu0 0.0
    %7105 = vmatmul.mubr.f32.gmra.mxu0 %v7023
    %v7106 = vpop.f32.mrf.mxu0
    %v7107 = vadd.f32 %v7010, %v7106
    %v7108 = vpop.f32.mrf.mxu0
    %7109 = vdwg.mxu0
    %s7110 = scalar_lea.vmem [#allocation78], 128
    %v7111 = vld [vmem:[%s7110] sm:$0xff]
    %v7112 = vld [vmem:[%s7110 + $0x8] sm:$0xff]
    %v7113 = vld [vmem:[%s7110 + $0x10] sm:$0xff]
    %v7114 = vld [vmem:[%s7110 + $0x18] sm:$0xff]
    %v7115 = vld [vmem:[%s7110 + $0x20] sm:$0xff]
    %v7116 = vld [vmem:[%s7110 + $0x28] sm:$0xff]
    %v7117 = vld [vmem:[%s7110 + $0x30] sm:$0xff]
    %v7118 = vld [vmem:[%s7110 + $0x38] sm:$0xff]
    %v7120 = vsel %vm1145, %v6881, 0
    %v7123 = vsel %vm1145, %v6886, 0
    %v7126 = vsel %vm1145, %v6891, 0
    %v7129 = vsel %vm1145, %v6896, 0
    %7131 = vmatprep.subr.mxu0 0.0
    %7132 = vmatpush1.msra.mxu0 0.0
    %7133 = vmatprep.subr.mxu0 0.0
    %7134 = vmatpush1.msra.mxu0 0.0
    %7135 = vmatprep.subr.mxu0 0.0
    %7136 = vmatpush1.msra.mxu0 0.0
    %7137 = vmatprep.subr.mxu0 0.0
    %7138 = vmatpush1.msra.mxu0 0.0
    %7139 = vmatprep.subr.mxu0 0.0
    %7140 = vmatpush1.msra.mxu0 0.0
    %7141 = vmatprep.subr.mxu0 0.0
    %7142 = vmatpush1.msra.mxu0 0.0
    %7143 = vmatprep.subr.mxu0 0.0
    %7144 = vmatpush1.msra.mxu0 0.0
    %7145 = vmatprep.subr.mxu0 0.0
    %7146 = vmatpush1.msra.mxu0 0.0
    %7147 = vmatprep.subr.mxu0 0.0
    %7148 = vmatpush1.msra.mxu0 %v7118
    %7149 = vmatprep.subr.mxu0 0.0
    %7150 = vmatpush1.msra.mxu0 %v7117
    %7151 = vmatprep.subr.mxu0 0.0
    %7152 = vmatpush1.msra.mxu0 %v7116
    %7153 = vmatprep.subr.mxu0 0.0
    %7154 = vmatpush1.msra.mxu0 %v7115
    %7155 = vmatprep.subr.mxu0 0.0
    %7156 = vmatpush1.msra.mxu0 %v7114
    %7157 = vmatprep.subr.mxu0 0.0
    %7158 = vmatpush1.msra.mxu0 %v7113
    %7159 = vmatprep.subr.mxu0 0.0
    %7160 = vmatpush1.msra.mxu0 %v7112
    %7161 = vmatprep.subr.mxu0 0.0
    %7162 = vmatpush1.msra.mxu0 %v7111
    %7163 = vmatprep.subr.mxu0 0.0
    %7164 = vmatpush2.msra.mxu0 0.0
    %7165 = vmatprep.subr.mxu0 0.0
    %7166 = vmatpush2.msra.mxu0 0.0
    %7167 = vmatprep.subr.mxu0 0.0
    %7168 = vmatpush2.msra.mxu0 0.0
    %7169 = vmatprep.subr.mxu0 0.0
    %7170 = vmatpush2.msra.mxu0 0.0
    %7171 = vmatprep.subr.mxu0 0.0
    %7172 = vmatpush2.msra.mxu0 0.0
    %7173 = vmatprep.subr.mxu0 0.0
    %7174 = vmatpush2.msra.mxu0 0.0
    %7175 = vmatprep.subr.mxu0 0.0
    %7176 = vmatpush2.msra.mxu0 0.0
    %7177 = vmatprep.subr.mxu0 0.0
    %7178 = vmatpush2.msra.mxu0 0.0
    %7179 = vmatprep.subr.mxu0 0.0
    %7180 = vmatpush2.msra.mxu0 0.0
    %7181 = vmatprep.subr.mxu0 0.0
    %7182 = vmatpush2.msra.mxu0 0.0
    %7183 = vmatprep.subr.mxu0 0.0
    %7184 = vmatpush2.msra.mxu0 0.0
    %7185 = vmatprep.subr.mxu0 0.0
    %7186 = vmatpush2.msra.mxu0 0.0
    %7187 = vmatprep.subr.mxu0 0.0
    %7188 = vmatpush2.msra.mxu0 0.0
    %7189 = vmatprep.subr.mxu0 0.0
    %7190 = vmatpush2.msra.mxu0 0.0
    %7191 = vmatprep.subr.mxu0 0.0
    %7192 = vmatpush2.msra.mxu0 0.0
    %7193 = vmatprep.subr.mxu0 0.0
    %7194 = vmatpush2.msra.mxu0 0.0
    %7195 = vmatprep.mubr.f32.mxu0 0.0
    %7196 = vmatmul.mubr.f32.gmra.mxu0 %v7120
    %v7197 = vpop.f32.mrf.mxu0
    %v7198 = vadd.f32 0.0, %v7197
    %v7199 = vpop.f32.mrf.mxu0
    %7200 = vmatprep.mubr.f32.mxu0 0.0
    %7201 = vmatmul.mubr.f32.gmra.mxu0 %v7123
    %v7202 = vpop.f32.mrf.mxu0
    %v7203 = vadd.f32 0.0, %v7202
    %v7204 = vpop.f32.mrf.mxu0
    %7205 = vmatprep.mubr.f32.mxu0 0.0
    %7206 = vmatmul.mubr.f32.gmra.mxu0 %v7126
    %v7207 = vpop.f32.mrf.mxu0
    %v7208 = vadd.f32 0.0, %v7207
    %v7209 = vpop.f32.mrf.mxu0
    %7210 = vmatprep.mubr.f32.mxu0 0.0
    %7211 = vmatmul.mubr.f32.gmra.mxu0 %v7129
    %v7212 = vpop.f32.mrf.mxu0
    %v7213 = vadd.f32 0.0, %v7212
    %v7214 = vpop.f32.mrf.mxu0
    %7215 = vdwg.mxu0
    %v7216 = vadd.f32 %v7092, %v7198
    %v7217 = vadd.f32 %v7097, %v7203
    %v7218 = vadd.f32 %v7102, %v7208
    %v7219 = vadd.f32 %v7107, %v7213
    %v7220 = vld [vmem:[#allocation79] sm:$0x1]
    %v7222 = vlaneseq
    %v7223 = vshrl.u32 %v7222, 7
    %v7224 = vsub.s32 0, %v7223
    %v7225 = vrot.slane %v7220, %v7224
    %v7227 = vadd.f32 %v7216, %v7225
    %v7228 = vadd.f32 %v7217, %v7225
    %v7229 = vadd.f32 %v7218, %v7225
    %v7230 = vadd.f32 %v7219, %v7225
    %v7231 = vld [vmem:[#allocation81] sm:$0x1]
    %v7232 = vld [vmem:[#allocation82] sm:$0x1]
    %v7233 = vsel %vm1145, %v7227, 0.0
    %v7234 = vsel %vm1145, %v7228, 0.0
    %v7235 = vadd.f32 %v7233, %v7234
    %v7236 = vsel %vm1145, %v7229, 0.0
    %v7237 = vadd.f32 %v7235, %v7236
    %v7238 = vsel %vm1145, %v7230, 0.0
    %v7239 = vadd.f32 %v7237, %v7238
    %v7240 = vrot.slane %v7239, 4
    %v7241 = vadd.f32 %v7239, %v7240
    %v7242 = vrot.slane %v7241, 2
    %v7243 = vadd.f32 %v7241, %v7242
    %v7244 = vrot.slane %v7243, 1
    %v7245 = vadd.f32 %v7243, %v7244
    %v7246 = vmul.f32 %v7245, %v1476
    %v7247 = vsub.f32 %v7227, %v7246
    %v7248 = vsub.f32 %v7228, %v7246
    %v7249 = vsub.f32 %v7229, %v7246
    %v7250 = vsub.f32 %v7230, %v7246
    %v7251 = vmul.f32 %v7247, %v7247
    %v7252 = vmul.f32 %v7248, %v7248
    %v7253 = vmul.f32 %v7249, %v7249
    %v7254 = vmul.f32 %v7250, %v7250
    %v7255 = vsel %vm1145, %v7251, 0.0
    %v7256 = vsel %vm1145, %v7252, 0.0
    %v7257 = vadd.f32 %v7255, %v7256
    %v7258 = vsel %vm1145, %v7253, 0.0
    %v7259 = vadd.f32 %v7257, %v7258
    %v7260 = vsel %vm1145, %v7254, 0.0
    %v7261 = vadd.f32 %v7259, %v7260
    %v7262 = vrot.slane %v7261, 4
    %v7263 = vadd.f32 %v7261, %v7262
    %v7264 = vrot.slane %v7263, 2
    %v7265 = vadd.f32 %v7263, %v7264
    %v7266 = vrot.slane %v7265, 1
    %v7267 = vadd.f32 %v7265, %v7266
    %v7268 = vmul.f32 %v7267, %v1476
    %v7269 = vadd.f32 %v7268, 1e-05
    %v7270 = vrsqrt.pop %v7269
    %v7271 = vmul.f32 %v7247, %v7270
    %v7272 = vmul.f32 %v7248, %v7270
    %v7273 = vmul.f32 %v7249, %v7270
    %v7274 = vmul.f32 %v7250, %v7270
    %v7276 = vlaneseq
    %v7277 = vshrl.u32 %v7276, 7
    %v7278 = vsub.s32 0, %v7277
    %v7279 = vrot.slane %v7231, %v7278
    %v7281 = vmul.f32 %v7271, %v7279
    %v7282 = vmul.f32 %v7272, %v7279
    %v7283 = vmul.f32 %v7273, %v7279
    %v7284 = vmul.f32 %v7274, %v7279
    %v7286 = vlaneseq
    %v7287 = vshrl.u32 %v7286, 7
    %v7288 = vsub.s32 0, %v7287
    %v7289 = vrot.slane %v7232, %v7288
    %v7291 = vadd.f32 %v7281, %v7289
    %v7292 = vadd.f32 %v7282, %v7289
    %v7293 = vadd.f32 %v7283, %v7289
    %v7294 = vadd.f32 %v7284, %v7289
    %v7295 = vmax.f32 %v7291, 0.0
    %v7296 = vmax.f32 %v7292, 0.0
    %v7297 = vmax.f32 %v7293, 0.0
    %v7298 = vmax.f32 %v7294, 0.0
    %v7299 = vadd.f32 %v7295, %v6155
    %v7300 = vadd.f32 %v7296, %v6156
    %v7301 = vadd.f32 %v7297, %v6157
    %v7302 = vadd.f32 %v7298, %v6158
    %v7303 = vld [vmem:[#allocation84] sm:$0xff]
    %v7304 = vld [vmem:[#allocation84 + $0x8] sm:$0xff]
    %v7305 = vld [vmem:[#allocation84 + $0x10] sm:$0xff]
    %v7306 = vld [vmem:[#allocation84 + $0x18] sm:$0xff]
    %v7307 = vld [vmem:[#allocation84 + $0x20] sm:$0xff]
    %v7308 = vld [vmem:[#allocation84 + $0x28] sm:$0xff]
    %v7309 = vld [vmem:[#allocation84 + $0x30] sm:$0xff]
    %v7310 = vld [vmem:[#allocation84 + $0x38] sm:$0xff]
    %v7311 = vld [vmem:[#allocation85] sm:$0x1]
    %v7313 = vlaneseq
    %v7314 = vshrl.u32 %v7313, 7
    %v7315 = vsub.s32 0, %v7314
    %v7316 = vrot.slane %v7311, %v7315
    %v7319 = vsel %vm1145, %v7299, 0
    %v7322 = vsel %vm1145, %v7300, 0
    %v7325 = vsel %vm1145, %v7301, 0
    %v7328 = vsel %vm1145, %v7302, 0
    %7330 = vmatprep.subr.mxu0 0.0
    %7331 = vmatpush1.msra.mxu0 0.0
    %7332 = vmatprep.subr.mxu0 0.0
    %7333 = vmatpush1.msra.mxu0 0.0
    %7334 = vmatprep.subr.mxu0 0.0
    %7335 = vmatpush1.msra.mxu0 0.0
    %7336 = vmatprep.subr.mxu0 0.0
    %7337 = vmatpush1.msra.mxu0 0.0
    %7338 = vmatprep.subr.mxu0 0.0
    %7339 = vmatpush1.msra.mxu0 0.0
    %7340 = vmatprep.subr.mxu0 0.0
    %7341 = vmatpush1.msra.mxu0 0.0
    %7342 = vmatprep.subr.mxu0 0.0
    %7343 = vmatpush1.msra.mxu0 0.0
    %7344 = vmatprep.subr.mxu0 0.0
    %7345 = vmatpush1.msra.mxu0 0.0
    %7346 = vmatprep.subr.mxu0 0.0
    %7347 = vmatpush1.msra.mxu0 %v7310
    %7348 = vmatprep.subr.mxu0 0.0
    %7349 = vmatpush1.msra.mxu0 %v7309
    %7350 = vmatprep.subr.mxu0 0.0
    %7351 = vmatpush1.msra.mxu0 %v7308
    %7352 = vmatprep.subr.mxu0 0.0
    %7353 = vmatpush1.msra.mxu0 %v7307
    %7354 = vmatprep.subr.mxu0 0.0
    %7355 = vmatpush1.msra.mxu0 %v7306
    %7356 = vmatprep.subr.mxu0 0.0
    %7357 = vmatpush1.msra.mxu0 %v7305
    %7358 = vmatprep.subr.mxu0 0.0
    %7359 = vmatpush1.msra.mxu0 %v7304
    %7360 = vmatprep.subr.mxu0 0.0
    %7361 = vmatpush1.msra.mxu0 %v7303
    %7362 = vmatprep.subr.mxu0 0.0
    %7363 = vmatpush2.msra.mxu0 0.0
    %7364 = vmatprep.subr.mxu0 0.0
    %7365 = vmatpush2.msra.mxu0 0.0
    %7366 = vmatprep.subr.mxu0 0.0
    %7367 = vmatpush2.msra.mxu0 0.0
    %7368 = vmatprep.subr.mxu0 0.0
    %7369 = vmatpush2.msra.mxu0 0.0
    %7370 = vmatprep.subr.mxu0 0.0
    %7371 = vmatpush2.msra.mxu0 0.0
    %7372 = vmatprep.subr.mxu0 0.0
    %7373 = vmatpush2.msra.mxu0 0.0
    %7374 = vmatprep.subr.mxu0 0.0
    %7375 = vmatpush2.msra.mxu0 0.0
    %7376 = vmatprep.subr.mxu0 0.0
    %7377 = vmatpush2.msra.mxu0 0.0
    %7378 = vmatprep.subr.mxu0 0.0
    %7379 = vmatpush2.msra.mxu0 0.0
    %7380 = vmatprep.subr.mxu0 0.0
    %7381 = vmatpush2.msra.mxu0 0.0
    %7382 = vmatprep.subr.mxu0 0.0
    %7383 = vmatpush2.msra.mxu0 0.0
    %7384 = vmatprep.subr.mxu0 0.0
    %7385 = vmatpush2.msra.mxu0 0.0
    %7386 = vmatprep.subr.mxu0 0.0
    %7387 = vmatpush2.msra.mxu0 0.0
    %7388 = vmatprep.subr.mxu0 0.0
    %7389 = vmatpush2.msra.mxu0 0.0
    %7390 = vmatprep.subr.mxu0 0.0
    %7391 = vmatpush2.msra.mxu0 0.0
    %7392 = vmatprep.subr.mxu0 0.0
    %7393 = vmatpush2.msra.mxu0 0.0
    %7394 = vmatprep.mubr.f32.mxu0 0.0
    %7395 = vmatmul.mubr.f32.gmra.mxu0 %v7319
    %v7396 = vpop.f32.mrf.mxu0
    %v7397 = vadd.f32 %v7316, %v7396
    %v7398 = vpop.f32.mrf.mxu0
    %7399 = vmatprep.mubr.f32.mxu0 0.0
    %7400 = vmatmul.mubr.f32.gmra.mxu0 %v7322
    %v7401 = vpop.f32.mrf.mxu0
    %v7402 = vadd.f32 %v7316, %v7401
    %v7403 = vpop.f32.mrf.mxu0
    %7404 = vmatprep.mubr.f32.mxu0 0.0
    %7405 = vmatmul.mubr.f32.gmra.mxu0 %v7325
    %v7406 = vpop.f32.mrf.mxu0
    %v7407 = vadd.f32 %v7316, %v7406
    %v7408 = vpop.f32.mrf.mxu0
    %7409 = vmatprep.mubr.f32.mxu0 0.0
    %7410 = vmatmul.mubr.f32.gmra.mxu0 %v7328
    %v7411 = vpop.f32.mrf.mxu0
    %v7412 = vadd.f32 %v7316, %v7411
    %v7413 = vpop.f32.mrf.mxu0
    %7414 = vdwg.mxu0
    %vm7415 = vcmask 785408
    %7416 = vst.msk [vmem:[%s123] sm:$0xff] %vm7415, %v7397
    %7417 = vst.msk [vmem:[%s123 + $0x8] sm:$0xff] %vm7415, %v7402
    %7418 = vst.msk [vmem:[%s123 + $0x10] sm:$0xff] %vm7415, %v7407
    %7419 = vst.msk [vmem:[%s123 + $0x18] sm:$0xff] %vm7415, %v7412
    // Predicated region
    $region470: #{slim_cc_auto_decoder_forward.2} parent=1 // pred_check
      _
    $region471: #{slim_cc_auto_decoder_forward.2} parent=1 // pred_check_branch
      %7421 = sbr.rel (0) target = $region473
    $region472: #{slim_cc_auto_decoder_forward.2} parent=1 // pred_region
      _
    $region473: #{slim_cc_auto_decoder_forward.2} parent=1 // pred_fallthru
      _
    // Predicated region
    $region474: #{slim_cc_auto_decoder_forward.2} parent=1 // pred_check
      _
    $region475: #{slim_cc_auto_decoder_forward.2} parent=1 // pred_check_branch
      %7423 = sbr.rel (0) target = $region477
    $region476: #{slim_cc_auto_decoder_forward.2} parent=1 // pred_region
      _
    $region477: #{slim_cc_auto_decoder_forward.2} parent=1 // pred_fallthru
      _
    %7424 = vsyncpa [#allocation3], 1
    %7425 = vsyncpa [#allocation5], 1
    %7426 = vsyncpa [#allocation8], 1
    %7427 = vsyncpa [#allocation11], 1
    %7428 = vsyncpa [#allocation14], 1
    %7429 = vsyncpa [#allocation17], 1
    %7430 = vsyncpa [#allocation20], 1
    %7431 = vsyncpa [#allocation23], 1
    %7432 = vsyncpa [#allocation26], 1
    %7433 = vsyncpa [#allocation29], 1
    %7434 = vsyncpa [#allocation32], 1
    %7435 = vsyncpa [#allocation35], 1
    %7436 = vsyncpa [#allocation38], 1
    %7437 = vsyncpa [#allocation41], 1
    %7438 = vsyncpa [#allocation44], 1
    %7439 = vsyncpa [#allocation47], 1
    %7440 = vsyncpa [#allocation50], 1
    %7441 = vsyncpa [#allocation53], 1
    %7442 = vsyncpa [#allocation56], 1
    %7443 = vsyncpa [#allocation59], 1
    %7444 = vsyncpa [#allocation62], 1
    %7445 = vsyncpa [#allocation65], 1
    %7446 = vsyncpa [#allocation68], 1
    %7447 = vsyncpa [#allocation71], 1
    %7448 = vsyncpa [#allocation74], 1
    %7449 = vsyncpa [#allocation77], 1
    %7450 = vsyncpa [#allocation80], 1
    %7451 = vsyncpa [#allocation83], 1
    %7452 = vsyncpa [#allocation86], 1

</llo_original>
